<compile_context>
chip_gen: v7x
topology: tpu7x:2x2x1
jax: 0.10.0
libtpu: 0.0.40
codegen_flags: <defaults>
</compile_context>

<pallas_src>
import functools

import jax
import jax.numpy as jnp
from jax.experimental import pallas as pl
from jax.experimental.pallas import tpu as pltpu


# ----------------------------------------------------------------------------
# Pallas kernels
# ----------------------------------------------------------------------------
def _conv_tap_kernel(x_ref, w_ref, b_ref, o_ref, acc_ref, *,
                     batch, ho, cout, pool_k, pool_out_h, pool_out_w):
    """One kernel-row tap of fused conv + bias + ReLU + stride-1 3x3 max-pool.

    Grid axis 0 runs over the KH kernel-row taps (reduction, "arbitrary").
      x_ref : (1, B*Ho, Wp*Cin)    bf16  input slab for this tap (rows pre-strided)
      w_ref : (1, Wp*Cin, Wo*Cout) bf16  lifted (block-sparse) weight for this tap
      b_ref : (1, Wo*Cout)         f32   bias tiled over Wo
      o_ref : (B*PH, PW*Cout)      f32   pooled output (lane-dense, 512 lanes)
      acc   : (B*Ho, Wo*Cout)      f32   conv accumulator (VMEM scratch)
    """
    t = pl.program_id(0)

    @pl.when(t == 0)
    def _init():
        acc_ref[...] = jnp.zeros_like(acc_ref)

    # bf16 x bf16 -> f32 accumulate on the MXU.
    acc_ref[...] += jnp.dot(x_ref[0], w_ref[0],
                            preferred_element_type=jnp.float32)

    @pl.when(t == pl.num_programs(0) - 1)
    def _epilogue():
        y = jnp.maximum(acc_ref[...] + b_ref[...], 0.0)       # bias + ReLU (f32)

        # MaxPool along W: lanes are (w, c)-flattened, stride-1 window of pool_k.
        m = y[:, 0:pool_out_w * cout]
        for dw in range(1, pool_k):
            m = jnp.maximum(m, y[:, dw * cout: dw * cout + pool_out_w * cout])

        # MaxPool along H: rows are (b, h)-flattened; pool within each batch.
        for b in range(batch):
            r = m[b * ho: b * ho + pool_out_h, :]
            for di in range(1, pool_k):
                r = jnp.maximum(r, m[b * ho + di: b * ho + di + pool_out_h, :])
            o_ref[b * pool_out_h:(b + 1) * pool_out_h, :] = r.astype(o_ref.dtype)


def _fc_fused_kernel(x_ref, w1_ref, b1_ref, w2_ref, b2_ref, o_ref):
    """Classifier: relu(x @ w1 + b1) @ w2 + b2, fully resident in VMEM."""
    h = jnp.dot(x_ref[...], w1_ref[...], preferred_element_type=jnp.float32)
    h = jnp.maximum(h + b1_ref[...], 0.0)                     # f32 epilogue
    h = h.astype(w2_ref.dtype)                                # bf16 for the MXU
    o = jnp.dot(h, w2_ref[...], preferred_element_type=jnp.float32)
    o_ref[...] = (o + b2_ref[...]).astype(o_ref.dtype)


# ----------------------------------------------------------------------------
# Pallas wrappers
# ----------------------------------------------------------------------------
def conv_relu_pool(x_nhwc, lifted_w, bias_tiled, *, kh, stride, padding, cout,
                   pool_k=3):
    """Conv2d(kh x kh, stride, padding) + bias + ReLU + MaxPool(pool_k, stride=1).

    One pallas_call per layer; the KH kernel-row taps are an in-kernel grid
    reduction.  Returns the pooled activation as NHWC (B, PH, PW, Cout) f32.
    """
    B, H, W, Cin = x_nhwc.shape
    Hp, Wp = H + 2 * padding, W + 2 * padding
    Ho = (Hp - kh) // stride + 1
    Wo = (Wp - kh) // stride + 1
    PH, PW = Ho - pool_k + 1, Wo - pool_k + 1

    M, K, N = B * Ho, Wp * Cin, Wo * cout
    assert lifted_w.shape == (kh, K, N), (lifted_w.shape, (kh, K, N))
    assert bias_tiled.shape == (1, N)

    xp = jnp.pad(x_nhwc, ((0, 0), (padding,) * 2, (padding,) * 2, (0, 0)))
    # Per kernel-row-tap slabs: rows i, i+s, ..., i+s*(Ho-1); the whole padded
    # W stays in the lane dim (the W taps live inside the lifted weight).
    slabs = jnp.stack(
        [xp[:, i:i + stride * (Ho - 1) + 1:stride, :, :].reshape(M, K)
         for i in range(kh)],
        axis=0).astype(jnp.bfloat16)                          # (KH, M, K)

    kernel = functools.partial(
        _conv_tap_kernel, batch=B, ho=Ho, cout=cout,
        pool_k=pool_k, pool_out_h=PH, pool_out_w=PW)

    out2d = pl.pallas_call(
        kernel,
        out_shape=jax.ShapeDtypeStruct((B * PH, PW * cout), jnp.float32),
        grid=(kh,),
        in_specs=[
            pl.BlockSpec((1, M, K), lambda t: (t, 0, 0)),     # slab for tap t
            pl.BlockSpec((1, K, N), lambda t: (t, 0, 0)),     # lifted weight t
            pl.BlockSpec((1, N), lambda t: (0, 0)),           # bias (resident)
        ],
        out_specs=pl.BlockSpec((B * PH, PW * cout), lambda t: (0, 0)),
        scratch_shapes=[pltpu.VMEM((M, N), jnp.float32)],
        compiler_params=pltpu.CompilerParams(
            dimension_semantics=("arbitrary",)),
    )(slabs, lifted_w, bias_tiled)

    return out2d.reshape(B, PH, PW, cout)


def classifier(x_flat_bf16, w1, b1, w2p, b2p):
    """Fused Linear(4096,256)+ReLU+Linear(256, Npad); Npad lanes are dense."""
    B = x_flat_bf16.shape[0]
    n_pad = w2p.shape[1]
    return pl.pallas_call(
        _fc_fused_kernel,
        out_shape=jax.ShapeDtypeStruct((B, n_pad), jnp.float32),
        in_specs=[pl.BlockSpec(memory_space=pltpu.MemorySpace.VMEM)] * 5,
        out_specs=pl.BlockSpec(memory_space=pltpu.MemorySpace.VMEM),
    )(x_flat_bf16, w1, b1, w2p, b2p)


def adaptive_avg_pool(x, out_h, out_w):
    """AdaptiveAvgPool2d (PyTorch index formula); pure replication fast path."""
    B, H, W, C = x.shape
    if out_h % H == 0 and out_w % W == 0:
        return jnp.repeat(jnp.repeat(x, out_h // H, axis=1), out_w // W, axis=2)
    rows = []
    for i in range(out_h):
        h0, h1 = (i * H) // out_h, -(-((i + 1) * H) // out_h)
        cols = []
        for j in range(out_w):
            w0, w1 = (j * W) // out_w, -(-((j + 1) * W) // out_w)
            cols.append(jnp.mean(x[:, h0:h1, w0:w1, :], axis=(1, 2)))
        rows.append(jnp.stack(cols, axis=1))
    return jnp.stack(rows, axis=1)


# ----------------------------------------------------------------------------
# Parameter init and one-time preprocessing
# ----------------------------------------------------------------------------
def init_params(key, number_of_classes=10):
    ks = jax.random.split(key, 10)

    def w_init(k, shape, fan_in):
        return jax.random.normal(k, shape, jnp.float32) / jnp.sqrt(fan_in)

    def b_init(k, shape):
        return 0.01 * jax.random.normal(k, shape, jnp.float32)

    return {
        # conv weights in HWIO layout
        "w1": w_init(ks[0], (5, 5, 3, 16), 5 * 5 * 3),
        "b1": b_init(ks[1], (16,)),
        "w2": w_init(ks[2], (3, 3, 16, 32), 3 * 3 * 16),
        "b2": b_init(ks[3], (32,)),
        "w3": w_init(ks[4], (3, 3, 32, 64), 3 * 3 * 32),
        "b3": b_init(ks[5], (64,)),
        # linear weights stored as (in_features, out_features)
        "fw1": w_init(ks[6], (8 * 8 * 64, 256), 8 * 8 * 64),
        "fb1": b_init(ks[7], (256,)),
        "fw2": w_init(ks[8], (256, number_of_classes), 256),
        "fb2": b_init(ks[9], (number_of_classes,)),
    }


def _lift_conv_weight(w_hwio, *, wp, stride, wo):
    """(KH,KW,Cin,Cout) -> (KH, Wp*Cin, Wo*Cout) block-sparse 'lifted' weight.

    lifted[i, win*Cin + c, w*Cout + o] = W[i, win - stride*w, c, o]
    (zero when win - stride*w is outside [0, KW)).  A row-slab (B*Ho, Wp*Cin)
    times this matrix performs, for kernel-row tap i, the whole W-direction of
    the convolution for every output column at once (one MXU GEMM per tap).
    """
    kh, kw, cin, cout = w_hwio.shape
    win = jnp.arange(wp)
    wout = jnp.arange(wo)
    j = win[:, None] - stride * wout[None, :]                 # (Wp, Wo)
    valid = (j >= 0) & (j < kw)
    jc = jnp.clip(j, 0, kw - 1)
    g = w_hwio[:, jc, :, :]                                   # (KH, Wp, Wo, Cin, Cout)
    g = g * valid[None, :, :, None, None].astype(w_hwio.dtype)
    g = jnp.transpose(g, (0, 1, 3, 2, 4))                     # (KH, Wp, Cin, Wo, Cout)
    return g.reshape(kh, wp * cin, wo * cout)


def prepare_params(params, *, input_hw=32):
    """One-time preprocessing into kernel-ready form (bf16 GEMM operands,
    lifted conv weights, Wo-tiled biases, lane-padded fc2)."""
    def lift(w_hwio, h_in, stride, padding):
        kh = w_hwio.shape[0]
        wp = h_in + 2 * padding
        wo = (wp - kh) // stride + 1
        return _lift_conv_weight(w_hwio, wp=wp, stride=stride, wo=wo), wo

    h = input_hw
    lw1, wo1 = lift(params["w1"], h, 1, 3)    # 32 -> 34 (conv) -> 32 (pool)
    h = wo1 - 2
    lw2, wo2 = lift(params["w2"], h, 2, 3)    # 32 -> 18 -> 16
    h = wo2 - 2
    lw3, wo3 = lift(params["w3"], h, 2, 3)    # 16 -> 10 -> 8 (-> 4 after ::2)

    nc = params["fb2"].shape[0]
    n_pad = ((nc + 127) // 128) * 128         # lane-dense fc2 output
    fw2p = jnp.pad(params["fw2"], ((0, 0), (0, n_pad - nc)))
    fb2p = jnp.pad(params["fb2"], ((0, n_pad - nc),))

    return {
        "lw1": lw1.astype(jnp.bfloat16),
        "bt1": jnp.tile(params["b1"], wo1)[None, :].astype(jnp.float32),
        "lw2": lw2.astype(jnp.bfloat16),
        "bt2": jnp.tile(params["b2"], wo2)[None, :].astype(jnp.float32),
        "lw3": lw3.astype(jnp.bfloat16),
        "bt3": jnp.tile(params["b3"], wo3)[None, :].astype(jnp.float32),
        "fw1": params["fw1"].astype(jnp.bfloat16),
        "fb1": params["fb1"][None, :].astype(jnp.float32),
        "fw2p": fw2p.astype(jnp.bfloat16),
        "fb2p": fb2p[None, :].astype(jnp.float32),
    }


# ----------------------------------------------------------------------------
# Model forward
# ----------------------------------------------------------------------------
def cnn_custom_forward(prepped, x_nchw, num_classes=10):
    # NCHW (PyTorch) -> NHWC for the TPU kernels.
    x = jnp.transpose(x_nchw, (0, 2, 3, 1)).astype(jnp.float32)

    # convolutional_features (conv + ReLU + 3x3 max-pool fused per stage)
    x = conv_relu_pool(x, prepped["lw1"], prepped["bt1"],
                       kh=5, stride=1, padding=3, cout=16)     # (B, 32, 32, 16)
    x = conv_relu_pool(x, prepped["lw2"], prepped["bt2"],
                       kh=3, stride=2, padding=3, cout=32)     # (B, 16, 16, 32)
    x = conv_relu_pool(x, prepped["lw3"], prepped["bt3"],
                       kh=3, stride=2, padding=3, cout=64)     # (B, 8, 8, 64)
    # MaxPool2d(3, stride=2) == fused stride-1 pool above + this subsample.
    x = x[:, ::2, ::2, :]                                      # (B, 4, 4, 64)

    # average_pooling (4x4 -> 8x8 is pure replication) + flatten in (C, H, W)
    x = adaptive_avg_pool(x, 8, 8)                             # (B, 8, 8, 64)
    x = jnp.transpose(x, (0, 3, 1, 2)).reshape(x.shape[0], 64 * 8 * 8)

    # classifiying_features: Dropout(0.1) is the identity at inference time.
    # TODO(synk): training-mode dropout masking (RNG) not implemented.
    logits = classifier(x.astype(jnp.bfloat16),
                        prepped["fw1"], prepped["fb1"],
                        prepped["fw2p"], prepped["fb2p"])
    return logits[:, :num_classes]


# ----------------------------------------------------------------------------
# Main
# ----------------------------------------------------------------------------
if __name__ == "__main__":
    key = jax.random.PRNGKey(0)
    pkey, xkey = jax.random.split(key)

    params = init_params(pkey, number_of_classes=10)
    prepped = prepare_params(params, input_hw=32)
    # Small CIFAR-like input consistent with the module: (B=2, C=3, H=W=32).
    x = jax.random.normal(xkey, (2, 3, 32, 32), jnp.float32)

    fwd = jax.jit(cnn_custom_forward)
    logits = fwd(prepped, x)
    logits = jax.block_until_ready(logits)

    assert logits.shape == (2, 10), logits.shape
    assert jnp.all(jnp.isfinite(logits))
    print("KERNEL_OK")
</pallas_src>

<mosaic_0001>
module attributes {stable_mosaic.version = 11 : i64} {
  func.func @_conv_tap_kernel(%arg0: i32, %arg1: memref<1x68x114xbf16, #tpu.memory_space<vmem>>, %arg2: memref<1x114x544xbf16, #tpu.memory_space<vmem>>, %arg3: memref<1x544xf32, #tpu.memory_space<vmem>>, %arg4: memref<64x512xf32, #tpu.memory_space<vmem>>, %arg5: memref<68x544xf32, #tpu.memory_space<vmem>>) attributes {dimension_semantics = [#tpu.dimension_semantics<arbitrary>], iteration_bounds = array<i64: 5>, scalar_prefetch = 0 : i64, scratch_operands = 1 : i64, tpu.core_type = #tpu.core_type<tc>, window_params = [{transform_indices = @transform_0, window_bounds = array<i64: 1, 68, 114>}, {transform_indices = @transform_1, window_bounds = array<i64: 1, 114, 544>}, {pipeline_mode = #tpu.pipeline_mode<synchronous>, transform_indices = @transform_2, window_bounds = array<i64: 1, 544>}, {pipeline_mode = #tpu.pipeline_mode<synchronous>, transform_indices = @transform_3, window_bounds = array<i64: 64, 512>}]} {
    %c0_i32 = arith.constant 0 : i32
    %0 = arith.cmpi eq, %arg0, %c0_i32 : i32
    %1 = arith.extui %0 : i1 to i32
    %c0_i32_0 = arith.constant 0 : i32
    %2 = arith.cmpi ne, %1, %c0_i32_0 : i32
    scf.if %2 {
      %cst_11 = arith.constant 0.000000e+00 : f32
      %14 = vector.broadcast %cst_11 : f32 to vector<68x544xf32>
      %c0_12 = arith.constant 0 : index
      %c0_13 = arith.constant 0 : index
      %15 = vector.load %arg5[%c0_12, %c0_13] : memref<68x544xf32, #tpu.memory_space<vmem>>, vector<68x544xf32>
      tpu.vector_store %arg5[%c0_12, %c0_13], %14 {strides = array<i32>} : memref<68x544xf32, #tpu.memory_space<vmem>>, vector<68x544xf32>,
    } else {
    }
    %c0 = arith.constant 0 : index
    %c0_1 = arith.constant 0 : index
    %3 = vector.load %arg5[%c0, %c0_1] : memref<68x544xf32, #tpu.memory_space<vmem>>, vector<68x544xf32>
    %c0_2 = arith.constant 0 : index
    %c0_3 = arith.constant 0 : index
    %c0_4 = arith.constant 0 : index
    %4 = vector.load %arg1[%c0_2, %c0_3, %c0_4] : memref<1x68x114xbf16, #tpu.memory_space<vmem>>, vector<1x68x114xbf16>
    %5 = vector.shape_cast %4 : vector<1x68x114xbf16> to vector<68x114xbf16>
    %c0_5 = arith.constant 0 : index
    %c0_6 = arith.constant 0 : index
    %c0_7 = arith.constant 0 : index
    %6 = vector.load %arg2[%c0_5, %c0_6, %c0_7] : memref<1x114x544xbf16, #tpu.memory_space<vmem>>, vector<1x114x544xbf16>
    %7 = vector.shape_cast %6 : vector<1x114x544xbf16> to vector<114x544xbf16>
    %cst = arith.constant dense<0.000000e+00> : vector<68x544xf32>
    %8 = tpu.matmul %5, %7, %cst {dimension_numbers = #tpu.dot_dimension_numbers<[1], [0], [0], [1], [0, 0, 1, 1], [], []>} : vector<68x114xbf16>, vector<114x544xbf16>, vector<68x544xf32> -> vector<68x544xf32>
    %9 = arith.addf %3, %8 : vector<68x544xf32>
    %c0_8 = arith.constant 0 : index
    %c0_9 = arith.constant 0 : index
    %10 = vector.load %arg5[%c0_8, %c0_9] : memref<68x544xf32, #tpu.memory_space<vmem>>, vector<68x544xf32>
    tpu.vector_store %arg5[%c0_8, %c0_9], %9 {strides = array<i32>} : memref<68x544xf32, #tpu.memory_space<vmem>>, vector<68x544xf32>,
    %c4_i32 = arith.constant 4 : i32
    %11 = arith.cmpi eq, %arg0, %c4_i32 : i32
    %12 = arith.extui %11 : i1 to i32
    %c0_i32_10 = arith.constant 0 : i32
    %13 = arith.cmpi ne, %12, %c0_i32_10 : i32
    scf.if %13 {
      %c0_11 = arith.constant 0 : index
      %c0_12 = arith.constant 0 : index
      %14 = vector.load %arg5[%c0_11, %c0_12] : memref<68x544xf32, #tpu.memory_space<vmem>>, vector<68x544xf32>
      %c0_13 = arith.constant 0 : index
      %c0_14 = arith.constant 0 : index
      %15 = vector.load %arg3[%c0_13, %c0_14] : memref<1x544xf32, #tpu.memory_space<vmem>>, vector<1x544xf32>
      %16 = vector.broadcast %15 : vector<1x544xf32> to vector<68x544xf32>
      %17 = arith.addf %14, %16 : vector<68x544xf32>
      %cst_15 = arith.constant 0.000000e+00 : f32
      %18 = vector.broadcast %cst_15 : f32 to vector<68x544xf32>
      %19 = arith.maximumf %17, %18 : vector<68x544xf32>
      %20 = vector.extract_strided_slice %19 {offsets = [0, 0], sizes = [68, 512], strides = [1, 1]} : vector<68x544xf32> to vector<68x512xf32>
      %21 = vector.extract_strided_slice %19 {offsets = [0, 16], sizes = [68, 512], strides = [1, 1]} : vector<68x544xf32> to vector<68x512xf32>
      %22 = arith.maximumf %20, %21 : vector<68x512xf32>
      %23 = vector.extract_strided_slice %19 {offsets = [0, 32], sizes = [68, 512], strides = [1, 1]} : vector<68x544xf32> to vector<68x512xf32>
      %24 = arith.maximumf %22, %23 : vector<68x512xf32>
      %25 = vector.extract_strided_slice %24 {offsets = [0, 0], sizes = [32, 512], strides = [1, 1]} : vector<68x512xf32> to vector<32x512xf32>
      %26 = vector.extract_strided_slice %24 {offsets = [1, 0], sizes = [32, 512], strides = [1, 1]} : vector<68x512xf32> to vector<32x512xf32>
      %27 = arith.maximumf %25, %26 : vector<32x512xf32>
      %28 = vector.extract_strided_slice %24 {offsets = [2, 0], sizes = [32, 512], strides = [1, 1]} : vector<68x512xf32> to vector<32x512xf32>
      %29 = arith.maximumf %27, %28 : vector<32x512xf32>
      %c0_16 = arith.constant 0 : index
      %c0_17 = arith.constant 0 : index
      %30 = vector.load %arg4[%c0_16, %c0_17] : memref<64x512xf32, #tpu.memory_space<vmem>>, vector<32x512xf32>
      tpu.vector_store %arg4[%c0_16, %c0_17], %29 {strides = array<i32>} : memref<64x512xf32, #tpu.memory_space<vmem>>, vector<32x512xf32>,
      %31 = vector.extract_strided_slice %24 {offsets = [34, 0], sizes = [32, 512], strides = [1, 1]} : vector<68x512xf32> to vector<32x512xf32>
      %32 = vector.extract_strided_slice %24 {offsets = [35, 0], sizes = [32, 512], strides = [1, 1]} : vector<68x512xf32> to vector<32x512xf32>
      %33 = arith.maximumf %31, %32 : vector<32x512xf32>
      %34 = vector.extract_strided_slice %24 {offsets = [36, 0], sizes = [32, 512], strides = [1, 1]} : vector<68x512xf32> to vector<32x512xf32>
      %35 = arith.maximumf %33, %34 : vector<32x512xf32>
      %c32 = arith.constant 32 : index
      %c0_18 = arith.constant 0 : index
      %36 = vector.load %arg4[%c32, %c0_18] : memref<64x512xf32, #tpu.memory_space<vmem>>, vector<32x512xf32>
      tpu.vector_store %arg4[%c32, %c0_18], %35 {strides = array<i32>} : memref<64x512xf32, #tpu.memory_space<vmem>>, vector<32x512xf32>,
    } else {
    }
    return
  }
  func.func @transform_0(%arg0: i32) -> (i32, i32, i32) {
    %c0_i32 = arith.constant 0 : i32
    %c0_i32_0 = arith.constant 0 : i32
    %c0_i32_1 = arith.constant 0 : i32
    return %arg0, %c0_i32, %c0_i32_0 : i32, i32, i32
  }
  func.func @transform_1(%arg0: i32) -> (i32, i32, i32) {
    %c0_i32 = arith.constant 0 : i32
    %c0_i32_0 = arith.constant 0 : i32
    %c0_i32_1 = arith.constant 0 : i32
    return %arg0, %c0_i32, %c0_i32_0 : i32, i32, i32
  }
  func.func @transform_2(%arg0: i32) -> (i32, i32) {
    %c0_i32 = arith.constant 0 : i32
    %c0_i32_0 = arith.constant 0 : i32
    %c0_i32_1 = arith.constant 0 : i32
    return %c0_i32, %c0_i32_0 : i32, i32
  }
  func.func @transform_3(%arg0: i32) -> (i32, i32) {
    %c0_i32 = arith.constant 0 : i32
    %c0_i32_0 = arith.constant 0 : i32
    %c0_i32_1 = arith.constant 0 : i32
    return %c0_i32, %c0_i32_0 : i32, i32
  }
}

module attributes {stable_mosaic.version = 11 : i64} {
  func.func @_conv_tap_kernel(%arg0: i32, %arg1: memref<1x36x608xbf16, #tpu.memory_space<vmem>>, %arg2: memref<1x608x576xbf16, #tpu.memory_space<vmem>>, %arg3: memref<1x576xf32, #tpu.memory_space<vmem>>, %arg4: memref<32x512xf32, #tpu.memory_space<vmem>>, %arg5: memref<36x576xf32, #tpu.memory_space<vmem>>) attributes {dimension_semantics = [#tpu.dimension_semantics<arbitrary>], iteration_bounds = array<i64: 3>, scalar_prefetch = 0 : i64, scratch_operands = 1 : i64, tpu.core_type = #tpu.core_type<tc>, window_params = [{transform_indices = @transform_0, window_bounds = array<i64: 1, 36, 608>}, {transform_indices = @transform_1, window_bounds = array<i64: 1, 608, 576>}, {pipeline_mode = #tpu.pipeline_mode<synchronous>, transform_indices = @transform_2, window_bounds = array<i64: 1, 576>}, {pipeline_mode = #tpu.pipeline_mode<synchronous>, transform_indices = @transform_3, window_bounds = array<i64: 32, 512>}]} {
    %c0_i32 = arith.constant 0 : i32
    %0 = arith.cmpi eq, %arg0, %c0_i32 : i32
    %1 = arith.extui %0 : i1 to i32
    %c0_i32_0 = arith.constant 0 : i32
    %2 = arith.cmpi ne, %1, %c0_i32_0 : i32
    scf.if %2 {
      %cst_11 = arith.constant 0.000000e+00 : f32
      %14 = vector.broadcast %cst_11 : f32 to vector<36x576xf32>
      %c0_12 = arith.constant 0 : index
      %c0_13 = arith.constant 0 : index
      %15 = vector.load %arg5[%c0_12, %c0_13] : memref<36x576xf32, #tpu.memory_space<vmem>>, vector<36x576xf32>
      tpu.vector_store %arg5[%c0_12, %c0_13], %14 {strides = array<i32>} : memref<36x576xf32, #tpu.memory_space<vmem>>, vector<36x576xf32>,
    } else {
    }
    %c0 = arith.constant 0 : index
    %c0_1 = arith.constant 0 : index
    %3 = vector.load %arg5[%c0, %c0_1] : memref<36x576xf32, #tpu.memory_space<vmem>>, vector<36x576xf32>
    %c0_2 = arith.constant 0 : index
    %c0_3 = arith.constant 0 : index
    %c0_4 = arith.constant 0 : index
    %4 = vector.load %arg1[%c0_2, %c0_3, %c0_4] : memref<1x36x608xbf16, #tpu.memory_space<vmem>>, vector<1x36x608xbf16>
    %5 = vector.shape_cast %4 : vector<1x36x608xbf16> to vector<36x608xbf16>
    %c0_5 = arith.constant 0 : index
    %c0_6 = arith.constant 0 : index
    %c0_7 = arith.constant 0 : index
    %6 = vector.load %arg2[%c0_5, %c0_6, %c0_7] : memref<1x608x576xbf16, #tpu.memory_space<vmem>>, vector<1x608x576xbf16>
    %7 = vector.shape_cast %6 : vector<1x608x576xbf16> to vector<608x576xbf16>
    %cst = arith.constant dense<0.000000e+00> : vector<36x576xf32>
    %8 = tpu.matmul %5, %7, %cst {dimension_numbers = #tpu.dot_dimension_numbers<[1], [0], [0], [1], [0, 0, 1, 1], [], []>} : vector<36x608xbf16>, vector<608x576xbf16>, vector<36x576xf32> -> vector<36x576xf32>
    %9 = arith.addf %3, %8 : vector<36x576xf32>
    %c0_8 = arith.constant 0 : index
    %c0_9 = arith.constant 0 : index
    %10 = vector.load %arg5[%c0_8, %c0_9] : memref<36x576xf32, #tpu.memory_space<vmem>>, vector<36x576xf32>
    tpu.vector_store %arg5[%c0_8, %c0_9], %9 {strides = array<i32>} : memref<36x576xf32, #tpu.memory_space<vmem>>, vector<36x576xf32>,
    %c2_i32 = arith.constant 2 : i32
    %11 = arith.cmpi eq, %arg0, %c2_i32 : i32
    %12 = arith.extui %11 : i1 to i32
    %c0_i32_10 = arith.constant 0 : i32
    %13 = arith.cmpi ne, %12, %c0_i32_10 : i32
    scf.if %13 {
      %c0_11 = arith.constant 0 : index
      %c0_12 = arith.constant 0 : index
      %14 = vector.load %arg5[%c0_11, %c0_12] : memref<36x576xf32, #tpu.memory_space<vmem>>, vector<36x576xf32>
      %c0_13 = arith.constant 0 : index
      %c0_14 = arith.constant 0 : index
      %15 = vector.load %arg3[%c0_13, %c0_14] : memref<1x576xf32, #tpu.memory_space<vmem>>, vector<1x576xf32>
      %16 = vector.broadcast %15 : vector<1x576xf32> to vector<36x576xf32>
      %17 = arith.addf %14, %16 : vector<36x576xf32>
      %cst_15 = arith.constant 0.000000e+00 : f32
      %18 = vector.broadcast %cst_15 : f32 to vector<36x576xf32>
      %19 = arith.maximumf %17, %18 : vector<36x576xf32>
      %20 = vector.extract_strided_slice %19 {offsets = [0, 0], sizes = [36, 512], strides = [1, 1]} : vector<36x576xf32> to vector<36x512xf32>
      %21 = vector.extract_strided_slice %19 {offsets = [0, 32], sizes = [36, 512], strides = [1, 1]} : vector<36x576xf32> to vector<36x512xf32>
      %22 = arith.maximumf %20, %21 : vector<36x512xf32>
      %23 = vector.extract_strided_slice %19 {offsets = [0, 64], sizes = [36, 512], strides = [1, 1]} : vector<36x576xf32> to vector<36x512xf32>
      %24 = arith.maximumf %22, %23 : vector<36x512xf32>
      %25 = vector.extract_strided_slice %24 {offsets = [0, 0], sizes = [16, 512], strides = [1, 1]} : vector<36x512xf32> to vector<16x512xf32>
      %26 = vector.extract_strided_slice %24 {offsets = [1, 0], sizes = [16, 512], strides = [1, 1]} : vector<36x512xf32> to vector<16x512xf32>
      %27 = arith.maximumf %25, %26 : vector<16x512xf32>
      %28 = vector.extract_strided_slice %24 {offsets = [2, 0], sizes = [16, 512], strides = [1, 1]} : vector<36x512xf32> to vector<16x512xf32>
      %29 = arith.maximumf %27, %28 : vector<16x512xf32>
      %c0_16 = arith.constant 0 : index
      %c0_17 = arith.constant 0 : index
      %30 = vector.load %arg4[%c0_16, %c0_17] : memref<32x512xf32, #tpu.memory_space<vmem>>, vector<16x512xf32>
      tpu.vector_store %arg4[%c0_16, %c0_17], %29 {strides = array<i32>} : memref<32x512xf32, #tpu.memory_space<vmem>>, vector<16x512xf32>,
      %31 = vector.extract_strided_slice %24 {offsets = [18, 0], sizes = [16, 512], strides = [1, 1]} : vector<36x512xf32> to vector<16x512xf32>
      %32 = vector.extract_strided_slice %24 {offsets = [19, 0], sizes = [16, 512], strides = [1, 1]} : vector<36x512xf32> to vector<16x512xf32>
      %33 = arith.maximumf %31, %32 : vector<16x512xf32>
      %34 = vector.extract_strided_slice %24 {offsets = [20, 0], sizes = [16, 512], strides = [1, 1]} : vector<36x512xf32> to vector<16x512xf32>
      %35 = arith.maximumf %33, %34 : vector<16x512xf32>
      %c16 = arith.constant 16 : index
      %c0_18 = arith.constant 0 : index
      %36 = vector.load %arg4[%c16, %c0_18] : memref<32x512xf32, #tpu.memory_space<vmem>>, vector<16x512xf32>
      tpu.vector_store %arg4[%c16, %c0_18], %35 {strides = array<i32>} : memref<32x512xf32, #tpu.memory_space<vmem>>, vector<16x512xf32>,
    } else {
    }
    return
  }
  func.func @transform_0(%arg0: i32) -> (i32, i32, i32) {
    %c0_i32 = arith.constant 0 : i32
    %c0_i32_0 = arith.constant 0 : i32
    %c0_i32_1 = arith.constant 0 : i32
    return %arg0, %c0_i32, %c0_i32_0 : i32, i32, i32
  }
  func.func @transform_1(%arg0: i32) -> (i32, i32, i32) {
    %c0_i32 = arith.constant 0 : i32
    %c0_i32_0 = arith.constant 0 : i32
    %c0_i32_1 = arith.constant 0 : i32
    return %arg0, %c0_i32, %c0_i32_0 : i32, i32, i32
  }
  func.func @transform_2(%arg0: i32) -> (i32, i32) {
    %c0_i32 = arith.constant 0 : i32
    %c0_i32_0 = arith.constant 0 : i32
    %c0_i32_1 = arith.constant 0 : i32
    return %c0_i32, %c0_i32_0 : i32, i32
  }
  func.func @transform_3(%arg0: i32) -> (i32, i32) {
    %c0_i32 = arith.constant 0 : i32
    %c0_i32_0 = arith.constant 0 : i32
    %c0_i32_1 = arith.constant 0 : i32
    return %c0_i32, %c0_i32_0 : i32, i32
  }
}

module attributes {stable_mosaic.version = 11 : i64} {
  func.func @_conv_tap_kernel(%arg0: i32, %arg1: memref<1x20x704xbf16, #tpu.memory_space<vmem>>, %arg2: memref<1x704x640xbf16, #tpu.memory_space<vmem>>, %arg3: memref<1x640xf32, #tpu.memory_space<vmem>>, %arg4: memref<16x512xf32, #tpu.memory_space<vmem>>, %arg5: memref<20x640xf32, #tpu.memory_space<vmem>>) attributes {dimension_semantics = [#tpu.dimension_semantics<arbitrary>], iteration_bounds = array<i64: 3>, scalar_prefetch = 0 : i64, scratch_operands = 1 : i64, tpu.core_type = #tpu.core_type<tc>, window_params = [{transform_indices = @transform_0, window_bounds = array<i64: 1, 20, 704>}, {transform_indices = @transform_1, window_bounds = array<i64: 1, 704, 640>}, {pipeline_mode = #tpu.pipeline_mode<synchronous>, transform_indices = @transform_2, window_bounds = array<i64: 1, 640>}, {pipeline_mode = #tpu.pipeline_mode<synchronous>, transform_indices = @transform_3, window_bounds = array<i64: 16, 512>}]} {
    %c0_i32 = arith.constant 0 : i32
    %0 = arith.cmpi eq, %arg0, %c0_i32 : i32
    %1 = arith.extui %0 : i1 to i32
    %c0_i32_0 = arith.constant 0 : i32
    %2 = arith.cmpi ne, %1, %c0_i32_0 : i32
    scf.if %2 {
      %cst_11 = arith.constant 0.000000e+00 : f32
      %14 = vector.broadcast %cst_11 : f32 to vector<20x640xf32>
      %c0_12 = arith.constant 0 : index
      %c0_13 = arith.constant 0 : index
      %15 = vector.load %arg5[%c0_12, %c0_13] : memref<20x640xf32, #tpu.memory_space<vmem>>, vector<20x640xf32>
      tpu.vector_store %arg5[%c0_12, %c0_13], %14 {strides = array<i32>} : memref<20x640xf32, #tpu.memory_space<vmem>>, vector<20x640xf32>,
    } else {
    }
    %c0 = arith.constant 0 : index
    %c0_1 = arith.constant 0 : index
    %3 = vector.load %arg5[%c0, %c0_1] : memref<20x640xf32, #tpu.memory_space<vmem>>, vector<20x640xf32>
    %c0_2 = arith.constant 0 : index
    %c0_3 = arith.constant 0 : index
    %c0_4 = arith.constant 0 : index
    %4 = vector.load %arg1[%c0_2, %c0_3, %c0_4] : memref<1x20x704xbf16, #tpu.memory_space<vmem>>, vector<1x20x704xbf16>
    %5 = vector.shape_cast %4 : vector<1x20x704xbf16> to vector<20x704xbf16>
    %c0_5 = arith.constant 0 : index
    %c0_6 = arith.constant 0 : index
    %c0_7 = arith.constant 0 : index
    %6 = vector.load %arg2[%c0_5, %c0_6, %c0_7] : memref<1x704x640xbf16, #tpu.memory_space<vmem>>, vector<1x704x640xbf16>
    %7 = vector.shape_cast %6 : vector<1x704x640xbf16> to vector<704x640xbf16>
    %cst = arith.constant dense<0.000000e+00> : vector<20x640xf32>
    %8 = tpu.matmul %5, %7, %cst {dimension_numbers = #tpu.dot_dimension_numbers<[1], [0], [0], [1], [0, 0, 1, 1], [], []>} : vector<20x704xbf16>, vector<704x640xbf16>, vector<20x640xf32> -> vector<20x640xf32>
    %9 = arith.addf %3, %8 : vector<20x640xf32>
    %c0_8 = arith.constant 0 : index
    %c0_9 = arith.constant 0 : index
    %10 = vector.load %arg5[%c0_8, %c0_9] : memref<20x640xf32, #tpu.memory_space<vmem>>, vector<20x640xf32>
    tpu.vector_store %arg5[%c0_8, %c0_9], %9 {strides = array<i32>} : memref<20x640xf32, #tpu.memory_space<vmem>>, vector<20x640xf32>,
    %c2_i32 = arith.constant 2 : i32
    %11 = arith.cmpi eq, %arg0, %c2_i32 : i32
    %12 = arith.extui %11 : i1 to i32
    %c0_i32_10 = arith.constant 0 : i32
    %13 = arith.cmpi ne, %12, %c0_i32_10 : i32
    scf.if %13 {
      %c0_11 = arith.constant 0 : index
      %c0_12 = arith.constant 0 : index
      %14 = vector.load %arg5[%c0_11, %c0_12] : memref<20x640xf32, #tpu.memory_space<vmem>>, vector<20x640xf32>
      %c0_13 = arith.constant 0 : index
      %c0_14 = arith.constant 0 : index
      %15 = vector.load %arg3[%c0_13, %c0_14] : memref<1x640xf32, #tpu.memory_space<vmem>>, vector<1x640xf32>
      %16 = vector.broadcast %15 : vector<1x640xf32> to vector<20x640xf32>
      %17 = arith.addf %14, %16 : vector<20x640xf32>
      %cst_15 = arith.constant 0.000000e+00 : f32
      %18 = vector.broadcast %cst_15 : f32 to vector<20x640xf32>
      %19 = arith.maximumf %17, %18 : vector<20x640xf32>
      %20 = vector.extract_strided_slice %19 {offsets = [0, 0], sizes = [20, 512], strides = [1, 1]} : vector<20x640xf32> to vector<20x512xf32>
      %21 = vector.extract_strided_slice %19 {offsets = [0, 64], sizes = [20, 512], strides = [1, 1]} : vector<20x640xf32> to vector<20x512xf32>
      %22 = arith.maximumf %20, %21 : vector<20x512xf32>
      %23 = vector.extract_strided_slice %19 {offsets = [0, 128], sizes = [20, 512], strides = [1, 1]} : vector<20x640xf32> to vector<20x512xf32>
      %24 = arith.maximumf %22, %23 : vector<20x512xf32>
      %25 = vector.extract_strided_slice %24 {offsets = [0, 0], sizes = [8, 512], strides = [1, 1]} : vector<20x512xf32> to vector<8x512xf32>
      %26 = vector.extract_strided_slice %24 {offsets = [1, 0], sizes = [8, 512], strides = [1, 1]} : vector<20x512xf32> to vector<8x512xf32>
      %27 = arith.maximumf %25, %26 : vector<8x512xf32>
      %28 = vector.extract_strided_slice %24 {offsets = [2, 0], sizes = [8, 512], strides = [1, 1]} : vector<20x512xf32> to vector<8x512xf32>
      %29 = arith.maximumf %27, %28 : vector<8x512xf32>
      %c0_16 = arith.constant 0 : index
      %c0_17 = arith.constant 0 : index
      %30 = vector.load %arg4[%c0_16, %c0_17] : memref<16x512xf32, #tpu.memory_space<vmem>>, vector<8x512xf32>
      tpu.vector_store %arg4[%c0_16, %c0_17], %29 {strides = array<i32>} : memref<16x512xf32, #tpu.memory_space<vmem>>, vector<8x512xf32>,
      %31 = vector.extract_strided_slice %24 {offsets = [10, 0], sizes = [8, 512], strides = [1, 1]} : vector<20x512xf32> to vector<8x512xf32>
      %32 = vector.extract_strided_slice %24 {offsets = [11, 0], sizes = [8, 512], strides = [1, 1]} : vector<20x512xf32> to vector<8x512xf32>
      %33 = arith.maximumf %31, %32 : vector<8x512xf32>
      %34 = vector.extract_strided_slice %24 {offsets = [12, 0], sizes = [8, 512], strides = [1, 1]} : vector<20x512xf32> to vector<8x512xf32>
      %35 = arith.maximumf %33, %34 : vector<8x512xf32>
      %c8 = arith.constant 8 : index
      %c0_18 = arith.constant 0 : index
      %36 = vector.load %arg4[%c8, %c0_18] : memref<16x512xf32, #tpu.memory_space<vmem>>, vector<8x512xf32>
      tpu.vector_store %arg4[%c8, %c0_18], %35 {strides = array<i32>} : memref<16x512xf32, #tpu.memory_space<vmem>>, vector<8x512xf32>,
    } else {
    }
    return
  }
  func.func @transform_0(%arg0: i32) -> (i32, i32, i32) {
    %c0_i32 = arith.constant 0 : i32
    %c0_i32_0 = arith.constant 0 : i32
    %c0_i32_1 = arith.constant 0 : i32
    return %arg0, %c0_i32, %c0_i32_0 : i32, i32, i32
  }
  func.func @transform_1(%arg0: i32) -> (i32, i32, i32) {
    %c0_i32 = arith.constant 0 : i32
    %c0_i32_0 = arith.constant 0 : i32
    %c0_i32_1 = arith.constant 0 : i32
    return %arg0, %c0_i32, %c0_i32_0 : i32, i32, i32
  }
  func.func @transform_2(%arg0: i32) -> (i32, i32) {
    %c0_i32 = arith.constant 0 : i32
    %c0_i32_0 = arith.constant 0 : i32
    %c0_i32_1 = arith.constant 0 : i32
    return %c0_i32, %c0_i32_0 : i32, i32
  }
  func.func @transform_3(%arg0: i32) -> (i32, i32) {
    %c0_i32 = arith.constant 0 : i32
    %c0_i32_0 = arith.constant 0 : i32
    %c0_i32_1 = arith.constant 0 : i32
    return %c0_i32, %c0_i32_0 : i32, i32
  }
}

module attributes {stable_mosaic.version = 11 : i64} {
  func.func @_fc_fused_kernel(%arg0: memref<2x4096xbf16, #tpu.memory_space<vmem>>, %arg1: memref<4096x256xbf16, #tpu.memory_space<vmem>>, %arg2: memref<1x256xf32, #tpu.memory_space<vmem>>, %arg3: memref<256x128xbf16, #tpu.memory_space<vmem>>, %arg4: memref<1x128xf32, #tpu.memory_space<vmem>>, %arg5: memref<2x128xf32, #tpu.memory_space<vmem>>) attributes {dimension_semantics = [], scalar_prefetch = 0 : i64, scratch_operands = 0 : i64, tpu.core_type = #tpu.core_type<tc>} {
    %c0 = arith.constant 0 : index
    %c0_0 = arith.constant 0 : index
    %0 = vector.load %arg0[%c0, %c0_0] : memref<2x4096xbf16, #tpu.memory_space<vmem>>, vector<2x4096xbf16>
    %c0_1 = arith.constant 0 : index
    %c0_2 = arith.constant 0 : index
    %1 = vector.load %arg1[%c0_1, %c0_2] : memref<4096x256xbf16, #tpu.memory_space<vmem>>, vector<4096x256xbf16>
    %cst = arith.constant dense<0.000000e+00> : vector<2x256xf32>
    %2 = tpu.matmul %0, %1, %cst {dimension_numbers = #tpu.dot_dimension_numbers<[1], [0], [0], [1], [0, 0, 1, 1], [], []>} : vector<2x4096xbf16>, vector<4096x256xbf16>, vector<2x256xf32> -> vector<2x256xf32>
    %c0_3 = arith.constant 0 : index
    %c0_4 = arith.constant 0 : index
    %3 = vector.load %arg2[%c0_3, %c0_4] : memref<1x256xf32, #tpu.memory_space<vmem>>, vector<1x256xf32>
    %4 = vector.broadcast %3 : vector<1x256xf32> to vector<2x256xf32>
    %5 = arith.addf %2, %4 : vector<2x256xf32>
    %cst_5 = arith.constant 0.000000e+00 : f32
    %6 = vector.broadcast %cst_5 : f32 to vector<2x256xf32>
    %7 = arith.maximumf %5, %6 : vector<2x256xf32>
    %8 = arith.truncf %7 : vector<2x256xf32> to vector<2x256xbf16>
    %c0_6 = arith.constant 0 : index
    %c0_7 = arith.constant 0 : index
    %9 = vector.load %arg3[%c0_6, %c0_7] : memref<256x128xbf16, #tpu.memory_space<vmem>>, vector<256x128xbf16>
    %cst_8 = arith.constant dense<0.000000e+00> : vector<2x128xf32>
    %10 = tpu.matmul %8, %9, %cst_8 {dimension_numbers = #tpu.dot_dimension_numbers<[1], [0], [0], [1], [0, 0, 1, 1], [], []>} : vector<2x256xbf16>, vector<256x128xbf16>, vector<2x128xf32> -> vector<2x128xf32>
    %c0_9 = arith.constant 0 : index
    %c0_10 = arith.constant 0 : index
    %11 = vector.load %arg4[%c0_9, %c0_10] : memref<1x128xf32, #tpu.memory_space<vmem>>, vector<1x128xf32>
    %12 = vector.broadcast %11 : vector<1x128xf32> to vector<2x128xf32>
    %13 = arith.addf %10, %12 : vector<2x128xf32>
    %c0_11 = arith.constant 0 : index
    %c0_12 = arith.constant 0 : index
    %14 = vector.load %arg5[%c0_11, %c0_12] : memref<2x128xf32, #tpu.memory_space<vmem>>, vector<2x128xf32>
    tpu.vector_store %arg5[%c0_11, %c0_12], %13 {strides = array<i32>} : memref<2x128xf32, #tpu.memory_space<vmem>>, vector<2x128xf32>,
    return
  }
}

</mosaic_0001>

<llo_original>
// kernel: cnn_custom_forward.4
$region0: #{cnn_custom_forward.4}
  #allocation0 [shape = 'u32[]', space=smem, size = 0x4, offset = 0x4, fixed_abs, tag = 'smem constant byte address 0x4 - core index']
  #allocation1 [shape = 'u32[144,128]{1,0:T(1,128)}', space=vmem, size = 0x12000, scoped, tag = 'internal scratch']
  #allocation2 [shape = 'f32[68,544]{1,0:T(8,128)}', space=vmem, size = 0x2d000, scoped, tag = 'scratch operand']
  %s0 = inlined_call_operand.vmem [shape: bf16[5,68,114], index: 0, kind: input, shape index: {}]
  %s1 = inlined_call_operand.vmem [shape: bf16[5,114,544], index: 1, kind: input, shape index: {}]
  %s2 = inlined_call_operand.vmem [shape: f32[1,544], index: 2, kind: input, shape index: {}]
  %s3 = inlined_call_operand.vmem [shape: f32[64,512], index: 3, kind: output, shape index: {}]
  %s4 = sld [smem:[#allocation0]]
  $region53: #{cnn_custom_forward.4} parent=0
    _
  %s6 = ssub.s32 1, %s4
  %s7 = scalar_select 0, %s6, %s4
  loop: start=0, step=1, limit=7
  $region2: #{cnn_custom_forward.4} parent=0 // loop_pre_header
    _
  $region3: #{cnn_custom_forward.4} parent=0 // loop_header
    %s9 = sphi 0, %s13
    %p10 = scmp.ge.s32.totalorder %s9, 7
    %s19 = sphi 0, %s21
    %s22 = sphi 0, %s19
    %s23 = sphi 0, %s22
    %s39 = sphi 0, %s23
    %s45 = sphi 0, %s47
    %s48 = sphi 0, %s45
    %s49 = sphi 0, %s48
    %s65 = sphi 0, %s49
    %s69 = sphi 0, %s69
    %s71 = sphi 0, %s69
    %s72 = sphi 0, %s71
    %s86 = sphi 0, %s72
    %s90 = sphi 0, %s90
    %s92 = sphi 0, %s90
    %s93 = sphi 0, %s92
    %s107 = sphi 0, %s93
  $region4: #{cnn_custom_forward.4} parent=0 // loop_header_branch
    %12 = sbr.rel (%p10) target = $region8
  $region5: #{cnn_custom_forward.4} parent=0 // loop_body
    %s14 = ssub.s32 %s9, 1
    %s15 = ssub.s32 %s9, 2
    %s16 = sadd.s32 %s9, 1
    %s17 = ssub.s32 %s9, %s16
    %p18 = scmp.eq.s32.totalorder %s17, 0
    %s20 = sadd.s32 %s19, 1
    %s21 = scalar_select %p18, %s19, %s20
    %p24 = pneg %p18
    %p25 = scmp.eq.s32.totalorder %s9, 4
    %p26 = por %p24, %p25
    %p27 = scmp.ne.s32.totalorder %s19, %s22
    %p28 = scmp.eq.s32.totalorder %s9, 0
    %p29 = por %p27, %p28
    %p30 = scmp.ne.s32.totalorder %s19, %s22
    %p31 = scmp.eq.s32.totalorder %s14, 4
    %p32 = por %p30, %p31
    %p33 = scmp.ne.s32.totalorder %s22, %s23
    %p34 = scmp.eq.s32.totalorder %s14, 0
    %p35 = por %p33, %p34
    %p36 = scmp.ne.s32.totalorder %s22, %s23
    %p37 = scmp.eq.s32.totalorder %s15, 4
    %p38 = por %p36, %p37
    %p40 = scmp.ne.s32.totalorder %s23, %s39
    %p41 = scmp.eq.s32.totalorder %s15, 0
    %p42 = por %p40, %p41
    %s43 = ssub.s32 %s9, %s16
    %p44 = scmp.eq.s32.totalorder %s43, 0
    %s46 = sadd.s32 %s45, 1
    %s47 = scalar_select %p44, %s45, %s46
    %p50 = pneg %p44
    %p51 = scmp.eq.s32.totalorder %s9, 4
    %p52 = por %p50, %p51
    %p53 = scmp.ne.s32.totalorder %s45, %s48
    %p54 = scmp.eq.s32.totalorder %s9, 0
    %p55 = por %p53, %p54
    %p56 = scmp.ne.s32.totalorder %s45, %s48
    %p57 = scmp.eq.s32.totalorder %s14, 4
    %p58 = por %p56, %p57
    %p59 = scmp.ne.s32.totalorder %s48, %s49
    %p60 = scmp.eq.s32.totalorder %s14, 0
    %p61 = por %p59, %p60
    %p62 = scmp.ne.s32.totalorder %s48, %s49
    %p63 = scmp.eq.s32.totalorder %s15, 4
    %p64 = por %p62, %p63
    %p66 = scmp.ne.s32.totalorder %s49, %s65
    %p67 = scmp.eq.s32.totalorder %s15, 0
    %p68 = por %p66, %p67
    %s70 = sadd.s32 %s69, 1
    %p73 = scmp.eq.s32.totalorder %s9, 4
    %p74 = scmp.ne.s32.totalorder %s69, %s71
    %p75 = scmp.eq.s32.totalorder %s9, 0
    %p76 = por %p74, %p75
    %p77 = scmp.ne.s32.totalorder %s69, %s71
    %p78 = scmp.eq.s32.totalorder %s14, 4
    %p79 = por %p77, %p78
    %p80 = scmp.ne.s32.totalorder %s71, %s72
    %p81 = scmp.eq.s32.totalorder %s14, 0
    %p82 = por %p80, %p81
    %p83 = scmp.ne.s32.totalorder %s71, %s72
    %p84 = scmp.eq.s32.totalorder %s15, 4
    %p85 = por %p83, %p84
    %p87 = scmp.ne.s32.totalorder %s72, %s86
    %p88 = scmp.eq.s32.totalorder %s15, 0
    %p89 = por %p87, %p88
    %s91 = sadd.s32 %s90, 1
    %p94 = scmp.eq.s32.totalorder %s9, 4
    %p95 = scmp.ne.s32.totalorder %s90, %s92
    %p96 = scmp.eq.s32.totalorder %s9, 0
    %p97 = por %p95, %p96
    %p98 = scmp.ne.s32.totalorder %s90, %s92
    %p99 = scmp.eq.s32.totalorder %s14, 4
    %p100 = por %p98, %p99
    %p101 = scmp.ne.s32.totalorder %s92, %s93
    %p102 = scmp.eq.s32.totalorder %s14, 0
    %p103 = por %p101, %p102
    %p104 = scmp.ne.s32.totalorder %s92, %s93
    %p105 = scmp.eq.s32.totalorder %s15, 4
    %p106 = por %p104, %p105
    %p108 = scmp.ne.s32.totalorder %s93, %s107
    %p109 = scmp.eq.s32.totalorder %s15, 0
    %p110 = por %p108, %p109
    %p111 = scmp.le.s32.totalorder 1, %s9
    %p112 = scmp.lt.s32.totalorder %s9, 6
    %p113 = pnand %p111, %p112
    %p114 = pneg %p113
    // Predicated region
    $region9: #{cnn_custom_forward.4} parent=5 // pred_check
      _
    $region10: #{cnn_custom_forward.4} parent=5 // pred_check_branch
      %116 = sbr.rel (%p113) target = $region12
    $region11: #{cnn_custom_forward.4} parent=5 // pred_region
      %s117 = ssub.s32 %s9, 1
      // Predicated region
      $region13: #{cnn_custom_forward.4} parent=11 // pred_check
        %p118 = pneg %p82
      $region14: #{cnn_custom_forward.4} parent=11 // pred_check_branch
        %120 = sbr.rel (%p118) target = $region16
      $region15: #{cnn_custom_forward.4} parent=11 // pred_region
        _
      $region16: #{cnn_custom_forward.4} parent=11 // pred_fallthru
        _
    $region12: #{cnn_custom_forward.4} parent=5 // pred_fallthru
      _
    %p121 = scmp.lt.s32.totalorder %s9, 5
    // Predicated region
    $region17: #{cnn_custom_forward.4} parent=5 // pred_check
      %p122 = pneg %p121
    $region18: #{cnn_custom_forward.4} parent=5 // pred_check_branch
      %124 = sbr.rel (%p122) target = $region20
    $region19: #{cnn_custom_forward.4} parent=5 // pred_region
      // Predicated region
      $region21: #{cnn_custom_forward.4} parent=19 // pred_check
        %p125 = pneg %p29
      $region22: #{cnn_custom_forward.4} parent=19 // pred_check_branch
        %127 = sbr.rel (%p125) target = $region24
      $region23: #{cnn_custom_forward.4} parent=19 // pred_region
        %p128 = scmp.lt.s32.totalorder %s9, 4
        %s129 = scalar_select %p128, %s9, 4
        %s130 = smul.addr %s129, 9
        %s131 = smul.addr %s130, 4
        %s132 = scalar_lea.vmem %s0, %s131
      $region24: #{cnn_custom_forward.4} parent=19 // pred_fallthru
        _
      // Predicated region
      $region25: #{cnn_custom_forward.4} parent=19 // pred_check
        %p133 = pneg %p55
      $region26: #{cnn_custom_forward.4} parent=19 // pred_check_branch
        %135 = sbr.rel (%p133) target = $region28
      $region27: #{cnn_custom_forward.4} parent=19 // pred_region
        %p136 = scmp.lt.s32.totalorder %s9, 4
        %s137 = scalar_select %p136, %s9, 4
        %s138 = smul.addr %s137, 75
        %s139 = smul.addr %s138, 4
        %s140 = scalar_lea.vmem %s1, %s139
      $region28: #{cnn_custom_forward.4} parent=19 // pred_fallthru
        _
    $region20: #{cnn_custom_forward.4} parent=5 // pred_fallthru
      _
    %p141 = scmp.le.s32.totalorder 1, %s9
    %p142 = scmp.lt.s32.totalorder %s9, 6
    %p143 = pnand %p141, %p142
    %p144 = pneg %p143
    // Predicated region
    $region29: #{cnn_custom_forward.4} parent=5 // pred_check
      _
    $region30: #{cnn_custom_forward.4} parent=5 // pred_check_branch
      %146 = sbr.rel (%p143) target = $region32
    $region31: #{cnn_custom_forward.4} parent=5 // pred_region
      %s147 = ssub.s32 %s9, 1
      %p148 = scmp.lt.s32.totalorder %s14, 4
      %s149 = scalar_select %p148, %s14, 4
      %s150 = smul.addr %s149, 9
      %s151 = smul.addr %s150, 4
      %s152 = scalar_lea.vmem %s0, %s151
      %p153 = pneg %p35
      %p154 = pneg %p32
      %p155 = scmp.lt.s32.totalorder %s14, 4
      %s156 = scalar_select %p155, %s14, 4
      %s157 = smul.addr %s156, 75
      %s158 = smul.addr %s157, 4
      %s159 = scalar_lea.vmem %s1, %s158
      %p160 = pneg %p61
      %p161 = pneg %p58
      %p162 = pneg %p82
      %p163 = pneg %p79
      %p164 = pneg %p103
      %p165 = pneg %p100
      %p166 = scmp.lt.s32.totalorder %s14, 4
      %s167 = scalar_select %p166, %s14, 4
      %s168 = smul.addr %s167, 9
      %s169 = smul.addr %s168, 4
      %s170 = scalar_lea.vmem %s0, %s169
      %p171 = scmp.lt.s32.totalorder %s14, 4
      %s172 = scalar_select %p171, %s14, 4
      %s173 = smul.addr %s172, 75
      %s174 = smul.addr %s173, 4
      %s175 = scalar_lea.vmem %s1, %s174
      %p177 = scmp.eq.s32.totalorder %s14, 0
      // Predicated region
      $region33: #{cnn_custom_forward.4} parent=31 // pred_check
        %p178 = pneg %p177
      $region34: #{cnn_custom_forward.4} parent=31 // pred_check_branch
        %180 = sbr.rel (%p178) target = $region36
      $region35: #{cnn_custom_forward.4} parent=31 // pred_region
        %181 = vst [vmem:[#allocation2] sm:$0xff] 0.0
        %182 = vst [vmem:[#allocation2 + $0x8] sm:$0xff] 0.0
        %183 = vst [vmem:[#allocation2 + $0x10] sm:$0xff] 0.0
        %184 = vst [vmem:[#allocation2 + $0x18] sm:$0xff] 0.0
        %vm185 = vcmask 261120
        %186 = vst.msk [vmem:[#allocation2 + $0x20] sm:$0xff] %vm185, 0.0
        %187 = vst [vmem:[#allocation2 + $0x28] sm:$0xff] 0.0
        %188 = vst [vmem:[#allocation2 + $0x30] sm:$0xff] 0.0
        %189 = vst [vmem:[#allocation2 + $0x38] sm:$0xff] 0.0
        %190 = vst [vmem:[#allocation2 + $0x40] sm:$0xff] 0.0
        %191 = vst.msk [vmem:[#allocation2 + $0x48] sm:$0xff] %vm185, 0.0
        %192 = vst [vmem:[#allocation2 + $0x50] sm:$0xff] 0.0
        %193 = vst [vmem:[#allocation2 + $0x58] sm:$0xff] 0.0
        %194 = vst [vmem:[#allocation2 + $0x60] sm:$0xff] 0.0
        %195 = vst [vmem:[#allocation2 + $0x68] sm:$0xff] 0.0
        %196 = vst.msk [vmem:[#allocation2 + $0x70] sm:$0xff] %vm185, 0.0
        %197 = vst [vmem:[#allocation2 + $0x78] sm:$0xff] 0.0
        %198 = vst [vmem:[#allocation2 + $0x80] sm:$0xff] 0.0
        %199 = vst [vmem:[#allocation2 + $0x88] sm:$0xff] 0.0
        %200 = vst [vmem:[#allocation2 + $0x90] sm:$0xff] 0.0
        %201 = vst.msk [vmem:[#allocation2 + $0x98] sm:$0xff] %vm185, 0.0
        %202 = vst [vmem:[#allocation2 + $0xa0] sm:$0xff] 0.0
        %203 = vst [vmem:[#allocation2 + $0xa8] sm:$0xff] 0.0
        %204 = vst [vmem:[#allocation2 + $0xb0] sm:$0xff] 0.0
        %205 = vst [vmem:[#allocation2 + $0xb8] sm:$0xff] 0.0
        %206 = vst.msk [vmem:[#allocation2 + $0xc0] sm:$0xff] %vm185, 0.0
        %207 = vst [vmem:[#allocation2 + $0xc8] sm:$0xff] 0.0
        %208 = vst [vmem:[#allocation2 + $0xd0] sm:$0xff] 0.0
        %209 = vst [vmem:[#allocation2 + $0xd8] sm:$0xff] 0.0
        %210 = vst [vmem:[#allocation2 + $0xe0] sm:$0xff] 0.0
        %211 = vst.msk [vmem:[#allocation2 + $0xe8] sm:$0xff] %vm185, 0.0
        %212 = vst [vmem:[#allocation2 + $0xf0] sm:$0xff] 0.0
        %213 = vst [vmem:[#allocation2 + $0xf8] sm:$0xff] 0.0
        %214 = vst [vmem:[#allocation2 + $0x100] sm:$0xff] 0.0
        %215 = vst [vmem:[#allocation2 + $0x108] sm:$0xff] 0.0
        %216 = vst.msk [vmem:[#allocation2 + $0x110] sm:$0xff] %vm185, 0.0
        %217 = vst [vmem:[#allocation2 + $0x118] sm:$0xff] 0.0
        %218 = vst [vmem:[#allocation2 + $0x120] sm:$0xff] 0.0
        %219 = vst [vmem:[#allocation2 + $0x128] sm:$0xff] 0.0
        %220 = vst [vmem:[#allocation2 + $0x130] sm:$0xff] 0.0
        %221 = vst.msk [vmem:[#allocation2 + $0x138] sm:$0xff] %vm185, 0.0
        %222 = vst [vmem:[#allocation2 + $0x140] sm:$0xf] 0.0
        %223 = vst [vmem:[#allocation2 + $0x148] sm:$0xf] 0.0
        %224 = vst [vmem:[#allocation2 + $0x150] sm:$0xf] 0.0
        %225 = vst [vmem:[#allocation2 + $0x158] sm:$0xf] 0.0
        %vm226 = vcmask 257024
        %227 = vst.msk [vmem:[#allocation2 + $0x160] sm:$0xf] %vm226, 0.0
      $region36: #{cnn_custom_forward.4} parent=31 // pred_fallthru
        _
      %v228 = vld [vmem:[#allocation2] sm:$0xff]
      %v229 = vld [vmem:[#allocation2 + $0x8] sm:$0xff]
      %v230 = vld [vmem:[#allocation2 + $0x10] sm:$0xff]
      %v231 = vld [vmem:[#allocation2 + $0x18] sm:$0xff]
      %v232 = vld [vmem:[#allocation2 + $0x20] sm:$0xff]
      %v233 = vld [vmem:[#allocation2 + $0x28] sm:$0xff]
      %v234 = vld [vmem:[#allocation2 + $0x30] sm:$0xff]
      %v235 = vld [vmem:[#allocation2 + $0x38] sm:$0xff]
      %v236 = vld [vmem:[#allocation2 + $0x40] sm:$0xff]
      %v237 = vld [vmem:[#allocation2 + $0x48] sm:$0xff]
      %v238 = vld [vmem:[#allocation2 + $0x50] sm:$0xff]
      %v239 = vld [vmem:[#allocation2 + $0x58] sm:$0xff]
      %v240 = vld [vmem:[#allocation2 + $0x60] sm:$0xff]
      %v241 = vld [vmem:[#allocation2 + $0x68] sm:$0xff]
      %v242 = vld [vmem:[#allocation2 + $0x70] sm:$0xff]
      %v243 = vld [vmem:[#allocation2 + $0x78] sm:$0xff]
      %v244 = vld [vmem:[#allocation2 + $0x80] sm:$0xff]
      %v245 = vld [vmem:[#allocation2 + $0x88] sm:$0xff]
      %v246 = vld [vmem:[#allocation2 + $0x90] sm:$0xff]
      %v247 = vld [vmem:[#allocation2 + $0x98] sm:$0xff]
      %v248 = vld [vmem:[#allocation2 + $0xa0] sm:$0xff]
      %v249 = vld [vmem:[#allocation2 + $0xa8] sm:$0xff]
      %v250 = vld [vmem:[#allocation2 + $0xb0] sm:$0xff]
      %v251 = vld [vmem:[#allocation2 + $0xb8] sm:$0xff]
      %v252 = vld [vmem:[#allocation2 + $0xc0] sm:$0xff]
      %v253 = vld [vmem:[#allocation2 + $0xc8] sm:$0xff]
      %v254 = vld [vmem:[#allocation2 + $0xd0] sm:$0xff]
      %v255 = vld [vmem:[#allocation2 + $0xd8] sm:$0xff]
      %v256 = vld [vmem:[#allocation2 + $0xe0] sm:$0xff]
      %v257 = vld [vmem:[#allocation2 + $0xe8] sm:$0xff]
      %v258 = vld [vmem:[#allocation2 + $0xf0] sm:$0xff]
      %v259 = vld [vmem:[#allocation2 + $0xf8] sm:$0xff]
      %v260 = vld [vmem:[#allocation2 + $0x100] sm:$0xff]
      %v261 = vld [vmem:[#allocation2 + $0x108] sm:$0xff]
      %v262 = vld [vmem:[#allocation2 + $0x110] sm:$0xff]
      %v263 = vld [vmem:[#allocation2 + $0x118] sm:$0xff]
      %v264 = vld [vmem:[#allocation2 + $0x120] sm:$0xff]
      %v265 = vld [vmem:[#allocation2 + $0x128] sm:$0xff]
      %v266 = vld [vmem:[#allocation2 + $0x130] sm:$0xff]
      %v267 = vld [vmem:[#allocation2 + $0x138] sm:$0xff]
      %v268 = vld [vmem:[#allocation2 + $0x140] sm:$0xf]
      %v269 = vld [vmem:[#allocation2 + $0x148] sm:$0xf]
      %v270 = vld [vmem:[#allocation2 + $0x150] sm:$0xf]
      %v271 = vld [vmem:[#allocation2 + $0x158] sm:$0xf]
      %v272 = vld [vmem:[#allocation2 + $0x160] sm:$0xf]
      %v273 = vld [vmem:[%s170] sm:$0xf]
      %v274 = vld [vmem:[%s170 + $0x4] sm:$0xf]
      %v275 = vld [vmem:[%s170 + $0x8] sm:$0xf]
      %v276 = vld [vmem:[%s170 + $0xc] sm:$0xf]
      %v277 = vld [vmem:[%s170 + $0x10] sm:$0xf]
      %v278 = vld [vmem:[%s170 + $0x14] sm:$0xf]
      %v279 = vld [vmem:[%s170 + $0x18] sm:$0xf]
      %v280 = vld [vmem:[%s170 + $0x1c] sm:$0xf]
      %v281 = vld [vmem:[%s170 + $0x20] sm:$0x3]
      %v282 = vld [vmem:[%s175] sm:$0xff]
      %v283 = vld [vmem:[%s175 + $0x8] sm:$0xff]
      %v284 = vld [vmem:[%s175 + $0x10] sm:$0xf]
      %v285 = vld [vmem:[%s175 + $0x14] sm:$0xff]
      %v286 = vld [vmem:[%s175 + $0x1c] sm:$0xff]
      %v287 = vld [vmem:[%s175 + $0x24] sm:$0xf]
      %v288 = vld [vmem:[%s175 + $0x28] sm:$0xff]
      %v289 = vld [vmem:[%s175 + $0x30] sm:$0xff]
      %v290 = vld [vmem:[%s175 + $0x38] sm:$0xf]
      %v291 = vld [vmem:[%s175 + $0x3c] sm:$0xff]
      %v292 = vld [vmem:[%s175 + $0x44] sm:$0xff]
      %v293 = vld [vmem:[%s175 + $0x4c] sm:$0xf]
      %v294 = vld [vmem:[%s175 + $0x50] sm:$0xff]
      %v295 = vld [vmem:[%s175 + $0x58] sm:$0xff]
      %v296 = vld [vmem:[%s175 + $0x60] sm:$0xf]
      %v297 = vld [vmem:[%s175 + $0x64] sm:$0xff]
      %v298 = vld [vmem:[%s175 + $0x6c] sm:$0xff]
      %v299 = vld [vmem:[%s175 + $0x74] sm:$0xf]
      %v300 = vld [vmem:[%s175 + $0x78] sm:$0xff]
      %v301 = vld [vmem:[%s175 + $0x80] sm:$0xff]
      %v302 = vld [vmem:[%s175 + $0x88] sm:$0xf]
      %v303 = vld [vmem:[%s175 + $0x8c] sm:$0xff]
      %v304 = vld [vmem:[%s175 + $0x94] sm:$0xff]
      %v305 = vld [vmem:[%s175 + $0x9c] sm:$0xf]
      %v306 = vld [vmem:[%s175 + $0xa0] sm:$0xff]
      %v307 = vld [vmem:[%s175 + $0xa8] sm:$0xff]
      %v308 = vld [vmem:[%s175 + $0xb0] sm:$0xf]
      %v309 = vld [vmem:[%s175 + $0xb4] sm:$0xff]
      %v310 = vld [vmem:[%s175 + $0xbc] sm:$0xff]
      %v311 = vld [vmem:[%s175 + $0xc4] sm:$0xf]
      %v312 = vld [vmem:[%s175 + $0xc8] sm:$0xff]
      %v313 = vld [vmem:[%s175 + $0xd0] sm:$0xff]
      %v314 = vld [vmem:[%s175 + $0xd8] sm:$0xf]
      %v315 = vld [vmem:[%s175 + $0xdc] sm:$0xff]
      %v316 = vld [vmem:[%s175 + $0xe4] sm:$0xff]
      %v317 = vld [vmem:[%s175 + $0xec] sm:$0xf]
      %v318 = vld [vmem:[%s175 + $0xf0] sm:$0xff]
      %v319 = vld [vmem:[%s175 + $0xf8] sm:$0xff]
      %v320 = vld [vmem:[%s175 + $0x100] sm:$0xf]
      %v321 = vld [vmem:[%s175 + $0x104] sm:$0xff]
      %v322 = vld [vmem:[%s175 + $0x10c] sm:$0xff]
      %v323 = vld [vmem:[%s175 + $0x114] sm:$0xf]
      %v324 = vld [vmem:[%s175 + $0x118] sm:$0x11]
      %v325 = vld [vmem:[%s175 + $0x120] sm:$0x11]
      %v326 = vld [vmem:[%s175 + $0x128] sm:$0x1]
      %v336 = vunpack.c.l.b16 %v273
      %v337 = vunpack.c.l.b16 %v274
      %v338 = vunpack.c.l.b16 %v275
      %v339 = vunpack.c.l.b16 %v276
      %v340 = vunpack.c.l.b16 %v277
      %v341 = vunpack.c.l.b16 %v278
      %v342 = vunpack.c.l.b16 %v279
      %v343 = vunpack.c.l.b16 %v280
      %v344 = vunpack.c.l.b16 %v281
      %v345 = vpack.c.b16 %v337, %v336
      %v346 = vpack.c.b16 %v339, %v338
      %v347 = vpack.c.b16 %v341, %v340
      %v348 = vpack.c.b16 %v343, %v342
      %v349 = vpack.c.b16 %v344, %v344
      %v395 = vunpack.c.l.b16 %v282
      %v396 = vunpack.c.h.b16 %v282
      %v397 = vunpack.c.l.b16 %v283
      %v398 = vunpack.c.h.b16 %v283
      %v399 = vunpack.c.l.b16 %v284
      %v400 = vunpack.c.l.b16 %v285
      %v401 = vunpack.c.h.b16 %v285
      %v402 = vunpack.c.l.b16 %v286
      %v403 = vunpack.c.h.b16 %v286
      %v404 = vunpack.c.l.b16 %v287
      %v405 = vunpack.c.l.b16 %v288
      %v406 = vunpack.c.h.b16 %v288
      %v407 = vunpack.c.l.b16 %v289
      %v408 = vunpack.c.h.b16 %v289
      %v409 = vunpack.c.l.b16 %v290
      %v410 = vunpack.c.l.b16 %v291
      %v411 = vunpack.c.h.b16 %v291
      %v412 = vunpack.c.l.b16 %v292
      %v413 = vunpack.c.h.b16 %v292
      %v414 = vunpack.c.l.b16 %v293
      %v415 = vunpack.c.l.b16 %v294
      %v416 = vunpack.c.h.b16 %v294
      %v417 = vunpack.c.l.b16 %v295
      %v418 = vunpack.c.h.b16 %v295
      %v419 = vunpack.c.l.b16 %v296
      %v420 = vunpack.c.l.b16 %v297
      %v421 = vunpack.c.h.b16 %v297
      %v422 = vunpack.c.l.b16 %v298
      %v423 = vunpack.c.h.b16 %v298
      %v424 = vunpack.c.l.b16 %v299
      %v425 = vunpack.c.l.b16 %v300
      %v426 = vunpack.c.h.b16 %v300
      %v427 = vunpack.c.l.b16 %v301
      %v428 = vunpack.c.h.b16 %v301
      %v429 = vunpack.c.l.b16 %v302
      %v430 = vunpack.c.l.b16 %v303
      %v431 = vunpack.c.h.b16 %v303
      %v432 = vunpack.c.l.b16 %v304
      %v433 = vunpack.c.h.b16 %v304
      %v434 = vunpack.c.l.b16 %v305
      %v435 = vunpack.c.l.b16 %v306
      %v436 = vunpack.c.h.b16 %v306
      %v437 = vunpack.c.l.b16 %v307
      %v438 = vunpack.c.h.b16 %v307
      %v439 = vunpack.c.l.b16 %v308
      %v440 = vunpack.c.l.b16 %v309
      %v441 = vunpack.c.h.b16 %v309
      %v442 = vunpack.c.l.b16 %v310
      %v443 = vunpack.c.h.b16 %v310
      %v444 = vunpack.c.l.b16 %v311
      %v445 = vunpack.c.l.b16 %v312
      %v446 = vunpack.c.h.b16 %v312
      %v447 = vunpack.c.l.b16 %v313
      %v448 = vunpack.c.h.b16 %v313
      %v449 = vunpack.c.l.b16 %v314
      %v450 = vunpack.c.l.b16 %v315
      %v451 = vunpack.c.h.b16 %v315
      %v452 = vunpack.c.l.b16 %v316
      %v453 = vunpack.c.h.b16 %v316
      %v454 = vunpack.c.l.b16 %v317
      %v455 = vunpack.c.l.b16 %v318
      %v456 = vunpack.c.h.b16 %v318
      %v457 = vunpack.c.l.b16 %v319
      %v458 = vunpack.c.h.b16 %v319
      %v459 = vunpack.c.l.b16 %v320
      %v460 = vunpack.c.l.b16 %v321
      %v461 = vunpack.c.h.b16 %v321
      %v462 = vunpack.c.l.b16 %v322
      %v463 = vunpack.c.h.b16 %v322
      %v464 = vunpack.c.l.b16 %v323
      %v465 = vunpack.c.l.b16 %v324
      %v466 = vunpack.c.h.b16 %v324
      %v467 = vunpack.c.l.b16 %v325
      %v468 = vunpack.c.h.b16 %v325
      %v469 = vunpack.c.l.b16 %v326
      %v470 = vpack.c.b16 %v400, %v395
      %v471 = vpack.c.b16 %v401, %v396
      %v472 = vpack.c.b16 %v402, %v397
      %v473 = vpack.c.b16 %v403, %v398
      %v474 = vpack.c.b16 %v404, %v399
      %v475 = vpack.c.b16 %v410, %v405
      %v476 = vpack.c.b16 %v411, %v406
      %v477 = vpack.c.b16 %v412, %v407
      %v478 = vpack.c.b16 %v413, %v408
      %v479 = vpack.c.b16 %v414, %v409
      %v480 = vpack.c.b16 %v420, %v415
      %v481 = vpack.c.b16 %v421, %v416
      %v482 = vpack.c.b16 %v422, %v417
      %v483 = vpack.c.b16 %v423, %v418
      %v484 = vpack.c.b16 %v424, %v419
      %v485 = vpack.c.b16 %v430, %v425
      %v486 = vpack.c.b16 %v431, %v426
      %v487 = vpack.c.b16 %v432, %v427
      %v488 = vpack.c.b16 %v433, %v428
      %v489 = vpack.c.b16 %v434, %v429
      %v490 = vpack.c.b16 %v440, %v435
      %v491 = vpack.c.b16 %v441, %v436
      %v492 = vpack.c.b16 %v442, %v437
      %v493 = vpack.c.b16 %v443, %v438
      %v494 = vpack.c.b16 %v444, %v439
      %v495 = vpack.c.b16 %v450, %v445
      %v496 = vpack.c.b16 %v451, %v446
      %v497 = vpack.c.b16 %v452, %v447
      %v498 = vpack.c.b16 %v453, %v448
      %v499 = vpack.c.b16 %v454, %v449
      %v500 = vpack.c.b16 %v460, %v455
      %v501 = vpack.c.b16 %v461, %v456
      %v502 = vpack.c.b16 %v462, %v457
      %v503 = vpack.c.b16 %v463, %v458
      %v504 = vpack.c.b16 %v464, %v459
      %v505 = vpack.c.b16 %v465, %v465
      %v506 = vpack.c.b16 %v466, %v466
      %v507 = vpack.c.b16 %v467, %v467
      %v508 = vpack.c.b16 %v468, %v468
      %v509 = vpack.c.b16 %v469, %v469
      %vm545 = vcmask 932864
      %v547 = vsel %vm545, %v345, 0
      %v550 = vsel %vm545, %v346, 0
      %v553 = vsel %vm545, %v347, 0
      %v556 = vsel %vm545, %v348, 0
      %v559 = vsel %vm545, %v349, 0
      %vm561 = vcmask 1040384
      %v563 = vsel %vm561, %v505, 0
      %v566 = vsel %vm561, %v506, 0
      %v569 = vsel %vm561, %v507, 0
      %v572 = vsel %vm561, %v508, 0
      %v575 = vsel %vm561, %v509, 0
      %577 = vmatprep.subr.bf16.mxu0 %v471
      %578 = vmatpush1.bf16.msra.mxu0 %v470
      %579 = vmatprep.subr.bf16.mxu0 %v476
      %580 = vmatpush1.bf16.msra.mxu0 %v475
      %581 = vmatprep.subr.bf16.mxu0 %v481
      %582 = vmatpush1.bf16.msra.mxu0 %v480
      %583 = vmatprep.subr.bf16.mxu0 %v486
      %584 = vmatpush1.bf16.msra.mxu0 %v485
      %585 = vmatprep.subr.bf16.mxu0 %v491
      %586 = vmatpush1.bf16.msra.mxu0 %v490
      %587 = vmatprep.subr.bf16.mxu0 %v496
      %588 = vmatpush1.bf16.msra.mxu0 %v495
      %589 = vmatprep.subr.bf16.mxu0 %v501
      %590 = vmatpush1.bf16.msra.mxu0 %v500
      %591 = vmatprep.subr.bf16.mxu0 %v566
      %592 = vmatpush1.bf16.msra.mxu0 %v563
      %593 = vmatprep.subr.bf16.mxu0 0
      %594 = vmatpush1.bf16.msra.mxu0 0
      %595 = vmatprep.subr.bf16.mxu0 0
      %596 = vmatpush1.bf16.msra.mxu0 0
      %597 = vmatprep.subr.bf16.mxu0 0
      %598 = vmatpush1.bf16.msra.mxu0 0
      %599 = vmatprep.subr.bf16.mxu0 0
      %600 = vmatpush1.bf16.msra.mxu0 0
      %601 = vmatprep.subr.bf16.mxu0 0
      %602 = vmatpush1.bf16.msra.mxu0 0
      %603 = vmatprep.subr.bf16.mxu0 0
      %604 = vmatpush1.bf16.msra.mxu0 0
      %605 = vmatprep.subr.bf16.mxu0 0
      %606 = vmatpush1.bf16.msra.mxu0 0
      %607 = vmatprep.subr.bf16.mxu0 0
      %608 = vmatpush1.bf16.msra.mxu0 0
      %609 = vmatprep.mubr.bf16.mxu0 0
      %610 = vmatmul.mubr.bf16.gmra.mrb[0].mxu0 %v547
      %v611 = vpop.f32.mrb[0].mxu0
      %v612 = vadd.f32 0.0, %v611
      %v613 = vpop.f32.mrb[0].mxu0
      %v614 = vadd.f32 0.0, %v613
      %v615 = vpop.f32.mrb[0].mxu0
      %v616 = vadd.f32 0.0, %v615
      %v617 = vpop.f32.mrb[0].mxu0
      %v618 = vadd.f32 0.0, %v617
      %619 = vmatprep.mubr.bf16.mxu0 0
      %620 = vmatmul.mubr.bf16.gmra.mrb[0].mxu0 %v550
      %v621 = vpop.f32.mrb[0].mxu0
      %v622 = vadd.f32 0.0, %v621
      %v623 = vpop.f32.mrb[0].mxu0
      %v624 = vadd.f32 0.0, %v623
      %v625 = vpop.f32.mrb[0].mxu0
      %v626 = vadd.f32 0.0, %v625
      %v627 = vpop.f32.mrb[0].mxu0
      %v628 = vadd.f32 0.0, %v627
      %629 = vmatprep.mubr.bf16.mxu0 0
      %630 = vmatmul.mubr.bf16.gmra.mrb[0].mxu0 %v553
      %v631 = vpop.f32.mrb[0].mxu0
      %v632 = vadd.f32 0.0, %v631
      %v633 = vpop.f32.mrb[0].mxu0
      %v634 = vadd.f32 0.0, %v633
      %v635 = vpop.f32.mrb[0].mxu0
      %v636 = vadd.f32 0.0, %v635
      %v637 = vpop.f32.mrb[0].mxu0
      %v638 = vadd.f32 0.0, %v637
      %639 = vmatprep.mubr.bf16.mxu0 0
      %640 = vmatmul.mubr.bf16.gmra.mrb[0].mxu0 %v556
      %v641 = vpop.f32.mrb[0].mxu0
      %v642 = vadd.f32 0.0, %v641
      %v643 = vpop.f32.mrb[0].mxu0
      %v644 = vadd.f32 0.0, %v643
      %v645 = vpop.f32.mrb[0].mxu0
      %v646 = vadd.f32 0.0, %v645
      %v647 = vpop.f32.mrb[0].mxu0
      %v648 = vadd.f32 0.0, %v647
      %649 = vmatprep.mubr.bf16.mxu0 0
      %650 = vmatmul.mubr.bf16.gmra.mrb[0].mxu0 %v559
      %v651 = vpop.f32.mrb[0].mxu0
      %v652 = vadd.f32 0.0, %v651
      %v653 = vpop.f32.mrb[0].mxu0
      %v654 = vadd.f32 0.0, %v653
      %v655 = vpop.f32.mrb[0].mxu0
      %v656 = vpop.f32.mrb[0].mxu0
      %657 = vdwg.mxu0
      %658 = vmatprep.subr.bf16.mxu0 %v473
      %659 = vmatpush1.bf16.msra.mxu0 %v472
      %660 = vmatprep.subr.bf16.mxu0 %v478
      %661 = vmatpush1.bf16.msra.mxu0 %v477
      %662 = vmatprep.subr.bf16.mxu0 %v483
      %663 = vmatpush1.bf16.msra.mxu0 %v482
      %664 = vmatprep.subr.bf16.mxu0 %v488
      %665 = vmatpush1.bf16.msra.mxu0 %v487
      %666 = vmatprep.subr.bf16.mxu0 %v493
      %667 = vmatpush1.bf16.msra.mxu0 %v492
      %668 = vmatprep.subr.bf16.mxu0 %v498
      %669 = vmatpush1.bf16.msra.mxu0 %v497
      %670 = vmatprep.subr.bf16.mxu0 %v503
      %671 = vmatpush1.bf16.msra.mxu0 %v502
      %672 = vmatprep.subr.bf16.mxu0 %v572
      %673 = vmatpush1.bf16.msra.mxu0 %v569
      %674 = vmatprep.subr.bf16.mxu0 0
      %675 = vmatpush1.bf16.msra.mxu0 0
      %676 = vmatprep.subr.bf16.mxu0 0
      %677 = vmatpush1.bf16.msra.mxu0 0
      %678 = vmatprep.subr.bf16.mxu0 0
      %679 = vmatpush1.bf16.msra.mxu0 0
      %680 = vmatprep.subr.bf16.mxu0 0
      %681 = vmatpush1.bf16.msra.mxu0 0
      %682 = vmatprep.subr.bf16.mxu0 0
      %683 = vmatpush1.bf16.msra.mxu0 0
      %684 = vmatprep.subr.bf16.mxu0 0
      %685 = vmatpush1.bf16.msra.mxu0 0
      %686 = vmatprep.subr.bf16.mxu0 0
      %687 = vmatpush1.bf16.msra.mxu0 0
      %688 = vmatprep.subr.bf16.mxu0 0
      %689 = vmatpush1.bf16.msra.mxu0 0
      %690 = vmatprep.mubr.bf16.mxu0 0
      %691 = vmatmul.mubr.bf16.gmra.mrb[0].mxu0 %v547
      %v692 = vpop.f32.mrb[0].mxu0
      %v693 = vadd.f32 0.0, %v692
      %v694 = vpop.f32.mrb[0].mxu0
      %v695 = vadd.f32 0.0, %v694
      %v696 = vpop.f32.mrb[0].mxu0
      %v697 = vadd.f32 0.0, %v696
      %v698 = vpop.f32.mrb[0].mxu0
      %v699 = vadd.f32 0.0, %v698
      %700 = vmatprep.mubr.bf16.mxu0 0
      %701 = vmatmul.mubr.bf16.gmra.mrb[0].mxu0 %v550
      %v702 = vpop.f32.mrb[0].mxu0
      %v703 = vadd.f32 0.0, %v702
      %v704 = vpop.f32.mrb[0].mxu0
      %v705 = vadd.f32 0.0, %v704
      %v706 = vpop.f32.mrb[0].mxu0
      %v707 = vadd.f32 0.0, %v706
      %v708 = vpop.f32.mrb[0].mxu0
      %v709 = vadd.f32 0.0, %v708
      %710 = vmatprep.mubr.bf16.mxu0 0
      %711 = vmatmul.mubr.bf16.gmra.mrb[0].mxu0 %v553
      %v712 = vpop.f32.mrb[0].mxu0
      %v713 = vadd.f32 0.0, %v712
      %v714 = vpop.f32.mrb[0].mxu0
      %v715 = vadd.f32 0.0, %v714
      %v716 = vpop.f32.mrb[0].mxu0
      %v717 = vadd.f32 0.0, %v716
      %v718 = vpop.f32.mrb[0].mxu0
      %v719 = vadd.f32 0.0, %v718
      %720 = vmatprep.mubr.bf16.mxu0 0
      %721 = vmatmul.mubr.bf16.gmra.mrb[0].mxu0 %v556
      %v722 = vpop.f32.mrb[0].mxu0
      %v723 = vadd.f32 0.0, %v722
      %v724 = vpop.f32.mrb[0].mxu0
      %v725 = vadd.f32 0.0, %v724
      %v726 = vpop.f32.mrb[0].mxu0
      %v727 = vadd.f32 0.0, %v726
      %v728 = vpop.f32.mrb[0].mxu0
      %v729 = vadd.f32 0.0, %v728
      %730 = vmatprep.mubr.bf16.mxu0 0
      %731 = vmatmul.mubr.bf16.gmra.mrb[0].mxu0 %v559
      %v732 = vpop.f32.mrb[0].mxu0
      %v733 = vadd.f32 0.0, %v732
      %v734 = vpop.f32.mrb[0].mxu0
      %v735 = vadd.f32 0.0, %v734
      %v736 = vpop.f32.mrb[0].mxu0
      %v737 = vpop.f32.mrb[0].mxu0
      %738 = vdwg.mxu0
      %739 = vmatprep.subr.bf16.mxu0 0
      %740 = vmatpush1.bf16.msra.mxu0 %v474
      %741 = vmatprep.subr.bf16.mxu0 0
      %742 = vmatpush1.bf16.msra.mxu0 %v479
      %743 = vmatprep.subr.bf16.mxu0 0
      %744 = vmatpush1.bf16.msra.mxu0 %v484
      %745 = vmatprep.subr.bf16.mxu0 0
      %746 = vmatpush1.bf16.msra.mxu0 %v489
      %747 = vmatprep.subr.bf16.mxu0 0
      %748 = vmatpush1.bf16.msra.mxu0 %v494
      %749 = vmatprep.subr.bf16.mxu0 0
      %750 = vmatpush1.bf16.msra.mxu0 %v499
      %751 = vmatprep.subr.bf16.mxu0 0
      %752 = vmatpush1.bf16.msra.mxu0 %v504
      %753 = vmatprep.subr.bf16.mxu0 0
      %754 = vmatpush1.bf16.msra.mxu0 %v575
      %755 = vmatprep.subr.bf16.mxu0 0
      %756 = vmatpush1.bf16.msra.mxu0 0
      %757 = vmatprep.subr.bf16.mxu0 0
      %758 = vmatpush1.bf16.msra.mxu0 0
      %759 = vmatprep.subr.bf16.mxu0 0
      %760 = vmatpush1.bf16.msra.mxu0 0
      %761 = vmatprep.subr.bf16.mxu0 0
      %762 = vmatpush1.bf16.msra.mxu0 0
      %763 = vmatprep.subr.bf16.mxu0 0
      %764 = vmatpush1.bf16.msra.mxu0 0
      %765 = vmatprep.subr.bf16.mxu0 0
      %766 = vmatpush1.bf16.msra.mxu0 0
      %767 = vmatprep.subr.bf16.mxu0 0
      %768 = vmatpush1.bf16.msra.mxu0 0
      %769 = vmatprep.subr.bf16.mxu0 0
      %770 = vmatpush1.bf16.msra.mxu0 0
      %771 = vmatprep.mubr.bf16.mxu0 0
      %772 = vmatmul.mubr.bf16.gmra.mrb[0].mxu0 %v547
      %v773 = vpop.f32.mrb[0].mxu0
      %v774 = vadd.f32 0.0, %v773
      %v775 = vpop.f32.mrb[0].mxu0
      %v776 = vpop.f32.mrb[0].mxu0
      %v777 = vadd.f32 0.0, %v776
      %v778 = vpop.f32.mrb[0].mxu0
      %779 = vmatprep.mubr.bf16.mxu0 0
      %780 = vmatmul.mubr.bf16.gmra.mrb[0].mxu0 %v550
      %v781 = vpop.f32.mrb[0].mxu0
      %v782 = vadd.f32 0.0, %v781
      %v783 = vpop.f32.mrb[0].mxu0
      %v784 = vpop.f32.mrb[0].mxu0
      %v785 = vadd.f32 0.0, %v784
      %v786 = vpop.f32.mrb[0].mxu0
      %787 = vmatprep.mubr.bf16.mxu0 0
      %788 = vmatmul.mubr.bf16.gmra.mrb[0].mxu0 %v553
      %v789 = vpop.f32.mrb[0].mxu0
      %v790 = vadd.f32 0.0, %v789
      %v791 = vpop.f32.mrb[0].mxu0
      %v792 = vpop.f32.mrb[0].mxu0
      %v793 = vadd.f32 0.0, %v792
      %v794 = vpop.f32.mrb[0].mxu0
      %795 = vmatprep.mubr.bf16.mxu0 0
      %796 = vmatmul.mubr.bf16.gmra.mrb[0].mxu0 %v556
      %v797 = vpop.f32.mrb[0].mxu0
      %v798 = vadd.f32 0.0, %v797
      %v799 = vpop.f32.mrb[0].mxu0
      %v800 = vpop.f32.mrb[0].mxu0
      %v801 = vadd.f32 0.0, %v800
      %v802 = vpop.f32.mrb[0].mxu0
      %803 = vmatprep.mubr.bf16.mxu0 0
      %804 = vmatmul.mubr.bf16.gmra.mrb[0].mxu0 %v559
      %v805 = vpop.f32.mrb[0].mxu0
      %v806 = vadd.f32 0.0, %v805
      %v807 = vpop.f32.mrb[0].mxu0
      %v808 = vpop.f32.mrb[0].mxu0
      %v809 = vpop.f32.mrb[0].mxu0
      %810 = vdwg.mxu0
      %v811 = vadd.f32 %v228, %v612
      %v812 = vadd.f32 %v229, %v614
      %v813 = vadd.f32 %v230, %v693
      %v814 = vadd.f32 %v231, %v695
      %v815 = vadd.f32 %v232, %v774
      %v816 = vadd.f32 %v233, %v616
      %v817 = vadd.f32 %v234, %v618
      %v818 = vadd.f32 %v235, %v697
      %v819 = vadd.f32 %v236, %v699
      %v820 = vadd.f32 %v237, %v777
      %v821 = vadd.f32 %v238, %v622
      %v822 = vadd.f32 %v239, %v624
      %v823 = vadd.f32 %v240, %v703
      %v824 = vadd.f32 %v241, %v705
      %v825 = vadd.f32 %v242, %v782
      %v826 = vadd.f32 %v243, %v626
      %v827 = vadd.f32 %v244, %v628
      %v828 = vadd.f32 %v245, %v707
      %v829 = vadd.f32 %v246, %v709
      %v830 = vadd.f32 %v247, %v785
      %v831 = vadd.f32 %v248, %v632
      %v832 = vadd.f32 %v249, %v634
      %v833 = vadd.f32 %v250, %v713
      %v834 = vadd.f32 %v251, %v715
      %v835 = vadd.f32 %v252, %v790
      %v836 = vadd.f32 %v253, %v636
      %v837 = vadd.f32 %v254, %v638
      %v838 = vadd.f32 %v255, %v717
      %v839 = vadd.f32 %v256, %v719
      %v840 = vadd.f32 %v257, %v793
      %v841 = vadd.f32 %v258, %v642
      %v842 = vadd.f32 %v259, %v644
      %v843 = vadd.f32 %v260, %v723
      %v844 = vadd.f32 %v261, %v725
      %v845 = vadd.f32 %v262, %v798
      %v846 = vadd.f32 %v263, %v646
      %v847 = vadd.f32 %v264, %v648
      %v848 = vadd.f32 %v265, %v727
      %v849 = vadd.f32 %v266, %v729
      %v850 = vadd.f32 %v267, %v801
      %v851 = vadd.f32 %v268, %v652
      %v852 = vadd.f32 %v269, %v654
      %v853 = vadd.f32 %v270, %v733
      %v854 = vadd.f32 %v271, %v735
      %v855 = vadd.f32 %v272, %v806
      %856 = vst [vmem:[#allocation2] sm:$0xff] %v811
      %857 = vst [vmem:[#allocation2 + $0x8] sm:$0xff] %v812
      %858 = vst [vmem:[#allocation2 + $0x10] sm:$0xff] %v813
      %859 = vst [vmem:[#allocation2 + $0x18] sm:$0xff] %v814
      %vm860 = vcmask 261120
      %861 = vst.msk [vmem:[#allocation2 + $0x20] sm:$0xff] %vm860, %v815
      %862 = vst [vmem:[#allocation2 + $0x28] sm:$0xff] %v816
      %863 = vst [vmem:[#allocation2 + $0x30] sm:$0xff] %v817
      %864 = vst [vmem:[#allocation2 + $0x38] sm:$0xff] %v818
      %865 = vst [vmem:[#allocation2 + $0x40] sm:$0xff] %v819
      %866 = vst.msk [vmem:[#allocation2 + $0x48] sm:$0xff] %vm860, %v820
      %867 = vst [vmem:[#allocation2 + $0x50] sm:$0xff] %v821
      %868 = vst [vmem:[#allocation2 + $0x58] sm:$0xff] %v822
      %869 = vst [vmem:[#allocation2 + $0x60] sm:$0xff] %v823
      %870 = vst [vmem:[#allocation2 + $0x68] sm:$0xff] %v824
      %871 = vst.msk [vmem:[#allocation2 + $0x70] sm:$0xff] %vm860, %v825
      %872 = vst [vmem:[#allocation2 + $0x78] sm:$0xff] %v826
      %873 = vst [vmem:[#allocation2 + $0x80] sm:$0xff] %v827
      %874 = vst [vmem:[#allocation2 + $0x88] sm:$0xff] %v828
      %875 = vst [vmem:[#allocation2 + $0x90] sm:$0xff] %v829
      %876 = vst.msk [vmem:[#allocation2 + $0x98] sm:$0xff] %vm860, %v830
      %877 = vst [vmem:[#allocation2 + $0xa0] sm:$0xff] %v831
      %878 = vst [vmem:[#allocation2 + $0xa8] sm:$0xff] %v832
      %879 = vst [vmem:[#allocation2 + $0xb0] sm:$0xff] %v833
      %880 = vst [vmem:[#allocation2 + $0xb8] sm:$0xff] %v834
      %881 = vst.msk [vmem:[#allocation2 + $0xc0] sm:$0xff] %vm860, %v835
      %882 = vst [vmem:[#allocation2 + $0xc8] sm:$0xff] %v836
      %883 = vst [vmem:[#allocation2 + $0xd0] sm:$0xff] %v837
      %884 = vst [vmem:[#allocation2 + $0xd8] sm:$0xff] %v838
      %885 = vst [vmem:[#allocation2 + $0xe0] sm:$0xff] %v839
      %886 = vst.msk [vmem:[#allocation2 + $0xe8] sm:$0xff] %vm860, %v840
      %887 = vst [vmem:[#allocation2 + $0xf0] sm:$0xff] %v841
      %888 = vst [vmem:[#allocation2 + $0xf8] sm:$0xff] %v842
      %889 = vst [vmem:[#allocation2 + $0x100] sm:$0xff] %v843
      %890 = vst [vmem:[#allocation2 + $0x108] sm:$0xff] %v844
      %891 = vst.msk [vmem:[#allocation2 + $0x110] sm:$0xff] %vm860, %v845
      %892 = vst [vmem:[#allocation2 + $0x118] sm:$0xff] %v846
      %893 = vst [vmem:[#allocation2 + $0x120] sm:$0xff] %v847
      %894 = vst [vmem:[#allocation2 + $0x128] sm:$0xff] %v848
      %895 = vst [vmem:[#allocation2 + $0x130] sm:$0xff] %v849
      %896 = vst.msk [vmem:[#allocation2 + $0x138] sm:$0xff] %vm860, %v850
      %897 = vst [vmem:[#allocation2 + $0x140] sm:$0xf] %v851
      %898 = vst [vmem:[#allocation2 + $0x148] sm:$0xf] %v852
      %899 = vst [vmem:[#allocation2 + $0x150] sm:$0xf] %v853
      %900 = vst [vmem:[#allocation2 + $0x158] sm:$0xf] %v854
      %vm901 = vcmask 257024
      %902 = vst.msk [vmem:[#allocation2 + $0x160] sm:$0xf] %vm901, %v855
      %p903 = scmp.eq.s32.totalorder %s14, 4
      // Predicated region
      $region37: #{cnn_custom_forward.4} parent=31 // pred_check
        %p904 = pneg %p903
      $region38: #{cnn_custom_forward.4} parent=31 // pred_check_branch
        %906 = sbr.rel (%p904) target = $region40
      $region39: #{cnn_custom_forward.4} parent=31 // pred_region
        %v907 = vld [vmem:[#allocation2] sm:$0xff]
        %v908 = vld [vmem:[#allocation2 + $0x8] sm:$0xff]
        %v909 = vld [vmem:[#allocation2 + $0x10] sm:$0xff]
        %v910 = vld [vmem:[#allocation2 + $0x18] sm:$0xff]
        %v911 = vld [vmem:[#allocation2 + $0x20] sm:$0xff]
        %v912 = vld [vmem:[#allocation2 + $0x28] sm:$0xff]
        %v913 = vld [vmem:[#allocation2 + $0x30] sm:$0xff]
        %v914 = vld [vmem:[#allocation2 + $0x38] sm:$0xff]
        %v915 = vld [vmem:[#allocation2 + $0x40] sm:$0xff]
        %v916 = vld [vmem:[#allocation2 + $0x48] sm:$0xff]
        %v917 = vld [vmem:[#allocation2 + $0x50] sm:$0xff]
        %v918 = vld [vmem:[#allocation2 + $0x58] sm:$0xff]
        %v919 = vld [vmem:[#allocation2 + $0x60] sm:$0xff]
        %v920 = vld [vmem:[#allocation2 + $0x68] sm:$0xff]
        %v921 = vld [vmem:[#allocation2 + $0x70] sm:$0xff]
        %v922 = vld [vmem:[#allocation2 + $0x78] sm:$0xff]
        %v923 = vld [vmem:[#allocation2 + $0x80] sm:$0xff]
        %v924 = vld [vmem:[#allocation2 + $0x88] sm:$0xff]
        %v925 = vld [vmem:[#allocation2 + $0x90] sm:$0xff]
        %v926 = vld [vmem:[#allocation2 + $0x98] sm:$0xff]
        %v927 = vld [vmem:[#allocation2 + $0xa0] sm:$0xff]
        %v928 = vld [vmem:[#allocation2 + $0xa8] sm:$0xff]
        %v929 = vld [vmem:[#allocation2 + $0xb0] sm:$0xff]
        %v930 = vld [vmem:[#allocation2 + $0xb8] sm:$0xff]
        %v931 = vld [vmem:[#allocation2 + $0xc0] sm:$0xff]
        %v932 = vld [vmem:[#allocation2 + $0xc8] sm:$0xff]
        %v933 = vld [vmem:[#allocation2 + $0xd0] sm:$0xff]
        %v934 = vld [vmem:[#allocation2 + $0xd8] sm:$0xff]
        %v935 = vld [vmem:[#allocation2 + $0xe0] sm:$0xff]
        %v936 = vld [vmem:[#allocation2 + $0xe8] sm:$0xff]
        %v937 = vld [vmem:[#allocation2 + $0xf0] sm:$0xff]
        %v938 = vld [vmem:[#allocation2 + $0xf8] sm:$0xff]
        %v939 = vld [vmem:[#allocation2 + $0x100] sm:$0xff]
        %v940 = vld [vmem:[#allocation2 + $0x108] sm:$0xff]
        %v941 = vld [vmem:[#allocation2 + $0x110] sm:$0xff]
        %v942 = vld [vmem:[#allocation2 + $0x118] sm:$0xff]
        %v943 = vld [vmem:[#allocation2 + $0x120] sm:$0xff]
        %v944 = vld [vmem:[#allocation2 + $0x128] sm:$0xff]
        %v945 = vld [vmem:[#allocation2 + $0x130] sm:$0xff]
        %v946 = vld [vmem:[#allocation2 + $0x138] sm:$0xff]
        %v947 = vld [vmem:[#allocation2 + $0x140] sm:$0xf]
        %v948 = vld [vmem:[#allocation2 + $0x148] sm:$0xf]
        %v949 = vld [vmem:[#allocation2 + $0x150] sm:$0xf]
        %v950 = vld [vmem:[#allocation2 + $0x158] sm:$0xf]
        %v951 = vld [vmem:[#allocation2 + $0x160] sm:$0xf]
        %v952 = vld [vmem:[%s2] sm:$0x1f]
        %v954 = vlaneseq
        %v955 = vshrl.u32 %v954, 7
        %v956 = vsub.s32 0, %v955
        %v957 = vrot.slane %v952, %v956
        %v958 = vlaneseq
        %v959 = vshrl.u32 %v958, 7
        %v960 = vsub.s32 1, %v959
        %v961 = vrot.slane %v952, %v960
        %v962 = vlaneseq
        %v963 = vshrl.u32 %v962, 7
        %v964 = vsub.s32 2, %v963
        %v965 = vrot.slane %v952, %v964
        %v966 = vlaneseq
        %v967 = vshrl.u32 %v966, 7
        %v968 = vsub.s32 3, %v967
        %v969 = vrot.slane %v952, %v968
        %v970 = vlaneseq
        %v971 = vshrl.u32 %v970, 7
        %v972 = vsub.s32 4, %v971
        %v973 = vrot.slane %v952, %v972
        %v979 = vadd.f32 %v907, %v957
        %v980 = vadd.f32 %v908, %v961
        %v981 = vadd.f32 %v909, %v965
        %v982 = vadd.f32 %v910, %v969
        %v983 = vadd.f32 %v911, %v973
        %v984 = vadd.f32 %v912, %v957
        %v985 = vadd.f32 %v913, %v961
        %v986 = vadd.f32 %v914, %v965
        %v987 = vadd.f32 %v915, %v969
        %v988 = vadd.f32 %v916, %v973
        %v989 = vadd.f32 %v917, %v957
        %v990 = vadd.f32 %v918, %v961
        %v991 = vadd.f32 %v919, %v965
        %v992 = vadd.f32 %v920, %v969
        %v993 = vadd.f32 %v921, %v973
        %v994 = vadd.f32 %v922, %v957
        %v995 = vadd.f32 %v923, %v961
        %v996 = vadd.f32 %v924, %v965
        %v997 = vadd.f32 %v925, %v969
        %v998 = vadd.f32 %v926, %v973
        %v999 = vadd.f32 %v927, %v957
        %v1000 = vadd.f32 %v928, %v961
        %v1001 = vadd.f32 %v929, %v965
        %v1002 = vadd.f32 %v930, %v969
        %v1003 = vadd.f32 %v931, %v973
        %v1004 = vadd.f32 %v932, %v957
        %v1005 = vadd.f32 %v933, %v961
        %v1006 = vadd.f32 %v934, %v965
        %v1007 = vadd.f32 %v935, %v969
        %v1008 = vadd.f32 %v936, %v973
        %v1009 = vadd.f32 %v937, %v957
        %v1010 = vadd.f32 %v938, %v961
        %v1011 = vadd.f32 %v939, %v965
        %v1012 = vadd.f32 %v940, %v969
        %v1013 = vadd.f32 %v941, %v973
        %v1014 = vadd.f32 %v942, %v957
        %v1015 = vadd.f32 %v943, %v961
        %v1016 = vadd.f32 %v944, %v965
        %v1017 = vadd.f32 %v945, %v969
        %v1018 = vadd.f32 %v946, %v973
        %v1019 = vadd.f32 %v947, %v957
        %v1020 = vadd.f32 %v948, %v961
        %v1021 = vadd.f32 %v949, %v965
        %v1022 = vadd.f32 %v950, %v969
        %v1023 = vadd.f32 %v951, %v973
        %v1024 = vmax.f32 %v979, 0.0
        %v1025 = vmax.f32 %v980, 0.0
        %v1026 = vmax.f32 %v981, 0.0
        %v1027 = vmax.f32 %v982, 0.0
        %v1028 = vmax.f32 %v983, 0.0
        %v1029 = vmax.f32 %v984, 0.0
        %v1030 = vmax.f32 %v985, 0.0
        %v1031 = vmax.f32 %v986, 0.0
        %v1032 = vmax.f32 %v987, 0.0
        %v1033 = vmax.f32 %v988, 0.0
        %v1034 = vmax.f32 %v989, 0.0
        %v1035 = vmax.f32 %v990, 0.0
        %v1036 = vmax.f32 %v991, 0.0
        %v1037 = vmax.f32 %v992, 0.0
        %v1038 = vmax.f32 %v993, 0.0
        %v1039 = vmax.f32 %v994, 0.0
        %v1040 = vmax.f32 %v995, 0.0
        %v1041 = vmax.f32 %v996, 0.0
        %v1042 = vmax.f32 %v997, 0.0
        %v1043 = vmax.f32 %v998, 0.0
        %v1044 = vmax.f32 %v999, 0.0
        %v1045 = vmax.f32 %v1000, 0.0
        %v1046 = vmax.f32 %v1001, 0.0
        %v1047 = vmax.f32 %v1002, 0.0
        %v1048 = vmax.f32 %v1003, 0.0
        %v1049 = vmax.f32 %v1004, 0.0
        %v1050 = vmax.f32 %v1005, 0.0
        %v1051 = vmax.f32 %v1006, 0.0
        %v1052 = vmax.f32 %v1007, 0.0
        %v1053 = vmax.f32 %v1008, 0.0
        %v1054 = vmax.f32 %v1009, 0.0
        %v1055 = vmax.f32 %v1010, 0.0
        %v1056 = vmax.f32 %v1011, 0.0
        %v1057 = vmax.f32 %v1012, 0.0
        %v1058 = vmax.f32 %v1013, 0.0
        %v1059 = vmax.f32 %v1014, 0.0
        %v1060 = vmax.f32 %v1015, 0.0
        %v1061 = vmax.f32 %v1016, 0.0
        %v1062 = vmax.f32 %v1017, 0.0
        %v1063 = vmax.f32 %v1018, 0.0
        %v1064 = vmax.f32 %v1019, 0.0
        %v1065 = vmax.f32 %v1020, 0.0
        %v1066 = vmax.f32 %v1021, 0.0
        %v1067 = vmax.f32 %v1022, 0.0
        %v1068 = vmax.f32 %v1023, 0.0
        %1114 = vrot.lane.b32.xlu0 %v1024, 112
        %v1115 = vpop.permute.xlu0 %1114
        %1116 = vrot.lane.b32.xlu0 %v1025, 112
        %v1117 = vpop.permute.xlu0 %1116
        %1118 = vrot.lane.b32.xlu0 %v1026, 112
        %v1119 = vpop.permute.xlu0 %1118
        %1120 = vrot.lane.b32.xlu0 %v1027, 112
        %v1121 = vpop.permute.xlu0 %1120
        %1122 = vrot.lane.b32.xlu0 %v1028, 112
        %v1123 = vpop.permute.xlu0 %1122
        %1124 = vrot.lane.b32.xlu0 %v1029, 112
        %v1125 = vpop.permute.xlu0 %1124
        %1126 = vrot.lane.b32.xlu0 %v1030, 112
        %v1127 = vpop.permute.xlu0 %1126
        %1128 = vrot.lane.b32.xlu0 %v1031, 112
        %v1129 = vpop.permute.xlu0 %1128
        %1130 = vrot.lane.b32.xlu0 %v1032, 112
        %v1131 = vpop.permute.xlu0 %1130
        %1132 = vrot.lane.b32.xlu0 %v1033, 112
        %v1133 = vpop.permute.xlu0 %1132
        %1134 = vrot.lane.b32.xlu0 %v1034, 112
        %v1135 = vpop.permute.xlu0 %1134
        %1136 = vrot.lane.b32.xlu0 %v1035, 112
        %v1137 = vpop.permute.xlu0 %1136
        %1138 = vrot.lane.b32.xlu0 %v1036, 112
        %v1139 = vpop.permute.xlu0 %1138
        %1140 = vrot.lane.b32.xlu0 %v1037, 112
        %v1141 = vpop.permute.xlu0 %1140
        %1142 = vrot.lane.b32.xlu0 %v1038, 112
        %v1143 = vpop.permute.xlu0 %1142
        %1144 = vrot.lane.b32.xlu0 %v1039, 112
        %v1145 = vpop.permute.xlu0 %1144
        %1146 = vrot.lane.b32.xlu0 %v1040, 112
        %v1147 = vpop.permute.xlu0 %1146
        %1148 = vrot.lane.b32.xlu0 %v1041, 112
        %v1149 = vpop.permute.xlu0 %1148
        %1150 = vrot.lane.b32.xlu0 %v1042, 112
        %v1151 = vpop.permute.xlu0 %1150
        %1152 = vrot.lane.b32.xlu0 %v1043, 112
        %v1153 = vpop.permute.xlu0 %1152
        %1154 = vrot.lane.b32.xlu0 %v1044, 112
        %v1155 = vpop.permute.xlu0 %1154
        %1156 = vrot.lane.b32.xlu0 %v1045, 112
        %v1157 = vpop.permute.xlu0 %1156
        %1158 = vrot.lane.b32.xlu0 %v1046, 112
        %v1159 = vpop.permute.xlu0 %1158
        %1160 = vrot.lane.b32.xlu0 %v1047, 112
        %v1161 = vpop.permute.xlu0 %1160
        %1162 = vrot.lane.b32.xlu0 %v1048, 112
        %v1163 = vpop.permute.xlu0 %1162
        %1164 = vrot.lane.b32.xlu0 %v1049, 112
        %v1165 = vpop.permute.xlu0 %1164
        %1166 = vrot.lane.b32.xlu0 %v1050, 112
        %v1167 = vpop.permute.xlu0 %1166
        %1168 = vrot.lane.b32.xlu0 %v1051, 112
        %v1169 = vpop.permute.xlu0 %1168
        %1170 = vrot.lane.b32.xlu0 %v1052, 112
        %v1171 = vpop.permute.xlu0 %1170
        %1172 = vrot.lane.b32.xlu0 %v1053, 112
        %v1173 = vpop.permute.xlu0 %1172
        %1174 = vrot.lane.b32.xlu0 %v1054, 112
        %v1175 = vpop.permute.xlu0 %1174
        %1176 = vrot.lane.b32.xlu0 %v1055, 112
        %v1177 = vpop.permute.xlu0 %1176
        %1178 = vrot.lane.b32.xlu0 %v1056, 112
        %v1179 = vpop.permute.xlu0 %1178
        %1180 = vrot.lane.b32.xlu0 %v1057, 112
        %v1181 = vpop.permute.xlu0 %1180
        %1182 = vrot.lane.b32.xlu0 %v1058, 112
        %v1183 = vpop.permute.xlu0 %1182
        %1184 = vrot.lane.b32.xlu0 %v1059, 112
        %v1185 = vpop.permute.xlu0 %1184
        %1186 = vrot.lane.b32.xlu0 %v1060, 112
        %v1187 = vpop.permute.xlu0 %1186
        %1188 = vrot.lane.b32.xlu0 %v1061, 112
        %v1189 = vpop.permute.xlu0 %1188
        %1190 = vrot.lane.b32.xlu0 %v1062, 112
        %v1191 = vpop.permute.xlu0 %1190
        %1192 = vrot.lane.b32.xlu0 %v1063, 112
        %v1193 = vpop.permute.xlu0 %1192
        %1194 = vrot.lane.b32.xlu0 %v1064, 112
        %v1195 = vpop.permute.xlu0 %1194
        %1196 = vrot.lane.b32.xlu0 %v1065, 112
        %v1197 = vpop.permute.xlu0 %1196
        %1198 = vrot.lane.b32.xlu0 %v1066, 112
        %v1199 = vpop.permute.xlu0 %1198
        %1200 = vrot.lane.b32.xlu0 %v1067, 112
        %v1201 = vpop.permute.xlu0 %1200
        %1202 = vrot.lane.b32.xlu0 %v1068, 112
        %v1203 = vpop.permute.xlu0 %1202
        %vm1204 = vcmask 916480
        %v1205 = vsel %vm1204, %v1115, %v1117
        %v1206 = vsel %vm1204, %v1117, %v1119
        %v1207 = vsel %vm1204, %v1119, %v1121
        %v1208 = vsel %vm1204, %v1121, %v1123
        %v1209 = vsel %vm1204, %v1125, %v1127
        %v1210 = vsel %vm1204, %v1127, %v1129
        %v1211 = vsel %vm1204, %v1129, %v1131
        %v1212 = vsel %vm1204, %v1131, %v1133
        %v1213 = vsel %vm1204, %v1135, %v1137
        %v1214 = vsel %vm1204, %v1137, %v1139
        %v1215 = vsel %vm1204, %v1139, %v1141
        %v1216 = vsel %vm1204, %v1141, %v1143
        %v1217 = vsel %vm1204, %v1145, %v1147
        %v1218 = vsel %vm1204, %v1147, %v1149
        %v1219 = vsel %vm1204, %v1149, %v1151
        %v1220 = vsel %vm1204, %v1151, %v1153
        %v1221 = vsel %vm1204, %v1155, %v1157
        %v1222 = vsel %vm1204, %v1157, %v1159
        %v1223 = vsel %vm1204, %v1159, %v1161
        %v1224 = vsel %vm1204, %v1161, %v1163
        %v1225 = vsel %vm1204, %v1165, %v1167
        %v1226 = vsel %vm1204, %v1167, %v1169
        %v1227 = vsel %vm1204, %v1169, %v1171
        %v1228 = vsel %vm1204, %v1171, %v1173
        %v1229 = vsel %vm1204, %v1175, %v1177
        %v1230 = vsel %vm1204, %v1177, %v1179
        %v1231 = vsel %vm1204, %v1179, %v1181
        %v1232 = vsel %vm1204, %v1181, %v1183
        %v1233 = vsel %vm1204, %v1185, %v1187
        %v1234 = vsel %vm1204, %v1187, %v1189
        %v1235 = vsel %vm1204, %v1189, %v1191
        %v1236 = vsel %vm1204, %v1191, %v1193
        %v1237 = vsel %vm1204, %v1195, %v1197
        %v1238 = vsel %vm1204, %v1197, %v1199
        %v1239 = vsel %vm1204, %v1199, %v1201
        %v1240 = vsel %vm1204, %v1201, %v1203
        %v1277 = vmax.f32 %v1024, %v1205
        %v1278 = vmax.f32 %v1025, %v1206
        %v1279 = vmax.f32 %v1026, %v1207
        %v1280 = vmax.f32 %v1027, %v1208
        %v1281 = vmax.f32 %v1029, %v1209
        %v1282 = vmax.f32 %v1030, %v1210
        %v1283 = vmax.f32 %v1031, %v1211
        %v1284 = vmax.f32 %v1032, %v1212
        %v1285 = vmax.f32 %v1034, %v1213
        %v1286 = vmax.f32 %v1035, %v1214
        %v1287 = vmax.f32 %v1036, %v1215
        %v1288 = vmax.f32 %v1037, %v1216
        %v1289 = vmax.f32 %v1039, %v1217
        %v1290 = vmax.f32 %v1040, %v1218
        %v1291 = vmax.f32 %v1041, %v1219
        %v1292 = vmax.f32 %v1042, %v1220
        %v1293 = vmax.f32 %v1044, %v1221
        %v1294 = vmax.f32 %v1045, %v1222
        %v1295 = vmax.f32 %v1046, %v1223
        %v1296 = vmax.f32 %v1047, %v1224
        %v1297 = vmax.f32 %v1049, %v1225
        %v1298 = vmax.f32 %v1050, %v1226
        %v1299 = vmax.f32 %v1051, %v1227
        %v1300 = vmax.f32 %v1052, %v1228
        %v1301 = vmax.f32 %v1054, %v1229
        %v1302 = vmax.f32 %v1055, %v1230
        %v1303 = vmax.f32 %v1056, %v1231
        %v1304 = vmax.f32 %v1057, %v1232
        %v1305 = vmax.f32 %v1059, %v1233
        %v1306 = vmax.f32 %v1060, %v1234
        %v1307 = vmax.f32 %v1061, %v1235
        %v1308 = vmax.f32 %v1062, %v1236
        %v1309 = vmax.f32 %v1064, %v1237
        %v1310 = vmax.f32 %v1065, %v1238
        %v1311 = vmax.f32 %v1066, %v1239
        %v1312 = vmax.f32 %v1067, %v1240
        %1313 = vrot.lane.b32.xlu0 %v1024, 96
        %v1314 = vpop.permute.xlu0 %1313
        %1315 = vrot.lane.b32.xlu0 %v1025, 96
        %v1316 = vpop.permute.xlu0 %1315
        %1317 = vrot.lane.b32.xlu0 %v1026, 96
        %v1318 = vpop.permute.xlu0 %1317
        %1319 = vrot.lane.b32.xlu0 %v1027, 96
        %v1320 = vpop.permute.xlu0 %1319
        %1321 = vrot.lane.b32.xlu0 %v1028, 96
        %v1322 = vpop.permute.xlu0 %1321
        %1323 = vrot.lane.b32.xlu0 %v1029, 96
        %v1324 = vpop.permute.xlu0 %1323
        %1325 = vrot.lane.b32.xlu0 %v1030, 96
        %v1326 = vpop.permute.xlu0 %1325
        %1327 = vrot.lane.b32.xlu0 %v1031, 96
        %v1328 = vpop.permute.xlu0 %1327
        %1329 = vrot.lane.b32.xlu0 %v1032, 96
        %v1330 = vpop.permute.xlu0 %1329
        %1331 = vrot.lane.b32.xlu0 %v1033, 96
        %v1332 = vpop.permute.xlu0 %1331
        %1333 = vrot.lane.b32.xlu0 %v1034, 96
        %v1334 = vpop.permute.xlu0 %1333
        %1335 = vrot.lane.b32.xlu0 %v1035, 96
        %v1336 = vpop.permute.xlu0 %1335
        %1337 = vrot.lane.b32.xlu0 %v1036, 96
        %v1338 = vpop.permute.xlu0 %1337
        %1339 = vrot.lane.b32.xlu0 %v1037, 96
        %v1340 = vpop.permute.xlu0 %1339
        %1341 = vrot.lane.b32.xlu0 %v1038, 96
        %v1342 = vpop.permute.xlu0 %1341
        %1343 = vrot.lane.b32.xlu0 %v1039, 96
        %v1344 = vpop.permute.xlu0 %1343
        %1345 = vrot.lane.b32.xlu0 %v1040, 96
        %v1346 = vpop.permute.xlu0 %1345
        %1347 = vrot.lane.b32.xlu0 %v1041, 96
        %v1348 = vpop.permute.xlu0 %1347
        %1349 = vrot.lane.b32.xlu0 %v1042, 96
        %v1350 = vpop.permute.xlu0 %1349
        %1351 = vrot.lane.b32.xlu0 %v1043, 96
        %v1352 = vpop.permute.xlu0 %1351
        %1353 = vrot.lane.b32.xlu0 %v1044, 96
        %v1354 = vpop.permute.xlu0 %1353
        %1355 = vrot.lane.b32.xlu0 %v1045, 96
        %v1356 = vpop.permute.xlu0 %1355
        %1357 = vrot.lane.b32.xlu0 %v1046, 96
        %v1358 = vpop.permute.xlu0 %1357
        %1359 = vrot.lane.b32.xlu0 %v1047, 96
        %v1360 = vpop.permute.xlu0 %1359
        %1361 = vrot.lane.b32.xlu0 %v1048, 96
        %v1362 = vpop.permute.xlu0 %1361
        %1363 = vrot.lane.b32.xlu0 %v1049, 96
        %v1364 = vpop.permute.xlu0 %1363
        %1365 = vrot.lane.b32.xlu0 %v1050, 96
        %v1366 = vpop.permute.xlu0 %1365
        %1367 = vrot.lane.b32.xlu0 %v1051, 96
        %v1368 = vpop.permute.xlu0 %1367
        %1369 = vrot.lane.b32.xlu0 %v1052, 96
        %v1370 = vpop.permute.xlu0 %1369
        %1371 = vrot.lane.b32.xlu0 %v1053, 96
        %v1372 = vpop.permute.xlu0 %1371
        %1373 = vrot.lane.b32.xlu0 %v1054, 96
        %v1374 = vpop.permute.xlu0 %1373
        %1375 = vrot.lane.b32.xlu0 %v1055, 96
        %v1376 = vpop.permute.xlu0 %1375
        %1377 = vrot.lane.b32.xlu0 %v1056, 96
        %v1378 = vpop.permute.xlu0 %1377
        %1379 = vrot.lane.b32.xlu0 %v1057, 96
        %v1380 = vpop.permute.xlu0 %1379
        %1381 = vrot.lane.b32.xlu0 %v1058, 96
        %v1382 = vpop.permute.xlu0 %1381
        %1383 = vrot.lane.b32.xlu0 %v1059, 96
        %v1384 = vpop.permute.xlu0 %1383
        %1385 = vrot.lane.b32.xlu0 %v1060, 96
        %v1386 = vpop.permute.xlu0 %1385
        %1387 = vrot.lane.b32.xlu0 %v1061, 96
        %v1388 = vpop.permute.xlu0 %1387
        %1389 = vrot.lane.b32.xlu0 %v1062, 96
        %v1390 = vpop.permute.xlu0 %1389
        %1391 = vrot.lane.b32.xlu0 %v1063, 96
        %v1392 = vpop.permute.xlu0 %1391
        %1393 = vrot.lane.b32.xlu0 %v1064, 96
        %v1394 = vpop.permute.xlu0 %1393
        %1395 = vrot.lane.b32.xlu0 %v1065, 96
        %v1396 = vpop.permute.xlu0 %1395
        %1397 = vrot.lane.b32.xlu0 %v1066, 96
        %v1398 = vpop.permute.xlu0 %1397
        %1399 = vrot.lane.b32.xlu0 %v1067, 96
        %v1400 = vpop.permute.xlu0 %1399
        %1401 = vrot.lane.b32.xlu0 %v1068, 96
        %v1402 = vpop.permute.xlu0 %1401
        %vm1403 = vcmask 785408
        %v1404 = vsel %vm1403, %v1314, %v1316
        %v1405 = vsel %vm1403, %v1316, %v1318
        %v1406 = vsel %vm1403, %v1318, %v1320
        %v1407 = vsel %vm1403, %v1320, %v1322
        %v1408 = vsel %vm1403, %v1324, %v1326
        %v1409 = vsel %vm1403, %v1326, %v1328
        %v1410 = vsel %vm1403, %v1328, %v1330
        %v1411 = vsel %vm1403, %v1330, %v1332
        %v1412 = vsel %vm1403, %v1334, %v1336
        %v1413 = vsel %vm1403, %v1336, %v1338
        %v1414 = vsel %vm1403, %v1338, %v1340
        %v1415 = vsel %vm1403, %v1340, %v1342
        %v1416 = vsel %vm1403, %v1344, %v1346
        %v1417 = vsel %vm1403, %v1346, %v1348
        %v1418 = vsel %vm1403, %v1348, %v1350
        %v1419 = vsel %vm1403, %v1350, %v1352
        %v1420 = vsel %vm1403, %v1354, %v1356
        %v1421 = vsel %vm1403, %v1356, %v1358
        %v1422 = vsel %vm1403, %v1358, %v1360
        %v1423 = vsel %vm1403, %v1360, %v1362
        %v1424 = vsel %vm1403, %v1364, %v1366
        %v1425 = vsel %vm1403, %v1366, %v1368
        %v1426 = vsel %vm1403, %v1368, %v1370
        %v1427 = vsel %vm1403, %v1370, %v1372
        %v1428 = vsel %vm1403, %v1374, %v1376
        %v1429 = vsel %vm1403, %v1376, %v1378
        %v1430 = vsel %vm1403, %v1378, %v1380
        %v1431 = vsel %vm1403, %v1380, %v1382
        %v1432 = vsel %vm1403, %v1384, %v1386
        %v1433 = vsel %vm1403, %v1386, %v1388
        %v1434 = vsel %vm1403, %v1388, %v1390
        %v1435 = vsel %vm1403, %v1390, %v1392
        %v1436 = vsel %vm1403, %v1394, %v1396
        %v1437 = vsel %vm1403, %v1396, %v1398
        %v1438 = vsel %vm1403, %v1398, %v1400
        %v1439 = vsel %vm1403, %v1400, %v1402
        %v1476 = vmax.f32 %v1277, %v1404
        %v1477 = vmax.f32 %v1278, %v1405
        %v1478 = vmax.f32 %v1279, %v1406
        %v1479 = vmax.f32 %v1280, %v1407
        %v1480 = vmax.f32 %v1281, %v1408
        %v1481 = vmax.f32 %v1282, %v1409
        %v1482 = vmax.f32 %v1283, %v1410
        %v1483 = vmax.f32 %v1284, %v1411
        %v1484 = vmax.f32 %v1285, %v1412
        %v1485 = vmax.f32 %v1286, %v1413
        %v1486 = vmax.f32 %v1287, %v1414
        %v1487 = vmax.f32 %v1288, %v1415
        %v1488 = vmax.f32 %v1289, %v1416
        %v1489 = vmax.f32 %v1290, %v1417
        %v1490 = vmax.f32 %v1291, %v1418
        %v1491 = vmax.f32 %v1292, %v1419
        %v1492 = vmax.f32 %v1293, %v1420
        %v1493 = vmax.f32 %v1294, %v1421
        %v1494 = vmax.f32 %v1295, %v1422
        %v1495 = vmax.f32 %v1296, %v1423
        %v1496 = vmax.f32 %v1297, %v1424
        %v1497 = vmax.f32 %v1298, %v1425
        %v1498 = vmax.f32 %v1299, %v1426
        %v1499 = vmax.f32 %v1300, %v1427
        %v1500 = vmax.f32 %v1301, %v1428
        %v1501 = vmax.f32 %v1302, %v1429
        %v1502 = vmax.f32 %v1303, %v1430
        %v1503 = vmax.f32 %v1304, %v1431
        %v1504 = vmax.f32 %v1305, %v1432
        %v1505 = vmax.f32 %v1306, %v1433
        %v1506 = vmax.f32 %v1307, %v1434
        %v1507 = vmax.f32 %v1308, %v1435
        %v1508 = vmax.f32 %v1309, %v1436
        %v1509 = vmax.f32 %v1310, %v1437
        %v1510 = vmax.f32 %v1311, %v1438
        %v1511 = vmax.f32 %v1312, %v1439
        %vm1532 = vcmask 1046528
        %v1533 = vrot.slane %v1476, 1
        %v1534 = vrot.slane %v1480, 1
        %v1535 = vsel %vm1532, %v1533, %v1534
        %v1536 = vrot.slane %v1477, 1
        %v1537 = vrot.slane %v1481, 1
        %v1538 = vsel %vm1532, %v1536, %v1537
        %v1539 = vrot.slane %v1478, 1
        %v1540 = vrot.slane %v1482, 1
        %v1541 = vsel %vm1532, %v1539, %v1540
        %v1542 = vrot.slane %v1479, 1
        %v1543 = vrot.slane %v1483, 1
        %v1544 = vsel %vm1532, %v1542, %v1543
        %v1545 = vrot.slane %v1484, 1
        %v1546 = vsel %vm1532, %v1534, %v1545
        %v1547 = vrot.slane %v1485, 1
        %v1548 = vsel %vm1532, %v1537, %v1547
        %v1549 = vrot.slane %v1486, 1
        %v1550 = vsel %vm1532, %v1540, %v1549
        %v1551 = vrot.slane %v1487, 1
        %v1552 = vsel %vm1532, %v1543, %v1551
        %v1553 = vrot.slane %v1488, 1
        %v1554 = vsel %vm1532, %v1545, %v1553
        %v1555 = vrot.slane %v1489, 1
        %v1556 = vsel %vm1532, %v1547, %v1555
        %v1557 = vrot.slane %v1490, 1
        %v1558 = vsel %vm1532, %v1549, %v1557
        %v1559 = vrot.slane %v1491, 1
        %v1560 = vsel %vm1532, %v1551, %v1559
        %v1561 = vrot.slane %v1492, 1
        %v1562 = vsel %vm1532, %v1553, %v1561
        %v1563 = vrot.slane %v1493, 1
        %v1564 = vsel %vm1532, %v1555, %v1563
        %v1565 = vrot.slane %v1494, 1
        %v1566 = vsel %vm1532, %v1557, %v1565
        %v1567 = vrot.slane %v1495, 1
        %v1568 = vsel %vm1532, %v1559, %v1567
        %v1585 = vmax.f32 %v1476, %v1535
        %v1586 = vmax.f32 %v1477, %v1538
        %v1587 = vmax.f32 %v1478, %v1541
        %v1588 = vmax.f32 %v1479, %v1544
        %v1589 = vmax.f32 %v1480, %v1546
        %v1590 = vmax.f32 %v1481, %v1548
        %v1591 = vmax.f32 %v1482, %v1550
        %v1592 = vmax.f32 %v1483, %v1552
        %v1593 = vmax.f32 %v1484, %v1554
        %v1594 = vmax.f32 %v1485, %v1556
        %v1595 = vmax.f32 %v1486, %v1558
        %v1596 = vmax.f32 %v1487, %v1560
        %v1597 = vmax.f32 %v1488, %v1562
        %v1598 = vmax.f32 %v1489, %v1564
        %v1599 = vmax.f32 %v1490, %v1566
        %v1600 = vmax.f32 %v1491, %v1568
        %vm1601 = vcmask 1045504
        %v1602 = vrot.slane %v1476, 2
        %v1603 = vrot.slane %v1480, 2
        %v1604 = vsel %vm1601, %v1602, %v1603
        %v1605 = vrot.slane %v1477, 2
        %v1606 = vrot.slane %v1481, 2
        %v1607 = vsel %vm1601, %v1605, %v1606
        %v1608 = vrot.slane %v1478, 2
        %v1609 = vrot.slane %v1482, 2
        %v1610 = vsel %vm1601, %v1608, %v1609
        %v1611 = vrot.slane %v1479, 2
        %v1612 = vrot.slane %v1483, 2
        %v1613 = vsel %vm1601, %v1611, %v1612
        %v1614 = vrot.slane %v1484, 2
        %v1615 = vsel %vm1601, %v1603, %v1614
        %v1616 = vrot.slane %v1485, 2
        %v1617 = vsel %vm1601, %v1606, %v1616
        %v1618 = vrot.slane %v1486, 2
        %v1619 = vsel %vm1601, %v1609, %v1618
        %v1620 = vrot.slane %v1487, 2
        %v1621 = vsel %vm1601, %v1612, %v1620
        %v1622 = vrot.slane %v1488, 2
        %v1623 = vsel %vm1601, %v1614, %v1622
        %v1624 = vrot.slane %v1489, 2
        %v1625 = vsel %vm1601, %v1616, %v1624
        %v1626 = vrot.slane %v1490, 2
        %v1627 = vsel %vm1601, %v1618, %v1626
        %v1628 = vrot.slane %v1491, 2
        %v1629 = vsel %vm1601, %v1620, %v1628
        %v1630 = vrot.slane %v1492, 2
        %v1631 = vsel %vm1601, %v1622, %v1630
        %v1632 = vrot.slane %v1493, 2
        %v1633 = vsel %vm1601, %v1624, %v1632
        %v1634 = vrot.slane %v1494, 2
        %v1635 = vsel %vm1601, %v1626, %v1634
        %v1636 = vrot.slane %v1495, 2
        %v1637 = vsel %vm1601, %v1628, %v1636
        %v1654 = vmax.f32 %v1585, %v1604
        %v1655 = vmax.f32 %v1586, %v1607
        %v1656 = vmax.f32 %v1587, %v1610
        %v1657 = vmax.f32 %v1588, %v1613
        %v1658 = vmax.f32 %v1589, %v1615
        %v1659 = vmax.f32 %v1590, %v1617
        %v1660 = vmax.f32 %v1591, %v1619
        %v1661 = vmax.f32 %v1592, %v1621
        %v1662 = vmax.f32 %v1593, %v1623
        %v1663 = vmax.f32 %v1594, %v1625
        %v1664 = vmax.f32 %v1595, %v1627
        %v1665 = vmax.f32 %v1596, %v1629
        %v1666 = vmax.f32 %v1597, %v1631
        %v1667 = vmax.f32 %v1598, %v1633
        %v1668 = vmax.f32 %v1599, %v1635
        %v1669 = vmax.f32 %v1600, %v1637
        %1670 = vst [vmem:[%s3] sm:$0xff] %v1654
        %1671 = vst [vmem:[%s3 + $0x8] sm:$0xff] %v1655
        %1672 = vst [vmem:[%s3 + $0x10] sm:$0xff] %v1656
        %1673 = vst [vmem:[%s3 + $0x18] sm:$0xff] %v1657
        %1674 = vst [vmem:[%s3 + $0x20] sm:$0xff] %v1658
        %1675 = vst [vmem:[%s3 + $0x28] sm:$0xff] %v1659
        %1676 = vst [vmem:[%s3 + $0x30] sm:$0xff] %v1660
        %1677 = vst [vmem:[%s3 + $0x38] sm:$0xff] %v1661
        %1678 = vst [vmem:[%s3 + $0x40] sm:$0xff] %v1662
        %1679 = vst [vmem:[%s3 + $0x48] sm:$0xff] %v1663
        %1680 = vst [vmem:[%s3 + $0x50] sm:$0xff] %v1664
        %1681 = vst [vmem:[%s3 + $0x58] sm:$0xff] %v1665
        %1682 = vst [vmem:[%s3 + $0x60] sm:$0xff] %v1666
        %1683 = vst [vmem:[%s3 + $0x68] sm:$0xff] %v1667
        %1684 = vst [vmem:[%s3 + $0x70] sm:$0xff] %v1668
        %1685 = vst [vmem:[%s3 + $0x78] sm:$0xff] %v1669
        %v1702 = vrot.slane %v1496, 1
        %v1703 = vsel %vm1532, %v1561, %v1702
        %v1704 = vrot.slane %v1497, 1
        %v1705 = vsel %vm1532, %v1563, %v1704
        %v1706 = vrot.slane %v1498, 1
        %v1707 = vsel %vm1532, %v1565, %v1706
        %v1708 = vrot.slane %v1499, 1
        %v1709 = vsel %vm1532, %v1567, %v1708
        %v1710 = vrot.slane %v1500, 1
        %v1711 = vsel %vm1532, %v1702, %v1710
        %v1712 = vrot.slane %v1501, 1
        %v1713 = vsel %vm1532, %v1704, %v1712
        %v1714 = vrot.slane %v1502, 1
        %v1715 = vsel %vm1532, %v1706, %v1714
        %v1716 = vrot.slane %v1503, 1
        %v1717 = vsel %vm1532, %v1708, %v1716
        %v1718 = vrot.slane %v1504, 1
        %v1719 = vsel %vm1532, %v1710, %v1718
        %v1720 = vrot.slane %v1505, 1
        %v1721 = vsel %vm1532, %v1712, %v1720
        %v1722 = vrot.slane %v1506, 1
        %v1723 = vsel %vm1532, %v1714, %v1722
        %v1724 = vrot.slane %v1507, 1
        %v1725 = vsel %vm1532, %v1716, %v1724
        %v1726 = vrot.slane %v1508, 1
        %v1727 = vsel %vm1532, %v1718, %v1726
        %v1728 = vrot.slane %v1509, 1
        %v1729 = vsel %vm1532, %v1720, %v1728
        %v1730 = vrot.slane %v1510, 1
        %v1731 = vsel %vm1532, %v1722, %v1730
        %v1732 = vrot.slane %v1511, 1
        %v1733 = vsel %vm1532, %v1724, %v1732
        %v1754 = vmax.f32 %v1492, %v1703
        %v1755 = vmax.f32 %v1493, %v1705
        %v1756 = vmax.f32 %v1494, %v1707
        %v1757 = vmax.f32 %v1495, %v1709
        %v1758 = vmax.f32 %v1496, %v1711
        %v1759 = vmax.f32 %v1497, %v1713
        %v1760 = vmax.f32 %v1498, %v1715
        %v1761 = vmax.f32 %v1499, %v1717
        %v1762 = vmax.f32 %v1500, %v1719
        %v1763 = vmax.f32 %v1501, %v1721
        %v1764 = vmax.f32 %v1502, %v1723
        %v1765 = vmax.f32 %v1503, %v1725
        %v1766 = vmax.f32 %v1504, %v1727
        %v1767 = vmax.f32 %v1505, %v1729
        %v1768 = vmax.f32 %v1506, %v1731
        %v1769 = vmax.f32 %v1507, %v1733
        %v1770 = vmax.f32 %v1508, %v1726
        %v1771 = vmax.f32 %v1509, %v1728
        %v1772 = vmax.f32 %v1510, %v1730
        %v1773 = vmax.f32 %v1511, %v1732
        %v1774 = vrot.slane %v1496, 2
        %v1775 = vsel %vm1601, %v1630, %v1774
        %v1776 = vrot.slane %v1497, 2
        %v1777 = vsel %vm1601, %v1632, %v1776
        %v1778 = vrot.slane %v1498, 2
        %v1779 = vsel %vm1601, %v1634, %v1778
        %v1780 = vrot.slane %v1499, 2
        %v1781 = vsel %vm1601, %v1636, %v1780
        %v1782 = vrot.slane %v1500, 2
        %v1783 = vsel %vm1601, %v1774, %v1782
        %v1784 = vrot.slane %v1501, 2
        %v1785 = vsel %vm1601, %v1776, %v1784
        %v1786 = vrot.slane %v1502, 2
        %v1787 = vsel %vm1601, %v1778, %v1786
        %v1788 = vrot.slane %v1503, 2
        %v1789 = vsel %vm1601, %v1780, %v1788
        %v1790 = vrot.slane %v1504, 2
        %v1791 = vsel %vm1601, %v1782, %v1790
        %v1792 = vrot.slane %v1505, 2
        %v1793 = vsel %vm1601, %v1784, %v1792
        %v1794 = vrot.slane %v1506, 2
        %v1795 = vsel %vm1601, %v1786, %v1794
        %v1796 = vrot.slane %v1507, 2
        %v1797 = vsel %vm1601, %v1788, %v1796
        %v1798 = vrot.slane %v1508, 2
        %v1799 = vsel %vm1601, %v1790, %v1798
        %v1800 = vrot.slane %v1509, 2
        %v1801 = vsel %vm1601, %v1792, %v1800
        %v1802 = vrot.slane %v1510, 2
        %v1803 = vsel %vm1601, %v1794, %v1802
        %v1804 = vrot.slane %v1511, 2
        %v1805 = vsel %vm1601, %v1796, %v1804
        %v1826 = vmax.f32 %v1754, %v1775
        %v1827 = vmax.f32 %v1755, %v1777
        %v1828 = vmax.f32 %v1756, %v1779
        %v1829 = vmax.f32 %v1757, %v1781
        %v1830 = vmax.f32 %v1758, %v1783
        %v1831 = vmax.f32 %v1759, %v1785
        %v1832 = vmax.f32 %v1760, %v1787
        %v1833 = vmax.f32 %v1761, %v1789
        %v1834 = vmax.f32 %v1762, %v1791
        %v1835 = vmax.f32 %v1763, %v1793
        %v1836 = vmax.f32 %v1764, %v1795
        %v1837 = vmax.f32 %v1765, %v1797
        %v1838 = vmax.f32 %v1766, %v1799
        %v1839 = vmax.f32 %v1767, %v1801
        %v1840 = vmax.f32 %v1768, %v1803
        %v1841 = vmax.f32 %v1769, %v1805
        %v1842 = vmax.f32 %v1770, %v1798
        %v1843 = vmax.f32 %v1771, %v1800
        %v1844 = vmax.f32 %v1772, %v1802
        %v1845 = vmax.f32 %v1773, %v1804
        %v1866 = vrot.slane %v1826, 2
        %v1867 = vrot.slane %v1830, 2
        %v1868 = vsel %vm1601, %v1866, %v1867
        %v1869 = vrot.slane %v1827, 2
        %v1870 = vrot.slane %v1831, 2
        %v1871 = vsel %vm1601, %v1869, %v1870
        %v1872 = vrot.slane %v1828, 2
        %v1873 = vrot.slane %v1832, 2
        %v1874 = vsel %vm1601, %v1872, %v1873
        %v1875 = vrot.slane %v1829, 2
        %v1876 = vrot.slane %v1833, 2
        %v1877 = vsel %vm1601, %v1875, %v1876
        %v1878 = vrot.slane %v1834, 2
        %v1879 = vsel %vm1601, %v1867, %v1878
        %v1880 = vrot.slane %v1835, 2
        %v1881 = vsel %vm1601, %v1870, %v1880
        %v1882 = vrot.slane %v1836, 2
        %v1883 = vsel %vm1601, %v1873, %v1882
        %v1884 = vrot.slane %v1837, 2
        %v1885 = vsel %vm1601, %v1876, %v1884
        %v1886 = vrot.slane %v1838, 2
        %v1887 = vsel %vm1601, %v1878, %v1886
        %v1888 = vrot.slane %v1839, 2
        %v1889 = vsel %vm1601, %v1880, %v1888
        %v1890 = vrot.slane %v1840, 2
        %v1891 = vsel %vm1601, %v1882, %v1890
        %v1892 = vrot.slane %v1841, 2
        %v1893 = vsel %vm1601, %v1884, %v1892
        %v1894 = vrot.slane %v1842, 2
        %v1895 = vsel %vm1601, %v1886, %v1894
        %v1896 = vrot.slane %v1843, 2
        %v1897 = vsel %vm1601, %v1888, %v1896
        %v1898 = vrot.slane %v1844, 2
        %v1899 = vsel %vm1601, %v1890, %v1898
        %v1900 = vrot.slane %v1845, 2
        %v1901 = vsel %vm1601, %v1892, %v1900
        %1918 = vst [vmem:[%s3 + $0x80] sm:$0xff] %v1868
        %1919 = vst [vmem:[%s3 + $0x88] sm:$0xff] %v1871
        %1920 = vst [vmem:[%s3 + $0x90] sm:$0xff] %v1874
        %1921 = vst [vmem:[%s3 + $0x98] sm:$0xff] %v1877
        %1922 = vst [vmem:[%s3 + $0xa0] sm:$0xff] %v1879
        %1923 = vst [vmem:[%s3 + $0xa8] sm:$0xff] %v1881
        %1924 = vst [vmem:[%s3 + $0xb0] sm:$0xff] %v1883
        %1925 = vst [vmem:[%s3 + $0xb8] sm:$0xff] %v1885
        %1926 = vst [vmem:[%s3 + $0xc0] sm:$0xff] %v1887
        %1927 = vst [vmem:[%s3 + $0xc8] sm:$0xff] %v1889
        %1928 = vst [vmem:[%s3 + $0xd0] sm:$0xff] %v1891
        %1929 = vst [vmem:[%s3 + $0xd8] sm:$0xff] %v1893
        %1930 = vst [vmem:[%s3 + $0xe0] sm:$0xff] %v1895
        %1931 = vst [vmem:[%s3 + $0xe8] sm:$0xff] %v1897
        %1932 = vst [vmem:[%s3 + $0xf0] sm:$0xff] %v1899
        %1933 = vst [vmem:[%s3 + $0xf8] sm:$0xff] %v1901
      $region40: #{cnn_custom_forward.4} parent=31 // pred_fallthru
        _
      // Predicated region
      $region41: #{cnn_custom_forward.4} parent=31 // pred_check
        %p1934 = pneg %p100
      $region42: #{cnn_custom_forward.4} parent=31 // pred_check_branch
        %1936 = sbr.rel (%p1934) target = $region44
      $region43: #{cnn_custom_forward.4} parent=31 // pred_region
        _
      $region44: #{cnn_custom_forward.4} parent=31 // pred_fallthru
        _
      // Predicated region
      $region45: #{cnn_custom_forward.4} parent=31 // pred_check
        %p1937 = pneg %p100
      $region46: #{cnn_custom_forward.4} parent=31 // pred_check_branch
        %1939 = sbr.rel (%p1937) target = $region48
      $region47: #{cnn_custom_forward.4} parent=31 // pred_region
        _
      $region48: #{cnn_custom_forward.4} parent=31 // pred_fallthru
        _
    $region32: #{cnn_custom_forward.4} parent=5 // pred_fallthru
      _
    %p1940 = scmp.le.s32.totalorder 2, %s9
    // Predicated region
    $region49: #{cnn_custom_forward.4} parent=5 // pred_check
      %p1941 = pneg %p1940
    $region50: #{cnn_custom_forward.4} parent=5 // pred_check_branch
      %1943 = sbr.rel (%p1941) target = $region52
    $region51: #{cnn_custom_forward.4} parent=5 // pred_region
      %s1944 = ssub.s32 %s9, 2
    $region52: #{cnn_custom_forward.4} parent=5 // pred_fallthru
      _
  $region6: #{cnn_custom_forward.4} parent=0 // loop_footer
    %s13 = sadd.s32 1, %s9
  $region7: #{cnn_custom_forward.4} parent=0 // loop_footer_branch
    %8 = sbr.rel target = $region3
  $region8: #{cnn_custom_forward.4} parent=0 // loop_exit
    _

// kernel: cnn_custom_forward.5
$region0: #{cnn_custom_forward.5}
  #allocation0 [shape = 'u32[]', space=smem, size = 0x4, offset = 0x4, fixed_abs, tag = 'smem constant byte address 0x4 - core index']
  #allocation1 [shape = 'u32[144,128]{1,0:T(1,128)}', space=vmem, size = 0x12000, scoped, tag = 'internal scratch']
  #allocation2 [shape = 'f32[36,576]{1,0:T(8,128)}', space=vmem, size = 0x19000, scoped, tag = 'scratch operand']
  %s0 = inlined_call_operand.vmem [shape: bf16[3,36,608], index: 0, kind: input, shape index: {}]
  %s1 = inlined_call_operand.vmem [shape: bf16[3,608,576], index: 1, kind: input, shape index: {}]
  %s2 = inlined_call_operand.vmem [shape: f32[1,576], index: 2, kind: input, shape index: {}]
  %s3 = inlined_call_operand.vmem [shape: f32[32,512], index: 3, kind: output, shape index: {}]
  %s4 = sld [smem:[#allocation0]]
  $region53: #{cnn_custom_forward.5} parent=0
    _
  %s6 = ssub.s32 1, %s4
  %s7 = scalar_select 0, %s6, %s4
  loop: start=0, step=1, limit=5
  $region2: #{cnn_custom_forward.5} parent=0 // loop_pre_header
    _
  $region3: #{cnn_custom_forward.5} parent=0 // loop_header
    %s9 = sphi 0, %s13
    %p10 = scmp.ge.s32.totalorder %s9, 5
    %s19 = sphi 0, %s21
    %s22 = sphi 0, %s19
    %s23 = sphi 0, %s22
    %s39 = sphi 0, %s23
    %s45 = sphi 0, %s47
    %s48 = sphi 0, %s45
    %s49 = sphi 0, %s48
    %s65 = sphi 0, %s49
    %s69 = sphi 0, %s69
    %s71 = sphi 0, %s69
    %s72 = sphi 0, %s71
    %s86 = sphi 0, %s72
    %s90 = sphi 0, %s90
    %s92 = sphi 0, %s90
    %s93 = sphi 0, %s92
    %s107 = sphi 0, %s93
  $region4: #{cnn_custom_forward.5} parent=0 // loop_header_branch
    %12 = sbr.rel (%p10) target = $region8
  $region5: #{cnn_custom_forward.5} parent=0 // loop_body
    %s14 = ssub.s32 %s9, 1
    %s15 = ssub.s32 %s9, 2
    %s16 = sadd.s32 %s9, 1
    %s17 = ssub.s32 %s9, %s16
    %p18 = scmp.eq.s32.totalorder %s17, 0
    %s20 = sadd.s32 %s19, 1
    %s21 = scalar_select %p18, %s19, %s20
    %p24 = pneg %p18
    %p25 = scmp.eq.s32.totalorder %s9, 2
    %p26 = por %p24, %p25
    %p27 = scmp.ne.s32.totalorder %s19, %s22
    %p28 = scmp.eq.s32.totalorder %s9, 0
    %p29 = por %p27, %p28
    %p30 = scmp.ne.s32.totalorder %s19, %s22
    %p31 = scmp.eq.s32.totalorder %s14, 2
    %p32 = por %p30, %p31
    %p33 = scmp.ne.s32.totalorder %s22, %s23
    %p34 = scmp.eq.s32.totalorder %s14, 0
    %p35 = por %p33, %p34
    %p36 = scmp.ne.s32.totalorder %s22, %s23
    %p37 = scmp.eq.s32.totalorder %s15, 2
    %p38 = por %p36, %p37
    %p40 = scmp.ne.s32.totalorder %s23, %s39
    %p41 = scmp.eq.s32.totalorder %s15, 0
    %p42 = por %p40, %p41
    %s43 = ssub.s32 %s9, %s16
    %p44 = scmp.eq.s32.totalorder %s43, 0
    %s46 = sadd.s32 %s45, 1
    %s47 = scalar_select %p44, %s45, %s46
    %p50 = pneg %p44
    %p51 = scmp.eq.s32.totalorder %s9, 2
    %p52 = por %p50, %p51
    %p53 = scmp.ne.s32.totalorder %s45, %s48
    %p54 = scmp.eq.s32.totalorder %s9, 0
    %p55 = por %p53, %p54
    %p56 = scmp.ne.s32.totalorder %s45, %s48
    %p57 = scmp.eq.s32.totalorder %s14, 2
    %p58 = por %p56, %p57
    %p59 = scmp.ne.s32.totalorder %s48, %s49
    %p60 = scmp.eq.s32.totalorder %s14, 0
    %p61 = por %p59, %p60
    %p62 = scmp.ne.s32.totalorder %s48, %s49
    %p63 = scmp.eq.s32.totalorder %s15, 2
    %p64 = por %p62, %p63
    %p66 = scmp.ne.s32.totalorder %s49, %s65
    %p67 = scmp.eq.s32.totalorder %s15, 0
    %p68 = por %p66, %p67
    %s70 = sadd.s32 %s69, 1
    %p73 = scmp.eq.s32.totalorder %s9, 2
    %p74 = scmp.ne.s32.totalorder %s69, %s71
    %p75 = scmp.eq.s32.totalorder %s9, 0
    %p76 = por %p74, %p75
    %p77 = scmp.ne.s32.totalorder %s69, %s71
    %p78 = scmp.eq.s32.totalorder %s14, 2
    %p79 = por %p77, %p78
    %p80 = scmp.ne.s32.totalorder %s71, %s72
    %p81 = scmp.eq.s32.totalorder %s14, 0
    %p82 = por %p80, %p81
    %p83 = scmp.ne.s32.totalorder %s71, %s72
    %p84 = scmp.eq.s32.totalorder %s15, 2
    %p85 = por %p83, %p84
    %p87 = scmp.ne.s32.totalorder %s72, %s86
    %p88 = scmp.eq.s32.totalorder %s15, 0
    %p89 = por %p87, %p88
    %s91 = sadd.s32 %s90, 1
    %p94 = scmp.eq.s32.totalorder %s9, 2
    %p95 = scmp.ne.s32.totalorder %s90, %s92
    %p96 = scmp.eq.s32.totalorder %s9, 0
    %p97 = por %p95, %p96
    %p98 = scmp.ne.s32.totalorder %s90, %s92
    %p99 = scmp.eq.s32.totalorder %s14, 2
    %p100 = por %p98, %p99
    %p101 = scmp.ne.s32.totalorder %s92, %s93
    %p102 = scmp.eq.s32.totalorder %s14, 0
    %p103 = por %p101, %p102
    %p104 = scmp.ne.s32.totalorder %s92, %s93
    %p105 = scmp.eq.s32.totalorder %s15, 2
    %p106 = por %p104, %p105
    %p108 = scmp.ne.s32.totalorder %s93, %s107
    %p109 = scmp.eq.s32.totalorder %s15, 0
    %p110 = por %p108, %p109
    %p111 = scmp.le.s32.totalorder 1, %s9
    %p112 = scmp.lt.s32.totalorder %s9, 4
    %p113 = pnand %p111, %p112
    %p114 = pneg %p113
    // Predicated region
    $region9: #{cnn_custom_forward.5} parent=5 // pred_check
      _
    $region10: #{cnn_custom_forward.5} parent=5 // pred_check_branch
      %116 = sbr.rel (%p113) target = $region12
    $region11: #{cnn_custom_forward.5} parent=5 // pred_region
      %s117 = ssub.s32 %s9, 1
      // Predicated region
      $region13: #{cnn_custom_forward.5} parent=11 // pred_check
        %p118 = pneg %p82
      $region14: #{cnn_custom_forward.5} parent=11 // pred_check_branch
        %120 = sbr.rel (%p118) target = $region16
      $region15: #{cnn_custom_forward.5} parent=11 // pred_region
        _
      $region16: #{cnn_custom_forward.5} parent=11 // pred_fallthru
        _
    $region12: #{cnn_custom_forward.5} parent=5 // pred_fallthru
      _
    %p121 = scmp.lt.s32.totalorder %s9, 3
    // Predicated region
    $region17: #{cnn_custom_forward.5} parent=5 // pred_check
      %p122 = pneg %p121
    $region18: #{cnn_custom_forward.5} parent=5 // pred_check_branch
      %124 = sbr.rel (%p122) target = $region20
    $region19: #{cnn_custom_forward.5} parent=5 // pred_region
      // Predicated region
      $region21: #{cnn_custom_forward.5} parent=19 // pred_check
        %p125 = pneg %p29
      $region22: #{cnn_custom_forward.5} parent=19 // pred_check_branch
        %127 = sbr.rel (%p125) target = $region24
      $region23: #{cnn_custom_forward.5} parent=19 // pred_region
        %p128 = scmp.lt.s32.totalorder %s9, 2
        %s129 = scalar_select %p128, %s9, 2
        %s130 = smul.addr %s129, 25
        %s131 = smul.addr %s130, 4
        %s132 = scalar_lea.vmem %s0, %s131
      $region24: #{cnn_custom_forward.5} parent=19 // pred_fallthru
        _
      // Predicated region
      $region25: #{cnn_custom_forward.5} parent=19 // pred_check
        %p133 = pneg %p55
      $region26: #{cnn_custom_forward.5} parent=19 // pred_check_branch
        %135 = sbr.rel (%p133) target = $region28
      $region27: #{cnn_custom_forward.5} parent=19 // pred_region
        %p136 = scmp.lt.s32.totalorder %s9, 2
        %s137 = scalar_select %p136, %s9, 2
        %s138 = smul.addr %s137, 380
        %s139 = smul.addr %s138, 4
        %s140 = scalar_lea.vmem %s1, %s139
      $region28: #{cnn_custom_forward.5} parent=19 // pred_fallthru
        _
    $region20: #{cnn_custom_forward.5} parent=5 // pred_fallthru
      _
    %p141 = scmp.le.s32.totalorder 1, %s9
    %p142 = scmp.lt.s32.totalorder %s9, 4
    %p143 = pnand %p141, %p142
    %p144 = pneg %p143
    // Predicated region
    $region29: #{cnn_custom_forward.5} parent=5 // pred_check
      _
    $region30: #{cnn_custom_forward.5} parent=5 // pred_check_branch
      %146 = sbr.rel (%p143) target = $region32
    $region31: #{cnn_custom_forward.5} parent=5 // pred_region
      %s147 = ssub.s32 %s9, 1
      %p148 = scmp.lt.s32.totalorder %s14, 2
      %s149 = scalar_select %p148, %s14, 2
      %s150 = smul.addr %s149, 25
      %s151 = smul.addr %s150, 4
      %s152 = scalar_lea.vmem %s0, %s151
      %p153 = pneg %p35
      %p154 = pneg %p32
      %p155 = scmp.lt.s32.totalorder %s14, 2
      %s156 = scalar_select %p155, %s14, 2
      %s157 = smul.addr %s156, 380
      %s158 = smul.addr %s157, 4
      %s159 = scalar_lea.vmem %s1, %s158
      %p160 = pneg %p61
      %p161 = pneg %p58
      %p162 = pneg %p82
      %p163 = pneg %p79
      %p164 = pneg %p103
      %p165 = pneg %p100
      %p166 = scmp.lt.s32.totalorder %s14, 2
      %s167 = scalar_select %p166, %s14, 2
      %s168 = smul.addr %s167, 25
      %s169 = smul.addr %s168, 4
      %s170 = scalar_lea.vmem %s0, %s169
      %p171 = scmp.lt.s32.totalorder %s14, 2
      %s172 = scalar_select %p171, %s14, 2
      %s173 = smul.addr %s172, 380
      %s174 = smul.addr %s173, 4
      %s175 = scalar_lea.vmem %s1, %s174
      %p177 = scmp.eq.s32.totalorder %s14, 0
      // Predicated region
      $region33: #{cnn_custom_forward.5} parent=31 // pred_check
        %p178 = pneg %p177
      $region34: #{cnn_custom_forward.5} parent=31 // pred_check_branch
        %180 = sbr.rel (%p178) target = $region36
      $region35: #{cnn_custom_forward.5} parent=31 // pred_region
        %181 = vst [vmem:[#allocation2] sm:$0xff] 0.0
        %182 = vst [vmem:[#allocation2 + $0x8] sm:$0xff] 0.0
        %183 = vst [vmem:[#allocation2 + $0x10] sm:$0xff] 0.0
        %184 = vst [vmem:[#allocation2 + $0x18] sm:$0xff] 0.0
        %vm185 = vcmask 523264
        %186 = vst.msk [vmem:[#allocation2 + $0x20] sm:$0xff] %vm185, 0.0
        %187 = vst [vmem:[#allocation2 + $0x28] sm:$0xff] 0.0
        %188 = vst [vmem:[#allocation2 + $0x30] sm:$0xff] 0.0
        %189 = vst [vmem:[#allocation2 + $0x38] sm:$0xff] 0.0
        %190 = vst [vmem:[#allocation2 + $0x40] sm:$0xff] 0.0
        %191 = vst.msk [vmem:[#allocation2 + $0x48] sm:$0xff] %vm185, 0.0
        %192 = vst [vmem:[#allocation2 + $0x50] sm:$0xff] 0.0
        %193 = vst [vmem:[#allocation2 + $0x58] sm:$0xff] 0.0
        %194 = vst [vmem:[#allocation2 + $0x60] sm:$0xff] 0.0
        %195 = vst [vmem:[#allocation2 + $0x68] sm:$0xff] 0.0
        %196 = vst.msk [vmem:[#allocation2 + $0x70] sm:$0xff] %vm185, 0.0
        %197 = vst [vmem:[#allocation2 + $0x78] sm:$0xff] 0.0
        %198 = vst [vmem:[#allocation2 + $0x80] sm:$0xff] 0.0
        %199 = vst [vmem:[#allocation2 + $0x88] sm:$0xff] 0.0
        %200 = vst [vmem:[#allocation2 + $0x90] sm:$0xff] 0.0
        %201 = vst.msk [vmem:[#allocation2 + $0x98] sm:$0xff] %vm185, 0.0
        %202 = vst [vmem:[#allocation2 + $0xa0] sm:$0xf] 0.0
        %203 = vst [vmem:[#allocation2 + $0xa8] sm:$0xf] 0.0
        %204 = vst [vmem:[#allocation2 + $0xb0] sm:$0xf] 0.0
        %205 = vst [vmem:[#allocation2 + $0xb8] sm:$0xf] 0.0
        %vm206 = vcmask 519168
        %207 = vst.msk [vmem:[#allocation2 + $0xc0] sm:$0xf] %vm206, 0.0
      $region36: #{cnn_custom_forward.5} parent=31 // pred_fallthru
        _
      %v208 = vld [vmem:[#allocation2] sm:$0xff]
      %v209 = vld [vmem:[#allocation2 + $0x8] sm:$0xff]
      %v210 = vld [vmem:[#allocation2 + $0x10] sm:$0xff]
      %v211 = vld [vmem:[#allocation2 + $0x18] sm:$0xff]
      %v212 = vld [vmem:[#allocation2 + $0x20] sm:$0xff]
      %v213 = vld [vmem:[#allocation2 + $0x28] sm:$0xff]
      %v214 = vld [vmem:[#allocation2 + $0x30] sm:$0xff]
      %v215 = vld [vmem:[#allocation2 + $0x38] sm:$0xff]
      %v216 = vld [vmem:[#allocation2 + $0x40] sm:$0xff]
      %v217 = vld [vmem:[#allocation2 + $0x48] sm:$0xff]
      %v218 = vld [vmem:[#allocation2 + $0x50] sm:$0xff]
      %v219 = vld [vmem:[#allocation2 + $0x58] sm:$0xff]
      %v220 = vld [vmem:[#allocation2 + $0x60] sm:$0xff]
      %v221 = vld [vmem:[#allocation2 + $0x68] sm:$0xff]
      %v222 = vld [vmem:[#allocation2 + $0x70] sm:$0xff]
      %v223 = vld [vmem:[#allocation2 + $0x78] sm:$0xff]
      %v224 = vld [vmem:[#allocation2 + $0x80] sm:$0xff]
      %v225 = vld [vmem:[#allocation2 + $0x88] sm:$0xff]
      %v226 = vld [vmem:[#allocation2 + $0x90] sm:$0xff]
      %v227 = vld [vmem:[#allocation2 + $0x98] sm:$0xff]
      %v228 = vld [vmem:[#allocation2 + $0xa0] sm:$0xf]
      %v229 = vld [vmem:[#allocation2 + $0xa8] sm:$0xf]
      %v230 = vld [vmem:[#allocation2 + $0xb0] sm:$0xf]
      %v231 = vld [vmem:[#allocation2 + $0xb8] sm:$0xf]
      %v232 = vld [vmem:[#allocation2 + $0xc0] sm:$0xf]
      %v233 = vld [vmem:[%s170] sm:$0xff]
      %v234 = vld [vmem:[%s170 + $0x8] sm:$0xff]
      %v235 = vld [vmem:[%s170 + $0x10] sm:$0xf]
      %v236 = vld [vmem:[%s170 + $0x14] sm:$0xff]
      %v237 = vld [vmem:[%s170 + $0x1c] sm:$0xff]
      %v238 = vld [vmem:[%s170 + $0x24] sm:$0xf]
      %v239 = vld [vmem:[%s170 + $0x28] sm:$0xff]
      %v240 = vld [vmem:[%s170 + $0x30] sm:$0xff]
      %v241 = vld [vmem:[%s170 + $0x38] sm:$0xf]
      %v242 = vld [vmem:[%s170 + $0x3c] sm:$0xff]
      %v243 = vld [vmem:[%s170 + $0x44] sm:$0xff]
      %v244 = vld [vmem:[%s170 + $0x4c] sm:$0xf]
      %v245 = vld [vmem:[%s170 + $0x50] sm:$0x33]
      %v246 = vld [vmem:[%s170 + $0x58] sm:$0x33]
      %v247 = vld [vmem:[%s170 + $0x60] sm:$0x3]
      %v248 = vld [vmem:[%s175] sm:$0xff]
      %v249 = vld [vmem:[%s175 + $0x8] sm:$0xff]
      %v250 = vld [vmem:[%s175 + $0x10] sm:$0xf]
      %v251 = vld [vmem:[%s175 + $0x14] sm:$0xff]
      %v252 = vld [vmem:[%s175 + $0x1c] sm:$0xff]
      %v253 = vld [vmem:[%s175 + $0x24] sm:$0xf]
      %v254 = vld [vmem:[%s175 + $0x28] sm:$0xff]
      %v255 = vld [vmem:[%s175 + $0x30] sm:$0xff]
      %v256 = vld [vmem:[%s175 + $0x38] sm:$0xf]
      %v257 = vld [vmem:[%s175 + $0x3c] sm:$0xff]
      %v258 = vld [vmem:[%s175 + $0x44] sm:$0xff]
      %v259 = vld [vmem:[%s175 + $0x4c] sm:$0xf]
      %v260 = vld [vmem:[%s175 + $0x50] sm:$0xff]
      %v261 = vld [vmem:[%s175 + $0x58] sm:$0xff]
      %v262 = vld [vmem:[%s175 + $0x60] sm:$0xf]
      %v263 = vld [vmem:[%s175 + $0x64] sm:$0xff]
      %v264 = vld [vmem:[%s175 + $0x6c] sm:$0xff]
      %v265 = vld [vmem:[%s175 + $0x74] sm:$0xf]
      %v266 = vld [vmem:[%s175 + $0x78] sm:$0xff]
      %v267 = vld [vmem:[%s175 + $0x80] sm:$0xff]
      %v268 = vld [vmem:[%s175 + $0x88] sm:$0xf]
      %v269 = vld [vmem:[%s175 + $0x8c] sm:$0xff]
      %v270 = vld [vmem:[%s175 + $0x94] sm:$0xff]
      %v271 = vld [vmem:[%s175 + $0x9c] sm:$0xf]
      %v272 = vld [vmem:[%s175 + $0xa0] sm:$0xff]
      %v273 = vld [vmem:[%s175 + $0xa8] sm:$0xff]
      %v274 = vld [vmem:[%s175 + $0xb0] sm:$0xf]
      %v275 = vld [vmem:[%s175 + $0xb4] sm:$0xff]
      %v276 = vld [vmem:[%s175 + $0xbc] sm:$0xff]
      %v277 = vld [vmem:[%s175 + $0xc4] sm:$0xf]
      %v278 = vld [vmem:[%s175 + $0xc8] sm:$0xff]
      %v279 = vld [vmem:[%s175 + $0xd0] sm:$0xff]
      %v280 = vld [vmem:[%s175 + $0xd8] sm:$0xf]
      %v281 = vld [vmem:[%s175 + $0xdc] sm:$0xff]
      %v282 = vld [vmem:[%s175 + $0xe4] sm:$0xff]
      %v283 = vld [vmem:[%s175 + $0xec] sm:$0xf]
      %v284 = vld [vmem:[%s175 + $0xf0] sm:$0xff]
      %v285 = vld [vmem:[%s175 + $0xf8] sm:$0xff]
      %v286 = vld [vmem:[%s175 + $0x100] sm:$0xf]
      %v287 = vld [vmem:[%s175 + $0x104] sm:$0xff]
      %v288 = vld [vmem:[%s175 + $0x10c] sm:$0xff]
      %v289 = vld [vmem:[%s175 + $0x114] sm:$0xf]
      %v290 = vld [vmem:[%s175 + $0x118] sm:$0xff]
      %v291 = vld [vmem:[%s175 + $0x120] sm:$0xff]
      %v292 = vld [vmem:[%s175 + $0x128] sm:$0xf]
      %v293 = vld [vmem:[%s175 + $0x12c] sm:$0xff]
      %v294 = vld [vmem:[%s175 + $0x134] sm:$0xff]
      %v295 = vld [vmem:[%s175 + $0x13c] sm:$0xf]
      %v296 = vld [vmem:[%s175 + $0x140] sm:$0xff]
      %v297 = vld [vmem:[%s175 + $0x148] sm:$0xff]
      %v298 = vld [vmem:[%s175 + $0x150] sm:$0xf]
      %v299 = vld [vmem:[%s175 + $0x154] sm:$0xff]
      %v300 = vld [vmem:[%s175 + $0x15c] sm:$0xff]
      %v301 = vld [vmem:[%s175 + $0x164] sm:$0xf]
      %v302 = vld [vmem:[%s175 + $0x168] sm:$0xff]
      %v303 = vld [vmem:[%s175 + $0x170] sm:$0xff]
      %v304 = vld [vmem:[%s175 + $0x178] sm:$0xf]
      %v305 = vld [vmem:[%s175 + $0x17c] sm:$0xff]
      %v306 = vld [vmem:[%s175 + $0x184] sm:$0xff]
      %v307 = vld [vmem:[%s175 + $0x18c] sm:$0xf]
      %v308 = vld [vmem:[%s175 + $0x190] sm:$0xff]
      %v309 = vld [vmem:[%s175 + $0x198] sm:$0xff]
      %v310 = vld [vmem:[%s175 + $0x1a0] sm:$0xf]
      %v311 = vld [vmem:[%s175 + $0x1a4] sm:$0xff]
      %v312 = vld [vmem:[%s175 + $0x1ac] sm:$0xff]
      %v313 = vld [vmem:[%s175 + $0x1b4] sm:$0xf]
      %v314 = vld [vmem:[%s175 + $0x1b8] sm:$0xff]
      %v315 = vld [vmem:[%s175 + $0x1c0] sm:$0xff]
      %v316 = vld [vmem:[%s175 + $0x1c8] sm:$0xf]
      %v317 = vld [vmem:[%s175 + $0x1cc] sm:$0xff]
      %v318 = vld [vmem:[%s175 + $0x1d4] sm:$0xff]
      %v319 = vld [vmem:[%s175 + $0x1dc] sm:$0xf]
      %v320 = vld [vmem:[%s175 + $0x1e0] sm:$0xff]
      %v321 = vld [vmem:[%s175 + $0x1e8] sm:$0xff]
      %v322 = vld [vmem:[%s175 + $0x1f0] sm:$0xf]
      %v323 = vld [vmem:[%s175 + $0x1f4] sm:$0xff]
      %v324 = vld [vmem:[%s175 + $0x1fc] sm:$0xff]
      %v325 = vld [vmem:[%s175 + $0x204] sm:$0xf]
      %v326 = vld [vmem:[%s175 + $0x208] sm:$0xff]
      %v327 = vld [vmem:[%s175 + $0x210] sm:$0xff]
      %v328 = vld [vmem:[%s175 + $0x218] sm:$0xf]
      %v329 = vld [vmem:[%s175 + $0x21c] sm:$0xff]
      %v330 = vld [vmem:[%s175 + $0x224] sm:$0xff]
      %v331 = vld [vmem:[%s175 + $0x22c] sm:$0xf]
      %v332 = vld [vmem:[%s175 + $0x230] sm:$0xff]
      %v333 = vld [vmem:[%s175 + $0x238] sm:$0xff]
      %v334 = vld [vmem:[%s175 + $0x240] sm:$0xf]
      %v335 = vld [vmem:[%s175 + $0x244] sm:$0xff]
      %v336 = vld [vmem:[%s175 + $0x24c] sm:$0xff]
      %v337 = vld [vmem:[%s175 + $0x254] sm:$0xf]
      %v338 = vld [vmem:[%s175 + $0x258] sm:$0xff]
      %v339 = vld [vmem:[%s175 + $0x260] sm:$0xff]
      %v340 = vld [vmem:[%s175 + $0x268] sm:$0xf]
      %v341 = vld [vmem:[%s175 + $0x26c] sm:$0xff]
      %v342 = vld [vmem:[%s175 + $0x274] sm:$0xff]
      %v343 = vld [vmem:[%s175 + $0x27c] sm:$0xf]
      %v344 = vld [vmem:[%s175 + $0x280] sm:$0xff]
      %v345 = vld [vmem:[%s175 + $0x288] sm:$0xff]
      %v346 = vld [vmem:[%s175 + $0x290] sm:$0xf]
      %v347 = vld [vmem:[%s175 + $0x294] sm:$0xff]
      %v348 = vld [vmem:[%s175 + $0x29c] sm:$0xff]
      %v349 = vld [vmem:[%s175 + $0x2a4] sm:$0xf]
      %v350 = vld [vmem:[%s175 + $0x2a8] sm:$0xff]
      %v351 = vld [vmem:[%s175 + $0x2b0] sm:$0xff]
      %v352 = vld [vmem:[%s175 + $0x2b8] sm:$0xf]
      %v353 = vld [vmem:[%s175 + $0x2bc] sm:$0xff]
      %v354 = vld [vmem:[%s175 + $0x2c4] sm:$0xff]
      %v355 = vld [vmem:[%s175 + $0x2cc] sm:$0xf]
      %v356 = vld [vmem:[%s175 + $0x2d0] sm:$0xff]
      %v357 = vld [vmem:[%s175 + $0x2d8] sm:$0xff]
      %v358 = vld [vmem:[%s175 + $0x2e0] sm:$0xf]
      %v359 = vld [vmem:[%s175 + $0x2e4] sm:$0xff]
      %v360 = vld [vmem:[%s175 + $0x2ec] sm:$0xff]
      %v361 = vld [vmem:[%s175 + $0x2f4] sm:$0xf]
      %v362 = vld [vmem:[%s175 + $0x2f8] sm:$0xff]
      %v363 = vld [vmem:[%s175 + $0x300] sm:$0xff]
      %v364 = vld [vmem:[%s175 + $0x308] sm:$0xf]
      %v365 = vld [vmem:[%s175 + $0x30c] sm:$0xff]
      %v366 = vld [vmem:[%s175 + $0x314] sm:$0xff]
      %v367 = vld [vmem:[%s175 + $0x31c] sm:$0xf]
      %v368 = vld [vmem:[%s175 + $0x320] sm:$0xff]
      %v369 = vld [vmem:[%s175 + $0x328] sm:$0xff]
      %v370 = vld [vmem:[%s175 + $0x330] sm:$0xf]
      %v371 = vld [vmem:[%s175 + $0x334] sm:$0xff]
      %v372 = vld [vmem:[%s175 + $0x33c] sm:$0xff]
      %v373 = vld [vmem:[%s175 + $0x344] sm:$0xf]
      %v374 = vld [vmem:[%s175 + $0x348] sm:$0xff]
      %v375 = vld [vmem:[%s175 + $0x350] sm:$0xff]
      %v376 = vld [vmem:[%s175 + $0x358] sm:$0xf]
      %v377 = vld [vmem:[%s175 + $0x35c] sm:$0xff]
      %v378 = vld [vmem:[%s175 + $0x364] sm:$0xff]
      %v379 = vld [vmem:[%s175 + $0x36c] sm:$0xf]
      %v380 = vld [vmem:[%s175 + $0x370] sm:$0xff]
      %v381 = vld [vmem:[%s175 + $0x378] sm:$0xff]
      %v382 = vld [vmem:[%s175 + $0x380] sm:$0xf]
      %v383 = vld [vmem:[%s175 + $0x384] sm:$0xff]
      %v384 = vld [vmem:[%s175 + $0x38c] sm:$0xff]
      %v385 = vld [vmem:[%s175 + $0x394] sm:$0xf]
      %v386 = vld [vmem:[%s175 + $0x398] sm:$0xff]
      %v387 = vld [vmem:[%s175 + $0x3a0] sm:$0xff]
      %v388 = vld [vmem:[%s175 + $0x3a8] sm:$0xf]
      %v389 = vld [vmem:[%s175 + $0x3ac] sm:$0xff]
      %v390 = vld [vmem:[%s175 + $0x3b4] sm:$0xff]
      %v391 = vld [vmem:[%s175 + $0x3bc] sm:$0xf]
      %v392 = vld [vmem:[%s175 + $0x3c0] sm:$0xff]
      %v393 = vld [vmem:[%s175 + $0x3c8] sm:$0xff]
      %v394 = vld [vmem:[%s175 + $0x3d0] sm:$0xf]
      %v395 = vld [vmem:[%s175 + $0x3d4] sm:$0xff]
      %v396 = vld [vmem:[%s175 + $0x3dc] sm:$0xff]
      %v397 = vld [vmem:[%s175 + $0x3e4] sm:$0xf]
      %v398 = vld [vmem:[%s175 + $0x3e8] sm:$0xff]
      %v399 = vld [vmem:[%s175 + $0x3f0] sm:$0xff]
      %v400 = vld [vmem:[%s175 + $0x3f8] sm:$0xf]
      %v401 = vld [vmem:[%s175 + $0x3fc] sm:$0xff]
      %v402 = vld [vmem:[%s175 + $0x404] sm:$0xff]
      %v403 = vld [vmem:[%s175 + $0x40c] sm:$0xf]
      %v404 = vld [vmem:[%s175 + $0x410] sm:$0xff]
      %v405 = vld [vmem:[%s175 + $0x418] sm:$0xff]
      %v406 = vld [vmem:[%s175 + $0x420] sm:$0xf]
      %v407 = vld [vmem:[%s175 + $0x424] sm:$0xff]
      %v408 = vld [vmem:[%s175 + $0x42c] sm:$0xff]
      %v409 = vld [vmem:[%s175 + $0x434] sm:$0xf]
      %v410 = vld [vmem:[%s175 + $0x438] sm:$0xff]
      %v411 = vld [vmem:[%s175 + $0x440] sm:$0xff]
      %v412 = vld [vmem:[%s175 + $0x448] sm:$0xf]
      %v413 = vld [vmem:[%s175 + $0x44c] sm:$0xff]
      %v414 = vld [vmem:[%s175 + $0x454] sm:$0xff]
      %v415 = vld [vmem:[%s175 + $0x45c] sm:$0xf]
      %v416 = vld [vmem:[%s175 + $0x460] sm:$0xff]
      %v417 = vld [vmem:[%s175 + $0x468] sm:$0xff]
      %v418 = vld [vmem:[%s175 + $0x470] sm:$0xf]
      %v419 = vld [vmem:[%s175 + $0x474] sm:$0xff]
      %v420 = vld [vmem:[%s175 + $0x47c] sm:$0xff]
      %v421 = vld [vmem:[%s175 + $0x484] sm:$0xf]
      %v422 = vld [vmem:[%s175 + $0x488] sm:$0xff]
      %v423 = vld [vmem:[%s175 + $0x490] sm:$0xff]
      %v424 = vld [vmem:[%s175 + $0x498] sm:$0xf]
      %v425 = vld [vmem:[%s175 + $0x49c] sm:$0xff]
      %v426 = vld [vmem:[%s175 + $0x4a4] sm:$0xff]
      %v427 = vld [vmem:[%s175 + $0x4ac] sm:$0xf]
      %v428 = vld [vmem:[%s175 + $0x4b0] sm:$0xff]
      %v429 = vld [vmem:[%s175 + $0x4b8] sm:$0xff]
      %v430 = vld [vmem:[%s175 + $0x4c0] sm:$0xf]
      %v431 = vld [vmem:[%s175 + $0x4c4] sm:$0xff]
      %v432 = vld [vmem:[%s175 + $0x4cc] sm:$0xff]
      %v433 = vld [vmem:[%s175 + $0x4d4] sm:$0xf]
      %v434 = vld [vmem:[%s175 + $0x4d8] sm:$0xff]
      %v435 = vld [vmem:[%s175 + $0x4e0] sm:$0xff]
      %v436 = vld [vmem:[%s175 + $0x4e8] sm:$0xf]
      %v437 = vld [vmem:[%s175 + $0x4ec] sm:$0xff]
      %v438 = vld [vmem:[%s175 + $0x4f4] sm:$0xff]
      %v439 = vld [vmem:[%s175 + $0x4fc] sm:$0xf]
      %v440 = vld [vmem:[%s175 + $0x500] sm:$0xff]
      %v441 = vld [vmem:[%s175 + $0x508] sm:$0xff]
      %v442 = vld [vmem:[%s175 + $0x510] sm:$0xf]
      %v443 = vld [vmem:[%s175 + $0x514] sm:$0xff]
      %v444 = vld [vmem:[%s175 + $0x51c] sm:$0xff]
      %v445 = vld [vmem:[%s175 + $0x524] sm:$0xf]
      %v446 = vld [vmem:[%s175 + $0x528] sm:$0xff]
      %v447 = vld [vmem:[%s175 + $0x530] sm:$0xff]
      %v448 = vld [vmem:[%s175 + $0x538] sm:$0xf]
      %v449 = vld [vmem:[%s175 + $0x53c] sm:$0xff]
      %v450 = vld [vmem:[%s175 + $0x544] sm:$0xff]
      %v451 = vld [vmem:[%s175 + $0x54c] sm:$0xf]
      %v452 = vld [vmem:[%s175 + $0x550] sm:$0xff]
      %v453 = vld [vmem:[%s175 + $0x558] sm:$0xff]
      %v454 = vld [vmem:[%s175 + $0x560] sm:$0xf]
      %v455 = vld [vmem:[%s175 + $0x564] sm:$0xff]
      %v456 = vld [vmem:[%s175 + $0x56c] sm:$0xff]
      %v457 = vld [vmem:[%s175 + $0x574] sm:$0xf]
      %v458 = vld [vmem:[%s175 + $0x578] sm:$0xff]
      %v459 = vld [vmem:[%s175 + $0x580] sm:$0xff]
      %v460 = vld [vmem:[%s175 + $0x588] sm:$0xf]
      %v461 = vld [vmem:[%s175 + $0x58c] sm:$0xff]
      %v462 = vld [vmem:[%s175 + $0x594] sm:$0xff]
      %v463 = vld [vmem:[%s175 + $0x59c] sm:$0xf]
      %v464 = vld [vmem:[%s175 + $0x5a0] sm:$0xff]
      %v465 = vld [vmem:[%s175 + $0x5a8] sm:$0xff]
      %v466 = vld [vmem:[%s175 + $0x5b0] sm:$0xf]
      %v467 = vld [vmem:[%s175 + $0x5b4] sm:$0xff]
      %v468 = vld [vmem:[%s175 + $0x5bc] sm:$0xff]
      %v469 = vld [vmem:[%s175 + $0x5c4] sm:$0xf]
      %v470 = vld [vmem:[%s175 + $0x5c8] sm:$0xff]
      %v471 = vld [vmem:[%s175 + $0x5d0] sm:$0xff]
      %v472 = vld [vmem:[%s175 + $0x5d8] sm:$0xf]
      %v473 = vld [vmem:[%s175 + $0x5dc] sm:$0xff]
      %v474 = vld [vmem:[%s175 + $0x5e4] sm:$0xff]
      %v475 = vld [vmem:[%s175 + $0x5ec] sm:$0xf]
      %v491 = vunpack.c.l.b16 %v233
      %v492 = vunpack.c.h.b16 %v233
      %v493 = vunpack.c.l.b16 %v234
      %v494 = vunpack.c.h.b16 %v234
      %v495 = vunpack.c.l.b16 %v235
      %v496 = vunpack.c.l.b16 %v236
      %v497 = vunpack.c.h.b16 %v236
      %v498 = vunpack.c.l.b16 %v237
      %v499 = vunpack.c.h.b16 %v237
      %v500 = vunpack.c.l.b16 %v238
      %v501 = vunpack.c.l.b16 %v239
      %v502 = vunpack.c.h.b16 %v239
      %v503 = vunpack.c.l.b16 %v240
      %v504 = vunpack.c.h.b16 %v240
      %v505 = vunpack.c.l.b16 %v241
      %v506 = vunpack.c.l.b16 %v242
      %v507 = vunpack.c.h.b16 %v242
      %v508 = vunpack.c.l.b16 %v243
      %v509 = vunpack.c.h.b16 %v243
      %v510 = vunpack.c.l.b16 %v244
      %v511 = vunpack.c.l.b16 %v245
      %v512 = vunpack.c.h.b16 %v245
      %v513 = vunpack.c.l.b16 %v246
      %v514 = vunpack.c.h.b16 %v246
      %v515 = vunpack.c.l.b16 %v247
      %v516 = vpack.c.b16 %v496, %v491
      %v517 = vpack.c.b16 %v497, %v492
      %v518 = vpack.c.b16 %v498, %v493
      %v519 = vpack.c.b16 %v499, %v494
      %v520 = vpack.c.b16 %v500, %v495
      %v521 = vpack.c.b16 %v506, %v501
      %v522 = vpack.c.b16 %v507, %v502
      %v523 = vpack.c.b16 %v508, %v503
      %v524 = vpack.c.b16 %v509, %v504
      %v525 = vpack.c.b16 %v510, %v505
      %v526 = vpack.c.b16 %v511, %v511
      %v527 = vpack.c.b16 %v512, %v512
      %v528 = vpack.c.b16 %v513, %v513
      %v529 = vpack.c.b16 %v514, %v514
      %v530 = vpack.c.b16 %v515, %v515
      %v771 = vunpack.c.l.b16 %v248
      %v772 = vunpack.c.h.b16 %v248
      %v773 = vunpack.c.l.b16 %v249
      %v774 = vunpack.c.h.b16 %v249
      %v775 = vunpack.c.l.b16 %v250
      %v776 = vunpack.c.l.b16 %v251
      %v777 = vunpack.c.h.b16 %v251
      %v778 = vunpack.c.l.b16 %v252
      %v779 = vunpack.c.h.b16 %v252
      %v780 = vunpack.c.l.b16 %v253
      %v781 = vunpack.c.l.b16 %v254
      %v782 = vunpack.c.h.b16 %v254
      %v783 = vunpack.c.l.b16 %v255
      %v784 = vunpack.c.h.b16 %v255
      %v785 = vunpack.c.l.b16 %v256
      %v786 = vunpack.c.l.b16 %v257
      %v787 = vunpack.c.h.b16 %v257
      %v788 = vunpack.c.l.b16 %v258
      %v789 = vunpack.c.h.b16 %v258
      %v790 = vunpack.c.l.b16 %v259
      %v791 = vunpack.c.l.b16 %v260
      %v792 = vunpack.c.h.b16 %v260
      %v793 = vunpack.c.l.b16 %v261
      %v794 = vunpack.c.h.b16 %v261
      %v795 = vunpack.c.l.b16 %v262
      %v796 = vunpack.c.l.b16 %v263
      %v797 = vunpack.c.h.b16 %v263
      %v798 = vunpack.c.l.b16 %v264
      %v799 = vunpack.c.h.b16 %v264
      %v800 = vunpack.c.l.b16 %v265
      %v801 = vunpack.c.l.b16 %v266
      %v802 = vunpack.c.h.b16 %v266
      %v803 = vunpack.c.l.b16 %v267
      %v804 = vunpack.c.h.b16 %v267
      %v805 = vunpack.c.l.b16 %v268
      %v806 = vunpack.c.l.b16 %v269
      %v807 = vunpack.c.h.b16 %v269
      %v808 = vunpack.c.l.b16 %v270
      %v809 = vunpack.c.h.b16 %v270
      %v810 = vunpack.c.l.b16 %v271
      %v811 = vunpack.c.l.b16 %v272
      %v812 = vunpack.c.h.b16 %v272
      %v813 = vunpack.c.l.b16 %v273
      %v814 = vunpack.c.h.b16 %v273
      %v815 = vunpack.c.l.b16 %v274
      %v816 = vunpack.c.l.b16 %v275
      %v817 = vunpack.c.h.b16 %v275
      %v818 = vunpack.c.l.b16 %v276
      %v819 = vunpack.c.h.b16 %v276
      %v820 = vunpack.c.l.b16 %v277
      %v821 = vunpack.c.l.b16 %v278
      %v822 = vunpack.c.h.b16 %v278
      %v823 = vunpack.c.l.b16 %v279
      %v824 = vunpack.c.h.b16 %v279
      %v825 = vunpack.c.l.b16 %v280
      %v826 = vunpack.c.l.b16 %v281
      %v827 = vunpack.c.h.b16 %v281
      %v828 = vunpack.c.l.b16 %v282
      %v829 = vunpack.c.h.b16 %v282
      %v830 = vunpack.c.l.b16 %v283
      %v831 = vunpack.c.l.b16 %v284
      %v832 = vunpack.c.h.b16 %v284
      %v833 = vunpack.c.l.b16 %v285
      %v834 = vunpack.c.h.b16 %v285
      %v835 = vunpack.c.l.b16 %v286
      %v836 = vunpack.c.l.b16 %v287
      %v837 = vunpack.c.h.b16 %v287
      %v838 = vunpack.c.l.b16 %v288
      %v839 = vunpack.c.h.b16 %v288
      %v840 = vunpack.c.l.b16 %v289
      %v841 = vunpack.c.l.b16 %v290
      %v842 = vunpack.c.h.b16 %v290
      %v843 = vunpack.c.l.b16 %v291
      %v844 = vunpack.c.h.b16 %v291
      %v845 = vunpack.c.l.b16 %v292
      %v846 = vunpack.c.l.b16 %v293
      %v847 = vunpack.c.h.b16 %v293
      %v848 = vunpack.c.l.b16 %v294
      %v849 = vunpack.c.h.b16 %v294
      %v850 = vunpack.c.l.b16 %v295
      %v851 = vunpack.c.l.b16 %v296
      %v852 = vunpack.c.h.b16 %v296
      %v853 = vunpack.c.l.b16 %v297
      %v854 = vunpack.c.h.b16 %v297
      %v855 = vunpack.c.l.b16 %v298
      %v856 = vunpack.c.l.b16 %v299
      %v857 = vunpack.c.h.b16 %v299
      %v858 = vunpack.c.l.b16 %v300
      %v859 = vunpack.c.h.b16 %v300
      %v860 = vunpack.c.l.b16 %v301
      %v861 = vunpack.c.l.b16 %v302
      %v862 = vunpack.c.h.b16 %v302
      %v863 = vunpack.c.l.b16 %v303
      %v864 = vunpack.c.h.b16 %v303
      %v865 = vunpack.c.l.b16 %v304
      %v866 = vunpack.c.l.b16 %v305
      %v867 = vunpack.c.h.b16 %v305
      %v868 = vunpack.c.l.b16 %v306
      %v869 = vunpack.c.h.b16 %v306
      %v870 = vunpack.c.l.b16 %v307
      %v871 = vunpack.c.l.b16 %v308
      %v872 = vunpack.c.h.b16 %v308
      %v873 = vunpack.c.l.b16 %v309
      %v874 = vunpack.c.h.b16 %v309
      %v875 = vunpack.c.l.b16 %v310
      %v876 = vunpack.c.l.b16 %v311
      %v877 = vunpack.c.h.b16 %v311
      %v878 = vunpack.c.l.b16 %v312
      %v879 = vunpack.c.h.b16 %v312
      %v880 = vunpack.c.l.b16 %v313
      %v881 = vunpack.c.l.b16 %v314
      %v882 = vunpack.c.h.b16 %v314
      %v883 = vunpack.c.l.b16 %v315
      %v884 = vunpack.c.h.b16 %v315
      %v885 = vunpack.c.l.b16 %v316
      %v886 = vunpack.c.l.b16 %v317
      %v887 = vunpack.c.h.b16 %v317
      %v888 = vunpack.c.l.b16 %v318
      %v889 = vunpack.c.h.b16 %v318
      %v890 = vunpack.c.l.b16 %v319
      %v891 = vunpack.c.l.b16 %v320
      %v892 = vunpack.c.h.b16 %v320
      %v893 = vunpack.c.l.b16 %v321
      %v894 = vunpack.c.h.b16 %v321
      %v895 = vunpack.c.l.b16 %v322
      %v896 = vunpack.c.l.b16 %v323
      %v897 = vunpack.c.h.b16 %v323
      %v898 = vunpack.c.l.b16 %v324
      %v899 = vunpack.c.h.b16 %v324
      %v900 = vunpack.c.l.b16 %v325
      %v901 = vunpack.c.l.b16 %v326
      %v902 = vunpack.c.h.b16 %v326
      %v903 = vunpack.c.l.b16 %v327
      %v904 = vunpack.c.h.b16 %v327
      %v905 = vunpack.c.l.b16 %v328
      %v906 = vunpack.c.l.b16 %v329
      %v907 = vunpack.c.h.b16 %v329
      %v908 = vunpack.c.l.b16 %v330
      %v909 = vunpack.c.h.b16 %v330
      %v910 = vunpack.c.l.b16 %v331
      %v911 = vunpack.c.l.b16 %v332
      %v912 = vunpack.c.h.b16 %v332
      %v913 = vunpack.c.l.b16 %v333
      %v914 = vunpack.c.h.b16 %v333
      %v915 = vunpack.c.l.b16 %v334
      %v916 = vunpack.c.l.b16 %v335
      %v917 = vunpack.c.h.b16 %v335
      %v918 = vunpack.c.l.b16 %v336
      %v919 = vunpack.c.h.b16 %v336
      %v920 = vunpack.c.l.b16 %v337
      %v921 = vunpack.c.l.b16 %v338
      %v922 = vunpack.c.h.b16 %v338
      %v923 = vunpack.c.l.b16 %v339
      %v924 = vunpack.c.h.b16 %v339
      %v925 = vunpack.c.l.b16 %v340
      %v926 = vunpack.c.l.b16 %v341
      %v927 = vunpack.c.h.b16 %v341
      %v928 = vunpack.c.l.b16 %v342
      %v929 = vunpack.c.h.b16 %v342
      %v930 = vunpack.c.l.b16 %v343
      %v931 = vunpack.c.l.b16 %v344
      %v932 = vunpack.c.h.b16 %v344
      %v933 = vunpack.c.l.b16 %v345
      %v934 = vunpack.c.h.b16 %v345
      %v935 = vunpack.c.l.b16 %v346
      %v936 = vunpack.c.l.b16 %v347
      %v937 = vunpack.c.h.b16 %v347
      %v938 = vunpack.c.l.b16 %v348
      %v939 = vunpack.c.h.b16 %v348
      %v940 = vunpack.c.l.b16 %v349
      %v941 = vunpack.c.l.b16 %v350
      %v942 = vunpack.c.h.b16 %v350
      %v943 = vunpack.c.l.b16 %v351
      %v944 = vunpack.c.h.b16 %v351
      %v945 = vunpack.c.l.b16 %v352
      %v946 = vunpack.c.l.b16 %v353
      %v947 = vunpack.c.h.b16 %v353
      %v948 = vunpack.c.l.b16 %v354
      %v949 = vunpack.c.h.b16 %v354
      %v950 = vunpack.c.l.b16 %v355
      %v951 = vunpack.c.l.b16 %v356
      %v952 = vunpack.c.h.b16 %v356
      %v953 = vunpack.c.l.b16 %v357
      %v954 = vunpack.c.h.b16 %v357
      %v955 = vunpack.c.l.b16 %v358
      %v956 = vunpack.c.l.b16 %v359
      %v957 = vunpack.c.h.b16 %v359
      %v958 = vunpack.c.l.b16 %v360
      %v959 = vunpack.c.h.b16 %v360
      %v960 = vunpack.c.l.b16 %v361
      %v961 = vunpack.c.l.b16 %v362
      %v962 = vunpack.c.h.b16 %v362
      %v963 = vunpack.c.l.b16 %v363
      %v964 = vunpack.c.h.b16 %v363
      %v965 = vunpack.c.l.b16 %v364
      %v966 = vunpack.c.l.b16 %v365
      %v967 = vunpack.c.h.b16 %v365
      %v968 = vunpack.c.l.b16 %v366
      %v969 = vunpack.c.h.b16 %v366
      %v970 = vunpack.c.l.b16 %v367
      %v971 = vunpack.c.l.b16 %v368
      %v972 = vunpack.c.h.b16 %v368
      %v973 = vunpack.c.l.b16 %v369
      %v974 = vunpack.c.h.b16 %v369
      %v975 = vunpack.c.l.b16 %v370
      %v976 = vunpack.c.l.b16 %v371
      %v977 = vunpack.c.h.b16 %v371
      %v978 = vunpack.c.l.b16 %v372
      %v979 = vunpack.c.h.b16 %v372
      %v980 = vunpack.c.l.b16 %v373
      %v981 = vunpack.c.l.b16 %v374
      %v982 = vunpack.c.h.b16 %v374
      %v983 = vunpack.c.l.b16 %v375
      %v984 = vunpack.c.h.b16 %v375
      %v985 = vunpack.c.l.b16 %v376
      %v986 = vunpack.c.l.b16 %v377
      %v987 = vunpack.c.h.b16 %v377
      %v988 = vunpack.c.l.b16 %v378
      %v989 = vunpack.c.h.b16 %v378
      %v990 = vunpack.c.l.b16 %v379
      %v991 = vunpack.c.l.b16 %v380
      %v992 = vunpack.c.h.b16 %v380
      %v993 = vunpack.c.l.b16 %v381
      %v994 = vunpack.c.h.b16 %v381
      %v995 = vunpack.c.l.b16 %v382
      %v996 = vunpack.c.l.b16 %v383
      %v997 = vunpack.c.h.b16 %v383
      %v998 = vunpack.c.l.b16 %v384
      %v999 = vunpack.c.h.b16 %v384
      %v1000 = vunpack.c.l.b16 %v385
      %v1001 = vunpack.c.l.b16 %v386
      %v1002 = vunpack.c.h.b16 %v386
      %v1003 = vunpack.c.l.b16 %v387
      %v1004 = vunpack.c.h.b16 %v387
      %v1005 = vunpack.c.l.b16 %v388
      %v1006 = vunpack.c.l.b16 %v389
      %v1007 = vunpack.c.h.b16 %v389
      %v1008 = vunpack.c.l.b16 %v390
      %v1009 = vunpack.c.h.b16 %v390
      %v1010 = vunpack.c.l.b16 %v391
      %v1011 = vunpack.c.l.b16 %v392
      %v1012 = vunpack.c.h.b16 %v392
      %v1013 = vunpack.c.l.b16 %v393
      %v1014 = vunpack.c.h.b16 %v393
      %v1015 = vunpack.c.l.b16 %v394
      %v1016 = vunpack.c.l.b16 %v395
      %v1017 = vunpack.c.h.b16 %v395
      %v1018 = vunpack.c.l.b16 %v396
      %v1019 = vunpack.c.h.b16 %v396
      %v1020 = vunpack.c.l.b16 %v397
      %v1021 = vunpack.c.l.b16 %v398
      %v1022 = vunpack.c.h.b16 %v398
      %v1023 = vunpack.c.l.b16 %v399
      %v1024 = vunpack.c.h.b16 %v399
      %v1025 = vunpack.c.l.b16 %v400
      %v1026 = vunpack.c.l.b16 %v401
      %v1027 = vunpack.c.h.b16 %v401
      %v1028 = vunpack.c.l.b16 %v402
      %v1029 = vunpack.c.h.b16 %v402
      %v1030 = vunpack.c.l.b16 %v403
      %v1031 = vunpack.c.l.b16 %v404
      %v1032 = vunpack.c.h.b16 %v404
      %v1033 = vunpack.c.l.b16 %v405
      %v1034 = vunpack.c.h.b16 %v405
      %v1035 = vunpack.c.l.b16 %v406
      %v1036 = vunpack.c.l.b16 %v407
      %v1037 = vunpack.c.h.b16 %v407
      %v1038 = vunpack.c.l.b16 %v408
      %v1039 = vunpack.c.h.b16 %v408
      %v1040 = vunpack.c.l.b16 %v409
      %v1041 = vunpack.c.l.b16 %v410
      %v1042 = vunpack.c.h.b16 %v410
      %v1043 = vunpack.c.l.b16 %v411
      %v1044 = vunpack.c.h.b16 %v411
      %v1045 = vunpack.c.l.b16 %v412
      %v1046 = vunpack.c.l.b16 %v413
      %v1047 = vunpack.c.h.b16 %v413
      %v1048 = vunpack.c.l.b16 %v414
      %v1049 = vunpack.c.h.b16 %v414
      %v1050 = vunpack.c.l.b16 %v415
      %v1051 = vunpack.c.l.b16 %v416
      %v1052 = vunpack.c.h.b16 %v416
      %v1053 = vunpack.c.l.b16 %v417
      %v1054 = vunpack.c.h.b16 %v417
      %v1055 = vunpack.c.l.b16 %v418
      %v1056 = vunpack.c.l.b16 %v419
      %v1057 = vunpack.c.h.b16 %v419
      %v1058 = vunpack.c.l.b16 %v420
      %v1059 = vunpack.c.h.b16 %v420
      %v1060 = vunpack.c.l.b16 %v421
      %v1061 = vunpack.c.l.b16 %v422
      %v1062 = vunpack.c.h.b16 %v422
      %v1063 = vunpack.c.l.b16 %v423
      %v1064 = vunpack.c.h.b16 %v423
      %v1065 = vunpack.c.l.b16 %v424
      %v1066 = vunpack.c.l.b16 %v425
      %v1067 = vunpack.c.h.b16 %v425
      %v1068 = vunpack.c.l.b16 %v426
      %v1069 = vunpack.c.h.b16 %v426
      %v1070 = vunpack.c.l.b16 %v427
      %v1071 = vunpack.c.l.b16 %v428
      %v1072 = vunpack.c.h.b16 %v428
      %v1073 = vunpack.c.l.b16 %v429
      %v1074 = vunpack.c.h.b16 %v429
      %v1075 = vunpack.c.l.b16 %v430
      %v1076 = vunpack.c.l.b16 %v431
      %v1077 = vunpack.c.h.b16 %v431
      %v1078 = vunpack.c.l.b16 %v432
      %v1079 = vunpack.c.h.b16 %v432
      %v1080 = vunpack.c.l.b16 %v433
      %v1081 = vunpack.c.l.b16 %v434
      %v1082 = vunpack.c.h.b16 %v434
      %v1083 = vunpack.c.l.b16 %v435
      %v1084 = vunpack.c.h.b16 %v435
      %v1085 = vunpack.c.l.b16 %v436
      %v1086 = vunpack.c.l.b16 %v437
      %v1087 = vunpack.c.h.b16 %v437
      %v1088 = vunpack.c.l.b16 %v438
      %v1089 = vunpack.c.h.b16 %v438
      %v1090 = vunpack.c.l.b16 %v439
      %v1091 = vunpack.c.l.b16 %v440
      %v1092 = vunpack.c.h.b16 %v440
      %v1093 = vunpack.c.l.b16 %v441
      %v1094 = vunpack.c.h.b16 %v441
      %v1095 = vunpack.c.l.b16 %v442
      %v1096 = vunpack.c.l.b16 %v443
      %v1097 = vunpack.c.h.b16 %v443
      %v1098 = vunpack.c.l.b16 %v444
      %v1099 = vunpack.c.h.b16 %v444
      %v1100 = vunpack.c.l.b16 %v445
      %v1101 = vunpack.c.l.b16 %v446
      %v1102 = vunpack.c.h.b16 %v446
      %v1103 = vunpack.c.l.b16 %v447
      %v1104 = vunpack.c.h.b16 %v447
      %v1105 = vunpack.c.l.b16 %v448
      %v1106 = vunpack.c.l.b16 %v449
      %v1107 = vunpack.c.h.b16 %v449
      %v1108 = vunpack.c.l.b16 %v450
      %v1109 = vunpack.c.h.b16 %v450
      %v1110 = vunpack.c.l.b16 %v451
      %v1111 = vunpack.c.l.b16 %v452
      %v1112 = vunpack.c.h.b16 %v452
      %v1113 = vunpack.c.l.b16 %v453
      %v1114 = vunpack.c.h.b16 %v453
      %v1115 = vunpack.c.l.b16 %v454
      %v1116 = vunpack.c.l.b16 %v455
      %v1117 = vunpack.c.h.b16 %v455
      %v1118 = vunpack.c.l.b16 %v456
      %v1119 = vunpack.c.h.b16 %v456
      %v1120 = vunpack.c.l.b16 %v457
      %v1121 = vunpack.c.l.b16 %v458
      %v1122 = vunpack.c.h.b16 %v458
      %v1123 = vunpack.c.l.b16 %v459
      %v1124 = vunpack.c.h.b16 %v459
      %v1125 = vunpack.c.l.b16 %v460
      %v1126 = vunpack.c.l.b16 %v461
      %v1127 = vunpack.c.h.b16 %v461
      %v1128 = vunpack.c.l.b16 %v462
      %v1129 = vunpack.c.h.b16 %v462
      %v1130 = vunpack.c.l.b16 %v463
      %v1131 = vunpack.c.l.b16 %v464
      %v1132 = vunpack.c.h.b16 %v464
      %v1133 = vunpack.c.l.b16 %v465
      %v1134 = vunpack.c.h.b16 %v465
      %v1135 = vunpack.c.l.b16 %v466
      %v1136 = vunpack.c.l.b16 %v467
      %v1137 = vunpack.c.h.b16 %v467
      %v1138 = vunpack.c.l.b16 %v468
      %v1139 = vunpack.c.h.b16 %v468
      %v1140 = vunpack.c.l.b16 %v469
      %v1141 = vunpack.c.l.b16 %v470
      %v1142 = vunpack.c.h.b16 %v470
      %v1143 = vunpack.c.l.b16 %v471
      %v1144 = vunpack.c.h.b16 %v471
      %v1145 = vunpack.c.l.b16 %v472
      %v1146 = vunpack.c.l.b16 %v473
      %v1147 = vunpack.c.h.b16 %v473
      %v1148 = vunpack.c.l.b16 %v474
      %v1149 = vunpack.c.h.b16 %v474
      %v1150 = vunpack.c.l.b16 %v475
      %v1151 = vpack.c.b16 %v776, %v771
      %v1152 = vpack.c.b16 %v777, %v772
      %v1153 = vpack.c.b16 %v778, %v773
      %v1154 = vpack.c.b16 %v779, %v774
      %v1155 = vpack.c.b16 %v780, %v775
      %v1156 = vpack.c.b16 %v786, %v781
      %v1157 = vpack.c.b16 %v787, %v782
      %v1158 = vpack.c.b16 %v788, %v783
      %v1159 = vpack.c.b16 %v789, %v784
      %v1160 = vpack.c.b16 %v790, %v785
      %v1161 = vpack.c.b16 %v796, %v791
      %v1162 = vpack.c.b16 %v797, %v792
      %v1163 = vpack.c.b16 %v798, %v793
      %v1164 = vpack.c.b16 %v799, %v794
      %v1165 = vpack.c.b16 %v800, %v795
      %v1166 = vpack.c.b16 %v806, %v801
      %v1167 = vpack.c.b16 %v807, %v802
      %v1168 = vpack.c.b16 %v808, %v803
      %v1169 = vpack.c.b16 %v809, %v804
      %v1170 = vpack.c.b16 %v810, %v805
      %v1171 = vpack.c.b16 %v816, %v811
      %v1172 = vpack.c.b16 %v817, %v812
      %v1173 = vpack.c.b16 %v818, %v813
      %v1174 = vpack.c.b16 %v819, %v814
      %v1175 = vpack.c.b16 %v820, %v815
      %v1176 = vpack.c.b16 %v826, %v821
      %v1177 = vpack.c.b16 %v827, %v822
      %v1178 = vpack.c.b16 %v828, %v823
      %v1179 = vpack.c.b16 %v829, %v824
      %v1180 = vpack.c.b16 %v830, %v825
      %v1181 = vpack.c.b16 %v836, %v831
      %v1182 = vpack.c.b16 %v837, %v832
      %v1183 = vpack.c.b16 %v838, %v833
      %v1184 = vpack.c.b16 %v839, %v834
      %v1185 = vpack.c.b16 %v840, %v835
      %v1186 = vpack.c.b16 %v846, %v841
      %v1187 = vpack.c.b16 %v847, %v842
      %v1188 = vpack.c.b16 %v848, %v843
      %v1189 = vpack.c.b16 %v849, %v844
      %v1190 = vpack.c.b16 %v850, %v845
      %v1191 = vpack.c.b16 %v856, %v851
      %v1192 = vpack.c.b16 %v857, %v852
      %v1193 = vpack.c.b16 %v858, %v853
      %v1194 = vpack.c.b16 %v859, %v854
      %v1195 = vpack.c.b16 %v860, %v855
      %v1196 = vpack.c.b16 %v866, %v861
      %v1197 = vpack.c.b16 %v867, %v862
      %v1198 = vpack.c.b16 %v868, %v863
      %v1199 = vpack.c.b16 %v869, %v864
      %v1200 = vpack.c.b16 %v870, %v865
      %v1201 = vpack.c.b16 %v876, %v871
      %v1202 = vpack.c.b16 %v877, %v872
      %v1203 = vpack.c.b16 %v878, %v873
      %v1204 = vpack.c.b16 %v879, %v874
      %v1205 = vpack.c.b16 %v880, %v875
      %v1206 = vpack.c.b16 %v886, %v881
      %v1207 = vpack.c.b16 %v887, %v882
      %v1208 = vpack.c.b16 %v888, %v883
      %v1209 = vpack.c.b16 %v889, %v884
      %v1210 = vpack.c.b16 %v890, %v885
      %v1211 = vpack.c.b16 %v896, %v891
      %v1212 = vpack.c.b16 %v897, %v892
      %v1213 = vpack.c.b16 %v898, %v893
      %v1214 = vpack.c.b16 %v899, %v894
      %v1215 = vpack.c.b16 %v900, %v895
      %v1216 = vpack.c.b16 %v906, %v901
      %v1217 = vpack.c.b16 %v907, %v902
      %v1218 = vpack.c.b16 %v908, %v903
      %v1219 = vpack.c.b16 %v909, %v904
      %v1220 = vpack.c.b16 %v910, %v905
      %v1221 = vpack.c.b16 %v916, %v911
      %v1222 = vpack.c.b16 %v917, %v912
      %v1223 = vpack.c.b16 %v918, %v913
      %v1224 = vpack.c.b16 %v919, %v914
      %v1225 = vpack.c.b16 %v920, %v915
      %v1226 = vpack.c.b16 %v926, %v921
      %v1227 = vpack.c.b16 %v927, %v922
      %v1228 = vpack.c.b16 %v928, %v923
      %v1229 = vpack.c.b16 %v929, %v924
      %v1230 = vpack.c.b16 %v930, %v925
      %v1231 = vpack.c.b16 %v936, %v931
      %v1232 = vpack.c.b16 %v937, %v932
      %v1233 = vpack.c.b16 %v938, %v933
      %v1234 = vpack.c.b16 %v939, %v934
      %v1235 = vpack.c.b16 %v940, %v935
      %v1236 = vpack.c.b16 %v946, %v941
      %v1237 = vpack.c.b16 %v947, %v942
      %v1238 = vpack.c.b16 %v948, %v943
      %v1239 = vpack.c.b16 %v949, %v944
      %v1240 = vpack.c.b16 %v950, %v945
      %v1241 = vpack.c.b16 %v956, %v951
      %v1242 = vpack.c.b16 %v957, %v952
      %v1243 = vpack.c.b16 %v958, %v953
      %v1244 = vpack.c.b16 %v959, %v954
      %v1245 = vpack.c.b16 %v960, %v955
      %v1246 = vpack.c.b16 %v966, %v961
      %v1247 = vpack.c.b16 %v967, %v962
      %v1248 = vpack.c.b16 %v968, %v963
      %v1249 = vpack.c.b16 %v969, %v964
      %v1250 = vpack.c.b16 %v970, %v965
      %v1251 = vpack.c.b16 %v976, %v971
      %v1252 = vpack.c.b16 %v977, %v972
      %v1253 = vpack.c.b16 %v978, %v973
      %v1254 = vpack.c.b16 %v979, %v974
      %v1255 = vpack.c.b16 %v980, %v975
      %v1256 = vpack.c.b16 %v986, %v981
      %v1257 = vpack.c.b16 %v987, %v982
      %v1258 = vpack.c.b16 %v988, %v983
      %v1259 = vpack.c.b16 %v989, %v984
      %v1260 = vpack.c.b16 %v990, %v985
      %v1261 = vpack.c.b16 %v996, %v991
      %v1262 = vpack.c.b16 %v997, %v992
      %v1263 = vpack.c.b16 %v998, %v993
      %v1264 = vpack.c.b16 %v999, %v994
      %v1265 = vpack.c.b16 %v1000, %v995
      %v1266 = vpack.c.b16 %v1006, %v1001
      %v1267 = vpack.c.b16 %v1007, %v1002
      %v1268 = vpack.c.b16 %v1008, %v1003
      %v1269 = vpack.c.b16 %v1009, %v1004
      %v1270 = vpack.c.b16 %v1010, %v1005
      %v1271 = vpack.c.b16 %v1016, %v1011
      %v1272 = vpack.c.b16 %v1017, %v1012
      %v1273 = vpack.c.b16 %v1018, %v1013
      %v1274 = vpack.c.b16 %v1019, %v1014
      %v1275 = vpack.c.b16 %v1020, %v1015
      %v1276 = vpack.c.b16 %v1026, %v1021
      %v1277 = vpack.c.b16 %v1027, %v1022
      %v1278 = vpack.c.b16 %v1028, %v1023
      %v1279 = vpack.c.b16 %v1029, %v1024
      %v1280 = vpack.c.b16 %v1030, %v1025
      %v1281 = vpack.c.b16 %v1036, %v1031
      %v1282 = vpack.c.b16 %v1037, %v1032
      %v1283 = vpack.c.b16 %v1038, %v1033
      %v1284 = vpack.c.b16 %v1039, %v1034
      %v1285 = vpack.c.b16 %v1040, %v1035
      %v1286 = vpack.c.b16 %v1046, %v1041
      %v1287 = vpack.c.b16 %v1047, %v1042
      %v1288 = vpack.c.b16 %v1048, %v1043
      %v1289 = vpack.c.b16 %v1049, %v1044
      %v1290 = vpack.c.b16 %v1050, %v1045
      %v1291 = vpack.c.b16 %v1056, %v1051
      %v1292 = vpack.c.b16 %v1057, %v1052
      %v1293 = vpack.c.b16 %v1058, %v1053
      %v1294 = vpack.c.b16 %v1059, %v1054
      %v1295 = vpack.c.b16 %v1060, %v1055
      %v1296 = vpack.c.b16 %v1066, %v1061
      %v1297 = vpack.c.b16 %v1067, %v1062
      %v1298 = vpack.c.b16 %v1068, %v1063
      %v1299 = vpack.c.b16 %v1069, %v1064
      %v1300 = vpack.c.b16 %v1070, %v1065
      %v1301 = vpack.c.b16 %v1076, %v1071
      %v1302 = vpack.c.b16 %v1077, %v1072
      %v1303 = vpack.c.b16 %v1078, %v1073
      %v1304 = vpack.c.b16 %v1079, %v1074
      %v1305 = vpack.c.b16 %v1080, %v1075
      %v1306 = vpack.c.b16 %v1086, %v1081
      %v1307 = vpack.c.b16 %v1087, %v1082
      %v1308 = vpack.c.b16 %v1088, %v1083
      %v1309 = vpack.c.b16 %v1089, %v1084
      %v1310 = vpack.c.b16 %v1090, %v1085
      %v1311 = vpack.c.b16 %v1096, %v1091
      %v1312 = vpack.c.b16 %v1097, %v1092
      %v1313 = vpack.c.b16 %v1098, %v1093
      %v1314 = vpack.c.b16 %v1099, %v1094
      %v1315 = vpack.c.b16 %v1100, %v1095
      %v1316 = vpack.c.b16 %v1106, %v1101
      %v1317 = vpack.c.b16 %v1107, %v1102
      %v1318 = vpack.c.b16 %v1108, %v1103
      %v1319 = vpack.c.b16 %v1109, %v1104
      %v1320 = vpack.c.b16 %v1110, %v1105
      %v1321 = vpack.c.b16 %v1116, %v1111
      %v1322 = vpack.c.b16 %v1117, %v1112
      %v1323 = vpack.c.b16 %v1118, %v1113
      %v1324 = vpack.c.b16 %v1119, %v1114
      %v1325 = vpack.c.b16 %v1120, %v1115
      %v1326 = vpack.c.b16 %v1126, %v1121
      %v1327 = vpack.c.b16 %v1127, %v1122
      %v1328 = vpack.c.b16 %v1128, %v1123
      %v1329 = vpack.c.b16 %v1129, %v1124
      %v1330 = vpack.c.b16 %v1130, %v1125
      %v1331 = vpack.c.b16 %v1136, %v1131
      %v1332 = vpack.c.b16 %v1137, %v1132
      %v1333 = vpack.c.b16 %v1138, %v1133
      %v1334 = vpack.c.b16 %v1139, %v1134
      %v1335 = vpack.c.b16 %v1140, %v1135
      %v1336 = vpack.c.b16 %v1146, %v1141
      %v1337 = vpack.c.b16 %v1147, %v1142
      %v1338 = vpack.c.b16 %v1148, %v1143
      %v1339 = vpack.c.b16 %v1149, %v1144
      %v1340 = vpack.c.b16 %v1150, %v1145
      %vm1531 = vcmask 785408
      %v1533 = vsel %vm1531, %v520, 0
      %v1536 = vsel %vm1531, %v525, 0
      %v1539 = vsel %vm1531, %v530, 0
      %1541 = vmatprep.subr.bf16.mxu0 %v1152
      %1542 = vmatpush1.bf16.msra.mxu0 %v1151
      %1543 = vmatprep.subr.bf16.mxu0 %v1157
      %1544 = vmatpush1.bf16.msra.mxu0 %v1156
      %1545 = vmatprep.subr.bf16.mxu0 %v1162
      %1546 = vmatpush1.bf16.msra.mxu0 %v1161
      %1547 = vmatprep.subr.bf16.mxu0 %v1167
      %1548 = vmatpush1.bf16.msra.mxu0 %v1166
      %1549 = vmatprep.subr.bf16.mxu0 %v1172
      %1550 = vmatpush1.bf16.msra.mxu0 %v1171
      %1551 = vmatprep.subr.bf16.mxu0 %v1177
      %1552 = vmatpush1.bf16.msra.mxu0 %v1176
      %1553 = vmatprep.subr.bf16.mxu0 %v1182
      %1554 = vmatpush1.bf16.msra.mxu0 %v1181
      %1555 = vmatprep.subr.bf16.mxu0 %v1187
      %1556 = vmatpush1.bf16.msra.mxu0 %v1186
      %1557 = vmatprep.subr.bf16.mxu0 %v1192
      %1558 = vmatpush1.bf16.msra.mxu0 %v1191
      %1559 = vmatprep.subr.bf16.mxu0 %v1197
      %1560 = vmatpush1.bf16.msra.mxu0 %v1196
      %1561 = vmatprep.subr.bf16.mxu0 %v1202
      %1562 = vmatpush1.bf16.msra.mxu0 %v1201
      %1563 = vmatprep.subr.bf16.mxu0 %v1207
      %1564 = vmatpush1.bf16.msra.mxu0 %v1206
      %1565 = vmatprep.subr.bf16.mxu0 %v1212
      %1566 = vmatpush1.bf16.msra.mxu0 %v1211
      %1567 = vmatprep.subr.bf16.mxu0 %v1217
      %1568 = vmatpush1.bf16.msra.mxu0 %v1216
      %1569 = vmatprep.subr.bf16.mxu0 %v1222
      %1570 = vmatpush1.bf16.msra.mxu0 %v1221
      %1571 = vmatprep.subr.bf16.mxu0 %v1227
      %1572 = vmatpush1.bf16.msra.mxu0 %v1226
      %1573 = vmatprep.mubr.bf16.mxu0 %v517
      %1574 = vmatmul.mubr.bf16.gmra.mrb[0].mxu0 %v516
      %v1575 = vpop.f32.mrb[0].mxu0
      %v1576 = vadd.f32 0.0, %v1575
      %v1577 = vpop.f32.mrb[0].mxu0
      %v1578 = vadd.f32 0.0, %v1577
      %v1579 = vpop.f32.mrb[0].mxu0
      %v1580 = vadd.f32 0.0, %v1579
      %v1581 = vpop.f32.mrb[0].mxu0
      %v1582 = vadd.f32 0.0, %v1581
      %1583 = vmatprep.mubr.bf16.mxu0 %v522
      %1584 = vmatmul.mubr.bf16.gmra.mrb[0].mxu0 %v521
      %v1585 = vpop.f32.mrb[0].mxu0
      %v1586 = vadd.f32 0.0, %v1585
      %v1587 = vpop.f32.mrb[0].mxu0
      %v1588 = vadd.f32 0.0, %v1587
      %v1589 = vpop.f32.mrb[0].mxu0
      %v1590 = vadd.f32 0.0, %v1589
      %v1591 = vpop.f32.mrb[0].mxu0
      %v1592 = vadd.f32 0.0, %v1591
      %1593 = vmatprep.mubr.bf16.mxu0 %v527
      %1594 = vmatmul.mubr.bf16.gmra.mrb[0].mxu0 %v526
      %v1595 = vpop.f32.mrb[0].mxu0
      %v1596 = vadd.f32 0.0, %v1595
      %v1597 = vpop.f32.mrb[0].mxu0
      %v1598 = vadd.f32 0.0, %v1597
      %v1599 = vpop.f32.mrb[0].mxu0
      %v1600 = vpop.f32.mrb[0].mxu0
      %1601 = vdwg.mxu0
      %1602 = vmatprep.subr.bf16.mxu0 %v1232
      %1603 = vmatpush1.bf16.msra.mxu0 %v1231
      %1604 = vmatprep.subr.bf16.mxu0 %v1237
      %1605 = vmatpush1.bf16.msra.mxu0 %v1236
      %1606 = vmatprep.subr.bf16.mxu0 %v1242
      %1607 = vmatpush1.bf16.msra.mxu0 %v1241
      %1608 = vmatprep.subr.bf16.mxu0 %v1247
      %1609 = vmatpush1.bf16.msra.mxu0 %v1246
      %1610 = vmatprep.subr.bf16.mxu0 %v1252
      %1611 = vmatpush1.bf16.msra.mxu0 %v1251
      %1612 = vmatprep.subr.bf16.mxu0 %v1257
      %1613 = vmatpush1.bf16.msra.mxu0 %v1256
      %1614 = vmatprep.subr.bf16.mxu0 %v1262
      %1615 = vmatpush1.bf16.msra.mxu0 %v1261
      %1616 = vmatprep.subr.bf16.mxu0 %v1267
      %1617 = vmatpush1.bf16.msra.mxu0 %v1266
      %1618 = vmatprep.subr.bf16.mxu0 %v1272
      %1619 = vmatpush1.bf16.msra.mxu0 %v1271
      %1620 = vmatprep.subr.bf16.mxu0 %v1277
      %1621 = vmatpush1.bf16.msra.mxu0 %v1276
      %1622 = vmatprep.subr.bf16.mxu0 %v1282
      %1623 = vmatpush1.bf16.msra.mxu0 %v1281
      %1624 = vmatprep.subr.bf16.mxu0 %v1287
      %1625 = vmatpush1.bf16.msra.mxu0 %v1286
      %1626 = vmatprep.subr.bf16.mxu0 %v1292
      %1627 = vmatpush1.bf16.msra.mxu0 %v1291
      %1628 = vmatprep.subr.bf16.mxu0 %v1297
      %1629 = vmatpush1.bf16.msra.mxu0 %v1296
      %1630 = vmatprep.subr.bf16.mxu0 %v1302
      %1631 = vmatpush1.bf16.msra.mxu0 %v1301
      %1632 = vmatprep.subr.bf16.mxu0 %v1307
      %1633 = vmatpush1.bf16.msra.mxu0 %v1306
      %1634 = vmatprep.mubr.bf16.mxu0 %v519
      %1635 = vmatmul.mubr.bf16.gmra.mrb[0].mxu0 %v518
      %v1636 = vpop.f32.mrb[0].mxu0
      %v1637 = vadd.f32 %v1576, %v1636
      %v1638 = vpop.f32.mrb[0].mxu0
      %v1639 = vadd.f32 %v1578, %v1638
      %v1640 = vpop.f32.mrb[0].mxu0
      %v1641 = vadd.f32 %v1580, %v1640
      %v1642 = vpop.f32.mrb[0].mxu0
      %v1643 = vadd.f32 %v1582, %v1642
      %1644 = vmatprep.mubr.bf16.mxu0 %v524
      %1645 = vmatmul.mubr.bf16.gmra.mrb[0].mxu0 %v523
      %v1646 = vpop.f32.mrb[0].mxu0
      %v1647 = vadd.f32 %v1586, %v1646
      %v1648 = vpop.f32.mrb[0].mxu0
      %v1649 = vadd.f32 %v1588, %v1648
      %v1650 = vpop.f32.mrb[0].mxu0
      %v1651 = vadd.f32 %v1590, %v1650
      %v1652 = vpop.f32.mrb[0].mxu0
      %v1653 = vadd.f32 %v1592, %v1652
      %1654 = vmatprep.mubr.bf16.mxu0 %v529
      %1655 = vmatmul.mubr.bf16.gmra.mrb[0].mxu0 %v528
      %v1656 = vpop.f32.mrb[0].mxu0
      %v1657 = vadd.f32 %v1596, %v1656
      %v1658 = vpop.f32.mrb[0].mxu0
      %v1659 = vadd.f32 %v1598, %v1658
      %v1660 = vpop.f32.mrb[0].mxu0
      %v1661 = vpop.f32.mrb[0].mxu0
      %1662 = vdwg.mxu0
      %1663 = vmatprep.subr.bf16.mxu0 %v1312
      %1664 = vmatpush1.bf16.msra.mxu0 %v1311
      %1665 = vmatprep.subr.bf16.mxu0 %v1317
      %1666 = vmatpush1.bf16.msra.mxu0 %v1316
      %1667 = vmatprep.subr.bf16.mxu0 %v1322
      %1668 = vmatpush1.bf16.msra.mxu0 %v1321
      %1669 = vmatprep.subr.bf16.mxu0 %v1327
      %1670 = vmatpush1.bf16.msra.mxu0 %v1326
      %1671 = vmatprep.subr.bf16.mxu0 %v1332
      %1672 = vmatpush1.bf16.msra.mxu0 %v1331
      %1673 = vmatprep.subr.bf16.mxu0 %v1337
      %1674 = vmatpush1.bf16.msra.mxu0 %v1336
      %1675 = vmatprep.subr.bf16.mxu0 0
      %1676 = vmatpush1.bf16.msra.mxu0 0
      %1677 = vmatprep.subr.bf16.mxu0 0
      %1678 = vmatpush1.bf16.msra.mxu0 0
      %1679 = vmatprep.subr.bf16.mxu0 0
      %1680 = vmatpush1.bf16.msra.mxu0 0
      %1681 = vmatprep.subr.bf16.mxu0 0
      %1682 = vmatpush1.bf16.msra.mxu0 0
      %1683 = vmatprep.subr.bf16.mxu0 0
      %1684 = vmatpush1.bf16.msra.mxu0 0
      %1685 = vmatprep.subr.bf16.mxu0 0
      %1686 = vmatpush1.bf16.msra.mxu0 0
      %1687 = vmatprep.subr.bf16.mxu0 0
      %1688 = vmatpush1.bf16.msra.mxu0 0
      %1689 = vmatprep.subr.bf16.mxu0 0
      %1690 = vmatpush1.bf16.msra.mxu0 0
      %1691 = vmatprep.subr.bf16.mxu0 0
      %1692 = vmatpush1.bf16.msra.mxu0 0
      %1693 = vmatprep.subr.bf16.mxu0 0
      %1694 = vmatpush1.bf16.msra.mxu0 0
      %1695 = vmatprep.mubr.bf16.mxu0 0
      %1696 = vmatmul.mubr.bf16.gmra.mrb[0].mxu0 %v1533
      %v1697 = vpop.f32.mrb[0].mxu0
      %v1698 = vadd.f32 %v1637, %v1697
      %v1699 = vpop.f32.mrb[0].mxu0
      %v1700 = vadd.f32 %v1639, %v1699
      %v1701 = vpop.f32.mrb[0].mxu0
      %v1702 = vadd.f32 %v1641, %v1701
      %v1703 = vpop.f32.mrb[0].mxu0
      %v1704 = vadd.f32 %v1643, %v1703
      %1705 = vmatprep.mubr.bf16.mxu0 0
      %1706 = vmatmul.mubr.bf16.gmra.mrb[0].mxu0 %v1536
      %v1707 = vpop.f32.mrb[0].mxu0
      %v1708 = vadd.f32 %v1647, %v1707
      %v1709 = vpop.f32.mrb[0].mxu0
      %v1710 = vadd.f32 %v1649, %v1709
      %v1711 = vpop.f32.mrb[0].mxu0
      %v1712 = vadd.f32 %v1651, %v1711
      %v1713 = vpop.f32.mrb[0].mxu0
      %v1714 = vadd.f32 %v1653, %v1713
      %1715 = vmatprep.mubr.bf16.mxu0 0
      %1716 = vmatmul.mubr.bf16.gmra.mrb[0].mxu0 %v1539
      %v1717 = vpop.f32.mrb[0].mxu0
      %v1718 = vadd.f32 %v1657, %v1717
      %v1719 = vpop.f32.mrb[0].mxu0
      %v1720 = vadd.f32 %v1659, %v1719
      %v1721 = vpop.f32.mrb[0].mxu0
      %v1722 = vpop.f32.mrb[0].mxu0
      %1723 = vdwg.mxu0
      %1724 = vmatprep.subr.bf16.mxu0 %v1154
      %1725 = vmatpush1.bf16.msra.mxu0 %v1153
      %1726 = vmatprep.subr.bf16.mxu0 %v1159
      %1727 = vmatpush1.bf16.msra.mxu0 %v1158
      %1728 = vmatprep.subr.bf16.mxu0 %v1164
      %1729 = vmatpush1.bf16.msra.mxu0 %v1163
      %1730 = vmatprep.subr.bf16.mxu0 %v1169
      %1731 = vmatpush1.bf16.msra.mxu0 %v1168
      %1732 = vmatprep.subr.bf16.mxu0 %v1174
      %1733 = vmatpush1.bf16.msra.mxu0 %v1173
      %1734 = vmatprep.subr.bf16.mxu0 %v1179
      %1735 = vmatpush1.bf16.msra.mxu0 %v1178
      %1736 = vmatprep.subr.bf16.mxu0 %v1184
      %1737 = vmatpush1.bf16.msra.mxu0 %v1183
      %1738 = vmatprep.subr.bf16.mxu0 %v1189
      %1739 = vmatpush1.bf16.msra.mxu0 %v1188
      %1740 = vmatprep.subr.bf16.mxu0 %v1194
      %1741 = vmatpush1.bf16.msra.mxu0 %v1193
      %1742 = vmatprep.subr.bf16.mxu0 %v1199
      %1743 = vmatpush1.bf16.msra.mxu0 %v1198
      %1744 = vmatprep.subr.bf16.mxu0 %v1204
      %1745 = vmatpush1.bf16.msra.mxu0 %v1203
      %1746 = vmatprep.subr.bf16.mxu0 %v1209
      %1747 = vmatpush1.bf16.msra.mxu0 %v1208
      %1748 = vmatprep.subr.bf16.mxu0 %v1214
      %1749 = vmatpush1.bf16.msra.mxu0 %v1213
      %1750 = vmatprep.subr.bf16.mxu0 %v1219
      %1751 = vmatpush1.bf16.msra.mxu0 %v1218
      %1752 = vmatprep.subr.bf16.mxu0 %v1224
      %1753 = vmatpush1.bf16.msra.mxu0 %v1223
      %1754 = vmatprep.subr.bf16.mxu0 %v1229
      %1755 = vmatpush1.bf16.msra.mxu0 %v1228
      %1756 = vmatprep.mubr.bf16.mxu0 %v517
      %1757 = vmatmul.mubr.bf16.gmra.mrb[0].mxu0 %v516
      %v1758 = vpop.f32.mrb[0].mxu0
      %v1759 = vadd.f32 0.0, %v1758
      %v1760 = vpop.f32.mrb[0].mxu0
      %v1761 = vadd.f32 0.0, %v1760
      %v1762 = vpop.f32.mrb[0].mxu0
      %v1763 = vadd.f32 0.0, %v1762
      %v1764 = vpop.f32.mrb[0].mxu0
      %v1765 = vadd.f32 0.0, %v1764
      %1766 = vmatprep.mubr.bf16.mxu0 %v522
      %1767 = vmatmul.mubr.bf16.gmra.mrb[0].mxu0 %v521
      %v1768 = vpop.f32.mrb[0].mxu0
      %v1769 = vadd.f32 0.0, %v1768
      %v1770 = vpop.f32.mrb[0].mxu0
      %v1771 = vadd.f32 0.0, %v1770
      %v1772 = vpop.f32.mrb[0].mxu0
      %v1773 = vadd.f32 0.0, %v1772
      %v1774 = vpop.f32.mrb[0].mxu0
      %v1775 = vadd.f32 0.0, %v1774
      %1776 = vmatprep.mubr.bf16.mxu0 %v527
      %1777 = vmatmul.mubr.bf16.gmra.mrb[0].mxu0 %v526
      %v1778 = vpop.f32.mrb[0].mxu0
      %v1779 = vadd.f32 0.0, %v1778
      %v1780 = vpop.f32.mrb[0].mxu0
      %v1781 = vadd.f32 0.0, %v1780
      %v1782 = vpop.f32.mrb[0].mxu0
      %v1783 = vpop.f32.mrb[0].mxu0
      %1784 = vdwg.mxu0
      %1785 = vmatprep.subr.bf16.mxu0 %v1234
      %1786 = vmatpush1.bf16.msra.mxu0 %v1233
      %1787 = vmatprep.subr.bf16.mxu0 %v1239
      %1788 = vmatpush1.bf16.msra.mxu0 %v1238
      %1789 = vmatprep.subr.bf16.mxu0 %v1244
      %1790 = vmatpush1.bf16.msra.mxu0 %v1243
      %1791 = vmatprep.subr.bf16.mxu0 %v1249
      %1792 = vmatpush1.bf16.msra.mxu0 %v1248
      %1793 = vmatprep.subr.bf16.mxu0 %v1254
      %1794 = vmatpush1.bf16.msra.mxu0 %v1253
      %1795 = vmatprep.subr.bf16.mxu0 %v1259
      %1796 = vmatpush1.bf16.msra.mxu0 %v1258
      %1797 = vmatprep.subr.bf16.mxu0 %v1264
      %1798 = vmatpush1.bf16.msra.mxu0 %v1263
      %1799 = vmatprep.subr.bf16.mxu0 %v1269
      %1800 = vmatpush1.bf16.msra.mxu0 %v1268
      %1801 = vmatprep.subr.bf16.mxu0 %v1274
      %1802 = vmatpush1.bf16.msra.mxu0 %v1273
      %1803 = vmatprep.subr.bf16.mxu0 %v1279
      %1804 = vmatpush1.bf16.msra.mxu0 %v1278
      %1805 = vmatprep.subr.bf16.mxu0 %v1284
      %1806 = vmatpush1.bf16.msra.mxu0 %v1283
      %1807 = vmatprep.subr.bf16.mxu0 %v1289
      %1808 = vmatpush1.bf16.msra.mxu0 %v1288
      %1809 = vmatprep.subr.bf16.mxu0 %v1294
      %1810 = vmatpush1.bf16.msra.mxu0 %v1293
      %1811 = vmatprep.subr.bf16.mxu0 %v1299
      %1812 = vmatpush1.bf16.msra.mxu0 %v1298
      %1813 = vmatprep.subr.bf16.mxu0 %v1304
      %1814 = vmatpush1.bf16.msra.mxu0 %v1303
      %1815 = vmatprep.subr.bf16.mxu0 %v1309
      %1816 = vmatpush1.bf16.msra.mxu0 %v1308
      %1817 = vmatprep.mubr.bf16.mxu0 %v519
      %1818 = vmatmul.mubr.bf16.gmra.mrb[0].mxu0 %v518
      %v1819 = vpop.f32.mrb[0].mxu0
      %v1820 = vadd.f32 %v1759, %v1819
      %v1821 = vpop.f32.mrb[0].mxu0
      %v1822 = vadd.f32 %v1761, %v1821
      %v1823 = vpop.f32.mrb[0].mxu0
      %v1824 = vadd.f32 %v1763, %v1823
      %v1825 = vpop.f32.mrb[0].mxu0
      %v1826 = vadd.f32 %v1765, %v1825
      %1827 = vmatprep.mubr.bf16.mxu0 %v524
      %1828 = vmatmul.mubr.bf16.gmra.mrb[0].mxu0 %v523
      %v1829 = vpop.f32.mrb[0].mxu0
      %v1830 = vadd.f32 %v1769, %v1829
      %v1831 = vpop.f32.mrb[0].mxu0
      %v1832 = vadd.f32 %v1771, %v1831
      %v1833 = vpop.f32.mrb[0].mxu0
      %v1834 = vadd.f32 %v1773, %v1833
      %v1835 = vpop.f32.mrb[0].mxu0
      %v1836 = vadd.f32 %v1775, %v1835
      %1837 = vmatprep.mubr.bf16.mxu0 %v529
      %1838 = vmatmul.mubr.bf16.gmra.mrb[0].mxu0 %v528
      %v1839 = vpop.f32.mrb[0].mxu0
      %v1840 = vadd.f32 %v1779, %v1839
      %v1841 = vpop.f32.mrb[0].mxu0
      %v1842 = vadd.f32 %v1781, %v1841
      %v1843 = vpop.f32.mrb[0].mxu0
      %v1844 = vpop.f32.mrb[0].mxu0
      %1845 = vdwg.mxu0
      %1846 = vmatprep.subr.bf16.mxu0 %v1314
      %1847 = vmatpush1.bf16.msra.mxu0 %v1313
      %1848 = vmatprep.subr.bf16.mxu0 %v1319
      %1849 = vmatpush1.bf16.msra.mxu0 %v1318
      %1850 = vmatprep.subr.bf16.mxu0 %v1324
      %1851 = vmatpush1.bf16.msra.mxu0 %v1323
      %1852 = vmatprep.subr.bf16.mxu0 %v1329
      %1853 = vmatpush1.bf16.msra.mxu0 %v1328
      %1854 = vmatprep.subr.bf16.mxu0 %v1334
      %1855 = vmatpush1.bf16.msra.mxu0 %v1333
      %1856 = vmatprep.subr.bf16.mxu0 %v1339
      %1857 = vmatpush1.bf16.msra.mxu0 %v1338
      %1858 = vmatprep.subr.bf16.mxu0 0
      %1859 = vmatpush1.bf16.msra.mxu0 0
      %1860 = vmatprep.subr.bf16.mxu0 0
      %1861 = vmatpush1.bf16.msra.mxu0 0
      %1862 = vmatprep.subr.bf16.mxu0 0
      %1863 = vmatpush1.bf16.msra.mxu0 0
      %1864 = vmatprep.subr.bf16.mxu0 0
      %1865 = vmatpush1.bf16.msra.mxu0 0
      %1866 = vmatprep.subr.bf16.mxu0 0
      %1867 = vmatpush1.bf16.msra.mxu0 0
      %1868 = vmatprep.subr.bf16.mxu0 0
      %1869 = vmatpush1.bf16.msra.mxu0 0
      %1870 = vmatprep.subr.bf16.mxu0 0
      %1871 = vmatpush1.bf16.msra.mxu0 0
      %1872 = vmatprep.subr.bf16.mxu0 0
      %1873 = vmatpush1.bf16.msra.mxu0 0
      %1874 = vmatprep.subr.bf16.mxu0 0
      %1875 = vmatpush1.bf16.msra.mxu0 0
      %1876 = vmatprep.subr.bf16.mxu0 0
      %1877 = vmatpush1.bf16.msra.mxu0 0
      %1878 = vmatprep.mubr.bf16.mxu0 0
      %1879 = vmatmul.mubr.bf16.gmra.mrb[0].mxu0 %v1533
      %v1880 = vpop.f32.mrb[0].mxu0
      %v1881 = vadd.f32 %v1820, %v1880
      %v1882 = vpop.f32.mrb[0].mxu0
      %v1883 = vadd.f32 %v1822, %v1882
      %v1884 = vpop.f32.mrb[0].mxu0
      %v1885 = vadd.f32 %v1824, %v1884
      %v1886 = vpop.f32.mrb[0].mxu0
      %v1887 = vadd.f32 %v1826, %v1886
      %1888 = vmatprep.mubr.bf16.mxu0 0
      %1889 = vmatmul.mubr.bf16.gmra.mrb[0].mxu0 %v1536
      %v1890 = vpop.f32.mrb[0].mxu0
      %v1891 = vadd.f32 %v1830, %v1890
      %v1892 = vpop.f32.mrb[0].mxu0
      %v1893 = vadd.f32 %v1832, %v1892
      %v1894 = vpop.f32.mrb[0].mxu0
      %v1895 = vadd.f32 %v1834, %v1894
      %v1896 = vpop.f32.mrb[0].mxu0
      %v1897 = vadd.f32 %v1836, %v1896
      %1898 = vmatprep.mubr.bf16.mxu0 0
      %1899 = vmatmul.mubr.bf16.gmra.mrb[0].mxu0 %v1539
      %v1900 = vpop.f32.mrb[0].mxu0
      %v1901 = vadd.f32 %v1840, %v1900
      %v1902 = vpop.f32.mrb[0].mxu0
      %v1903 = vadd.f32 %v1842, %v1902
      %v1904 = vpop.f32.mrb[0].mxu0
      %v1905 = vpop.f32.mrb[0].mxu0
      %1906 = vdwg.mxu0
      %1907 = vmatprep.subr.bf16.mxu0 0
      %1908 = vmatpush1.bf16.msra.mxu0 %v1155
      %1909 = vmatprep.subr.bf16.mxu0 0
      %1910 = vmatpush1.bf16.msra.mxu0 %v1160
      %1911 = vmatprep.subr.bf16.mxu0 0
      %1912 = vmatpush1.bf16.msra.mxu0 %v1165
      %1913 = vmatprep.subr.bf16.mxu0 0
      %1914 = vmatpush1.bf16.msra.mxu0 %v1170
      %1915 = vmatprep.subr.bf16.mxu0 0
      %1916 = vmatpush1.bf16.msra.mxu0 %v1175
      %1917 = vmatprep.subr.bf16.mxu0 0
      %1918 = vmatpush1.bf16.msra.mxu0 %v1180
      %1919 = vmatprep.subr.bf16.mxu0 0
      %1920 = vmatpush1.bf16.msra.mxu0 %v1185
      %1921 = vmatprep.subr.bf16.mxu0 0
      %1922 = vmatpush1.bf16.msra.mxu0 %v1190
      %1923 = vmatprep.subr.bf16.mxu0 0
      %1924 = vmatpush1.bf16.msra.mxu0 %v1195
      %1925 = vmatprep.subr.bf16.mxu0 0
      %1926 = vmatpush1.bf16.msra.mxu0 %v1200
      %1927 = vmatprep.subr.bf16.mxu0 0
      %1928 = vmatpush1.bf16.msra.mxu0 %v1205
      %1929 = vmatprep.subr.bf16.mxu0 0
      %1930 = vmatpush1.bf16.msra.mxu0 %v1210
      %1931 = vmatprep.subr.bf16.mxu0 0
      %1932 = vmatpush1.bf16.msra.mxu0 %v1215
      %1933 = vmatprep.subr.bf16.mxu0 0
      %1934 = vmatpush1.bf16.msra.mxu0 %v1220
      %1935 = vmatprep.subr.bf16.mxu0 0
      %1936 = vmatpush1.bf16.msra.mxu0 %v1225
      %1937 = vmatprep.subr.bf16.mxu0 0
      %1938 = vmatpush1.bf16.msra.mxu0 %v1230
      %1939 = vmatprep.mubr.bf16.mxu0 %v517
      %1940 = vmatmul.mubr.bf16.gmra.mrb[0].mxu0 %v516
      %v1941 = vpop.f32.mrb[0].mxu0
      %v1942 = vadd.f32 0.0, %v1941
      %v1943 = vpop.f32.mrb[0].mxu0
      %v1944 = vpop.f32.mrb[0].mxu0
      %v1945 = vadd.f32 0.0, %v1944
      %v1946 = vpop.f32.mrb[0].mxu0
      %1947 = vmatprep.mubr.bf16.mxu0 %v522
      %1948 = vmatmul.mubr.bf16.gmra.mrb[0].mxu0 %v521
      %v1949 = vpop.f32.mrb[0].mxu0
      %v1950 = vadd.f32 0.0, %v1949
      %v1951 = vpop.f32.mrb[0].mxu0
      %v1952 = vpop.f32.mrb[0].mxu0
      %v1953 = vadd.f32 0.0, %v1952
      %v1954 = vpop.f32.mrb[0].mxu0
      %1955 = vmatprep.mubr.bf16.mxu0 %v527
      %1956 = vmatmul.mubr.bf16.gmra.mrb[0].mxu0 %v526
      %v1957 = vpop.f32.mrb[0].mxu0
      %v1958 = vadd.f32 0.0, %v1957
      %v1959 = vpop.f32.mrb[0].mxu0
      %v1960 = vpop.f32.mrb[0].mxu0
      %v1961 = vpop.f32.mrb[0].mxu0
      %1962 = vdwg.mxu0
      %1963 = vmatprep.subr.bf16.mxu0 0
      %1964 = vmatpush1.bf16.msra.mxu0 %v1235
      %1965 = vmatprep.subr.bf16.mxu0 0
      %1966 = vmatpush1.bf16.msra.mxu0 %v1240
      %1967 = vmatprep.subr.bf16.mxu0 0
      %1968 = vmatpush1.bf16.msra.mxu0 %v1245
      %1969 = vmatprep.subr.bf16.mxu0 0
      %1970 = vmatpush1.bf16.msra.mxu0 %v1250
      %1971 = vmatprep.subr.bf16.mxu0 0
      %1972 = vmatpush1.bf16.msra.mxu0 %v1255
      %1973 = vmatprep.subr.bf16.mxu0 0
      %1974 = vmatpush1.bf16.msra.mxu0 %v1260
      %1975 = vmatprep.subr.bf16.mxu0 0
      %1976 = vmatpush1.bf16.msra.mxu0 %v1265
      %1977 = vmatprep.subr.bf16.mxu0 0
      %1978 = vmatpush1.bf16.msra.mxu0 %v1270
      %1979 = vmatprep.subr.bf16.mxu0 0
      %1980 = vmatpush1.bf16.msra.mxu0 %v1275
      %1981 = vmatprep.subr.bf16.mxu0 0
      %1982 = vmatpush1.bf16.msra.mxu0 %v1280
      %1983 = vmatprep.subr.bf16.mxu0 0
      %1984 = vmatpush1.bf16.msra.mxu0 %v1285
      %1985 = vmatprep.subr.bf16.mxu0 0
      %1986 = vmatpush1.bf16.msra.mxu0 %v1290
      %1987 = vmatprep.subr.bf16.mxu0 0
      %1988 = vmatpush1.bf16.msra.mxu0 %v1295
      %1989 = vmatprep.subr.bf16.mxu0 0
      %1990 = vmatpush1.bf16.msra.mxu0 %v1300
      %1991 = vmatprep.subr.bf16.mxu0 0
      %1992 = vmatpush1.bf16.msra.mxu0 %v1305
      %1993 = vmatprep.subr.bf16.mxu0 0
      %1994 = vmatpush1.bf16.msra.mxu0 %v1310
      %1995 = vmatprep.mubr.bf16.mxu0 %v519
      %1996 = vmatmul.mubr.bf16.gmra.mrb[0].mxu0 %v518
      %v1997 = vpop.f32.mrb[0].mxu0
      %v1998 = vadd.f32 %v1942, %v1997
      %v1999 = vpop.f32.mrb[0].mxu0
      %v2000 = vpop.f32.mrb[0].mxu0
      %v2001 = vadd.f32 %v1945, %v2000
      %v2002 = vpop.f32.mrb[0].mxu0
      %2003 = vmatprep.mubr.bf16.mxu0 %v524
      %2004 = vmatmul.mubr.bf16.gmra.mrb[0].mxu0 %v523
      %v2005 = vpop.f32.mrb[0].mxu0
      %v2006 = vadd.f32 %v1950, %v2005
      %v2007 = vpop.f32.mrb[0].mxu0
      %v2008 = vpop.f32.mrb[0].mxu0
      %v2009 = vadd.f32 %v1953, %v2008
      %v2010 = vpop.f32.mrb[0].mxu0
      %2011 = vmatprep.mubr.bf16.mxu0 %v529
      %2012 = vmatmul.mubr.bf16.gmra.mrb[0].mxu0 %v528
      %v2013 = vpop.f32.mrb[0].mxu0
      %v2014 = vadd.f32 %v1958, %v2013
      %v2015 = vpop.f32.mrb[0].mxu0
      %v2016 = vpop.f32.mrb[0].mxu0
      %v2017 = vpop.f32.mrb[0].mxu0
      %2018 = vdwg.mxu0
      %2019 = vmatprep.subr.bf16.mxu0 0
      %2020 = vmatpush1.bf16.msra.mxu0 %v1315
      %2021 = vmatprep.subr.bf16.mxu0 0
      %2022 = vmatpush1.bf16.msra.mxu0 %v1320
      %2023 = vmatprep.subr.bf16.mxu0 0
      %2024 = vmatpush1.bf16.msra.mxu0 %v1325
      %2025 = vmatprep.subr.bf16.mxu0 0
      %2026 = vmatpush1.bf16.msra.mxu0 %v1330
      %2027 = vmatprep.subr.bf16.mxu0 0
      %2028 = vmatpush1.bf16.msra.mxu0 %v1335
      %2029 = vmatprep.subr.bf16.mxu0 0
      %2030 = vmatpush1.bf16.msra.mxu0 %v1340
      %2031 = vmatprep.subr.bf16.mxu0 0
      %2032 = vmatpush1.bf16.msra.mxu0 0
      %2033 = vmatprep.subr.bf16.mxu0 0
      %2034 = vmatpush1.bf16.msra.mxu0 0
      %2035 = vmatprep.subr.bf16.mxu0 0
      %2036 = vmatpush1.bf16.msra.mxu0 0
      %2037 = vmatprep.subr.bf16.mxu0 0
      %2038 = vmatpush1.bf16.msra.mxu0 0
      %2039 = vmatprep.subr.bf16.mxu0 0
      %2040 = vmatpush1.bf16.msra.mxu0 0
      %2041 = vmatprep.subr.bf16.mxu0 0
      %2042 = vmatpush1.bf16.msra.mxu0 0
      %2043 = vmatprep.subr.bf16.mxu0 0
      %2044 = vmatpush1.bf16.msra.mxu0 0
      %2045 = vmatprep.subr.bf16.mxu0 0
      %2046 = vmatpush1.bf16.msra.mxu0 0
      %2047 = vmatprep.subr.bf16.mxu0 0
      %2048 = vmatpush1.bf16.msra.mxu0 0
      %2049 = vmatprep.subr.bf16.mxu0 0
      %2050 = vmatpush1.bf16.msra.mxu0 0
      %2051 = vmatprep.mubr.bf16.mxu0 0
      %2052 = vmatmul.mubr.bf16.gmra.mrb[0].mxu0 %v1533
      %v2053 = vpop.f32.mrb[0].mxu0
      %v2054 = vadd.f32 %v1998, %v2053
      %v2055 = vpop.f32.mrb[0].mxu0
      %v2056 = vpop.f32.mrb[0].mxu0
      %v2057 = vadd.f32 %v2001, %v2056
      %v2058 = vpop.f32.mrb[0].mxu0
      %2059 = vmatprep.mubr.bf16.mxu0 0
      %2060 = vmatmul.mubr.bf16.gmra.mrb[0].mxu0 %v1536
      %v2061 = vpop.f32.mrb[0].mxu0
      %v2062 = vadd.f32 %v2006, %v2061
      %v2063 = vpop.f32.mrb[0].mxu0
      %v2064 = vpop.f32.mrb[0].mxu0
      %v2065 = vadd.f32 %v2009, %v2064
      %v2066 = vpop.f32.mrb[0].mxu0
      %2067 = vmatprep.mubr.bf16.mxu0 0
      %2068 = vmatmul.mubr.bf16.gmra.mrb[0].mxu0 %v1539
      %v2069 = vpop.f32.mrb[0].mxu0
      %v2070 = vadd.f32 %v2014, %v2069
      %v2071 = vpop.f32.mrb[0].mxu0
      %v2072 = vpop.f32.mrb[0].mxu0
      %v2073 = vpop.f32.mrb[0].mxu0
      %2074 = vdwg.mxu0
      %v2075 = vadd.f32 %v208, %v1698
      %v2076 = vadd.f32 %v209, %v1700
      %v2077 = vadd.f32 %v210, %v1881
      %v2078 = vadd.f32 %v211, %v1883
      %v2079 = vadd.f32 %v212, %v2054
      %v2080 = vadd.f32 %v213, %v1702
      %v2081 = vadd.f32 %v214, %v1704
      %v2082 = vadd.f32 %v215, %v1885
      %v2083 = vadd.f32 %v216, %v1887
      %v2084 = vadd.f32 %v217, %v2057
      %v2085 = vadd.f32 %v218, %v1708
      %v2086 = vadd.f32 %v219, %v1710
      %v2087 = vadd.f32 %v220, %v1891
      %v2088 = vadd.f32 %v221, %v1893
      %v2089 = vadd.f32 %v222, %v2062
      %v2090 = vadd.f32 %v223, %v1712
      %v2091 = vadd.f32 %v224, %v1714
      %v2092 = vadd.f32 %v225, %v1895
      %v2093 = vadd.f32 %v226, %v1897
      %v2094 = vadd.f32 %v227, %v2065
      %v2095 = vadd.f32 %v228, %v1718
      %v2096 = vadd.f32 %v229, %v1720
      %v2097 = vadd.f32 %v230, %v1901
      %v2098 = vadd.f32 %v231, %v1903
      %v2099 = vadd.f32 %v232, %v2070
      %2100 = vst [vmem:[#allocation2] sm:$0xff] %v2075
      %2101 = vst [vmem:[#allocation2 + $0x8] sm:$0xff] %v2076
      %2102 = vst [vmem:[#allocation2 + $0x10] sm:$0xff] %v2077
      %2103 = vst [vmem:[#allocation2 + $0x18] sm:$0xff] %v2078
      %vm2104 = vcmask 523264
      %2105 = vst.msk [vmem:[#allocation2 + $0x20] sm:$0xff] %vm2104, %v2079
      %2106 = vst [vmem:[#allocation2 + $0x28] sm:$0xff] %v2080
      %2107 = vst [vmem:[#allocation2 + $0x30] sm:$0xff] %v2081
      %2108 = vst [vmem:[#allocation2 + $0x38] sm:$0xff] %v2082
      %2109 = vst [vmem:[#allocation2 + $0x40] sm:$0xff] %v2083
      %2110 = vst.msk [vmem:[#allocation2 + $0x48] sm:$0xff] %vm2104, %v2084
      %2111 = vst [vmem:[#allocation2 + $0x50] sm:$0xff] %v2085
      %2112 = vst [vmem:[#allocation2 + $0x58] sm:$0xff] %v2086
      %2113 = vst [vmem:[#allocation2 + $0x60] sm:$0xff] %v2087
      %2114 = vst [vmem:[#allocation2 + $0x68] sm:$0xff] %v2088
      %2115 = vst.msk [vmem:[#allocation2 + $0x70] sm:$0xff] %vm2104, %v2089
      %2116 = vst [vmem:[#allocation2 + $0x78] sm:$0xff] %v2090
      %2117 = vst [vmem:[#allocation2 + $0x80] sm:$0xff] %v2091
      %2118 = vst [vmem:[#allocation2 + $0x88] sm:$0xff] %v2092
      %2119 = vst [vmem:[#allocation2 + $0x90] sm:$0xff] %v2093
      %2120 = vst.msk [vmem:[#allocation2 + $0x98] sm:$0xff] %vm2104, %v2094
      %2121 = vst [vmem:[#allocation2 + $0xa0] sm:$0xf] %v2095
      %2122 = vst [vmem:[#allocation2 + $0xa8] sm:$0xf] %v2096
      %2123 = vst [vmem:[#allocation2 + $0xb0] sm:$0xf] %v2097
      %2124 = vst [vmem:[#allocation2 + $0xb8] sm:$0xf] %v2098
      %vm2125 = vcmask 519168
      %2126 = vst.msk [vmem:[#allocation2 + $0xc0] sm:$0xf] %vm2125, %v2099
      %p2127 = scmp.eq.s32.totalorder %s14, 2
      // Predicated region
      $region37: #{cnn_custom_forward.5} parent=31 // pred_check
        %p2128 = pneg %p2127
      $region38: #{cnn_custom_forward.5} parent=31 // pred_check_branch
        %2130 = sbr.rel (%p2128) target = $region40
      $region39: #{cnn_custom_forward.5} parent=31 // pred_region
        %v2131 = vld [vmem:[#allocation2] sm:$0xff]
        %v2132 = vld [vmem:[#allocation2 + $0x8] sm:$0xff]
        %v2133 = vld [vmem:[#allocation2 + $0x10] sm:$0xff]
        %v2134 = vld [vmem:[#allocation2 + $0x18] sm:$0xff]
        %v2135 = vld [vmem:[#allocation2 + $0x20] sm:$0xff]
        %v2136 = vld [vmem:[#allocation2 + $0x28] sm:$0xff]
        %v2137 = vld [vmem:[#allocation2 + $0x30] sm:$0xff]
        %v2138 = vld [vmem:[#allocation2 + $0x38] sm:$0xff]
        %v2139 = vld [vmem:[#allocation2 + $0x40] sm:$0xff]
        %v2140 = vld [vmem:[#allocation2 + $0x48] sm:$0xff]
        %v2141 = vld [vmem:[#allocation2 + $0x50] sm:$0xff]
        %v2142 = vld [vmem:[#allocation2 + $0x58] sm:$0xff]
        %v2143 = vld [vmem:[#allocation2 + $0x60] sm:$0xff]
        %v2144 = vld [vmem:[#allocation2 + $0x68] sm:$0xff]
        %v2145 = vld [vmem:[#allocation2 + $0x70] sm:$0xff]
        %v2146 = vld [vmem:[#allocation2 + $0x78] sm:$0xff]
        %v2147 = vld [vmem:[#allocation2 + $0x80] sm:$0xff]
        %v2148 = vld [vmem:[#allocation2 + $0x88] sm:$0xff]
        %v2149 = vld [vmem:[#allocation2 + $0x90] sm:$0xff]
        %v2150 = vld [vmem:[#allocation2 + $0x98] sm:$0xff]
        %v2151 = vld [vmem:[#allocation2 + $0xa0] sm:$0xf]
        %v2152 = vld [vmem:[#allocation2 + $0xa8] sm:$0xf]
        %v2153 = vld [vmem:[#allocation2 + $0xb0] sm:$0xf]
        %v2154 = vld [vmem:[#allocation2 + $0xb8] sm:$0xf]
        %v2155 = vld [vmem:[#allocation2 + $0xc0] sm:$0xf]
        %v2156 = vld [vmem:[%s2] sm:$0x1f]
        %v2158 = vlaneseq
        %v2159 = vshrl.u32 %v2158, 7
        %v2160 = vsub.s32 0, %v2159
        %v2161 = vrot.slane %v2156, %v2160
        %v2162 = vlaneseq
        %v2163 = vshrl.u32 %v2162, 7
        %v2164 = vsub.s32 1, %v2163
        %v2165 = vrot.slane %v2156, %v2164
        %v2166 = vlaneseq
        %v2167 = vshrl.u32 %v2166, 7
        %v2168 = vsub.s32 2, %v2167
        %v2169 = vrot.slane %v2156, %v2168
        %v2170 = vlaneseq
        %v2171 = vshrl.u32 %v2170, 7
        %v2172 = vsub.s32 3, %v2171
        %v2173 = vrot.slane %v2156, %v2172
        %v2174 = vlaneseq
        %v2175 = vshrl.u32 %v2174, 7
        %v2176 = vsub.s32 4, %v2175
        %v2177 = vrot.slane %v2156, %v2176
        %v2183 = vadd.f32 %v2131, %v2161
        %v2184 = vadd.f32 %v2132, %v2165
        %v2185 = vadd.f32 %v2133, %v2169
        %v2186 = vadd.f32 %v2134, %v2173
        %v2187 = vadd.f32 %v2135, %v2177
        %v2188 = vadd.f32 %v2136, %v2161
        %v2189 = vadd.f32 %v2137, %v2165
        %v2190 = vadd.f32 %v2138, %v2169
        %v2191 = vadd.f32 %v2139, %v2173
        %v2192 = vadd.f32 %v2140, %v2177
        %v2193 = vadd.f32 %v2141, %v2161
        %v2194 = vadd.f32 %v2142, %v2165
        %v2195 = vadd.f32 %v2143, %v2169
        %v2196 = vadd.f32 %v2144, %v2173
        %v2197 = vadd.f32 %v2145, %v2177
        %v2198 = vadd.f32 %v2146, %v2161
        %v2199 = vadd.f32 %v2147, %v2165
        %v2200 = vadd.f32 %v2148, %v2169
        %v2201 = vadd.f32 %v2149, %v2173
        %v2202 = vadd.f32 %v2150, %v2177
        %v2203 = vadd.f32 %v2151, %v2161
        %v2204 = vadd.f32 %v2152, %v2165
        %v2205 = vadd.f32 %v2153, %v2169
        %v2206 = vadd.f32 %v2154, %v2173
        %v2207 = vadd.f32 %v2155, %v2177
        %v2208 = vmax.f32 %v2183, 0.0
        %v2209 = vmax.f32 %v2184, 0.0
        %v2210 = vmax.f32 %v2185, 0.0
        %v2211 = vmax.f32 %v2186, 0.0
        %v2212 = vmax.f32 %v2187, 0.0
        %v2213 = vmax.f32 %v2188, 0.0
        %v2214 = vmax.f32 %v2189, 0.0
        %v2215 = vmax.f32 %v2190, 0.0
        %v2216 = vmax.f32 %v2191, 0.0
        %v2217 = vmax.f32 %v2192, 0.0
        %v2218 = vmax.f32 %v2193, 0.0
        %v2219 = vmax.f32 %v2194, 0.0
        %v2220 = vmax.f32 %v2195, 0.0
        %v2221 = vmax.f32 %v2196, 0.0
        %v2222 = vmax.f32 %v2197, 0.0
        %v2223 = vmax.f32 %v2198, 0.0
        %v2224 = vmax.f32 %v2199, 0.0
        %v2225 = vmax.f32 %v2200, 0.0
        %v2226 = vmax.f32 %v2201, 0.0
        %v2227 = vmax.f32 %v2202, 0.0
        %v2228 = vmax.f32 %v2203, 0.0
        %v2229 = vmax.f32 %v2204, 0.0
        %v2230 = vmax.f32 %v2205, 0.0
        %v2231 = vmax.f32 %v2206, 0.0
        %v2232 = vmax.f32 %v2207, 0.0
        %2258 = vrot.lane.b32.xlu0 %v2208, 96
        %v2259 = vpop.permute.xlu0 %2258
        %2260 = vrot.lane.b32.xlu0 %v2209, 96
        %v2261 = vpop.permute.xlu0 %2260
        %2262 = vrot.lane.b32.xlu0 %v2210, 96
        %v2263 = vpop.permute.xlu0 %2262
        %2264 = vrot.lane.b32.xlu0 %v2211, 96
        %v2265 = vpop.permute.xlu0 %2264
        %2266 = vrot.lane.b32.xlu0 %v2212, 96
        %v2267 = vpop.permute.xlu0 %2266
        %2268 = vrot.lane.b32.xlu0 %v2213, 96
        %v2269 = vpop.permute.xlu0 %2268
        %2270 = vrot.lane.b32.xlu0 %v2214, 96
        %v2271 = vpop.permute.xlu0 %2270
        %2272 = vrot.lane.b32.xlu0 %v2215, 96
        %v2273 = vpop.permute.xlu0 %2272
        %2274 = vrot.lane.b32.xlu0 %v2216, 96
        %v2275 = vpop.permute.xlu0 %2274
        %2276 = vrot.lane.b32.xlu0 %v2217, 96
        %v2277 = vpop.permute.xlu0 %2276
        %2278 = vrot.lane.b32.xlu0 %v2218, 96
        %v2279 = vpop.permute.xlu0 %2278
        %2280 = vrot.lane.b32.xlu0 %v2219, 96
        %v2281 = vpop.permute.xlu0 %2280
        %2282 = vrot.lane.b32.xlu0 %v2220, 96
        %v2283 = vpop.permute.xlu0 %2282
        %2284 = vrot.lane.b32.xlu0 %v2221, 96
        %v2285 = vpop.permute.xlu0 %2284
        %2286 = vrot.lane.b32.xlu0 %v2222, 96
        %v2287 = vpop.permute.xlu0 %2286
        %2288 = vrot.lane.b32.xlu0 %v2223, 96
        %v2289 = vpop.permute.xlu0 %2288
        %2290 = vrot.lane.b32.xlu0 %v2224, 96
        %v2291 = vpop.permute.xlu0 %2290
        %2292 = vrot.lane.b32.xlu0 %v2225, 96
        %v2293 = vpop.permute.xlu0 %2292
        %2294 = vrot.lane.b32.xlu0 %v2226, 96
        %v2295 = vpop.permute.xlu0 %2294
        %2296 = vrot.lane.b32.xlu0 %v2227, 96
        %v2297 = vpop.permute.xlu0 %2296
        %2298 = vrot.lane.b32.xlu0 %v2228, 96
        %v2299 = vpop.permute.xlu0 %2298
        %2300 = vrot.lane.b32.xlu0 %v2229, 96
        %v2301 = vpop.permute.xlu0 %2300
        %2302 = vrot.lane.b32.xlu0 %v2230, 96
        %v2303 = vpop.permute.xlu0 %2302
        %2304 = vrot.lane.b32.xlu0 %v2231, 96
        %v2305 = vpop.permute.xlu0 %2304
        %2306 = vrot.lane.b32.xlu0 %v2232, 96
        %v2307 = vpop.permute.xlu0 %2306
        %v2308 = vsel %vm1531, %v2259, %v2261
        %v2309 = vsel %vm1531, %v2261, %v2263
        %v2310 = vsel %vm1531, %v2263, %v2265
        %v2311 = vsel %vm1531, %v2265, %v2267
        %v2312 = vsel %vm1531, %v2269, %v2271
        %v2313 = vsel %vm1531, %v2271, %v2273
        %v2314 = vsel %vm1531, %v2273, %v2275
        %v2315 = vsel %vm1531, %v2275, %v2277
        %v2316 = vsel %vm1531, %v2279, %v2281
        %v2317 = vsel %vm1531, %v2281, %v2283
        %v2318 = vsel %vm1531, %v2283, %v2285
        %v2319 = vsel %vm1531, %v2285, %v2287
        %v2320 = vsel %vm1531, %v2289, %v2291
        %v2321 = vsel %vm1531, %v2291, %v2293
        %v2322 = vsel %vm1531, %v2293, %v2295
        %v2323 = vsel %vm1531, %v2295, %v2297
        %v2324 = vsel %vm1531, %v2299, %v2301
        %v2325 = vsel %vm1531, %v2301, %v2303
        %v2326 = vsel %vm1531, %v2303, %v2305
        %v2327 = vsel %vm1531, %v2305, %v2307
        %v2348 = vmax.f32 %v2208, %v2308
        %v2349 = vmax.f32 %v2209, %v2309
        %v2350 = vmax.f32 %v2210, %v2310
        %v2351 = vmax.f32 %v2211, %v2311
        %v2352 = vmax.f32 %v2213, %v2312
        %v2353 = vmax.f32 %v2214, %v2313
        %v2354 = vmax.f32 %v2215, %v2314
        %v2355 = vmax.f32 %v2216, %v2315
        %v2356 = vmax.f32 %v2218, %v2316
        %v2357 = vmax.f32 %v2219, %v2317
        %v2358 = vmax.f32 %v2220, %v2318
        %v2359 = vmax.f32 %v2221, %v2319
        %v2360 = vmax.f32 %v2223, %v2320
        %v2361 = vmax.f32 %v2224, %v2321
        %v2362 = vmax.f32 %v2225, %v2322
        %v2363 = vmax.f32 %v2226, %v2323
        %v2364 = vmax.f32 %v2228, %v2324
        %v2365 = vmax.f32 %v2229, %v2325
        %v2366 = vmax.f32 %v2230, %v2326
        %v2367 = vmax.f32 %v2231, %v2327
        %2368 = vrot.lane.b32.xlu0 %v2208, 64
        %v2369 = vpop.permute.xlu0 %2368
        %2370 = vrot.lane.b32.xlu0 %v2209, 64
        %v2371 = vpop.permute.xlu0 %2370
        %2372 = vrot.lane.b32.xlu0 %v2210, 64
        %v2373 = vpop.permute.xlu0 %2372
        %2374 = vrot.lane.b32.xlu0 %v2211, 64
        %v2375 = vpop.permute.xlu0 %2374
        %2376 = vrot.lane.b32.xlu0 %v2212, 64
        %v2377 = vpop.permute.xlu0 %2376
        %2378 = vrot.lane.b32.xlu0 %v2213, 64
        %v2379 = vpop.permute.xlu0 %2378
        %2380 = vrot.lane.b32.xlu0 %v2214, 64
        %v2381 = vpop.permute.xlu0 %2380
        %2382 = vrot.lane.b32.xlu0 %v2215, 64
        %v2383 = vpop.permute.xlu0 %2382
        %2384 = vrot.lane.b32.xlu0 %v2216, 64
        %v2385 = vpop.permute.xlu0 %2384
        %2386 = vrot.lane.b32.xlu0 %v2217, 64
        %v2387 = vpop.permute.xlu0 %2386
        %2388 = vrot.lane.b32.xlu0 %v2218, 64
        %v2389 = vpop.permute.xlu0 %2388
        %2390 = vrot.lane.b32.xlu0 %v2219, 64
        %v2391 = vpop.permute.xlu0 %2390
        %2392 = vrot.lane.b32.xlu0 %v2220, 64
        %v2393 = vpop.permute.xlu0 %2392
        %2394 = vrot.lane.b32.xlu0 %v2221, 64
        %v2395 = vpop.permute.xlu0 %2394
        %2396 = vrot.lane.b32.xlu0 %v2222, 64
        %v2397 = vpop.permute.xlu0 %2396
        %2398 = vrot.lane.b32.xlu0 %v2223, 64
        %v2399 = vpop.permute.xlu0 %2398
        %2400 = vrot.lane.b32.xlu0 %v2224, 64
        %v2401 = vpop.permute.xlu0 %2400
        %2402 = vrot.lane.b32.xlu0 %v2225, 64
        %v2403 = vpop.permute.xlu0 %2402
        %2404 = vrot.lane.b32.xlu0 %v2226, 64
        %v2405 = vpop.permute.xlu0 %2404
        %2406 = vrot.lane.b32.xlu0 %v2227, 64
        %v2407 = vpop.permute.xlu0 %2406
        %2408 = vrot.lane.b32.xlu0 %v2228, 64
        %v2409 = vpop.permute.xlu0 %2408
        %2410 = vrot.lane.b32.xlu0 %v2229, 64
        %v2411 = vpop.permute.xlu0 %2410
        %2412 = vrot.lane.b32.xlu0 %v2230, 64
        %v2413 = vpop.permute.xlu0 %2412
        %2414 = vrot.lane.b32.xlu0 %v2231, 64
        %v2415 = vpop.permute.xlu0 %2414
        %2416 = vrot.lane.b32.xlu0 %v2232, 64
        %v2417 = vpop.permute.xlu0 %2416
        %v2418 = vsel %vm2104, %v2369, %v2371
        %v2419 = vsel %vm2104, %v2371, %v2373
        %v2420 = vsel %vm2104, %v2373, %v2375
        %v2421 = vsel %vm2104, %v2375, %v2377
        %v2422 = vsel %vm2104, %v2379, %v2381
        %v2423 = vsel %vm2104, %v2381, %v2383
        %v2424 = vsel %vm2104, %v2383, %v2385
        %v2425 = vsel %vm2104, %v2385, %v2387
        %v2426 = vsel %vm2104, %v2389, %v2391
        %v2427 = vsel %vm2104, %v2391, %v2393
        %v2428 = vsel %vm2104, %v2393, %v2395
        %v2429 = vsel %vm2104, %v2395, %v2397
        %v2430 = vsel %vm2104, %v2399, %v2401
        %v2431 = vsel %vm2104, %v2401, %v2403
        %v2432 = vsel %vm2104, %v2403, %v2405
        %v2433 = vsel %vm2104, %v2405, %v2407
        %v2434 = vsel %vm2104, %v2409, %v2411
        %v2435 = vsel %vm2104, %v2411, %v2413
        %v2436 = vsel %vm2104, %v2413, %v2415
        %v2437 = vsel %vm2104, %v2415, %v2417
        %v2458 = vmax.f32 %v2348, %v2418
        %v2459 = vmax.f32 %v2349, %v2419
        %v2460 = vmax.f32 %v2350, %v2420
        %v2461 = vmax.f32 %v2351, %v2421
        %v2462 = vmax.f32 %v2352, %v2422
        %v2463 = vmax.f32 %v2353, %v2423
        %v2464 = vmax.f32 %v2354, %v2424
        %v2465 = vmax.f32 %v2355, %v2425
        %v2466 = vmax.f32 %v2356, %v2426
        %v2467 = vmax.f32 %v2357, %v2427
        %v2468 = vmax.f32 %v2358, %v2428
        %v2469 = vmax.f32 %v2359, %v2429
        %v2470 = vmax.f32 %v2360, %v2430
        %v2471 = vmax.f32 %v2361, %v2431
        %v2472 = vmax.f32 %v2362, %v2432
        %v2473 = vmax.f32 %v2363, %v2433
        %v2474 = vmax.f32 %v2364, %v2434
        %v2475 = vmax.f32 %v2365, %v2435
        %v2476 = vmax.f32 %v2366, %v2436
        %v2477 = vmax.f32 %v2367, %v2437
        %vm2490 = vcmask 1046528
        %v2491 = vrot.slane %v2458, 1
        %v2492 = vrot.slane %v2462, 1
        %v2493 = vsel %vm2490, %v2491, %v2492
        %v2494 = vrot.slane %v2459, 1
        %v2495 = vrot.slane %v2463, 1
        %v2496 = vsel %vm2490, %v2494, %v2495
        %v2497 = vrot.slane %v2460, 1
        %v2498 = vrot.slane %v2464, 1
        %v2499 = vsel %vm2490, %v2497, %v2498
        %v2500 = vrot.slane %v2461, 1
        %v2501 = vrot.slane %v2465, 1
        %v2502 = vsel %vm2490, %v2500, %v2501
        %v2503 = vrot.slane %v2466, 1
        %v2504 = vsel %vm2490, %v2492, %v2503
        %v2505 = vrot.slane %v2467, 1
        %v2506 = vsel %vm2490, %v2495, %v2505
        %v2507 = vrot.slane %v2468, 1
        %v2508 = vsel %vm2490, %v2498, %v2507
        %v2509 = vrot.slane %v2469, 1
        %v2510 = vsel %vm2490, %v2501, %v2509
        %v2519 = vmax.f32 %v2458, %v2493
        %v2520 = vmax.f32 %v2459, %v2496
        %v2521 = vmax.f32 %v2460, %v2499
        %v2522 = vmax.f32 %v2461, %v2502
        %v2523 = vmax.f32 %v2462, %v2504
        %v2524 = vmax.f32 %v2463, %v2506
        %v2525 = vmax.f32 %v2464, %v2508
        %v2526 = vmax.f32 %v2465, %v2510
        %vm2527 = vcmask 1045504
        %v2528 = vrot.slane %v2458, 2
        %v2529 = vrot.slane %v2462, 2
        %v2530 = vsel %vm2527, %v2528, %v2529
        %v2531 = vrot.slane %v2459, 2
        %v2532 = vrot.slane %v2463, 2
        %v2533 = vsel %vm2527, %v2531, %v2532
        %v2534 = vrot.slane %v2460, 2
        %v2535 = vrot.slane %v2464, 2
        %v2536 = vsel %vm2527, %v2534, %v2535
        %v2537 = vrot.slane %v2461, 2
        %v2538 = vrot.slane %v2465, 2
        %v2539 = vsel %vm2527, %v2537, %v2538
        %v2540 = vrot.slane %v2466, 2
        %v2541 = vsel %vm2527, %v2529, %v2540
        %v2542 = vrot.slane %v2467, 2
        %v2543 = vsel %vm2527, %v2532, %v2542
        %v2544 = vrot.slane %v2468, 2
        %v2545 = vsel %vm2527, %v2535, %v2544
        %v2546 = vrot.slane %v2469, 2
        %v2547 = vsel %vm2527, %v2538, %v2546
        %v2556 = vmax.f32 %v2519, %v2530
        %v2557 = vmax.f32 %v2520, %v2533
        %v2558 = vmax.f32 %v2521, %v2536
        %v2559 = vmax.f32 %v2522, %v2539
        %v2560 = vmax.f32 %v2523, %v2541
        %v2561 = vmax.f32 %v2524, %v2543
        %v2562 = vmax.f32 %v2525, %v2545
        %v2563 = vmax.f32 %v2526, %v2547
        %2564 = vst [vmem:[%s3] sm:$0xff] %v2556
        %2565 = vst [vmem:[%s3 + $0x8] sm:$0xff] %v2557
        %2566 = vst [vmem:[%s3 + $0x10] sm:$0xff] %v2558
        %2567 = vst [vmem:[%s3 + $0x18] sm:$0xff] %v2559
        %2568 = vst [vmem:[%s3 + $0x20] sm:$0xff] %v2560
        %2569 = vst [vmem:[%s3 + $0x28] sm:$0xff] %v2561
        %2570 = vst [vmem:[%s3 + $0x30] sm:$0xff] %v2562
        %2571 = vst [vmem:[%s3 + $0x38] sm:$0xff] %v2563
        %v2580 = vrot.slane %v2470, 1
        %v2581 = vsel %vm2490, %v2503, %v2580
        %v2582 = vrot.slane %v2471, 1
        %v2583 = vsel %vm2490, %v2505, %v2582
        %v2584 = vrot.slane %v2472, 1
        %v2585 = vsel %vm2490, %v2507, %v2584
        %v2586 = vrot.slane %v2473, 1
        %v2587 = vsel %vm2490, %v2509, %v2586
        %v2588 = vrot.slane %v2474, 1
        %v2589 = vsel %vm2490, %v2580, %v2588
        %v2590 = vrot.slane %v2475, 1
        %v2591 = vsel %vm2490, %v2582, %v2590
        %v2592 = vrot.slane %v2476, 1
        %v2593 = vsel %vm2490, %v2584, %v2592
        %v2594 = vrot.slane %v2477, 1
        %v2595 = vsel %vm2490, %v2586, %v2594
        %v2608 = vmax.f32 %v2466, %v2581
        %v2609 = vmax.f32 %v2467, %v2583
        %v2610 = vmax.f32 %v2468, %v2585
        %v2611 = vmax.f32 %v2469, %v2587
        %v2612 = vmax.f32 %v2470, %v2589
        %v2613 = vmax.f32 %v2471, %v2591
        %v2614 = vmax.f32 %v2472, %v2593
        %v2615 = vmax.f32 %v2473, %v2595
        %v2616 = vmax.f32 %v2474, %v2588
        %v2617 = vmax.f32 %v2475, %v2590
        %v2618 = vmax.f32 %v2476, %v2592
        %v2619 = vmax.f32 %v2477, %v2594
        %v2620 = vrot.slane %v2470, 2
        %v2621 = vsel %vm2527, %v2540, %v2620
        %v2622 = vrot.slane %v2471, 2
        %v2623 = vsel %vm2527, %v2542, %v2622
        %v2624 = vrot.slane %v2472, 2
        %v2625 = vsel %vm2527, %v2544, %v2624
        %v2626 = vrot.slane %v2473, 2
        %v2627 = vsel %vm2527, %v2546, %v2626
        %v2628 = vrot.slane %v2474, 2
        %v2629 = vsel %vm2527, %v2620, %v2628
        %v2630 = vrot.slane %v2475, 2
        %v2631 = vsel %vm2527, %v2622, %v2630
        %v2632 = vrot.slane %v2476, 2
        %v2633 = vsel %vm2527, %v2624, %v2632
        %v2634 = vrot.slane %v2477, 2
        %v2635 = vsel %vm2527, %v2626, %v2634
        %v2648 = vmax.f32 %v2608, %v2621
        %v2649 = vmax.f32 %v2609, %v2623
        %v2650 = vmax.f32 %v2610, %v2625
        %v2651 = vmax.f32 %v2611, %v2627
        %v2652 = vmax.f32 %v2612, %v2629
        %v2653 = vmax.f32 %v2613, %v2631
        %v2654 = vmax.f32 %v2614, %v2633
        %v2655 = vmax.f32 %v2615, %v2635
        %v2656 = vmax.f32 %v2616, %v2628
        %v2657 = vmax.f32 %v2617, %v2630
        %v2658 = vmax.f32 %v2618, %v2632
        %v2659 = vmax.f32 %v2619, %v2634
        %v2672 = vrot.slane %v2648, 2
        %v2673 = vrot.slane %v2652, 2
        %v2674 = vsel %vm2527, %v2672, %v2673
        %v2675 = vrot.slane %v2649, 2
        %v2676 = vrot.slane %v2653, 2
        %v2677 = vsel %vm2527, %v2675, %v2676
        %v2678 = vrot.slane %v2650, 2
        %v2679 = vrot.slane %v2654, 2
        %v2680 = vsel %vm2527, %v2678, %v2679
        %v2681 = vrot.slane %v2651, 2
        %v2682 = vrot.slane %v2655, 2
        %v2683 = vsel %vm2527, %v2681, %v2682
        %v2684 = vrot.slane %v2656, 2
        %v2685 = vsel %vm2527, %v2673, %v2684
        %v2686 = vrot.slane %v2657, 2
        %v2687 = vsel %vm2527, %v2676, %v2686
        %v2688 = vrot.slane %v2658, 2
        %v2689 = vsel %vm2527, %v2679, %v2688
        %v2690 = vrot.slane %v2659, 2
        %v2691 = vsel %vm2527, %v2682, %v2690
        %2700 = vst [vmem:[%s3 + $0x40] sm:$0xff] %v2674
        %2701 = vst [vmem:[%s3 + $0x48] sm:$0xff] %v2677
        %2702 = vst [vmem:[%s3 + $0x50] sm:$0xff] %v2680
        %2703 = vst [vmem:[%s3 + $0x58] sm:$0xff] %v2683
        %2704 = vst [vmem:[%s3 + $0x60] sm:$0xff] %v2685
        %2705 = vst [vmem:[%s3 + $0x68] sm:$0xff] %v2687
        %2706 = vst [vmem:[%s3 + $0x70] sm:$0xff] %v2689
        %2707 = vst [vmem:[%s3 + $0x78] sm:$0xff] %v2691
      $region40: #{cnn_custom_forward.5} parent=31 // pred_fallthru
        _
      // Predicated region
      $region41: #{cnn_custom_forward.5} parent=31 // pred_check
        %p2708 = pneg %p100
      $region42: #{cnn_custom_forward.5} parent=31 // pred_check_branch
        %2710 = sbr.rel (%p2708) target = $region44
      $region43: #{cnn_custom_forward.5} parent=31 // pred_region
        _
      $region44: #{cnn_custom_forward.5} parent=31 // pred_fallthru
        _
      // Predicated region
      $region45: #{cnn_custom_forward.5} parent=31 // pred_check
        %p2711 = pneg %p100
      $region46: #{cnn_custom_forward.5} parent=31 // pred_check_branch
        %2713 = sbr.rel (%p2711) target = $region48
      $region47: #{cnn_custom_forward.5} parent=31 // pred_region
        _
      $region48: #{cnn_custom_forward.5} parent=31 // pred_fallthru
        _
    $region32: #{cnn_custom_forward.5} parent=5 // pred_fallthru
      _
    %p2714 = scmp.le.s32.totalorder 2, %s9
    // Predicated region
    $region49: #{cnn_custom_forward.5} parent=5 // pred_check
      %p2715 = pneg %p2714
    $region50: #{cnn_custom_forward.5} parent=5 // pred_check_branch
      %2717 = sbr.rel (%p2715) target = $region52
    $region51: #{cnn_custom_forward.5} parent=5 // pred_region
      %s2718 = ssub.s32 %s9, 2
    $region52: #{cnn_custom_forward.5} parent=5 // pred_fallthru
      _
  $region6: #{cnn_custom_forward.5} parent=0 // loop_footer
    %s13 = sadd.s32 1, %s9
  $region7: #{cnn_custom_forward.5} parent=0 // loop_footer_branch
    %8 = sbr.rel target = $region3
  $region8: #{cnn_custom_forward.5} parent=0 // loop_exit
    _

// kernel: cnn_custom_forward.6
$region0: #{cnn_custom_forward.6}
  #allocation0 [shape = 'u32[]', space=smem, size = 0x4, offset = 0x4, fixed_abs, tag = 'smem constant byte address 0x4 - core index']
  #allocation1 [shape = 'u32[144,128]{1,0:T(1,128)}', space=vmem, size = 0x12000, scoped, tag = 'internal scratch']
  #allocation2 [shape = 'f32[20,640]{1,0:T(8,128)}', space=vmem, size = 0xf000, scoped, tag = 'scratch operand']
  %s0 = inlined_call_operand.vmem [shape: bf16[3,20,704], index: 0, kind: input, shape index: {}]
  %s1 = inlined_call_operand.vmem [shape: bf16[3,704,640], index: 1, kind: input, shape index: {}]
  %s2 = inlined_call_operand.vmem [shape: f32[1,640], index: 2, kind: input, shape index: {}]
  %s3 = inlined_call_operand.vmem [shape: f32[16,512], index: 3, kind: output, shape index: {}]
  %s4 = sld [smem:[#allocation0]]
  $region53: #{cnn_custom_forward.6} parent=0
    _
  %s6 = ssub.s32 1, %s4
  %s7 = scalar_select 0, %s6, %s4
  loop: start=0, step=1, limit=5
  $region2: #{cnn_custom_forward.6} parent=0 // loop_pre_header
    _
  $region3: #{cnn_custom_forward.6} parent=0 // loop_header
    %s9 = sphi 0, %s13
    %p10 = scmp.ge.s32.totalorder %s9, 5
    %s19 = sphi 0, %s21
    %s22 = sphi 0, %s19
    %s23 = sphi 0, %s22
    %s39 = sphi 0, %s23
    %s45 = sphi 0, %s47
    %s48 = sphi 0, %s45
    %s49 = sphi 0, %s48
    %s65 = sphi 0, %s49
    %s69 = sphi 0, %s69
    %s71 = sphi 0, %s69
    %s72 = sphi 0, %s71
    %s86 = sphi 0, %s72
    %s90 = sphi 0, %s90
    %s92 = sphi 0, %s90
    %s93 = sphi 0, %s92
    %s107 = sphi 0, %s93
  $region4: #{cnn_custom_forward.6} parent=0 // loop_header_branch
    %12 = sbr.rel (%p10) target = $region8
  $region5: #{cnn_custom_forward.6} parent=0 // loop_body
    %s14 = ssub.s32 %s9, 1
    %s15 = ssub.s32 %s9, 2
    %s16 = sadd.s32 %s9, 1
    %s17 = ssub.s32 %s9, %s16
    %p18 = scmp.eq.s32.totalorder %s17, 0
    %s20 = sadd.s32 %s19, 1
    %s21 = scalar_select %p18, %s19, %s20
    %p24 = pneg %p18
    %p25 = scmp.eq.s32.totalorder %s9, 2
    %p26 = por %p24, %p25
    %p27 = scmp.ne.s32.totalorder %s19, %s22
    %p28 = scmp.eq.s32.totalorder %s9, 0
    %p29 = por %p27, %p28
    %p30 = scmp.ne.s32.totalorder %s19, %s22
    %p31 = scmp.eq.s32.totalorder %s14, 2
    %p32 = por %p30, %p31
    %p33 = scmp.ne.s32.totalorder %s22, %s23
    %p34 = scmp.eq.s32.totalorder %s14, 0
    %p35 = por %p33, %p34
    %p36 = scmp.ne.s32.totalorder %s22, %s23
    %p37 = scmp.eq.s32.totalorder %s15, 2
    %p38 = por %p36, %p37
    %p40 = scmp.ne.s32.totalorder %s23, %s39
    %p41 = scmp.eq.s32.totalorder %s15, 0
    %p42 = por %p40, %p41
    %s43 = ssub.s32 %s9, %s16
    %p44 = scmp.eq.s32.totalorder %s43, 0
    %s46 = sadd.s32 %s45, 1
    %s47 = scalar_select %p44, %s45, %s46
    %p50 = pneg %p44
    %p51 = scmp.eq.s32.totalorder %s9, 2
    %p52 = por %p50, %p51
    %p53 = scmp.ne.s32.totalorder %s45, %s48
    %p54 = scmp.eq.s32.totalorder %s9, 0
    %p55 = por %p53, %p54
    %p56 = scmp.ne.s32.totalorder %s45, %s48
    %p57 = scmp.eq.s32.totalorder %s14, 2
    %p58 = por %p56, %p57
    %p59 = scmp.ne.s32.totalorder %s48, %s49
    %p60 = scmp.eq.s32.totalorder %s14, 0
    %p61 = por %p59, %p60
    %p62 = scmp.ne.s32.totalorder %s48, %s49
    %p63 = scmp.eq.s32.totalorder %s15, 2
    %p64 = por %p62, %p63
    %p66 = scmp.ne.s32.totalorder %s49, %s65
    %p67 = scmp.eq.s32.totalorder %s15, 0
    %p68 = por %p66, %p67
    %s70 = sadd.s32 %s69, 1
    %p73 = scmp.eq.s32.totalorder %s9, 2
    %p74 = scmp.ne.s32.totalorder %s69, %s71
    %p75 = scmp.eq.s32.totalorder %s9, 0
    %p76 = por %p74, %p75
    %p77 = scmp.ne.s32.totalorder %s69, %s71
    %p78 = scmp.eq.s32.totalorder %s14, 2
    %p79 = por %p77, %p78
    %p80 = scmp.ne.s32.totalorder %s71, %s72
    %p81 = scmp.eq.s32.totalorder %s14, 0
    %p82 = por %p80, %p81
    %p83 = scmp.ne.s32.totalorder %s71, %s72
    %p84 = scmp.eq.s32.totalorder %s15, 2
    %p85 = por %p83, %p84
    %p87 = scmp.ne.s32.totalorder %s72, %s86
    %p88 = scmp.eq.s32.totalorder %s15, 0
    %p89 = por %p87, %p88
    %s91 = sadd.s32 %s90, 1
    %p94 = scmp.eq.s32.totalorder %s9, 2
    %p95 = scmp.ne.s32.totalorder %s90, %s92
    %p96 = scmp.eq.s32.totalorder %s9, 0
    %p97 = por %p95, %p96
    %p98 = scmp.ne.s32.totalorder %s90, %s92
    %p99 = scmp.eq.s32.totalorder %s14, 2
    %p100 = por %p98, %p99
    %p101 = scmp.ne.s32.totalorder %s92, %s93
    %p102 = scmp.eq.s32.totalorder %s14, 0
    %p103 = por %p101, %p102
    %p104 = scmp.ne.s32.totalorder %s92, %s93
    %p105 = scmp.eq.s32.totalorder %s15, 2
    %p106 = por %p104, %p105
    %p108 = scmp.ne.s32.totalorder %s93, %s107
    %p109 = scmp.eq.s32.totalorder %s15, 0
    %p110 = por %p108, %p109
    %p111 = scmp.le.s32.totalorder 1, %s9
    %p112 = scmp.lt.s32.totalorder %s9, 4
    %p113 = pnand %p111, %p112
    %p114 = pneg %p113
    // Predicated region
    $region9: #{cnn_custom_forward.6} parent=5 // pred_check
      _
    $region10: #{cnn_custom_forward.6} parent=5 // pred_check_branch
      %116 = sbr.rel (%p113) target = $region12
    $region11: #{cnn_custom_forward.6} parent=5 // pred_region
      %s117 = ssub.s32 %s9, 1
      // Predicated region
      $region13: #{cnn_custom_forward.6} parent=11 // pred_check
        %p118 = pneg %p82
      $region14: #{cnn_custom_forward.6} parent=11 // pred_check_branch
        %120 = sbr.rel (%p118) target = $region16
      $region15: #{cnn_custom_forward.6} parent=11 // pred_region
        _
      $region16: #{cnn_custom_forward.6} parent=11 // pred_fallthru
        _
    $region12: #{cnn_custom_forward.6} parent=5 // pred_fallthru
      _
    %p121 = scmp.lt.s32.totalorder %s9, 3
    // Predicated region
    $region17: #{cnn_custom_forward.6} parent=5 // pred_check
      %p122 = pneg %p121
    $region18: #{cnn_custom_forward.6} parent=5 // pred_check_branch
      %124 = sbr.rel (%p122) target = $region20
    $region19: #{cnn_custom_forward.6} parent=5 // pred_region
      // Predicated region
      $region21: #{cnn_custom_forward.6} parent=19 // pred_check
        %p125 = pneg %p29
      $region22: #{cnn_custom_forward.6} parent=19 // pred_check_branch
        %127 = sbr.rel (%p125) target = $region24
      $region23: #{cnn_custom_forward.6} parent=19 // pred_region
        %p128 = scmp.lt.s32.totalorder %s9, 2
        %s129 = scalar_select %p128, %s9, 2
        %s130 = smul.addr %s129, 18
        %s131 = smul.addr %s130, 4
        %s132 = scalar_lea.vmem %s0, %s131
      $region24: #{cnn_custom_forward.6} parent=19 // pred_fallthru
        _
      // Predicated region
      $region25: #{cnn_custom_forward.6} parent=19 // pred_check
        %p133 = pneg %p55
      $region26: #{cnn_custom_forward.6} parent=19 // pred_check_branch
        %135 = sbr.rel (%p133) target = $region28
      $region27: #{cnn_custom_forward.6} parent=19 // pred_region
        %p136 = scmp.lt.s32.totalorder %s9, 2
        %s137 = scalar_select %p136, %s9, 2
        %s138 = smul.addr %s137, 440
        %s139 = smul.addr %s138, 4
        %s140 = scalar_lea.vmem %s1, %s139
      $region28: #{cnn_custom_forward.6} parent=19 // pred_fallthru
        _
    $region20: #{cnn_custom_forward.6} parent=5 // pred_fallthru
      _
    %p141 = scmp.le.s32.totalorder 1, %s9
    %p142 = scmp.lt.s32.totalorder %s9, 4
    %p143 = pnand %p141, %p142
    %p144 = pneg %p143
    // Predicated region
    $region29: #{cnn_custom_forward.6} parent=5 // pred_check
      _
    $region30: #{cnn_custom_forward.6} parent=5 // pred_check_branch
      %146 = sbr.rel (%p143) target = $region32
    $region31: #{cnn_custom_forward.6} parent=5 // pred_region
      %s147 = ssub.s32 %s9, 1
      %p148 = scmp.lt.s32.totalorder %s14, 2
      %s149 = scalar_select %p148, %s14, 2
      %s150 = smul.addr %s149, 18
      %s151 = smul.addr %s150, 4
      %s152 = scalar_lea.vmem %s0, %s151
      %p153 = pneg %p35
      %p154 = pneg %p32
      %p155 = scmp.lt.s32.totalorder %s14, 2
      %s156 = scalar_select %p155, %s14, 2
      %s157 = smul.addr %s156, 440
      %s158 = smul.addr %s157, 4
      %s159 = scalar_lea.vmem %s1, %s158
      %p160 = pneg %p61
      %p161 = pneg %p58
      %p162 = pneg %p82
      %p163 = pneg %p79
      %p164 = pneg %p103
      %p165 = pneg %p100
      %p166 = scmp.lt.s32.totalorder %s14, 2
      %s167 = scalar_select %p166, %s14, 2
      %s168 = smul.addr %s167, 18
      %s169 = smul.addr %s168, 4
      %s170 = scalar_lea.vmem %s0, %s169
      %p171 = scmp.lt.s32.totalorder %s14, 2
      %s172 = scalar_select %p171, %s14, 2
      %s173 = smul.addr %s172, 440
      %s174 = smul.addr %s173, 4
      %s175 = scalar_lea.vmem %s1, %s174
      %p177 = scmp.eq.s32.totalorder %s14, 0
      // Predicated region
      $region33: #{cnn_custom_forward.6} parent=31 // pred_check
        %p178 = pneg %p177
      $region34: #{cnn_custom_forward.6} parent=31 // pred_check_branch
        %180 = sbr.rel (%p178) target = $region36
      $region35: #{cnn_custom_forward.6} parent=31 // pred_region
        %181 = vst [vmem:[#allocation2] sm:$0xff] 0.0
        %182 = vst [vmem:[#allocation2 + $0x8] sm:$0xff] 0.0
        %183 = vst [vmem:[#allocation2 + $0x10] sm:$0xff] 0.0
        %184 = vst [vmem:[#allocation2 + $0x18] sm:$0xff] 0.0
        %185 = vst [vmem:[#allocation2 + $0x20] sm:$0xff] 0.0
        %186 = vst [vmem:[#allocation2 + $0x28] sm:$0xff] 0.0
        %187 = vst [vmem:[#allocation2 + $0x30] sm:$0xff] 0.0
        %188 = vst [vmem:[#allocation2 + $0x38] sm:$0xff] 0.0
        %189 = vst [vmem:[#allocation2 + $0x40] sm:$0xff] 0.0
        %190 = vst [vmem:[#allocation2 + $0x48] sm:$0xff] 0.0
        %191 = vst [vmem:[#allocation2 + $0x50] sm:$0xf] 0.0
        %192 = vst [vmem:[#allocation2 + $0x58] sm:$0xf] 0.0
        %193 = vst [vmem:[#allocation2 + $0x60] sm:$0xf] 0.0
        %194 = vst [vmem:[#allocation2 + $0x68] sm:$0xf] 0.0
        %195 = vst [vmem:[#allocation2 + $0x70] sm:$0xf] 0.0
      $region36: #{cnn_custom_forward.6} parent=31 // pred_fallthru
        _
      %v196 = vld [vmem:[#allocation2] sm:$0xff]
      %v197 = vld [vmem:[#allocation2 + $0x8] sm:$0xff]
      %v198 = vld [vmem:[#allocation2 + $0x10] sm:$0xff]
      %v199 = vld [vmem:[#allocation2 + $0x18] sm:$0xff]
      %v200 = vld [vmem:[#allocation2 + $0x20] sm:$0xff]
      %v201 = vld [vmem:[#allocation2 + $0x28] sm:$0xff]
      %v202 = vld [vmem:[#allocation2 + $0x30] sm:$0xff]
      %v203 = vld [vmem:[#allocation2 + $0x38] sm:$0xff]
      %v204 = vld [vmem:[#allocation2 + $0x40] sm:$0xff]
      %v205 = vld [vmem:[#allocation2 + $0x48] sm:$0xff]
      %v206 = vld [vmem:[#allocation2 + $0x50] sm:$0xf]
      %v207 = vld [vmem:[#allocation2 + $0x58] sm:$0xf]
      %v208 = vld [vmem:[#allocation2 + $0x60] sm:$0xf]
      %v209 = vld [vmem:[#allocation2 + $0x68] sm:$0xf]
      %v210 = vld [vmem:[#allocation2 + $0x70] sm:$0xf]
      %v211 = vld [vmem:[%s170] sm:$0xff]
      %v212 = vld [vmem:[%s170 + $0x8] sm:$0xff]
      %v213 = vld [vmem:[%s170 + $0x10] sm:$0xff]
      %v214 = vld [vmem:[%s170 + $0x18] sm:$0xff]
      %v215 = vld [vmem:[%s170 + $0x20] sm:$0xff]
      %v216 = vld [vmem:[%s170 + $0x28] sm:$0xff]
      %v217 = vld [vmem:[%s170 + $0x30] sm:$0x33]
      %v218 = vld [vmem:[%s170 + $0x38] sm:$0x33]
      %v219 = vld [vmem:[%s170 + $0x40] sm:$0x33]
      %v220 = vld [vmem:[%s175] sm:$0xff]
      %v221 = vld [vmem:[%s175 + $0x8] sm:$0xff]
      %v222 = vld [vmem:[%s175 + $0x10] sm:$0xf]
      %v223 = vld [vmem:[%s175 + $0x14] sm:$0xff]
      %v224 = vld [vmem:[%s175 + $0x1c] sm:$0xff]
      %v225 = vld [vmem:[%s175 + $0x24] sm:$0xf]
      %v226 = vld [vmem:[%s175 + $0x28] sm:$0xff]
      %v227 = vld [vmem:[%s175 + $0x30] sm:$0xff]
      %v228 = vld [vmem:[%s175 + $0x38] sm:$0xf]
      %v229 = vld [vmem:[%s175 + $0x3c] sm:$0xff]
      %v230 = vld [vmem:[%s175 + $0x44] sm:$0xff]
      %v231 = vld [vmem:[%s175 + $0x4c] sm:$0xf]
      %v232 = vld [vmem:[%s175 + $0x50] sm:$0xff]
      %v233 = vld [vmem:[%s175 + $0x58] sm:$0xff]
      %v234 = vld [vmem:[%s175 + $0x60] sm:$0xf]
      %v235 = vld [vmem:[%s175 + $0x64] sm:$0xff]
      %v236 = vld [vmem:[%s175 + $0x6c] sm:$0xff]
      %v237 = vld [vmem:[%s175 + $0x74] sm:$0xf]
      %v238 = vld [vmem:[%s175 + $0x78] sm:$0xff]
      %v239 = vld [vmem:[%s175 + $0x80] sm:$0xff]
      %v240 = vld [vmem:[%s175 + $0x88] sm:$0xf]
      %v241 = vld [vmem:[%s175 + $0x8c] sm:$0xff]
      %v242 = vld [vmem:[%s175 + $0x94] sm:$0xff]
      %v243 = vld [vmem:[%s175 + $0x9c] sm:$0xf]
      %v244 = vld [vmem:[%s175 + $0xa0] sm:$0xff]
      %v245 = vld [vmem:[%s175 + $0xa8] sm:$0xff]
      %v246 = vld [vmem:[%s175 + $0xb0] sm:$0xf]
      %v247 = vld [vmem:[%s175 + $0xb4] sm:$0xff]
      %v248 = vld [vmem:[%s175 + $0xbc] sm:$0xff]
      %v249 = vld [vmem:[%s175 + $0xc4] sm:$0xf]
      %v250 = vld [vmem:[%s175 + $0xc8] sm:$0xff]
      %v251 = vld [vmem:[%s175 + $0xd0] sm:$0xff]
      %v252 = vld [vmem:[%s175 + $0xd8] sm:$0xf]
      %v253 = vld [vmem:[%s175 + $0xdc] sm:$0xff]
      %v254 = vld [vmem:[%s175 + $0xe4] sm:$0xff]
      %v255 = vld [vmem:[%s175 + $0xec] sm:$0xf]
      %v256 = vld [vmem:[%s175 + $0xf0] sm:$0xff]
      %v257 = vld [vmem:[%s175 + $0xf8] sm:$0xff]
      %v258 = vld [vmem:[%s175 + $0x100] sm:$0xf]
      %v259 = vld [vmem:[%s175 + $0x104] sm:$0xff]
      %v260 = vld [vmem:[%s175 + $0x10c] sm:$0xff]
      %v261 = vld [vmem:[%s175 + $0x114] sm:$0xf]
      %v262 = vld [vmem:[%s175 + $0x118] sm:$0xff]
      %v263 = vld [vmem:[%s175 + $0x120] sm:$0xff]
      %v264 = vld [vmem:[%s175 + $0x128] sm:$0xf]
      %v265 = vld [vmem:[%s175 + $0x12c] sm:$0xff]
      %v266 = vld [vmem:[%s175 + $0x134] sm:$0xff]
      %v267 = vld [vmem:[%s175 + $0x13c] sm:$0xf]
      %v268 = vld [vmem:[%s175 + $0x140] sm:$0xff]
      %v269 = vld [vmem:[%s175 + $0x148] sm:$0xff]
      %v270 = vld [vmem:[%s175 + $0x150] sm:$0xf]
      %v271 = vld [vmem:[%s175 + $0x154] sm:$0xff]
      %v272 = vld [vmem:[%s175 + $0x15c] sm:$0xff]
      %v273 = vld [vmem:[%s175 + $0x164] sm:$0xf]
      %v274 = vld [vmem:[%s175 + $0x168] sm:$0xff]
      %v275 = vld [vmem:[%s175 + $0x170] sm:$0xff]
      %v276 = vld [vmem:[%s175 + $0x178] sm:$0xf]
      %v277 = vld [vmem:[%s175 + $0x17c] sm:$0xff]
      %v278 = vld [vmem:[%s175 + $0x184] sm:$0xff]
      %v279 = vld [vmem:[%s175 + $0x18c] sm:$0xf]
      %v280 = vld [vmem:[%s175 + $0x190] sm:$0xff]
      %v281 = vld [vmem:[%s175 + $0x198] sm:$0xff]
      %v282 = vld [vmem:[%s175 + $0x1a0] sm:$0xf]
      %v283 = vld [vmem:[%s175 + $0x1a4] sm:$0xff]
      %v284 = vld [vmem:[%s175 + $0x1ac] sm:$0xff]
      %v285 = vld [vmem:[%s175 + $0x1b4] sm:$0xf]
      %v286 = vld [vmem:[%s175 + $0x1b8] sm:$0xff]
      %v287 = vld [vmem:[%s175 + $0x1c0] sm:$0xff]
      %v288 = vld [vmem:[%s175 + $0x1c8] sm:$0xf]
      %v289 = vld [vmem:[%s175 + $0x1cc] sm:$0xff]
      %v290 = vld [vmem:[%s175 + $0x1d4] sm:$0xff]
      %v291 = vld [vmem:[%s175 + $0x1dc] sm:$0xf]
      %v292 = vld [vmem:[%s175 + $0x1e0] sm:$0xff]
      %v293 = vld [vmem:[%s175 + $0x1e8] sm:$0xff]
      %v294 = vld [vmem:[%s175 + $0x1f0] sm:$0xf]
      %v295 = vld [vmem:[%s175 + $0x1f4] sm:$0xff]
      %v296 = vld [vmem:[%s175 + $0x1fc] sm:$0xff]
      %v297 = vld [vmem:[%s175 + $0x204] sm:$0xf]
      %v298 = vld [vmem:[%s175 + $0x208] sm:$0xff]
      %v299 = vld [vmem:[%s175 + $0x210] sm:$0xff]
      %v300 = vld [vmem:[%s175 + $0x218] sm:$0xf]
      %v301 = vld [vmem:[%s175 + $0x21c] sm:$0xff]
      %v302 = vld [vmem:[%s175 + $0x224] sm:$0xff]
      %v303 = vld [vmem:[%s175 + $0x22c] sm:$0xf]
      %v304 = vld [vmem:[%s175 + $0x230] sm:$0xff]
      %v305 = vld [vmem:[%s175 + $0x238] sm:$0xff]
      %v306 = vld [vmem:[%s175 + $0x240] sm:$0xf]
      %v307 = vld [vmem:[%s175 + $0x244] sm:$0xff]
      %v308 = vld [vmem:[%s175 + $0x24c] sm:$0xff]
      %v309 = vld [vmem:[%s175 + $0x254] sm:$0xf]
      %v310 = vld [vmem:[%s175 + $0x258] sm:$0xff]
      %v311 = vld [vmem:[%s175 + $0x260] sm:$0xff]
      %v312 = vld [vmem:[%s175 + $0x268] sm:$0xf]
      %v313 = vld [vmem:[%s175 + $0x26c] sm:$0xff]
      %v314 = vld [vmem:[%s175 + $0x274] sm:$0xff]
      %v315 = vld [vmem:[%s175 + $0x27c] sm:$0xf]
      %v316 = vld [vmem:[%s175 + $0x280] sm:$0xff]
      %v317 = vld [vmem:[%s175 + $0x288] sm:$0xff]
      %v318 = vld [vmem:[%s175 + $0x290] sm:$0xf]
      %v319 = vld [vmem:[%s175 + $0x294] sm:$0xff]
      %v320 = vld [vmem:[%s175 + $0x29c] sm:$0xff]
      %v321 = vld [vmem:[%s175 + $0x2a4] sm:$0xf]
      %v322 = vld [vmem:[%s175 + $0x2a8] sm:$0xff]
      %v323 = vld [vmem:[%s175 + $0x2b0] sm:$0xff]
      %v324 = vld [vmem:[%s175 + $0x2b8] sm:$0xf]
      %v325 = vld [vmem:[%s175 + $0x2bc] sm:$0xff]
      %v326 = vld [vmem:[%s175 + $0x2c4] sm:$0xff]
      %v327 = vld [vmem:[%s175 + $0x2cc] sm:$0xf]
      %v328 = vld [vmem:[%s175 + $0x2d0] sm:$0xff]
      %v329 = vld [vmem:[%s175 + $0x2d8] sm:$0xff]
      %v330 = vld [vmem:[%s175 + $0x2e0] sm:$0xf]
      %v331 = vld [vmem:[%s175 + $0x2e4] sm:$0xff]
      %v332 = vld [vmem:[%s175 + $0x2ec] sm:$0xff]
      %v333 = vld [vmem:[%s175 + $0x2f4] sm:$0xf]
      %v334 = vld [vmem:[%s175 + $0x2f8] sm:$0xff]
      %v335 = vld [vmem:[%s175 + $0x300] sm:$0xff]
      %v336 = vld [vmem:[%s175 + $0x308] sm:$0xf]
      %v337 = vld [vmem:[%s175 + $0x30c] sm:$0xff]
      %v338 = vld [vmem:[%s175 + $0x314] sm:$0xff]
      %v339 = vld [vmem:[%s175 + $0x31c] sm:$0xf]
      %v340 = vld [vmem:[%s175 + $0x320] sm:$0xff]
      %v341 = vld [vmem:[%s175 + $0x328] sm:$0xff]
      %v342 = vld [vmem:[%s175 + $0x330] sm:$0xf]
      %v343 = vld [vmem:[%s175 + $0x334] sm:$0xff]
      %v344 = vld [vmem:[%s175 + $0x33c] sm:$0xff]
      %v345 = vld [vmem:[%s175 + $0x344] sm:$0xf]
      %v346 = vld [vmem:[%s175 + $0x348] sm:$0xff]
      %v347 = vld [vmem:[%s175 + $0x350] sm:$0xff]
      %v348 = vld [vmem:[%s175 + $0x358] sm:$0xf]
      %v349 = vld [vmem:[%s175 + $0x35c] sm:$0xff]
      %v350 = vld [vmem:[%s175 + $0x364] sm:$0xff]
      %v351 = vld [vmem:[%s175 + $0x36c] sm:$0xf]
      %v352 = vld [vmem:[%s175 + $0x370] sm:$0xff]
      %v353 = vld [vmem:[%s175 + $0x378] sm:$0xff]
      %v354 = vld [vmem:[%s175 + $0x380] sm:$0xf]
      %v355 = vld [vmem:[%s175 + $0x384] sm:$0xff]
      %v356 = vld [vmem:[%s175 + $0x38c] sm:$0xff]
      %v357 = vld [vmem:[%s175 + $0x394] sm:$0xf]
      %v358 = vld [vmem:[%s175 + $0x398] sm:$0xff]
      %v359 = vld [vmem:[%s175 + $0x3a0] sm:$0xff]
      %v360 = vld [vmem:[%s175 + $0x3a8] sm:$0xf]
      %v361 = vld [vmem:[%s175 + $0x3ac] sm:$0xff]
      %v362 = vld [vmem:[%s175 + $0x3b4] sm:$0xff]
      %v363 = vld [vmem:[%s175 + $0x3bc] sm:$0xf]
      %v364 = vld [vmem:[%s175 + $0x3c0] sm:$0xff]
      %v365 = vld [vmem:[%s175 + $0x3c8] sm:$0xff]
      %v366 = vld [vmem:[%s175 + $0x3d0] sm:$0xf]
      %v367 = vld [vmem:[%s175 + $0x3d4] sm:$0xff]
      %v368 = vld [vmem:[%s175 + $0x3dc] sm:$0xff]
      %v369 = vld [vmem:[%s175 + $0x3e4] sm:$0xf]
      %v370 = vld [vmem:[%s175 + $0x3e8] sm:$0xff]
      %v371 = vld [vmem:[%s175 + $0x3f0] sm:$0xff]
      %v372 = vld [vmem:[%s175 + $0x3f8] sm:$0xf]
      %v373 = vld [vmem:[%s175 + $0x3fc] sm:$0xff]
      %v374 = vld [vmem:[%s175 + $0x404] sm:$0xff]
      %v375 = vld [vmem:[%s175 + $0x40c] sm:$0xf]
      %v376 = vld [vmem:[%s175 + $0x410] sm:$0xff]
      %v377 = vld [vmem:[%s175 + $0x418] sm:$0xff]
      %v378 = vld [vmem:[%s175 + $0x420] sm:$0xf]
      %v379 = vld [vmem:[%s175 + $0x424] sm:$0xff]
      %v380 = vld [vmem:[%s175 + $0x42c] sm:$0xff]
      %v381 = vld [vmem:[%s175 + $0x434] sm:$0xf]
      %v382 = vld [vmem:[%s175 + $0x438] sm:$0xff]
      %v383 = vld [vmem:[%s175 + $0x440] sm:$0xff]
      %v384 = vld [vmem:[%s175 + $0x448] sm:$0xf]
      %v385 = vld [vmem:[%s175 + $0x44c] sm:$0xff]
      %v386 = vld [vmem:[%s175 + $0x454] sm:$0xff]
      %v387 = vld [vmem:[%s175 + $0x45c] sm:$0xf]
      %v388 = vld [vmem:[%s175 + $0x460] sm:$0xff]
      %v389 = vld [vmem:[%s175 + $0x468] sm:$0xff]
      %v390 = vld [vmem:[%s175 + $0x470] sm:$0xf]
      %v391 = vld [vmem:[%s175 + $0x474] sm:$0xff]
      %v392 = vld [vmem:[%s175 + $0x47c] sm:$0xff]
      %v393 = vld [vmem:[%s175 + $0x484] sm:$0xf]
      %v394 = vld [vmem:[%s175 + $0x488] sm:$0xff]
      %v395 = vld [vmem:[%s175 + $0x490] sm:$0xff]
      %v396 = vld [vmem:[%s175 + $0x498] sm:$0xf]
      %v397 = vld [vmem:[%s175 + $0x49c] sm:$0xff]
      %v398 = vld [vmem:[%s175 + $0x4a4] sm:$0xff]
      %v399 = vld [vmem:[%s175 + $0x4ac] sm:$0xf]
      %v400 = vld [vmem:[%s175 + $0x4b0] sm:$0xff]
      %v401 = vld [vmem:[%s175 + $0x4b8] sm:$0xff]
      %v402 = vld [vmem:[%s175 + $0x4c0] sm:$0xf]
      %v403 = vld [vmem:[%s175 + $0x4c4] sm:$0xff]
      %v404 = vld [vmem:[%s175 + $0x4cc] sm:$0xff]
      %v405 = vld [vmem:[%s175 + $0x4d4] sm:$0xf]
      %v406 = vld [vmem:[%s175 + $0x4d8] sm:$0xff]
      %v407 = vld [vmem:[%s175 + $0x4e0] sm:$0xff]
      %v408 = vld [vmem:[%s175 + $0x4e8] sm:$0xf]
      %v409 = vld [vmem:[%s175 + $0x4ec] sm:$0xff]
      %v410 = vld [vmem:[%s175 + $0x4f4] sm:$0xff]
      %v411 = vld [vmem:[%s175 + $0x4fc] sm:$0xf]
      %v412 = vld [vmem:[%s175 + $0x500] sm:$0xff]
      %v413 = vld [vmem:[%s175 + $0x508] sm:$0xff]
      %v414 = vld [vmem:[%s175 + $0x510] sm:$0xf]
      %v415 = vld [vmem:[%s175 + $0x514] sm:$0xff]
      %v416 = vld [vmem:[%s175 + $0x51c] sm:$0xff]
      %v417 = vld [vmem:[%s175 + $0x524] sm:$0xf]
      %v418 = vld [vmem:[%s175 + $0x528] sm:$0xff]
      %v419 = vld [vmem:[%s175 + $0x530] sm:$0xff]
      %v420 = vld [vmem:[%s175 + $0x538] sm:$0xf]
      %v421 = vld [vmem:[%s175 + $0x53c] sm:$0xff]
      %v422 = vld [vmem:[%s175 + $0x544] sm:$0xff]
      %v423 = vld [vmem:[%s175 + $0x54c] sm:$0xf]
      %v424 = vld [vmem:[%s175 + $0x550] sm:$0xff]
      %v425 = vld [vmem:[%s175 + $0x558] sm:$0xff]
      %v426 = vld [vmem:[%s175 + $0x560] sm:$0xf]
      %v427 = vld [vmem:[%s175 + $0x564] sm:$0xff]
      %v428 = vld [vmem:[%s175 + $0x56c] sm:$0xff]
      %v429 = vld [vmem:[%s175 + $0x574] sm:$0xf]
      %v430 = vld [vmem:[%s175 + $0x578] sm:$0xff]
      %v431 = vld [vmem:[%s175 + $0x580] sm:$0xff]
      %v432 = vld [vmem:[%s175 + $0x588] sm:$0xf]
      %v433 = vld [vmem:[%s175 + $0x58c] sm:$0xff]
      %v434 = vld [vmem:[%s175 + $0x594] sm:$0xff]
      %v435 = vld [vmem:[%s175 + $0x59c] sm:$0xf]
      %v436 = vld [vmem:[%s175 + $0x5a0] sm:$0xff]
      %v437 = vld [vmem:[%s175 + $0x5a8] sm:$0xff]
      %v438 = vld [vmem:[%s175 + $0x5b0] sm:$0xf]
      %v439 = vld [vmem:[%s175 + $0x5b4] sm:$0xff]
      %v440 = vld [vmem:[%s175 + $0x5bc] sm:$0xff]
      %v441 = vld [vmem:[%s175 + $0x5c4] sm:$0xf]
      %v442 = vld [vmem:[%s175 + $0x5c8] sm:$0xff]
      %v443 = vld [vmem:[%s175 + $0x5d0] sm:$0xff]
      %v444 = vld [vmem:[%s175 + $0x5d8] sm:$0xf]
      %v445 = vld [vmem:[%s175 + $0x5dc] sm:$0xff]
      %v446 = vld [vmem:[%s175 + $0x5e4] sm:$0xff]
      %v447 = vld [vmem:[%s175 + $0x5ec] sm:$0xf]
      %v448 = vld [vmem:[%s175 + $0x5f0] sm:$0xff]
      %v449 = vld [vmem:[%s175 + $0x5f8] sm:$0xff]
      %v450 = vld [vmem:[%s175 + $0x600] sm:$0xf]
      %v451 = vld [vmem:[%s175 + $0x604] sm:$0xff]
      %v452 = vld [vmem:[%s175 + $0x60c] sm:$0xff]
      %v453 = vld [vmem:[%s175 + $0x614] sm:$0xf]
      %v454 = vld [vmem:[%s175 + $0x618] sm:$0xff]
      %v455 = vld [vmem:[%s175 + $0x620] sm:$0xff]
      %v456 = vld [vmem:[%s175 + $0x628] sm:$0xf]
      %v457 = vld [vmem:[%s175 + $0x62c] sm:$0xff]
      %v458 = vld [vmem:[%s175 + $0x634] sm:$0xff]
      %v459 = vld [vmem:[%s175 + $0x63c] sm:$0xf]
      %v460 = vld [vmem:[%s175 + $0x640] sm:$0xff]
      %v461 = vld [vmem:[%s175 + $0x648] sm:$0xff]
      %v462 = vld [vmem:[%s175 + $0x650] sm:$0xf]
      %v463 = vld [vmem:[%s175 + $0x654] sm:$0xff]
      %v464 = vld [vmem:[%s175 + $0x65c] sm:$0xff]
      %v465 = vld [vmem:[%s175 + $0x664] sm:$0xf]
      %v466 = vld [vmem:[%s175 + $0x668] sm:$0xff]
      %v467 = vld [vmem:[%s175 + $0x670] sm:$0xff]
      %v468 = vld [vmem:[%s175 + $0x678] sm:$0xf]
      %v469 = vld [vmem:[%s175 + $0x67c] sm:$0xff]
      %v470 = vld [vmem:[%s175 + $0x684] sm:$0xff]
      %v471 = vld [vmem:[%s175 + $0x68c] sm:$0xf]
      %v472 = vld [vmem:[%s175 + $0x690] sm:$0xff]
      %v473 = vld [vmem:[%s175 + $0x698] sm:$0xff]
      %v474 = vld [vmem:[%s175 + $0x6a0] sm:$0xf]
      %v475 = vld [vmem:[%s175 + $0x6a4] sm:$0xff]
      %v476 = vld [vmem:[%s175 + $0x6ac] sm:$0xff]
      %v477 = vld [vmem:[%s175 + $0x6b4] sm:$0xf]
      %v478 = vld [vmem:[%s175 + $0x6b8] sm:$0xff]
      %v479 = vld [vmem:[%s175 + $0x6c0] sm:$0xff]
      %v480 = vld [vmem:[%s175 + $0x6c8] sm:$0xf]
      %v481 = vld [vmem:[%s175 + $0x6cc] sm:$0xff]
      %v482 = vld [vmem:[%s175 + $0x6d4] sm:$0xff]
      %v483 = vld [vmem:[%s175 + $0x6dc] sm:$0xf]
      %v493 = vunpack.c.l.b16 %v211
      %v494 = vunpack.c.h.b16 %v211
      %v495 = vunpack.c.l.b16 %v212
      %v496 = vunpack.c.h.b16 %v212
      %v497 = vunpack.c.l.b16 %v213
      %v498 = vunpack.c.h.b16 %v213
      %v499 = vunpack.c.l.b16 %v214
      %v500 = vunpack.c.h.b16 %v214
      %v501 = vunpack.c.l.b16 %v215
      %v502 = vunpack.c.h.b16 %v215
      %v503 = vunpack.c.l.b16 %v216
      %v504 = vunpack.c.h.b16 %v216
      %v505 = vunpack.c.l.b16 %v217
      %v506 = vunpack.c.h.b16 %v217
      %v507 = vunpack.c.l.b16 %v218
      %v508 = vunpack.c.h.b16 %v218
      %v509 = vunpack.c.l.b16 %v219
      %v510 = vunpack.c.h.b16 %v219
      %v511 = vpack.c.b16 %v499, %v493
      %v512 = vpack.c.b16 %v500, %v494
      %v513 = vpack.c.b16 %v501, %v495
      %v514 = vpack.c.b16 %v502, %v496
      %v515 = vpack.c.b16 %v503, %v497
      %v516 = vpack.c.b16 %v504, %v498
      %v517 = vpack.c.b16 %v505, %v505
      %v518 = vpack.c.b16 %v506, %v506
      %v519 = vpack.c.b16 %v507, %v507
      %v520 = vpack.c.b16 %v508, %v508
      %v521 = vpack.c.b16 %v509, %v509
      %v522 = vpack.c.b16 %v510, %v510
      %v797 = vunpack.c.l.b16 %v220
      %v798 = vunpack.c.h.b16 %v220
      %v799 = vunpack.c.l.b16 %v221
      %v800 = vunpack.c.h.b16 %v221
      %v801 = vunpack.c.l.b16 %v222
      %v802 = vunpack.c.l.b16 %v223
      %v803 = vunpack.c.h.b16 %v223
      %v804 = vunpack.c.l.b16 %v224
      %v805 = vunpack.c.h.b16 %v224
      %v806 = vunpack.c.l.b16 %v225
      %v807 = vunpack.c.l.b16 %v226
      %v808 = vunpack.c.h.b16 %v226
      %v809 = vunpack.c.l.b16 %v227
      %v810 = vunpack.c.h.b16 %v227
      %v811 = vunpack.c.l.b16 %v228
      %v812 = vunpack.c.l.b16 %v229
      %v813 = vunpack.c.h.b16 %v229
      %v814 = vunpack.c.l.b16 %v230
      %v815 = vunpack.c.h.b16 %v230
      %v816 = vunpack.c.l.b16 %v231
      %v817 = vunpack.c.l.b16 %v232
      %v818 = vunpack.c.h.b16 %v232
      %v819 = vunpack.c.l.b16 %v233
      %v820 = vunpack.c.h.b16 %v233
      %v821 = vunpack.c.l.b16 %v234
      %v822 = vunpack.c.l.b16 %v235
      %v823 = vunpack.c.h.b16 %v235
      %v824 = vunpack.c.l.b16 %v236
      %v825 = vunpack.c.h.b16 %v236
      %v826 = vunpack.c.l.b16 %v237
      %v827 = vunpack.c.l.b16 %v238
      %v828 = vunpack.c.h.b16 %v238
      %v829 = vunpack.c.l.b16 %v239
      %v830 = vunpack.c.h.b16 %v239
      %v831 = vunpack.c.l.b16 %v240
      %v832 = vunpack.c.l.b16 %v241
      %v833 = vunpack.c.h.b16 %v241
      %v834 = vunpack.c.l.b16 %v242
      %v835 = vunpack.c.h.b16 %v242
      %v836 = vunpack.c.l.b16 %v243
      %v837 = vunpack.c.l.b16 %v244
      %v838 = vunpack.c.h.b16 %v244
      %v839 = vunpack.c.l.b16 %v245
      %v840 = vunpack.c.h.b16 %v245
      %v841 = vunpack.c.l.b16 %v246
      %v842 = vunpack.c.l.b16 %v247
      %v843 = vunpack.c.h.b16 %v247
      %v844 = vunpack.c.l.b16 %v248
      %v845 = vunpack.c.h.b16 %v248
      %v846 = vunpack.c.l.b16 %v249
      %v847 = vunpack.c.l.b16 %v250
      %v848 = vunpack.c.h.b16 %v250
      %v849 = vunpack.c.l.b16 %v251
      %v850 = vunpack.c.h.b16 %v251
      %v851 = vunpack.c.l.b16 %v252
      %v852 = vunpack.c.l.b16 %v253
      %v853 = vunpack.c.h.b16 %v253
      %v854 = vunpack.c.l.b16 %v254
      %v855 = vunpack.c.h.b16 %v254
      %v856 = vunpack.c.l.b16 %v255
      %v857 = vunpack.c.l.b16 %v256
      %v858 = vunpack.c.h.b16 %v256
      %v859 = vunpack.c.l.b16 %v257
      %v860 = vunpack.c.h.b16 %v257
      %v861 = vunpack.c.l.b16 %v258
      %v862 = vunpack.c.l.b16 %v259
      %v863 = vunpack.c.h.b16 %v259
      %v864 = vunpack.c.l.b16 %v260
      %v865 = vunpack.c.h.b16 %v260
      %v866 = vunpack.c.l.b16 %v261
      %v867 = vunpack.c.l.b16 %v262
      %v868 = vunpack.c.h.b16 %v262
      %v869 = vunpack.c.l.b16 %v263
      %v870 = vunpack.c.h.b16 %v263
      %v871 = vunpack.c.l.b16 %v264
      %v872 = vunpack.c.l.b16 %v265
      %v873 = vunpack.c.h.b16 %v265
      %v874 = vunpack.c.l.b16 %v266
      %v875 = vunpack.c.h.b16 %v266
      %v876 = vunpack.c.l.b16 %v267
      %v877 = vunpack.c.l.b16 %v268
      %v878 = vunpack.c.h.b16 %v268
      %v879 = vunpack.c.l.b16 %v269
      %v880 = vunpack.c.h.b16 %v269
      %v881 = vunpack.c.l.b16 %v270
      %v882 = vunpack.c.l.b16 %v271
      %v883 = vunpack.c.h.b16 %v271
      %v884 = vunpack.c.l.b16 %v272
      %v885 = vunpack.c.h.b16 %v272
      %v886 = vunpack.c.l.b16 %v273
      %v887 = vunpack.c.l.b16 %v274
      %v888 = vunpack.c.h.b16 %v274
      %v889 = vunpack.c.l.b16 %v275
      %v890 = vunpack.c.h.b16 %v275
      %v891 = vunpack.c.l.b16 %v276
      %v892 = vunpack.c.l.b16 %v277
      %v893 = vunpack.c.h.b16 %v277
      %v894 = vunpack.c.l.b16 %v278
      %v895 = vunpack.c.h.b16 %v278
      %v896 = vunpack.c.l.b16 %v279
      %v897 = vunpack.c.l.b16 %v280
      %v898 = vunpack.c.h.b16 %v280
      %v899 = vunpack.c.l.b16 %v281
      %v900 = vunpack.c.h.b16 %v281
      %v901 = vunpack.c.l.b16 %v282
      %v902 = vunpack.c.l.b16 %v283
      %v903 = vunpack.c.h.b16 %v283
      %v904 = vunpack.c.l.b16 %v284
      %v905 = vunpack.c.h.b16 %v284
      %v906 = vunpack.c.l.b16 %v285
      %v907 = vunpack.c.l.b16 %v286
      %v908 = vunpack.c.h.b16 %v286
      %v909 = vunpack.c.l.b16 %v287
      %v910 = vunpack.c.h.b16 %v287
      %v911 = vunpack.c.l.b16 %v288
      %v912 = vunpack.c.l.b16 %v289
      %v913 = vunpack.c.h.b16 %v289
      %v914 = vunpack.c.l.b16 %v290
      %v915 = vunpack.c.h.b16 %v290
      %v916 = vunpack.c.l.b16 %v291
      %v917 = vunpack.c.l.b16 %v292
      %v918 = vunpack.c.h.b16 %v292
      %v919 = vunpack.c.l.b16 %v293
      %v920 = vunpack.c.h.b16 %v293
      %v921 = vunpack.c.l.b16 %v294
      %v922 = vunpack.c.l.b16 %v295
      %v923 = vunpack.c.h.b16 %v295
      %v924 = vunpack.c.l.b16 %v296
      %v925 = vunpack.c.h.b16 %v296
      %v926 = vunpack.c.l.b16 %v297
      %v927 = vunpack.c.l.b16 %v298
      %v928 = vunpack.c.h.b16 %v298
      %v929 = vunpack.c.l.b16 %v299
      %v930 = vunpack.c.h.b16 %v299
      %v931 = vunpack.c.l.b16 %v300
      %v932 = vunpack.c.l.b16 %v301
      %v933 = vunpack.c.h.b16 %v301
      %v934 = vunpack.c.l.b16 %v302
      %v935 = vunpack.c.h.b16 %v302
      %v936 = vunpack.c.l.b16 %v303
      %v937 = vunpack.c.l.b16 %v304
      %v938 = vunpack.c.h.b16 %v304
      %v939 = vunpack.c.l.b16 %v305
      %v940 = vunpack.c.h.b16 %v305
      %v941 = vunpack.c.l.b16 %v306
      %v942 = vunpack.c.l.b16 %v307
      %v943 = vunpack.c.h.b16 %v307
      %v944 = vunpack.c.l.b16 %v308
      %v945 = vunpack.c.h.b16 %v308
      %v946 = vunpack.c.l.b16 %v309
      %v947 = vunpack.c.l.b16 %v310
      %v948 = vunpack.c.h.b16 %v310
      %v949 = vunpack.c.l.b16 %v311
      %v950 = vunpack.c.h.b16 %v311
      %v951 = vunpack.c.l.b16 %v312
      %v952 = vunpack.c.l.b16 %v313
      %v953 = vunpack.c.h.b16 %v313
      %v954 = vunpack.c.l.b16 %v314
      %v955 = vunpack.c.h.b16 %v314
      %v956 = vunpack.c.l.b16 %v315
      %v957 = vunpack.c.l.b16 %v316
      %v958 = vunpack.c.h.b16 %v316
      %v959 = vunpack.c.l.b16 %v317
      %v960 = vunpack.c.h.b16 %v317
      %v961 = vunpack.c.l.b16 %v318
      %v962 = vunpack.c.l.b16 %v319
      %v963 = vunpack.c.h.b16 %v319
      %v964 = vunpack.c.l.b16 %v320
      %v965 = vunpack.c.h.b16 %v320
      %v966 = vunpack.c.l.b16 %v321
      %v967 = vunpack.c.l.b16 %v322
      %v968 = vunpack.c.h.b16 %v322
      %v969 = vunpack.c.l.b16 %v323
      %v970 = vunpack.c.h.b16 %v323
      %v971 = vunpack.c.l.b16 %v324
      %v972 = vunpack.c.l.b16 %v325
      %v973 = vunpack.c.h.b16 %v325
      %v974 = vunpack.c.l.b16 %v326
      %v975 = vunpack.c.h.b16 %v326
      %v976 = vunpack.c.l.b16 %v327
      %v977 = vunpack.c.l.b16 %v328
      %v978 = vunpack.c.h.b16 %v328
      %v979 = vunpack.c.l.b16 %v329
      %v980 = vunpack.c.h.b16 %v329
      %v981 = vunpack.c.l.b16 %v330
      %v982 = vunpack.c.l.b16 %v331
      %v983 = vunpack.c.h.b16 %v331
      %v984 = vunpack.c.l.b16 %v332
      %v985 = vunpack.c.h.b16 %v332
      %v986 = vunpack.c.l.b16 %v333
      %v987 = vunpack.c.l.b16 %v334
      %v988 = vunpack.c.h.b16 %v334
      %v989 = vunpack.c.l.b16 %v335
      %v990 = vunpack.c.h.b16 %v335
      %v991 = vunpack.c.l.b16 %v336
      %v992 = vunpack.c.l.b16 %v337
      %v993 = vunpack.c.h.b16 %v337
      %v994 = vunpack.c.l.b16 %v338
      %v995 = vunpack.c.h.b16 %v338
      %v996 = vunpack.c.l.b16 %v339
      %v997 = vunpack.c.l.b16 %v340
      %v998 = vunpack.c.h.b16 %v340
      %v999 = vunpack.c.l.b16 %v341
      %v1000 = vunpack.c.h.b16 %v341
      %v1001 = vunpack.c.l.b16 %v342
      %v1002 = vunpack.c.l.b16 %v343
      %v1003 = vunpack.c.h.b16 %v343
      %v1004 = vunpack.c.l.b16 %v344
      %v1005 = vunpack.c.h.b16 %v344
      %v1006 = vunpack.c.l.b16 %v345
      %v1007 = vunpack.c.l.b16 %v346
      %v1008 = vunpack.c.h.b16 %v346
      %v1009 = vunpack.c.l.b16 %v347
      %v1010 = vunpack.c.h.b16 %v347
      %v1011 = vunpack.c.l.b16 %v348
      %v1012 = vunpack.c.l.b16 %v349
      %v1013 = vunpack.c.h.b16 %v349
      %v1014 = vunpack.c.l.b16 %v350
      %v1015 = vunpack.c.h.b16 %v350
      %v1016 = vunpack.c.l.b16 %v351
      %v1017 = vunpack.c.l.b16 %v352
      %v1018 = vunpack.c.h.b16 %v352
      %v1019 = vunpack.c.l.b16 %v353
      %v1020 = vunpack.c.h.b16 %v353
      %v1021 = vunpack.c.l.b16 %v354
      %v1022 = vunpack.c.l.b16 %v355
      %v1023 = vunpack.c.h.b16 %v355
      %v1024 = vunpack.c.l.b16 %v356
      %v1025 = vunpack.c.h.b16 %v356
      %v1026 = vunpack.c.l.b16 %v357
      %v1027 = vunpack.c.l.b16 %v358
      %v1028 = vunpack.c.h.b16 %v358
      %v1029 = vunpack.c.l.b16 %v359
      %v1030 = vunpack.c.h.b16 %v359
      %v1031 = vunpack.c.l.b16 %v360
      %v1032 = vunpack.c.l.b16 %v361
      %v1033 = vunpack.c.h.b16 %v361
      %v1034 = vunpack.c.l.b16 %v362
      %v1035 = vunpack.c.h.b16 %v362
      %v1036 = vunpack.c.l.b16 %v363
      %v1037 = vunpack.c.l.b16 %v364
      %v1038 = vunpack.c.h.b16 %v364
      %v1039 = vunpack.c.l.b16 %v365
      %v1040 = vunpack.c.h.b16 %v365
      %v1041 = vunpack.c.l.b16 %v366
      %v1042 = vunpack.c.l.b16 %v367
      %v1043 = vunpack.c.h.b16 %v367
      %v1044 = vunpack.c.l.b16 %v368
      %v1045 = vunpack.c.h.b16 %v368
      %v1046 = vunpack.c.l.b16 %v369
      %v1047 = vunpack.c.l.b16 %v370
      %v1048 = vunpack.c.h.b16 %v370
      %v1049 = vunpack.c.l.b16 %v371
      %v1050 = vunpack.c.h.b16 %v371
      %v1051 = vunpack.c.l.b16 %v372
      %v1052 = vunpack.c.l.b16 %v373
      %v1053 = vunpack.c.h.b16 %v373
      %v1054 = vunpack.c.l.b16 %v374
      %v1055 = vunpack.c.h.b16 %v374
      %v1056 = vunpack.c.l.b16 %v375
      %v1057 = vunpack.c.l.b16 %v376
      %v1058 = vunpack.c.h.b16 %v376
      %v1059 = vunpack.c.l.b16 %v377
      %v1060 = vunpack.c.h.b16 %v377
      %v1061 = vunpack.c.l.b16 %v378
      %v1062 = vunpack.c.l.b16 %v379
      %v1063 = vunpack.c.h.b16 %v379
      %v1064 = vunpack.c.l.b16 %v380
      %v1065 = vunpack.c.h.b16 %v380
      %v1066 = vunpack.c.l.b16 %v381
      %v1067 = vunpack.c.l.b16 %v382
      %v1068 = vunpack.c.h.b16 %v382
      %v1069 = vunpack.c.l.b16 %v383
      %v1070 = vunpack.c.h.b16 %v383
      %v1071 = vunpack.c.l.b16 %v384
      %v1072 = vunpack.c.l.b16 %v385
      %v1073 = vunpack.c.h.b16 %v385
      %v1074 = vunpack.c.l.b16 %v386
      %v1075 = vunpack.c.h.b16 %v386
      %v1076 = vunpack.c.l.b16 %v387
      %v1077 = vunpack.c.l.b16 %v388
      %v1078 = vunpack.c.h.b16 %v388
      %v1079 = vunpack.c.l.b16 %v389
      %v1080 = vunpack.c.h.b16 %v389
      %v1081 = vunpack.c.l.b16 %v390
      %v1082 = vunpack.c.l.b16 %v391
      %v1083 = vunpack.c.h.b16 %v391
      %v1084 = vunpack.c.l.b16 %v392
      %v1085 = vunpack.c.h.b16 %v392
      %v1086 = vunpack.c.l.b16 %v393
      %v1087 = vunpack.c.l.b16 %v394
      %v1088 = vunpack.c.h.b16 %v394
      %v1089 = vunpack.c.l.b16 %v395
      %v1090 = vunpack.c.h.b16 %v395
      %v1091 = vunpack.c.l.b16 %v396
      %v1092 = vunpack.c.l.b16 %v397
      %v1093 = vunpack.c.h.b16 %v397
      %v1094 = vunpack.c.l.b16 %v398
      %v1095 = vunpack.c.h.b16 %v398
      %v1096 = vunpack.c.l.b16 %v399
      %v1097 = vunpack.c.l.b16 %v400
      %v1098 = vunpack.c.h.b16 %v400
      %v1099 = vunpack.c.l.b16 %v401
      %v1100 = vunpack.c.h.b16 %v401
      %v1101 = vunpack.c.l.b16 %v402
      %v1102 = vunpack.c.l.b16 %v403
      %v1103 = vunpack.c.h.b16 %v403
      %v1104 = vunpack.c.l.b16 %v404
      %v1105 = vunpack.c.h.b16 %v404
      %v1106 = vunpack.c.l.b16 %v405
      %v1107 = vunpack.c.l.b16 %v406
      %v1108 = vunpack.c.h.b16 %v406
      %v1109 = vunpack.c.l.b16 %v407
      %v1110 = vunpack.c.h.b16 %v407
      %v1111 = vunpack.c.l.b16 %v408
      %v1112 = vunpack.c.l.b16 %v409
      %v1113 = vunpack.c.h.b16 %v409
      %v1114 = vunpack.c.l.b16 %v410
      %v1115 = vunpack.c.h.b16 %v410
      %v1116 = vunpack.c.l.b16 %v411
      %v1117 = vunpack.c.l.b16 %v412
      %v1118 = vunpack.c.h.b16 %v412
      %v1119 = vunpack.c.l.b16 %v413
      %v1120 = vunpack.c.h.b16 %v413
      %v1121 = vunpack.c.l.b16 %v414
      %v1122 = vunpack.c.l.b16 %v415
      %v1123 = vunpack.c.h.b16 %v415
      %v1124 = vunpack.c.l.b16 %v416
      %v1125 = vunpack.c.h.b16 %v416
      %v1126 = vunpack.c.l.b16 %v417
      %v1127 = vunpack.c.l.b16 %v418
      %v1128 = vunpack.c.h.b16 %v418
      %v1129 = vunpack.c.l.b16 %v419
      %v1130 = vunpack.c.h.b16 %v419
      %v1131 = vunpack.c.l.b16 %v420
      %v1132 = vunpack.c.l.b16 %v421
      %v1133 = vunpack.c.h.b16 %v421
      %v1134 = vunpack.c.l.b16 %v422
      %v1135 = vunpack.c.h.b16 %v422
      %v1136 = vunpack.c.l.b16 %v423
      %v1137 = vunpack.c.l.b16 %v424
      %v1138 = vunpack.c.h.b16 %v424
      %v1139 = vunpack.c.l.b16 %v425
      %v1140 = vunpack.c.h.b16 %v425
      %v1141 = vunpack.c.l.b16 %v426
      %v1142 = vunpack.c.l.b16 %v427
      %v1143 = vunpack.c.h.b16 %v427
      %v1144 = vunpack.c.l.b16 %v428
      %v1145 = vunpack.c.h.b16 %v428
      %v1146 = vunpack.c.l.b16 %v429
      %v1147 = vunpack.c.l.b16 %v430
      %v1148 = vunpack.c.h.b16 %v430
      %v1149 = vunpack.c.l.b16 %v431
      %v1150 = vunpack.c.h.b16 %v431
      %v1151 = vunpack.c.l.b16 %v432
      %v1152 = vunpack.c.l.b16 %v433
      %v1153 = vunpack.c.h.b16 %v433
      %v1154 = vunpack.c.l.b16 %v434
      %v1155 = vunpack.c.h.b16 %v434
      %v1156 = vunpack.c.l.b16 %v435
      %v1157 = vunpack.c.l.b16 %v436
      %v1158 = vunpack.c.h.b16 %v436
      %v1159 = vunpack.c.l.b16 %v437
      %v1160 = vunpack.c.h.b16 %v437
      %v1161 = vunpack.c.l.b16 %v438
      %v1162 = vunpack.c.l.b16 %v439
      %v1163 = vunpack.c.h.b16 %v439
      %v1164 = vunpack.c.l.b16 %v440
      %v1165 = vunpack.c.h.b16 %v440
      %v1166 = vunpack.c.l.b16 %v441
      %v1167 = vunpack.c.l.b16 %v442
      %v1168 = vunpack.c.h.b16 %v442
      %v1169 = vunpack.c.l.b16 %v443
      %v1170 = vunpack.c.h.b16 %v443
      %v1171 = vunpack.c.l.b16 %v444
      %v1172 = vunpack.c.l.b16 %v445
      %v1173 = vunpack.c.h.b16 %v445
      %v1174 = vunpack.c.l.b16 %v446
      %v1175 = vunpack.c.h.b16 %v446
      %v1176 = vunpack.c.l.b16 %v447
      %v1177 = vunpack.c.l.b16 %v448
      %v1178 = vunpack.c.h.b16 %v448
      %v1179 = vunpack.c.l.b16 %v449
      %v1180 = vunpack.c.h.b16 %v449
      %v1181 = vunpack.c.l.b16 %v450
      %v1182 = vunpack.c.l.b16 %v451
      %v1183 = vunpack.c.h.b16 %v451
      %v1184 = vunpack.c.l.b16 %v452
      %v1185 = vunpack.c.h.b16 %v452
      %v1186 = vunpack.c.l.b16 %v453
      %v1187 = vunpack.c.l.b16 %v454
      %v1188 = vunpack.c.h.b16 %v454
      %v1189 = vunpack.c.l.b16 %v455
      %v1190 = vunpack.c.h.b16 %v455
      %v1191 = vunpack.c.l.b16 %v456
      %v1192 = vunpack.c.l.b16 %v457
      %v1193 = vunpack.c.h.b16 %v457
      %v1194 = vunpack.c.l.b16 %v458
      %v1195 = vunpack.c.h.b16 %v458
      %v1196 = vunpack.c.l.b16 %v459
      %v1197 = vunpack.c.l.b16 %v460
      %v1198 = vunpack.c.h.b16 %v460
      %v1199 = vunpack.c.l.b16 %v461
      %v1200 = vunpack.c.h.b16 %v461
      %v1201 = vunpack.c.l.b16 %v462
      %v1202 = vunpack.c.l.b16 %v463
      %v1203 = vunpack.c.h.b16 %v463
      %v1204 = vunpack.c.l.b16 %v464
      %v1205 = vunpack.c.h.b16 %v464
      %v1206 = vunpack.c.l.b16 %v465
      %v1207 = vunpack.c.l.b16 %v466
      %v1208 = vunpack.c.h.b16 %v466
      %v1209 = vunpack.c.l.b16 %v467
      %v1210 = vunpack.c.h.b16 %v467
      %v1211 = vunpack.c.l.b16 %v468
      %v1212 = vunpack.c.l.b16 %v469
      %v1213 = vunpack.c.h.b16 %v469
      %v1214 = vunpack.c.l.b16 %v470
      %v1215 = vunpack.c.h.b16 %v470
      %v1216 = vunpack.c.l.b16 %v471
      %v1217 = vunpack.c.l.b16 %v472
      %v1218 = vunpack.c.h.b16 %v472
      %v1219 = vunpack.c.l.b16 %v473
      %v1220 = vunpack.c.h.b16 %v473
      %v1221 = vunpack.c.l.b16 %v474
      %v1222 = vunpack.c.l.b16 %v475
      %v1223 = vunpack.c.h.b16 %v475
      %v1224 = vunpack.c.l.b16 %v476
      %v1225 = vunpack.c.h.b16 %v476
      %v1226 = vunpack.c.l.b16 %v477
      %v1227 = vunpack.c.l.b16 %v478
      %v1228 = vunpack.c.h.b16 %v478
      %v1229 = vunpack.c.l.b16 %v479
      %v1230 = vunpack.c.h.b16 %v479
      %v1231 = vunpack.c.l.b16 %v480
      %v1232 = vunpack.c.l.b16 %v481
      %v1233 = vunpack.c.h.b16 %v481
      %v1234 = vunpack.c.l.b16 %v482
      %v1235 = vunpack.c.h.b16 %v482
      %v1236 = vunpack.c.l.b16 %v483
      %v1237 = vpack.c.b16 %v802, %v797
      %v1238 = vpack.c.b16 %v803, %v798
      %v1239 = vpack.c.b16 %v804, %v799
      %v1240 = vpack.c.b16 %v805, %v800
      %v1241 = vpack.c.b16 %v806, %v801
      %v1242 = vpack.c.b16 %v812, %v807
      %v1243 = vpack.c.b16 %v813, %v808
      %v1244 = vpack.c.b16 %v814, %v809
      %v1245 = vpack.c.b16 %v815, %v810
      %v1246 = vpack.c.b16 %v816, %v811
      %v1247 = vpack.c.b16 %v822, %v817
      %v1248 = vpack.c.b16 %v823, %v818
      %v1249 = vpack.c.b16 %v824, %v819
      %v1250 = vpack.c.b16 %v825, %v820
      %v1251 = vpack.c.b16 %v826, %v821
      %v1252 = vpack.c.b16 %v832, %v827
      %v1253 = vpack.c.b16 %v833, %v828
      %v1254 = vpack.c.b16 %v834, %v829
      %v1255 = vpack.c.b16 %v835, %v830
      %v1256 = vpack.c.b16 %v836, %v831
      %v1257 = vpack.c.b16 %v842, %v837
      %v1258 = vpack.c.b16 %v843, %v838
      %v1259 = vpack.c.b16 %v844, %v839
      %v1260 = vpack.c.b16 %v845, %v840
      %v1261 = vpack.c.b16 %v846, %v841
      %v1262 = vpack.c.b16 %v852, %v847
      %v1263 = vpack.c.b16 %v853, %v848
      %v1264 = vpack.c.b16 %v854, %v849
      %v1265 = vpack.c.b16 %v855, %v850
      %v1266 = vpack.c.b16 %v856, %v851
      %v1267 = vpack.c.b16 %v862, %v857
      %v1268 = vpack.c.b16 %v863, %v858
      %v1269 = vpack.c.b16 %v864, %v859
      %v1270 = vpack.c.b16 %v865, %v860
      %v1271 = vpack.c.b16 %v866, %v861
      %v1272 = vpack.c.b16 %v872, %v867
      %v1273 = vpack.c.b16 %v873, %v868
      %v1274 = vpack.c.b16 %v874, %v869
      %v1275 = vpack.c.b16 %v875, %v870
      %v1276 = vpack.c.b16 %v876, %v871
      %v1277 = vpack.c.b16 %v882, %v877
      %v1278 = vpack.c.b16 %v883, %v878
      %v1279 = vpack.c.b16 %v884, %v879
      %v1280 = vpack.c.b16 %v885, %v880
      %v1281 = vpack.c.b16 %v886, %v881
      %v1282 = vpack.c.b16 %v892, %v887
      %v1283 = vpack.c.b16 %v893, %v888
      %v1284 = vpack.c.b16 %v894, %v889
      %v1285 = vpack.c.b16 %v895, %v890
      %v1286 = vpack.c.b16 %v896, %v891
      %v1287 = vpack.c.b16 %v902, %v897
      %v1288 = vpack.c.b16 %v903, %v898
      %v1289 = vpack.c.b16 %v904, %v899
      %v1290 = vpack.c.b16 %v905, %v900
      %v1291 = vpack.c.b16 %v906, %v901
      %v1292 = vpack.c.b16 %v912, %v907
      %v1293 = vpack.c.b16 %v913, %v908
      %v1294 = vpack.c.b16 %v914, %v909
      %v1295 = vpack.c.b16 %v915, %v910
      %v1296 = vpack.c.b16 %v916, %v911
      %v1297 = vpack.c.b16 %v922, %v917
      %v1298 = vpack.c.b16 %v923, %v918
      %v1299 = vpack.c.b16 %v924, %v919
      %v1300 = vpack.c.b16 %v925, %v920
      %v1301 = vpack.c.b16 %v926, %v921
      %v1302 = vpack.c.b16 %v932, %v927
      %v1303 = vpack.c.b16 %v933, %v928
      %v1304 = vpack.c.b16 %v934, %v929
      %v1305 = vpack.c.b16 %v935, %v930
      %v1306 = vpack.c.b16 %v936, %v931
      %v1307 = vpack.c.b16 %v942, %v937
      %v1308 = vpack.c.b16 %v943, %v938
      %v1309 = vpack.c.b16 %v944, %v939
      %v1310 = vpack.c.b16 %v945, %v940
      %v1311 = vpack.c.b16 %v946, %v941
      %v1312 = vpack.c.b16 %v952, %v947
      %v1313 = vpack.c.b16 %v953, %v948
      %v1314 = vpack.c.b16 %v954, %v949
      %v1315 = vpack.c.b16 %v955, %v950
      %v1316 = vpack.c.b16 %v956, %v951
      %v1317 = vpack.c.b16 %v962, %v957
      %v1318 = vpack.c.b16 %v963, %v958
      %v1319 = vpack.c.b16 %v964, %v959
      %v1320 = vpack.c.b16 %v965, %v960
      %v1321 = vpack.c.b16 %v966, %v961
      %v1322 = vpack.c.b16 %v972, %v967
      %v1323 = vpack.c.b16 %v973, %v968
      %v1324 = vpack.c.b16 %v974, %v969
      %v1325 = vpack.c.b16 %v975, %v970
      %v1326 = vpack.c.b16 %v976, %v971
      %v1327 = vpack.c.b16 %v982, %v977
      %v1328 = vpack.c.b16 %v983, %v978
      %v1329 = vpack.c.b16 %v984, %v979
      %v1330 = vpack.c.b16 %v985, %v980
      %v1331 = vpack.c.b16 %v986, %v981
      %v1332 = vpack.c.b16 %v992, %v987
      %v1333 = vpack.c.b16 %v993, %v988
      %v1334 = vpack.c.b16 %v994, %v989
      %v1335 = vpack.c.b16 %v995, %v990
      %v1336 = vpack.c.b16 %v996, %v991
      %v1337 = vpack.c.b16 %v1002, %v997
      %v1338 = vpack.c.b16 %v1003, %v998
      %v1339 = vpack.c.b16 %v1004, %v999
      %v1340 = vpack.c.b16 %v1005, %v1000
      %v1341 = vpack.c.b16 %v1006, %v1001
      %v1342 = vpack.c.b16 %v1012, %v1007
      %v1343 = vpack.c.b16 %v1013, %v1008
      %v1344 = vpack.c.b16 %v1014, %v1009
      %v1345 = vpack.c.b16 %v1015, %v1010
      %v1346 = vpack.c.b16 %v1016, %v1011
      %v1347 = vpack.c.b16 %v1022, %v1017
      %v1348 = vpack.c.b16 %v1023, %v1018
      %v1349 = vpack.c.b16 %v1024, %v1019
      %v1350 = vpack.c.b16 %v1025, %v1020
      %v1351 = vpack.c.b16 %v1026, %v1021
      %v1352 = vpack.c.b16 %v1032, %v1027
      %v1353 = vpack.c.b16 %v1033, %v1028
      %v1354 = vpack.c.b16 %v1034, %v1029
      %v1355 = vpack.c.b16 %v1035, %v1030
      %v1356 = vpack.c.b16 %v1036, %v1031
      %v1357 = vpack.c.b16 %v1042, %v1037
      %v1358 = vpack.c.b16 %v1043, %v1038
      %v1359 = vpack.c.b16 %v1044, %v1039
      %v1360 = vpack.c.b16 %v1045, %v1040
      %v1361 = vpack.c.b16 %v1046, %v1041
      %v1362 = vpack.c.b16 %v1052, %v1047
      %v1363 = vpack.c.b16 %v1053, %v1048
      %v1364 = vpack.c.b16 %v1054, %v1049
      %v1365 = vpack.c.b16 %v1055, %v1050
      %v1366 = vpack.c.b16 %v1056, %v1051
      %v1367 = vpack.c.b16 %v1062, %v1057
      %v1368 = vpack.c.b16 %v1063, %v1058
      %v1369 = vpack.c.b16 %v1064, %v1059
      %v1370 = vpack.c.b16 %v1065, %v1060
      %v1371 = vpack.c.b16 %v1066, %v1061
      %v1372 = vpack.c.b16 %v1072, %v1067
      %v1373 = vpack.c.b16 %v1073, %v1068
      %v1374 = vpack.c.b16 %v1074, %v1069
      %v1375 = vpack.c.b16 %v1075, %v1070
      %v1376 = vpack.c.b16 %v1076, %v1071
      %v1377 = vpack.c.b16 %v1082, %v1077
      %v1378 = vpack.c.b16 %v1083, %v1078
      %v1379 = vpack.c.b16 %v1084, %v1079
      %v1380 = vpack.c.b16 %v1085, %v1080
      %v1381 = vpack.c.b16 %v1086, %v1081
      %v1382 = vpack.c.b16 %v1092, %v1087
      %v1383 = vpack.c.b16 %v1093, %v1088
      %v1384 = vpack.c.b16 %v1094, %v1089
      %v1385 = vpack.c.b16 %v1095, %v1090
      %v1386 = vpack.c.b16 %v1096, %v1091
      %v1387 = vpack.c.b16 %v1102, %v1097
      %v1388 = vpack.c.b16 %v1103, %v1098
      %v1389 = vpack.c.b16 %v1104, %v1099
      %v1390 = vpack.c.b16 %v1105, %v1100
      %v1391 = vpack.c.b16 %v1106, %v1101
      %v1392 = vpack.c.b16 %v1112, %v1107
      %v1393 = vpack.c.b16 %v1113, %v1108
      %v1394 = vpack.c.b16 %v1114, %v1109
      %v1395 = vpack.c.b16 %v1115, %v1110
      %v1396 = vpack.c.b16 %v1116, %v1111
      %v1397 = vpack.c.b16 %v1122, %v1117
      %v1398 = vpack.c.b16 %v1123, %v1118
      %v1399 = vpack.c.b16 %v1124, %v1119
      %v1400 = vpack.c.b16 %v1125, %v1120
      %v1401 = vpack.c.b16 %v1126, %v1121
      %v1402 = vpack.c.b16 %v1132, %v1127
      %v1403 = vpack.c.b16 %v1133, %v1128
      %v1404 = vpack.c.b16 %v1134, %v1129
      %v1405 = vpack.c.b16 %v1135, %v1130
      %v1406 = vpack.c.b16 %v1136, %v1131
      %v1407 = vpack.c.b16 %v1142, %v1137
      %v1408 = vpack.c.b16 %v1143, %v1138
      %v1409 = vpack.c.b16 %v1144, %v1139
      %v1410 = vpack.c.b16 %v1145, %v1140
      %v1411 = vpack.c.b16 %v1146, %v1141
      %v1412 = vpack.c.b16 %v1152, %v1147
      %v1413 = vpack.c.b16 %v1153, %v1148
      %v1414 = vpack.c.b16 %v1154, %v1149
      %v1415 = vpack.c.b16 %v1155, %v1150
      %v1416 = vpack.c.b16 %v1156, %v1151
      %v1417 = vpack.c.b16 %v1162, %v1157
      %v1418 = vpack.c.b16 %v1163, %v1158
      %v1419 = vpack.c.b16 %v1164, %v1159
      %v1420 = vpack.c.b16 %v1165, %v1160
      %v1421 = vpack.c.b16 %v1166, %v1161
      %v1422 = vpack.c.b16 %v1172, %v1167
      %v1423 = vpack.c.b16 %v1173, %v1168
      %v1424 = vpack.c.b16 %v1174, %v1169
      %v1425 = vpack.c.b16 %v1175, %v1170
      %v1426 = vpack.c.b16 %v1176, %v1171
      %v1427 = vpack.c.b16 %v1182, %v1177
      %v1428 = vpack.c.b16 %v1183, %v1178
      %v1429 = vpack.c.b16 %v1184, %v1179
      %v1430 = vpack.c.b16 %v1185, %v1180
      %v1431 = vpack.c.b16 %v1186, %v1181
      %v1432 = vpack.c.b16 %v1192, %v1187
      %v1433 = vpack.c.b16 %v1193, %v1188
      %v1434 = vpack.c.b16 %v1194, %v1189
      %v1435 = vpack.c.b16 %v1195, %v1190
      %v1436 = vpack.c.b16 %v1196, %v1191
      %v1437 = vpack.c.b16 %v1202, %v1197
      %v1438 = vpack.c.b16 %v1203, %v1198
      %v1439 = vpack.c.b16 %v1204, %v1199
      %v1440 = vpack.c.b16 %v1205, %v1200
      %v1441 = vpack.c.b16 %v1206, %v1201
      %v1442 = vpack.c.b16 %v1212, %v1207
      %v1443 = vpack.c.b16 %v1213, %v1208
      %v1444 = vpack.c.b16 %v1214, %v1209
      %v1445 = vpack.c.b16 %v1215, %v1210
      %v1446 = vpack.c.b16 %v1216, %v1211
      %v1447 = vpack.c.b16 %v1222, %v1217
      %v1448 = vpack.c.b16 %v1223, %v1218
      %v1449 = vpack.c.b16 %v1224, %v1219
      %v1450 = vpack.c.b16 %v1225, %v1220
      %v1451 = vpack.c.b16 %v1226, %v1221
      %v1452 = vpack.c.b16 %v1232, %v1227
      %v1453 = vpack.c.b16 %v1233, %v1228
      %v1454 = vpack.c.b16 %v1234, %v1229
      %v1455 = vpack.c.b16 %v1235, %v1230
      %v1456 = vpack.c.b16 %v1236, %v1231
      %vm1677 = vcmask 523264
      %v1679 = vsel %vm1677, %v516, 0
      %v1682 = vsel %vm1677, %v522, 0
      %1684 = vmatprep.subr.bf16.mxu0 %v1238
      %1685 = vmatpush1.bf16.msra.mxu0 %v1237
      %1686 = vmatprep.subr.bf16.mxu0 %v1243
      %1687 = vmatpush1.bf16.msra.mxu0 %v1242
      %1688 = vmatprep.subr.bf16.mxu0 %v1248
      %1689 = vmatpush1.bf16.msra.mxu0 %v1247
      %1690 = vmatprep.subr.bf16.mxu0 %v1253
      %1691 = vmatpush1.bf16.msra.mxu0 %v1252
      %1692 = vmatprep.subr.bf16.mxu0 %v1258
      %1693 = vmatpush1.bf16.msra.mxu0 %v1257
      %1694 = vmatprep.subr.bf16.mxu0 %v1263
      %1695 = vmatpush1.bf16.msra.mxu0 %v1262
      %1696 = vmatprep.subr.bf16.mxu0 %v1268
      %1697 = vmatpush1.bf16.msra.mxu0 %v1267
      %1698 = vmatprep.subr.bf16.mxu0 %v1273
      %1699 = vmatpush1.bf16.msra.mxu0 %v1272
      %1700 = vmatprep.subr.bf16.mxu0 %v1278
      %1701 = vmatpush1.bf16.msra.mxu0 %v1277
      %1702 = vmatprep.subr.bf16.mxu0 %v1283
      %1703 = vmatpush1.bf16.msra.mxu0 %v1282
      %1704 = vmatprep.subr.bf16.mxu0 %v1288
      %1705 = vmatpush1.bf16.msra.mxu0 %v1287
      %1706 = vmatprep.subr.bf16.mxu0 %v1293
      %1707 = vmatpush1.bf16.msra.mxu0 %v1292
      %1708 = vmatprep.subr.bf16.mxu0 %v1298
      %1709 = vmatpush1.bf16.msra.mxu0 %v1297
      %1710 = vmatprep.subr.bf16.mxu0 %v1303
      %1711 = vmatpush1.bf16.msra.mxu0 %v1302
      %1712 = vmatprep.subr.bf16.mxu0 %v1308
      %1713 = vmatpush1.bf16.msra.mxu0 %v1307
      %1714 = vmatprep.subr.bf16.mxu0 %v1313
      %1715 = vmatpush1.bf16.msra.mxu0 %v1312
      %1716 = vmatprep.mubr.bf16.mxu0 %v512
      %1717 = vmatmul.mubr.bf16.gmra.mrb[0].mxu0 %v511
      %v1718 = vpop.f32.mrb[0].mxu0
      %v1719 = vadd.f32 0.0, %v1718
      %v1720 = vpop.f32.mrb[0].mxu0
      %v1721 = vadd.f32 0.0, %v1720
      %v1722 = vpop.f32.mrb[0].mxu0
      %v1723 = vadd.f32 0.0, %v1722
      %v1724 = vpop.f32.mrb[0].mxu0
      %v1725 = vadd.f32 0.0, %v1724
      %1726 = vmatprep.mubr.bf16.mxu0 %v518
      %1727 = vmatmul.mubr.bf16.gmra.mrb[0].mxu0 %v517
      %v1728 = vpop.f32.mrb[0].mxu0
      %v1729 = vadd.f32 0.0, %v1728
      %v1730 = vpop.f32.mrb[0].mxu0
      %v1731 = vadd.f32 0.0, %v1730
      %v1732 = vpop.f32.mrb[0].mxu0
      %v1733 = vpop.f32.mrb[0].mxu0
      %1734 = vdwg.mxu0
      %1735 = vmatprep.subr.bf16.mxu0 %v1318
      %1736 = vmatpush1.bf16.msra.mxu0 %v1317
      %1737 = vmatprep.subr.bf16.mxu0 %v1323
      %1738 = vmatpush1.bf16.msra.mxu0 %v1322
      %1739 = vmatprep.subr.bf16.mxu0 %v1328
      %1740 = vmatpush1.bf16.msra.mxu0 %v1327
      %1741 = vmatprep.subr.bf16.mxu0 %v1333
      %1742 = vmatpush1.bf16.msra.mxu0 %v1332
      %1743 = vmatprep.subr.bf16.mxu0 %v1338
      %1744 = vmatpush1.bf16.msra.mxu0 %v1337
      %1745 = vmatprep.subr.bf16.mxu0 %v1343
      %1746 = vmatpush1.bf16.msra.mxu0 %v1342
      %1747 = vmatprep.subr.bf16.mxu0 %v1348
      %1748 = vmatpush1.bf16.msra.mxu0 %v1347
      %1749 = vmatprep.subr.bf16.mxu0 %v1353
      %1750 = vmatpush1.bf16.msra.mxu0 %v1352
      %1751 = vmatprep.subr.bf16.mxu0 %v1358
      %1752 = vmatpush1.bf16.msra.mxu0 %v1357
      %1753 = vmatprep.subr.bf16.mxu0 %v1363
      %1754 = vmatpush1.bf16.msra.mxu0 %v1362
      %1755 = vmatprep.subr.bf16.mxu0 %v1368
      %1756 = vmatpush1.bf16.msra.mxu0 %v1367
      %1757 = vmatprep.subr.bf16.mxu0 %v1373
      %1758 = vmatpush1.bf16.msra.mxu0 %v1372
      %1759 = vmatprep.subr.bf16.mxu0 %v1378
      %1760 = vmatpush1.bf16.msra.mxu0 %v1377
      %1761 = vmatprep.subr.bf16.mxu0 %v1383
      %1762 = vmatpush1.bf16.msra.mxu0 %v1382
      %1763 = vmatprep.subr.bf16.mxu0 %v1388
      %1764 = vmatpush1.bf16.msra.mxu0 %v1387
      %1765 = vmatprep.subr.bf16.mxu0 %v1393
      %1766 = vmatpush1.bf16.msra.mxu0 %v1392
      %1767 = vmatprep.mubr.bf16.mxu0 %v514
      %1768 = vmatmul.mubr.bf16.gmra.mrb[0].mxu0 %v513
      %v1769 = vpop.f32.mrb[0].mxu0
      %v1770 = vadd.f32 %v1719, %v1769
      %v1771 = vpop.f32.mrb[0].mxu0
      %v1772 = vadd.f32 %v1721, %v1771
      %v1773 = vpop.f32.mrb[0].mxu0
      %v1774 = vadd.f32 %v1723, %v1773
      %v1775 = vpop.f32.mrb[0].mxu0
      %v1776 = vadd.f32 %v1725, %v1775
      %1777 = vmatprep.mubr.bf16.mxu0 %v520
      %1778 = vmatmul.mubr.bf16.gmra.mrb[0].mxu0 %v519
      %v1779 = vpop.f32.mrb[0].mxu0
      %v1780 = vadd.f32 %v1729, %v1779
      %v1781 = vpop.f32.mrb[0].mxu0
      %v1782 = vadd.f32 %v1731, %v1781
      %v1783 = vpop.f32.mrb[0].mxu0
      %v1784 = vpop.f32.mrb[0].mxu0
      %1785 = vdwg.mxu0
      %1786 = vmatprep.subr.bf16.mxu0 %v1398
      %1787 = vmatpush1.bf16.msra.mxu0 %v1397
      %1788 = vmatprep.subr.bf16.mxu0 %v1403
      %1789 = vmatpush1.bf16.msra.mxu0 %v1402
      %1790 = vmatprep.subr.bf16.mxu0 %v1408
      %1791 = vmatpush1.bf16.msra.mxu0 %v1407
      %1792 = vmatprep.subr.bf16.mxu0 %v1413
      %1793 = vmatpush1.bf16.msra.mxu0 %v1412
      %1794 = vmatprep.subr.bf16.mxu0 %v1418
      %1795 = vmatpush1.bf16.msra.mxu0 %v1417
      %1796 = vmatprep.subr.bf16.mxu0 %v1423
      %1797 = vmatpush1.bf16.msra.mxu0 %v1422
      %1798 = vmatprep.subr.bf16.mxu0 %v1428
      %1799 = vmatpush1.bf16.msra.mxu0 %v1427
      %1800 = vmatprep.subr.bf16.mxu0 %v1433
      %1801 = vmatpush1.bf16.msra.mxu0 %v1432
      %1802 = vmatprep.subr.bf16.mxu0 %v1438
      %1803 = vmatpush1.bf16.msra.mxu0 %v1437
      %1804 = vmatprep.subr.bf16.mxu0 %v1443
      %1805 = vmatpush1.bf16.msra.mxu0 %v1442
      %1806 = vmatprep.subr.bf16.mxu0 %v1448
      %1807 = vmatpush1.bf16.msra.mxu0 %v1447
      %1808 = vmatprep.subr.bf16.mxu0 %v1453
      %1809 = vmatpush1.bf16.msra.mxu0 %v1452
      %1810 = vmatprep.subr.bf16.mxu0 0
      %1811 = vmatpush1.bf16.msra.mxu0 0
      %1812 = vmatprep.subr.bf16.mxu0 0
      %1813 = vmatpush1.bf16.msra.mxu0 0
      %1814 = vmatprep.subr.bf16.mxu0 0
      %1815 = vmatpush1.bf16.msra.mxu0 0
      %1816 = vmatprep.subr.bf16.mxu0 0
      %1817 = vmatpush1.bf16.msra.mxu0 0
      %1818 = vmatprep.mubr.bf16.mxu0 %v1679
      %1819 = vmatmul.mubr.bf16.gmra.mrb[0].mxu0 %v515
      %v1820 = vpop.f32.mrb[0].mxu0
      %v1821 = vadd.f32 %v1770, %v1820
      %v1822 = vpop.f32.mrb[0].mxu0
      %v1823 = vadd.f32 %v1772, %v1822
      %v1824 = vpop.f32.mrb[0].mxu0
      %v1825 = vadd.f32 %v1774, %v1824
      %v1826 = vpop.f32.mrb[0].mxu0
      %v1827 = vadd.f32 %v1776, %v1826
      %1828 = vmatprep.mubr.bf16.mxu0 %v1682
      %1829 = vmatmul.mubr.bf16.gmra.mrb[0].mxu0 %v521
      %v1830 = vpop.f32.mrb[0].mxu0
      %v1831 = vadd.f32 %v1780, %v1830
      %v1832 = vpop.f32.mrb[0].mxu0
      %v1833 = vadd.f32 %v1782, %v1832
      %v1834 = vpop.f32.mrb[0].mxu0
      %v1835 = vpop.f32.mrb[0].mxu0
      %1836 = vdwg.mxu0
      %1837 = vmatprep.subr.bf16.mxu0 %v1240
      %1838 = vmatpush1.bf16.msra.mxu0 %v1239
      %1839 = vmatprep.subr.bf16.mxu0 %v1245
      %1840 = vmatpush1.bf16.msra.mxu0 %v1244
      %1841 = vmatprep.subr.bf16.mxu0 %v1250
      %1842 = vmatpush1.bf16.msra.mxu0 %v1249
      %1843 = vmatprep.subr.bf16.mxu0 %v1255
      %1844 = vmatpush1.bf16.msra.mxu0 %v1254
      %1845 = vmatprep.subr.bf16.mxu0 %v1260
      %1846 = vmatpush1.bf16.msra.mxu0 %v1259
      %1847 = vmatprep.subr.bf16.mxu0 %v1265
      %1848 = vmatpush1.bf16.msra.mxu0 %v1264
      %1849 = vmatprep.subr.bf16.mxu0 %v1270
      %1850 = vmatpush1.bf16.msra.mxu0 %v1269
      %1851 = vmatprep.subr.bf16.mxu0 %v1275
      %1852 = vmatpush1.bf16.msra.mxu0 %v1274
      %1853 = vmatprep.subr.bf16.mxu0 %v1280
      %1854 = vmatpush1.bf16.msra.mxu0 %v1279
      %1855 = vmatprep.subr.bf16.mxu0 %v1285
      %1856 = vmatpush1.bf16.msra.mxu0 %v1284
      %1857 = vmatprep.subr.bf16.mxu0 %v1290
      %1858 = vmatpush1.bf16.msra.mxu0 %v1289
      %1859 = vmatprep.subr.bf16.mxu0 %v1295
      %1860 = vmatpush1.bf16.msra.mxu0 %v1294
      %1861 = vmatprep.subr.bf16.mxu0 %v1300
      %1862 = vmatpush1.bf16.msra.mxu0 %v1299
      %1863 = vmatprep.subr.bf16.mxu0 %v1305
      %1864 = vmatpush1.bf16.msra.mxu0 %v1304
      %1865 = vmatprep.subr.bf16.mxu0 %v1310
      %1866 = vmatpush1.bf16.msra.mxu0 %v1309
      %1867 = vmatprep.subr.bf16.mxu0 %v1315
      %1868 = vmatpush1.bf16.msra.mxu0 %v1314
      %1869 = vmatprep.mubr.bf16.mxu0 %v512
      %1870 = vmatmul.mubr.bf16.gmra.mrb[0].mxu0 %v511
      %v1871 = vpop.f32.mrb[0].mxu0
      %v1872 = vadd.f32 0.0, %v1871
      %v1873 = vpop.f32.mrb[0].mxu0
      %v1874 = vadd.f32 0.0, %v1873
      %v1875 = vpop.f32.mrb[0].mxu0
      %v1876 = vadd.f32 0.0, %v1875
      %v1877 = vpop.f32.mrb[0].mxu0
      %v1878 = vadd.f32 0.0, %v1877
      %1879 = vmatprep.mubr.bf16.mxu0 %v518
      %1880 = vmatmul.mubr.bf16.gmra.mrb[0].mxu0 %v517
      %v1881 = vpop.f32.mrb[0].mxu0
      %v1882 = vadd.f32 0.0, %v1881
      %v1883 = vpop.f32.mrb[0].mxu0
      %v1884 = vadd.f32 0.0, %v1883
      %v1885 = vpop.f32.mrb[0].mxu0
      %v1886 = vpop.f32.mrb[0].mxu0
      %1887 = vdwg.mxu0
      %1888 = vmatprep.subr.bf16.mxu0 %v1320
      %1889 = vmatpush1.bf16.msra.mxu0 %v1319
      %1890 = vmatprep.subr.bf16.mxu0 %v1325
      %1891 = vmatpush1.bf16.msra.mxu0 %v1324
      %1892 = vmatprep.subr.bf16.mxu0 %v1330
      %1893 = vmatpush1.bf16.msra.mxu0 %v1329
      %1894 = vmatprep.subr.bf16.mxu0 %v1335
      %1895 = vmatpush1.bf16.msra.mxu0 %v1334
      %1896 = vmatprep.subr.bf16.mxu0 %v1340
      %1897 = vmatpush1.bf16.msra.mxu0 %v1339
      %1898 = vmatprep.subr.bf16.mxu0 %v1345
      %1899 = vmatpush1.bf16.msra.mxu0 %v1344
      %1900 = vmatprep.subr.bf16.mxu0 %v1350
      %1901 = vmatpush1.bf16.msra.mxu0 %v1349
      %1902 = vmatprep.subr.bf16.mxu0 %v1355
      %1903 = vmatpush1.bf16.msra.mxu0 %v1354
      %1904 = vmatprep.subr.bf16.mxu0 %v1360
      %1905 = vmatpush1.bf16.msra.mxu0 %v1359
      %1906 = vmatprep.subr.bf16.mxu0 %v1365
      %1907 = vmatpush1.bf16.msra.mxu0 %v1364
      %1908 = vmatprep.subr.bf16.mxu0 %v1370
      %1909 = vmatpush1.bf16.msra.mxu0 %v1369
      %1910 = vmatprep.subr.bf16.mxu0 %v1375
      %1911 = vmatpush1.bf16.msra.mxu0 %v1374
      %1912 = vmatprep.subr.bf16.mxu0 %v1380
      %1913 = vmatpush1.bf16.msra.mxu0 %v1379
      %1914 = vmatprep.subr.bf16.mxu0 %v1385
      %1915 = vmatpush1.bf16.msra.mxu0 %v1384
      %1916 = vmatprep.subr.bf16.mxu0 %v1390
      %1917 = vmatpush1.bf16.msra.mxu0 %v1389
      %1918 = vmatprep.subr.bf16.mxu0 %v1395
      %1919 = vmatpush1.bf16.msra.mxu0 %v1394
      %1920 = vmatprep.mubr.bf16.mxu0 %v514
      %1921 = vmatmul.mubr.bf16.gmra.mrb[0].mxu0 %v513
      %v1922 = vpop.f32.mrb[0].mxu0
      %v1923 = vadd.f32 %v1872, %v1922
      %v1924 = vpop.f32.mrb[0].mxu0
      %v1925 = vadd.f32 %v1874, %v1924
      %v1926 = vpop.f32.mrb[0].mxu0
      %v1927 = vadd.f32 %v1876, %v1926
      %v1928 = vpop.f32.mrb[0].mxu0
      %v1929 = vadd.f32 %v1878, %v1928
      %1930 = vmatprep.mubr.bf16.mxu0 %v520
      %1931 = vmatmul.mubr.bf16.gmra.mrb[0].mxu0 %v519
      %v1932 = vpop.f32.mrb[0].mxu0
      %v1933 = vadd.f32 %v1882, %v1932
      %v1934 = vpop.f32.mrb[0].mxu0
      %v1935 = vadd.f32 %v1884, %v1934
      %v1936 = vpop.f32.mrb[0].mxu0
      %v1937 = vpop.f32.mrb[0].mxu0
      %1938 = vdwg.mxu0
      %1939 = vmatprep.subr.bf16.mxu0 %v1400
      %1940 = vmatpush1.bf16.msra.mxu0 %v1399
      %1941 = vmatprep.subr.bf16.mxu0 %v1405
      %1942 = vmatpush1.bf16.msra.mxu0 %v1404
      %1943 = vmatprep.subr.bf16.mxu0 %v1410
      %1944 = vmatpush1.bf16.msra.mxu0 %v1409
      %1945 = vmatprep.subr.bf16.mxu0 %v1415
      %1946 = vmatpush1.bf16.msra.mxu0 %v1414
      %1947 = vmatprep.subr.bf16.mxu0 %v1420
      %1948 = vmatpush1.bf16.msra.mxu0 %v1419
      %1949 = vmatprep.subr.bf16.mxu0 %v1425
      %1950 = vmatpush1.bf16.msra.mxu0 %v1424
      %1951 = vmatprep.subr.bf16.mxu0 %v1430
      %1952 = vmatpush1.bf16.msra.mxu0 %v1429
      %1953 = vmatprep.subr.bf16.mxu0 %v1435
      %1954 = vmatpush1.bf16.msra.mxu0 %v1434
      %1955 = vmatprep.subr.bf16.mxu0 %v1440
      %1956 = vmatpush1.bf16.msra.mxu0 %v1439
      %1957 = vmatprep.subr.bf16.mxu0 %v1445
      %1958 = vmatpush1.bf16.msra.mxu0 %v1444
      %1959 = vmatprep.subr.bf16.mxu0 %v1450
      %1960 = vmatpush1.bf16.msra.mxu0 %v1449
      %1961 = vmatprep.subr.bf16.mxu0 %v1455
      %1962 = vmatpush1.bf16.msra.mxu0 %v1454
      %1963 = vmatprep.subr.bf16.mxu0 0
      %1964 = vmatpush1.bf16.msra.mxu0 0
      %1965 = vmatprep.subr.bf16.mxu0 0
      %1966 = vmatpush1.bf16.msra.mxu0 0
      %1967 = vmatprep.subr.bf16.mxu0 0
      %1968 = vmatpush1.bf16.msra.mxu0 0
      %1969 = vmatprep.subr.bf16.mxu0 0
      %1970 = vmatpush1.bf16.msra.mxu0 0
      %1971 = vmatprep.mubr.bf16.mxu0 %v1679
      %1972 = vmatmul.mubr.bf16.gmra.mrb[0].mxu0 %v515
      %v1973 = vpop.f32.mrb[0].mxu0
      %v1974 = vadd.f32 %v1923, %v1973
      %v1975 = vpop.f32.mrb[0].mxu0
      %v1976 = vadd.f32 %v1925, %v1975
      %v1977 = vpop.f32.mrb[0].mxu0
      %v1978 = vadd.f32 %v1927, %v1977
      %v1979 = vpop.f32.mrb[0].mxu0
      %v1980 = vadd.f32 %v1929, %v1979
      %1981 = vmatprep.mubr.bf16.mxu0 %v1682
      %1982 = vmatmul.mubr.bf16.gmra.mrb[0].mxu0 %v521
      %v1983 = vpop.f32.mrb[0].mxu0
      %v1984 = vadd.f32 %v1933, %v1983
      %v1985 = vpop.f32.mrb[0].mxu0
      %v1986 = vadd.f32 %v1935, %v1985
      %v1987 = vpop.f32.mrb[0].mxu0
      %v1988 = vpop.f32.mrb[0].mxu0
      %1989 = vdwg.mxu0
      %1990 = vmatprep.subr.bf16.mxu0 0
      %1991 = vmatpush1.bf16.msra.mxu0 %v1241
      %1992 = vmatprep.subr.bf16.mxu0 0
      %1993 = vmatpush1.bf16.msra.mxu0 %v1246
      %1994 = vmatprep.subr.bf16.mxu0 0
      %1995 = vmatpush1.bf16.msra.mxu0 %v1251
      %1996 = vmatprep.subr.bf16.mxu0 0
      %1997 = vmatpush1.bf16.msra.mxu0 %v1256
      %1998 = vmatprep.subr.bf16.mxu0 0
      %1999 = vmatpush1.bf16.msra.mxu0 %v1261
      %2000 = vmatprep.subr.bf16.mxu0 0
      %2001 = vmatpush1.bf16.msra.mxu0 %v1266
      %2002 = vmatprep.subr.bf16.mxu0 0
      %2003 = vmatpush1.bf16.msra.mxu0 %v1271
      %2004 = vmatprep.subr.bf16.mxu0 0
      %2005 = vmatpush1.bf16.msra.mxu0 %v1276
      %2006 = vmatprep.subr.bf16.mxu0 0
      %2007 = vmatpush1.bf16.msra.mxu0 %v1281
      %2008 = vmatprep.subr.bf16.mxu0 0
      %2009 = vmatpush1.bf16.msra.mxu0 %v1286
      %2010 = vmatprep.subr.bf16.mxu0 0
      %2011 = vmatpush1.bf16.msra.mxu0 %v1291
      %2012 = vmatprep.subr.bf16.mxu0 0
      %2013 = vmatpush1.bf16.msra.mxu0 %v1296
      %2014 = vmatprep.subr.bf16.mxu0 0
      %2015 = vmatpush1.bf16.msra.mxu0 %v1301
      %2016 = vmatprep.subr.bf16.mxu0 0
      %2017 = vmatpush1.bf16.msra.mxu0 %v1306
      %2018 = vmatprep.subr.bf16.mxu0 0
      %2019 = vmatpush1.bf16.msra.mxu0 %v1311
      %2020 = vmatprep.subr.bf16.mxu0 0
      %2021 = vmatpush1.bf16.msra.mxu0 %v1316
      %2022 = vmatprep.mubr.bf16.mxu0 %v512
      %2023 = vmatmul.mubr.bf16.gmra.mrb[0].mxu0 %v511
      %v2024 = vpop.f32.mrb[0].mxu0
      %v2025 = vadd.f32 0.0, %v2024
      %v2026 = vpop.f32.mrb[0].mxu0
      %v2027 = vpop.f32.mrb[0].mxu0
      %v2028 = vadd.f32 0.0, %v2027
      %v2029 = vpop.f32.mrb[0].mxu0
      %2030 = vmatprep.mubr.bf16.mxu0 %v518
      %2031 = vmatmul.mubr.bf16.gmra.mrb[0].mxu0 %v517
      %v2032 = vpop.f32.mrb[0].mxu0
      %v2033 = vadd.f32 0.0, %v2032
      %v2034 = vpop.f32.mrb[0].mxu0
      %v2035 = vpop.f32.mrb[0].mxu0
      %v2036 = vpop.f32.mrb[0].mxu0
      %2037 = vdwg.mxu0
      %2038 = vmatprep.subr.bf16.mxu0 0
      %2039 = vmatpush1.bf16.msra.mxu0 %v1321
      %2040 = vmatprep.subr.bf16.mxu0 0
      %2041 = vmatpush1.bf16.msra.mxu0 %v1326
      %2042 = vmatprep.subr.bf16.mxu0 0
      %2043 = vmatpush1.bf16.msra.mxu0 %v1331
      %2044 = vmatprep.subr.bf16.mxu0 0
      %2045 = vmatpush1.bf16.msra.mxu0 %v1336
      %2046 = vmatprep.subr.bf16.mxu0 0
      %2047 = vmatpush1.bf16.msra.mxu0 %v1341
      %2048 = vmatprep.subr.bf16.mxu0 0
      %2049 = vmatpush1.bf16.msra.mxu0 %v1346
      %2050 = vmatprep.subr.bf16.mxu0 0
      %2051 = vmatpush1.bf16.msra.mxu0 %v1351
      %2052 = vmatprep.subr.bf16.mxu0 0
      %2053 = vmatpush1.bf16.msra.mxu0 %v1356
      %2054 = vmatprep.subr.bf16.mxu0 0
      %2055 = vmatpush1.bf16.msra.mxu0 %v1361
      %2056 = vmatprep.subr.bf16.mxu0 0
      %2057 = vmatpush1.bf16.msra.mxu0 %v1366
      %2058 = vmatprep.subr.bf16.mxu0 0
      %2059 = vmatpush1.bf16.msra.mxu0 %v1371
      %2060 = vmatprep.subr.bf16.mxu0 0
      %2061 = vmatpush1.bf16.msra.mxu0 %v1376
      %2062 = vmatprep.subr.bf16.mxu0 0
      %2063 = vmatpush1.bf16.msra.mxu0 %v1381
      %2064 = vmatprep.subr.bf16.mxu0 0
      %2065 = vmatpush1.bf16.msra.mxu0 %v1386
      %2066 = vmatprep.subr.bf16.mxu0 0
      %2067 = vmatpush1.bf16.msra.mxu0 %v1391
      %2068 = vmatprep.subr.bf16.mxu0 0
      %2069 = vmatpush1.bf16.msra.mxu0 %v1396
      %2070 = vmatprep.mubr.bf16.mxu0 %v514
      %2071 = vmatmul.mubr.bf16.gmra.mrb[0].mxu0 %v513
      %v2072 = vpop.f32.mrb[0].mxu0
      %v2073 = vadd.f32 %v2025, %v2072
      %v2074 = vpop.f32.mrb[0].mxu0
      %v2075 = vpop.f32.mrb[0].mxu0
      %v2076 = vadd.f32 %v2028, %v2075
      %v2077 = vpop.f32.mrb[0].mxu0
      %2078 = vmatprep.mubr.bf16.mxu0 %v520
      %2079 = vmatmul.mubr.bf16.gmra.mrb[0].mxu0 %v519
      %v2080 = vpop.f32.mrb[0].mxu0
      %v2081 = vadd.f32 %v2033, %v2080
      %v2082 = vpop.f32.mrb[0].mxu0
      %v2083 = vpop.f32.mrb[0].mxu0
      %v2084 = vpop.f32.mrb[0].mxu0
      %2085 = vdwg.mxu0
      %2086 = vmatprep.subr.bf16.mxu0 0
      %2087 = vmatpush1.bf16.msra.mxu0 %v1401
      %2088 = vmatprep.subr.bf16.mxu0 0
      %2089 = vmatpush1.bf16.msra.mxu0 %v1406
      %2090 = vmatprep.subr.bf16.mxu0 0
      %2091 = vmatpush1.bf16.msra.mxu0 %v1411
      %2092 = vmatprep.subr.bf16.mxu0 0
      %2093 = vmatpush1.bf16.msra.mxu0 %v1416
      %2094 = vmatprep.subr.bf16.mxu0 0
      %2095 = vmatpush1.bf16.msra.mxu0 %v1421
      %2096 = vmatprep.subr.bf16.mxu0 0
      %2097 = vmatpush1.bf16.msra.mxu0 %v1426
      %2098 = vmatprep.subr.bf16.mxu0 0
      %2099 = vmatpush1.bf16.msra.mxu0 %v1431
      %2100 = vmatprep.subr.bf16.mxu0 0
      %2101 = vmatpush1.bf16.msra.mxu0 %v1436
      %2102 = vmatprep.subr.bf16.mxu0 0
      %2103 = vmatpush1.bf16.msra.mxu0 %v1441
      %2104 = vmatprep.subr.bf16.mxu0 0
      %2105 = vmatpush1.bf16.msra.mxu0 %v1446
      %2106 = vmatprep.subr.bf16.mxu0 0
      %2107 = vmatpush1.bf16.msra.mxu0 %v1451
      %2108 = vmatprep.subr.bf16.mxu0 0
      %2109 = vmatpush1.bf16.msra.mxu0 %v1456
      %2110 = vmatprep.subr.bf16.mxu0 0
      %2111 = vmatpush1.bf16.msra.mxu0 0
      %2112 = vmatprep.subr.bf16.mxu0 0
      %2113 = vmatpush1.bf16.msra.mxu0 0
      %2114 = vmatprep.subr.bf16.mxu0 0
      %2115 = vmatpush1.bf16.msra.mxu0 0
      %2116 = vmatprep.subr.bf16.mxu0 0
      %2117 = vmatpush1.bf16.msra.mxu0 0
      %2118 = vmatprep.mubr.bf16.mxu0 %v1679
      %2119 = vmatmul.mubr.bf16.gmra.mrb[0].mxu0 %v515
      %v2120 = vpop.f32.mrb[0].mxu0
      %v2121 = vadd.f32 %v2073, %v2120
      %v2122 = vpop.f32.mrb[0].mxu0
      %v2123 = vpop.f32.mrb[0].mxu0
      %v2124 = vadd.f32 %v2076, %v2123
      %v2125 = vpop.f32.mrb[0].mxu0
      %2126 = vmatprep.mubr.bf16.mxu0 %v1682
      %2127 = vmatmul.mubr.bf16.gmra.mrb[0].mxu0 %v521
      %v2128 = vpop.f32.mrb[0].mxu0
      %v2129 = vadd.f32 %v2081, %v2128
      %v2130 = vpop.f32.mrb[0].mxu0
      %v2131 = vpop.f32.mrb[0].mxu0
      %v2132 = vpop.f32.mrb[0].mxu0
      %2133 = vdwg.mxu0
      %v2134 = vadd.f32 %v196, %v1821
      %v2135 = vadd.f32 %v197, %v1823
      %v2136 = vadd.f32 %v198, %v1974
      %v2137 = vadd.f32 %v199, %v1976
      %v2138 = vadd.f32 %v200, %v2121
      %v2139 = vadd.f32 %v201, %v1825
      %v2140 = vadd.f32 %v202, %v1827
      %v2141 = vadd.f32 %v203, %v1978
      %v2142 = vadd.f32 %v204, %v1980
      %v2143 = vadd.f32 %v205, %v2124
      %v2144 = vadd.f32 %v206, %v1831
      %v2145 = vadd.f32 %v207, %v1833
      %v2146 = vadd.f32 %v208, %v1984
      %v2147 = vadd.f32 %v209, %v1986
      %v2148 = vadd.f32 %v210, %v2129
      %2149 = vst [vmem:[#allocation2] sm:$0xff] %v2134
      %2150 = vst [vmem:[#allocation2 + $0x8] sm:$0xff] %v2135
      %2151 = vst [vmem:[#allocation2 + $0x10] sm:$0xff] %v2136
      %2152 = vst [vmem:[#allocation2 + $0x18] sm:$0xff] %v2137
      %2153 = vst [vmem:[#allocation2 + $0x20] sm:$0xff] %v2138
      %2154 = vst [vmem:[#allocation2 + $0x28] sm:$0xff] %v2139
      %2155 = vst [vmem:[#allocation2 + $0x30] sm:$0xff] %v2140
      %2156 = vst [vmem:[#allocation2 + $0x38] sm:$0xff] %v2141
      %2157 = vst [vmem:[#allocation2 + $0x40] sm:$0xff] %v2142
      %2158 = vst [vmem:[#allocation2 + $0x48] sm:$0xff] %v2143
      %2159 = vst [vmem:[#allocation2 + $0x50] sm:$0xf] %v2144
      %2160 = vst [vmem:[#allocation2 + $0x58] sm:$0xf] %v2145
      %2161 = vst [vmem:[#allocation2 + $0x60] sm:$0xf] %v2146
      %2162 = vst [vmem:[#allocation2 + $0x68] sm:$0xf] %v2147
      %2163 = vst [vmem:[#allocation2 + $0x70] sm:$0xf] %v2148
      %p2164 = scmp.eq.s32.totalorder %s14, 2
      // Predicated region
      $region37: #{cnn_custom_forward.6} parent=31 // pred_check
        %p2165 = pneg %p2164
      $region38: #{cnn_custom_forward.6} parent=31 // pred_check_branch
        %2167 = sbr.rel (%p2165) target = $region40
      $region39: #{cnn_custom_forward.6} parent=31 // pred_region
        %v2168 = vld [vmem:[#allocation2] sm:$0xff]
        %v2169 = vld [vmem:[#allocation2 + $0x8] sm:$0xff]
        %v2170 = vld [vmem:[#allocation2 + $0x10] sm:$0xff]
        %v2171 = vld [vmem:[#allocation2 + $0x18] sm:$0xff]
        %v2172 = vld [vmem:[#allocation2 + $0x20] sm:$0xff]
        %v2173 = vld [vmem:[#allocation2 + $0x28] sm:$0xff]
        %v2174 = vld [vmem:[#allocation2 + $0x30] sm:$0xff]
        %v2175 = vld [vmem:[#allocation2 + $0x38] sm:$0xff]
        %v2176 = vld [vmem:[#allocation2 + $0x40] sm:$0xff]
        %v2177 = vld [vmem:[#allocation2 + $0x48] sm:$0xff]
        %v2178 = vld [vmem:[#allocation2 + $0x50] sm:$0xf]
        %v2179 = vld [vmem:[#allocation2 + $0x58] sm:$0xf]
        %v2180 = vld [vmem:[#allocation2 + $0x60] sm:$0xf]
        %v2181 = vld [vmem:[#allocation2 + $0x68] sm:$0xf]
        %v2182 = vld [vmem:[#allocation2 + $0x70] sm:$0xf]
        %v2183 = vld [vmem:[%s2] sm:$0x1f]
        %v2185 = vlaneseq
        %v2186 = vshrl.u32 %v2185, 7
        %v2187 = vsub.s32 0, %v2186
        %v2188 = vrot.slane %v2183, %v2187
        %v2189 = vlaneseq
        %v2190 = vshrl.u32 %v2189, 7
        %v2191 = vsub.s32 1, %v2190
        %v2192 = vrot.slane %v2183, %v2191
        %v2193 = vlaneseq
        %v2194 = vshrl.u32 %v2193, 7
        %v2195 = vsub.s32 2, %v2194
        %v2196 = vrot.slane %v2183, %v2195
        %v2197 = vlaneseq
        %v2198 = vshrl.u32 %v2197, 7
        %v2199 = vsub.s32 3, %v2198
        %v2200 = vrot.slane %v2183, %v2199
        %v2201 = vlaneseq
        %v2202 = vshrl.u32 %v2201, 7
        %v2203 = vsub.s32 4, %v2202
        %v2204 = vrot.slane %v2183, %v2203
        %v2210 = vadd.f32 %v2168, %v2188
        %v2211 = vadd.f32 %v2169, %v2192
        %v2212 = vadd.f32 %v2170, %v2196
        %v2213 = vadd.f32 %v2171, %v2200
        %v2214 = vadd.f32 %v2172, %v2204
        %v2215 = vadd.f32 %v2173, %v2188
        %v2216 = vadd.f32 %v2174, %v2192
        %v2217 = vadd.f32 %v2175, %v2196
        %v2218 = vadd.f32 %v2176, %v2200
        %v2219 = vadd.f32 %v2177, %v2204
        %v2220 = vadd.f32 %v2178, %v2188
        %v2221 = vadd.f32 %v2179, %v2192
        %v2222 = vadd.f32 %v2180, %v2196
        %v2223 = vadd.f32 %v2181, %v2200
        %v2224 = vadd.f32 %v2182, %v2204
        %v2225 = vmax.f32 %v2210, 0.0
        %v2226 = vmax.f32 %v2211, 0.0
        %v2227 = vmax.f32 %v2212, 0.0
        %v2228 = vmax.f32 %v2213, 0.0
        %v2229 = vmax.f32 %v2214, 0.0
        %v2230 = vmax.f32 %v2215, 0.0
        %v2231 = vmax.f32 %v2216, 0.0
        %v2232 = vmax.f32 %v2217, 0.0
        %v2233 = vmax.f32 %v2218, 0.0
        %v2234 = vmax.f32 %v2219, 0.0
        %v2235 = vmax.f32 %v2220, 0.0
        %v2236 = vmax.f32 %v2221, 0.0
        %v2237 = vmax.f32 %v2222, 0.0
        %v2238 = vmax.f32 %v2223, 0.0
        %v2239 = vmax.f32 %v2224, 0.0
        %2255 = vrot.lane.b32.xlu0 %v2225, 64
        %v2256 = vpop.permute.xlu0 %2255
        %2257 = vrot.lane.b32.xlu0 %v2226, 64
        %v2258 = vpop.permute.xlu0 %2257
        %2259 = vrot.lane.b32.xlu0 %v2227, 64
        %v2260 = vpop.permute.xlu0 %2259
        %2261 = vrot.lane.b32.xlu0 %v2228, 64
        %v2262 = vpop.permute.xlu0 %2261
        %2263 = vrot.lane.b32.xlu0 %v2229, 64
        %v2264 = vpop.permute.xlu0 %2263
        %2265 = vrot.lane.b32.xlu0 %v2230, 64
        %v2266 = vpop.permute.xlu0 %2265
        %2267 = vrot.lane.b32.xlu0 %v2231, 64
        %v2268 = vpop.permute.xlu0 %2267
        %2269 = vrot.lane.b32.xlu0 %v2232, 64
        %v2270 = vpop.permute.xlu0 %2269
        %2271 = vrot.lane.b32.xlu0 %v2233, 64
        %v2272 = vpop.permute.xlu0 %2271
        %2273 = vrot.lane.b32.xlu0 %v2234, 64
        %v2274 = vpop.permute.xlu0 %2273
        %2275 = vrot.lane.b32.xlu0 %v2235, 64
        %v2276 = vpop.permute.xlu0 %2275
        %2277 = vrot.lane.b32.xlu0 %v2236, 64
        %v2278 = vpop.permute.xlu0 %2277
        %2279 = vrot.lane.b32.xlu0 %v2237, 64
        %v2280 = vpop.permute.xlu0 %2279
        %2281 = vrot.lane.b32.xlu0 %v2238, 64
        %v2282 = vpop.permute.xlu0 %2281
        %2283 = vrot.lane.b32.xlu0 %v2239, 64
        %v2284 = vpop.permute.xlu0 %2283
        %v2285 = vsel %vm1677, %v2256, %v2258
        %v2286 = vsel %vm1677, %v2258, %v2260
        %v2287 = vsel %vm1677, %v2260, %v2262
        %v2288 = vsel %vm1677, %v2262, %v2264
        %v2289 = vsel %vm1677, %v2266, %v2268
        %v2290 = vsel %vm1677, %v2268, %v2270
        %v2291 = vsel %vm1677, %v2270, %v2272
        %v2292 = vsel %vm1677, %v2272, %v2274
        %v2293 = vsel %vm1677, %v2276, %v2278
        %v2294 = vsel %vm1677, %v2278, %v2280
        %v2295 = vsel %vm1677, %v2280, %v2282
        %v2296 = vsel %vm1677, %v2282, %v2284
        %v2309 = vmax.f32 %v2225, %v2285
        %v2310 = vmax.f32 %v2226, %v2286
        %v2311 = vmax.f32 %v2227, %v2287
        %v2312 = vmax.f32 %v2228, %v2288
        %v2313 = vmax.f32 %v2230, %v2289
        %v2314 = vmax.f32 %v2231, %v2290
        %v2315 = vmax.f32 %v2232, %v2291
        %v2316 = vmax.f32 %v2233, %v2292
        %v2317 = vmax.f32 %v2235, %v2293
        %v2318 = vmax.f32 %v2236, %v2294
        %v2319 = vmax.f32 %v2237, %v2295
        %v2320 = vmax.f32 %v2238, %v2296
        %v2321 = vmax.f32 %v2309, %v2226
        %v2322 = vmax.f32 %v2310, %v2227
        %v2323 = vmax.f32 %v2311, %v2228
        %v2324 = vmax.f32 %v2312, %v2229
        %v2325 = vmax.f32 %v2313, %v2231
        %v2326 = vmax.f32 %v2314, %v2232
        %v2327 = vmax.f32 %v2315, %v2233
        %v2328 = vmax.f32 %v2316, %v2234
        %v2329 = vmax.f32 %v2317, %v2236
        %v2330 = vmax.f32 %v2318, %v2237
        %v2331 = vmax.f32 %v2319, %v2238
        %v2332 = vmax.f32 %v2320, %v2239
        %vm2341 = vcmask 1046528
        %v2342 = vrot.slane %v2321, 1
        %v2343 = vrot.slane %v2325, 1
        %v2344 = vsel %vm2341, %v2342, %v2343
        %v2345 = vrot.slane %v2322, 1
        %v2346 = vrot.slane %v2326, 1
        %v2347 = vsel %vm2341, %v2345, %v2346
        %v2348 = vrot.slane %v2323, 1
        %v2349 = vrot.slane %v2327, 1
        %v2350 = vsel %vm2341, %v2348, %v2349
        %v2351 = vrot.slane %v2324, 1
        %v2352 = vrot.slane %v2328, 1
        %v2353 = vsel %vm2341, %v2351, %v2352
        %v2358 = vmax.f32 %v2321, %v2344
        %v2359 = vmax.f32 %v2322, %v2347
        %v2360 = vmax.f32 %v2323, %v2350
        %v2361 = vmax.f32 %v2324, %v2353
        %vm2362 = vcmask 1045504
        %v2363 = vrot.slane %v2321, 2
        %v2364 = vrot.slane %v2325, 2
        %v2365 = vsel %vm2362, %v2363, %v2364
        %v2366 = vrot.slane %v2322, 2
        %v2367 = vrot.slane %v2326, 2
        %v2368 = vsel %vm2362, %v2366, %v2367
        %v2369 = vrot.slane %v2323, 2
        %v2370 = vrot.slane %v2327, 2
        %v2371 = vsel %vm2362, %v2369, %v2370
        %v2372 = vrot.slane %v2324, 2
        %v2373 = vrot.slane %v2328, 2
        %v2374 = vsel %vm2362, %v2372, %v2373
        %v2379 = vmax.f32 %v2358, %v2365
        %v2380 = vmax.f32 %v2359, %v2368
        %v2381 = vmax.f32 %v2360, %v2371
        %v2382 = vmax.f32 %v2361, %v2374
        %2383 = vst [vmem:[%s3] sm:$0xff] %v2379
        %2384 = vst [vmem:[%s3 + $0x8] sm:$0xff] %v2380
        %2385 = vst [vmem:[%s3 + $0x10] sm:$0xff] %v2381
        %2386 = vst [vmem:[%s3 + $0x18] sm:$0xff] %v2382
        %v2391 = vrot.slane %v2329, 1
        %v2392 = vsel %vm2341, %v2343, %v2391
        %v2393 = vrot.slane %v2330, 1
        %v2394 = vsel %vm2341, %v2346, %v2393
        %v2395 = vrot.slane %v2331, 1
        %v2396 = vsel %vm2341, %v2349, %v2395
        %v2397 = vrot.slane %v2332, 1
        %v2398 = vsel %vm2341, %v2352, %v2397
        %v2407 = vmax.f32 %v2325, %v2392
        %v2408 = vmax.f32 %v2326, %v2394
        %v2409 = vmax.f32 %v2327, %v2396
        %v2410 = vmax.f32 %v2328, %v2398
        %v2411 = vmax.f32 %v2329, %v2391
        %v2412 = vmax.f32 %v2330, %v2393
        %v2413 = vmax.f32 %v2331, %v2395
        %v2414 = vmax.f32 %v2332, %v2397
        %v2415 = vrot.slane %v2329, 2
        %v2416 = vsel %vm2362, %v2364, %v2415
        %v2417 = vrot.slane %v2330, 2
        %v2418 = vsel %vm2362, %v2367, %v2417
        %v2419 = vrot.slane %v2331, 2
        %v2420 = vsel %vm2362, %v2370, %v2419
        %v2421 = vrot.slane %v2332, 2
        %v2422 = vsel %vm2362, %v2373, %v2421
        %v2431 = vmax.f32 %v2407, %v2416
        %v2432 = vmax.f32 %v2408, %v2418
        %v2433 = vmax.f32 %v2409, %v2420
        %v2434 = vmax.f32 %v2410, %v2422
        %v2435 = vmax.f32 %v2411, %v2415
        %v2436 = vmax.f32 %v2412, %v2417
        %v2437 = vmax.f32 %v2413, %v2419
        %v2438 = vmax.f32 %v2414, %v2421
        %v2447 = vrot.slane %v2431, 2
        %v2448 = vrot.slane %v2435, 2
        %v2449 = vsel %vm2362, %v2447, %v2448
        %v2450 = vrot.slane %v2432, 2
        %v2451 = vrot.slane %v2436, 2
        %v2452 = vsel %vm2362, %v2450, %v2451
        %v2453 = vrot.slane %v2433, 2
        %v2454 = vrot.slane %v2437, 2
        %v2455 = vsel %vm2362, %v2453, %v2454
        %v2456 = vrot.slane %v2434, 2
        %v2457 = vrot.slane %v2438, 2
        %v2458 = vsel %vm2362, %v2456, %v2457
        %2463 = vst [vmem:[%s3 + $0x20] sm:$0xff] %v2449
        %2464 = vst [vmem:[%s3 + $0x28] sm:$0xff] %v2452
        %2465 = vst [vmem:[%s3 + $0x30] sm:$0xff] %v2455
        %2466 = vst [vmem:[%s3 + $0x38] sm:$0xff] %v2458
      $region40: #{cnn_custom_forward.6} parent=31 // pred_fallthru
        _
      // Predicated region
      $region41: #{cnn_custom_forward.6} parent=31 // pred_check
        %p2467 = pneg %p100
      $region42: #{cnn_custom_forward.6} parent=31 // pred_check_branch
        %2469 = sbr.rel (%p2467) target = $region44
      $region43: #{cnn_custom_forward.6} parent=31 // pred_region
        _
      $region44: #{cnn_custom_forward.6} parent=31 // pred_fallthru
        _
      // Predicated region
      $region45: #{cnn_custom_forward.6} parent=31 // pred_check
        %p2470 = pneg %p100
      $region46: #{cnn_custom_forward.6} parent=31 // pred_check_branch
        %2472 = sbr.rel (%p2470) target = $region48
      $region47: #{cnn_custom_forward.6} parent=31 // pred_region
        _
      $region48: #{cnn_custom_forward.6} parent=31 // pred_fallthru
        _
    $region32: #{cnn_custom_forward.6} parent=5 // pred_fallthru
      _
    %p2473 = scmp.le.s32.totalorder 2, %s9
    // Predicated region
    $region49: #{cnn_custom_forward.6} parent=5 // pred_check
      %p2474 = pneg %p2473
    $region50: #{cnn_custom_forward.6} parent=5 // pred_check_branch
      %2476 = sbr.rel (%p2474) target = $region52
    $region51: #{cnn_custom_forward.6} parent=5 // pred_region
      %s2477 = ssub.s32 %s9, 2
    $region52: #{cnn_custom_forward.6} parent=5 // pred_fallthru
      _
  $region6: #{cnn_custom_forward.6} parent=0 // loop_footer
    %s13 = sadd.s32 1, %s9
  $region7: #{cnn_custom_forward.6} parent=0 // loop_footer_branch
    %8 = sbr.rel target = $region3
  $region8: #{cnn_custom_forward.6} parent=0 // loop_exit
    _

// kernel: cnn_custom_forward.7
$region0: #{cnn_custom_forward.7}
  #allocation0 [shape = 'u32[]', space=smem, size = 0x4, offset = 0x4, fixed_abs, tag = 'smem constant byte address 0x4 - core index']
  #allocation1 [shape = 'u32[144,128]{1,0:T(1,128)}', space=vmem, size = 0x12000, scoped, tag = 'internal scratch']
  %s0 = inlined_call_operand.vmem [shape: bf16[2,4096], index: 0, kind: input, shape index: {}]
  %s1 = inlined_call_operand.vmem [shape: bf16[4096,256], index: 1, kind: input, shape index: {}]
  %s2 = inlined_call_operand.vmem [shape: f32[1,256], index: 2, kind: input, shape index: {}]
  %s3 = inlined_call_operand.vmem [shape: bf16[256,128], index: 3, kind: input, shape index: {}]
  %s4 = inlined_call_operand.vmem [shape: f32[1,128], index: 4, kind: input, shape index: {}]
  %s5 = inlined_call_operand.hbm [shape: f32[2,128], index: 5, kind: output, shape index: {}]
  %s6 = sld [smem:[#allocation0]]
  $region30: #{cnn_custom_forward.7} parent=0
    _
  %s8 = ssub.s32 1, %s6
  %s9 = scalar_select 0, %s8, %s6
  $region1: #{cnn_custom_forward.7} parent=0
    #allocation2 [shape = 'u8[1024]{0}', space=vmem, size = 0x400, scoped, tag = 'output window, operand 0, single buffered']
    #allocation3 [shape = 's32[1]{0}', space=sflag, size = 0x4, scoped, tag = 'scoped memory for cnn_custom_forward.7']
    %10 = vsyncpa [#allocation3], 0
    // Predicated region
    $region2: #{cnn_custom_forward.7} parent=1 // pred_check
      _
    $region3: #{cnn_custom_forward.7} parent=1 // pred_check_branch
      %12 = sbr.rel (0) target = $region5
    $region4: #{cnn_custom_forward.7} parent=1 // pred_region
      _
    $region5: #{cnn_custom_forward.7} parent=1 // pred_fallthru
      _
    // Predicated region
    $region6: #{cnn_custom_forward.7} parent=1 // pred_check
      _
    $region7: #{cnn_custom_forward.7} parent=1 // pred_check_branch
      %14 = sbr.rel (0) target = $region9
    $region8: #{cnn_custom_forward.7} parent=1 // pred_region
      _
    $region9: #{cnn_custom_forward.7} parent=1 // pred_fallthru
      _
    // Predicated region
    $region10: #{cnn_custom_forward.7} parent=1 // pred_check
      _
    $region11: #{cnn_custom_forward.7} parent=1 // pred_check_branch
      %16 = sbr.rel (0) target = $region13
    $region12: #{cnn_custom_forward.7} parent=1 // pred_region
      _
    $region13: #{cnn_custom_forward.7} parent=1 // pred_fallthru
      _
    // Predicated region
    $region14: #{cnn_custom_forward.7} parent=1 // pred_check
      _
    $region15: #{cnn_custom_forward.7} parent=1 // pred_check_branch
      %18 = sbr.rel (0) target = $region17
    $region16: #{cnn_custom_forward.7} parent=1 // pred_region
      _
    $region17: #{cnn_custom_forward.7} parent=1 // pred_fallthru
      _
    // Predicated region
    $region18: #{cnn_custom_forward.7} parent=1 // pred_check
      _
    $region19: #{cnn_custom_forward.7} parent=1 // pred_check_branch
      %20 = sbr.rel (0) target = $region21
    $region20: #{cnn_custom_forward.7} parent=1 // pred_region
      _
    $region21: #{cnn_custom_forward.7} parent=1 // pred_fallthru
      _
    %v22 = vld [vmem:[%s0] sm:$0xff]
    %v23 = vld [vmem:[%s0 + $0x8] sm:$0xff]
    %v24 = vld [vmem:[%s0 + $0x10] sm:$0xff]
    %v25 = vld [vmem:[%s0 + $0x18] sm:$0xff]
    %v26 = vld [vmem:[%s1] sm:$0xff]
    %v27 = vld [vmem:[%s1 + $0x8] sm:$0xff]
    %v28 = vld [vmem:[%s1 + $0x10] sm:$0xff]
    %v29 = vld [vmem:[%s1 + $0x18] sm:$0xff]
    %v30 = vld [vmem:[%s1 + $0x20] sm:$0xff]
    %v31 = vld [vmem:[%s1 + $0x28] sm:$0xff]
    %v32 = vld [vmem:[%s1 + $0x30] sm:$0xff]
    %v33 = vld [vmem:[%s1 + $0x38] sm:$0xff]
    %v34 = vld [vmem:[%s1 + $0x40] sm:$0xff]
    %v35 = vld [vmem:[%s1 + $0x48] sm:$0xff]
    %v36 = vld [vmem:[%s1 + $0x50] sm:$0xff]
    %v37 = vld [vmem:[%s1 + $0x58] sm:$0xff]
    %v38 = vld [vmem:[%s1 + $0x60] sm:$0xff]
    %v39 = vld [vmem:[%s1 + $0x68] sm:$0xff]
    %v40 = vld [vmem:[%s1 + $0x70] sm:$0xff]
    %v41 = vld [vmem:[%s1 + $0x78] sm:$0xff]
    %v42 = vld [vmem:[%s1 + $0x80] sm:$0xff]
    %v43 = vld [vmem:[%s1 + $0x88] sm:$0xff]
    %v44 = vld [vmem:[%s1 + $0x90] sm:$0xff]
    %v45 = vld [vmem:[%s1 + $0x98] sm:$0xff]
    %v46 = vld [vmem:[%s1 + $0xa0] sm:$0xff]
    %v47 = vld [vmem:[%s1 + $0xa8] sm:$0xff]
    %v48 = vld [vmem:[%s1 + $0xb0] sm:$0xff]
    %v49 = vld [vmem:[%s1 + $0xb8] sm:$0xff]
    %v50 = vld [vmem:[%s1 + $0xc0] sm:$0xff]
    %v51 = vld [vmem:[%s1 + $0xc8] sm:$0xff]
    %v52 = vld [vmem:[%s1 + $0xd0] sm:$0xff]
    %v53 = vld [vmem:[%s1 + $0xd8] sm:$0xff]
    %v54 = vld [vmem:[%s1 + $0xe0] sm:$0xff]
    %v55 = vld [vmem:[%s1 + $0xe8] sm:$0xff]
    %v56 = vld [vmem:[%s1 + $0xf0] sm:$0xff]
    %v57 = vld [vmem:[%s1 + $0xf8] sm:$0xff]
    %v58 = vld [vmem:[%s1 + $0x100] sm:$0xff]
    %v59 = vld [vmem:[%s1 + $0x108] sm:$0xff]
    %v60 = vld [vmem:[%s1 + $0x110] sm:$0xff]
    %v61 = vld [vmem:[%s1 + $0x118] sm:$0xff]
    %v62 = vld [vmem:[%s1 + $0x120] sm:$0xff]
    %v63 = vld [vmem:[%s1 + $0x128] sm:$0xff]
    %v64 = vld [vmem:[%s1 + $0x130] sm:$0xff]
    %v65 = vld [vmem:[%s1 + $0x138] sm:$0xff]
    %v66 = vld [vmem:[%s1 + $0x140] sm:$0xff]
    %v67 = vld [vmem:[%s1 + $0x148] sm:$0xff]
    %v68 = vld [vmem:[%s1 + $0x150] sm:$0xff]
    %v69 = vld [vmem:[%s1 + $0x158] sm:$0xff]
    %v70 = vld [vmem:[%s1 + $0x160] sm:$0xff]
    %v71 = vld [vmem:[%s1 + $0x168] sm:$0xff]
    %v72 = vld [vmem:[%s1 + $0x170] sm:$0xff]
    %v73 = vld [vmem:[%s1 + $0x178] sm:$0xff]
    %v74 = vld [vmem:[%s1 + $0x180] sm:$0xff]
    %v75 = vld [vmem:[%s1 + $0x188] sm:$0xff]
    %v76 = vld [vmem:[%s1 + $0x190] sm:$0xff]
    %v77 = vld [vmem:[%s1 + $0x198] sm:$0xff]
    %v78 = vld [vmem:[%s1 + $0x1a0] sm:$0xff]
    %v79 = vld [vmem:[%s1 + $0x1a8] sm:$0xff]
    %v80 = vld [vmem:[%s1 + $0x1b0] sm:$0xff]
    %v81 = vld [vmem:[%s1 + $0x1b8] sm:$0xff]
    %v82 = vld [vmem:[%s1 + $0x1c0] sm:$0xff]
    %v83 = vld [vmem:[%s1 + $0x1c8] sm:$0xff]
    %v84 = vld [vmem:[%s1 + $0x1d0] sm:$0xff]
    %v85 = vld [vmem:[%s1 + $0x1d8] sm:$0xff]
    %v86 = vld [vmem:[%s1 + $0x1e0] sm:$0xff]
    %v87 = vld [vmem:[%s1 + $0x1e8] sm:$0xff]
    %v88 = vld [vmem:[%s1 + $0x1f0] sm:$0xff]
    %v89 = vld [vmem:[%s1 + $0x1f8] sm:$0xff]
    %v90 = vld [vmem:[%s1 + $0x200] sm:$0xff]
    %v91 = vld [vmem:[%s1 + $0x208] sm:$0xff]
    %v92 = vld [vmem:[%s1 + $0x210] sm:$0xff]
    %v93 = vld [vmem:[%s1 + $0x218] sm:$0xff]
    %v94 = vld [vmem:[%s1 + $0x220] sm:$0xff]
    %v95 = vld [vmem:[%s1 + $0x228] sm:$0xff]
    %v96 = vld [vmem:[%s1 + $0x230] sm:$0xff]
    %v97 = vld [vmem:[%s1 + $0x238] sm:$0xff]
    %v98 = vld [vmem:[%s1 + $0x240] sm:$0xff]
    %v99 = vld [vmem:[%s1 + $0x248] sm:$0xff]
    %v100 = vld [vmem:[%s1 + $0x250] sm:$0xff]
    %v101 = vld [vmem:[%s1 + $0x258] sm:$0xff]
    %v102 = vld [vmem:[%s1 + $0x260] sm:$0xff]
    %v103 = vld [vmem:[%s1 + $0x268] sm:$0xff]
    %v104 = vld [vmem:[%s1 + $0x270] sm:$0xff]
    %v105 = vld [vmem:[%s1 + $0x278] sm:$0xff]
    %v106 = vld [vmem:[%s1 + $0x280] sm:$0xff]
    %v107 = vld [vmem:[%s1 + $0x288] sm:$0xff]
    %v108 = vld [vmem:[%s1 + $0x290] sm:$0xff]
    %v109 = vld [vmem:[%s1 + $0x298] sm:$0xff]
    %v110 = vld [vmem:[%s1 + $0x2a0] sm:$0xff]
    %v111 = vld [vmem:[%s1 + $0x2a8] sm:$0xff]
    %v112 = vld [vmem:[%s1 + $0x2b0] sm:$0xff]
    %v113 = vld [vmem:[%s1 + $0x2b8] sm:$0xff]
    %v114 = vld [vmem:[%s1 + $0x2c0] sm:$0xff]
    %v115 = vld [vmem:[%s1 + $0x2c8] sm:$0xff]
    %v116 = vld [vmem:[%s1 + $0x2d0] sm:$0xff]
    %v117 = vld [vmem:[%s1 + $0x2d8] sm:$0xff]
    %v118 = vld [vmem:[%s1 + $0x2e0] sm:$0xff]
    %v119 = vld [vmem:[%s1 + $0x2e8] sm:$0xff]
    %v120 = vld [vmem:[%s1 + $0x2f0] sm:$0xff]
    %v121 = vld [vmem:[%s1 + $0x2f8] sm:$0xff]
    %v122 = vld [vmem:[%s1 + $0x300] sm:$0xff]
    %v123 = vld [vmem:[%s1 + $0x308] sm:$0xff]
    %v124 = vld [vmem:[%s1 + $0x310] sm:$0xff]
    %v125 = vld [vmem:[%s1 + $0x318] sm:$0xff]
    %v126 = vld [vmem:[%s1 + $0x320] sm:$0xff]
    %v127 = vld [vmem:[%s1 + $0x328] sm:$0xff]
    %v128 = vld [vmem:[%s1 + $0x330] sm:$0xff]
    %v129 = vld [vmem:[%s1 + $0x338] sm:$0xff]
    %v130 = vld [vmem:[%s1 + $0x340] sm:$0xff]
    %v131 = vld [vmem:[%s1 + $0x348] sm:$0xff]
    %v132 = vld [vmem:[%s1 + $0x350] sm:$0xff]
    %v133 = vld [vmem:[%s1 + $0x358] sm:$0xff]
    %v134 = vld [vmem:[%s1 + $0x360] sm:$0xff]
    %v135 = vld [vmem:[%s1 + $0x368] sm:$0xff]
    %v136 = vld [vmem:[%s1 + $0x370] sm:$0xff]
    %v137 = vld [vmem:[%s1 + $0x378] sm:$0xff]
    %v138 = vld [vmem:[%s1 + $0x380] sm:$0xff]
    %v139 = vld [vmem:[%s1 + $0x388] sm:$0xff]
    %v140 = vld [vmem:[%s1 + $0x390] sm:$0xff]
    %v141 = vld [vmem:[%s1 + $0x398] sm:$0xff]
    %v142 = vld [vmem:[%s1 + $0x3a0] sm:$0xff]
    %v143 = vld [vmem:[%s1 + $0x3a8] sm:$0xff]
    %v144 = vld [vmem:[%s1 + $0x3b0] sm:$0xff]
    %v145 = vld [vmem:[%s1 + $0x3b8] sm:$0xff]
    %v146 = vld [vmem:[%s1 + $0x3c0] sm:$0xff]
    %v147 = vld [vmem:[%s1 + $0x3c8] sm:$0xff]
    %v148 = vld [vmem:[%s1 + $0x3d0] sm:$0xff]
    %v149 = vld [vmem:[%s1 + $0x3d8] sm:$0xff]
    %v150 = vld [vmem:[%s1 + $0x3e0] sm:$0xff]
    %v151 = vld [vmem:[%s1 + $0x3e8] sm:$0xff]
    %v152 = vld [vmem:[%s1 + $0x3f0] sm:$0xff]
    %v153 = vld [vmem:[%s1 + $0x3f8] sm:$0xff]
    %v154 = vld [vmem:[%s1 + $0x400] sm:$0xff]
    %v155 = vld [vmem:[%s1 + $0x408] sm:$0xff]
    %v156 = vld [vmem:[%s1 + $0x410] sm:$0xff]
    %v157 = vld [vmem:[%s1 + $0x418] sm:$0xff]
    %v158 = vld [vmem:[%s1 + $0x420] sm:$0xff]
    %v159 = vld [vmem:[%s1 + $0x428] sm:$0xff]
    %v160 = vld [vmem:[%s1 + $0x430] sm:$0xff]
    %v161 = vld [vmem:[%s1 + $0x438] sm:$0xff]
    %v162 = vld [vmem:[%s1 + $0x440] sm:$0xff]
    %v163 = vld [vmem:[%s1 + $0x448] sm:$0xff]
    %v164 = vld [vmem:[%s1 + $0x450] sm:$0xff]
    %v165 = vld [vmem:[%s1 + $0x458] sm:$0xff]
    %v166 = vld [vmem:[%s1 + $0x460] sm:$0xff]
    %v167 = vld [vmem:[%s1 + $0x468] sm:$0xff]
    %v168 = vld [vmem:[%s1 + $0x470] sm:$0xff]
    %v169 = vld [vmem:[%s1 + $0x478] sm:$0xff]
    %v170 = vld [vmem:[%s1 + $0x480] sm:$0xff]
    %v171 = vld [vmem:[%s1 + $0x488] sm:$0xff]
    %v172 = vld [vmem:[%s1 + $0x490] sm:$0xff]
    %v173 = vld [vmem:[%s1 + $0x498] sm:$0xff]
    %v174 = vld [vmem:[%s1 + $0x4a0] sm:$0xff]
    %v175 = vld [vmem:[%s1 + $0x4a8] sm:$0xff]
    %v176 = vld [vmem:[%s1 + $0x4b0] sm:$0xff]
    %v177 = vld [vmem:[%s1 + $0x4b8] sm:$0xff]
    %v178 = vld [vmem:[%s1 + $0x4c0] sm:$0xff]
    %v179 = vld [vmem:[%s1 + $0x4c8] sm:$0xff]
    %v180 = vld [vmem:[%s1 + $0x4d0] sm:$0xff]
    %v181 = vld [vmem:[%s1 + $0x4d8] sm:$0xff]
    %v182 = vld [vmem:[%s1 + $0x4e0] sm:$0xff]
    %v183 = vld [vmem:[%s1 + $0x4e8] sm:$0xff]
    %v184 = vld [vmem:[%s1 + $0x4f0] sm:$0xff]
    %v185 = vld [vmem:[%s1 + $0x4f8] sm:$0xff]
    %v186 = vld [vmem:[%s1 + $0x500] sm:$0xff]
    %v187 = vld [vmem:[%s1 + $0x508] sm:$0xff]
    %v188 = vld [vmem:[%s1 + $0x510] sm:$0xff]
    %v189 = vld [vmem:[%s1 + $0x518] sm:$0xff]
    %v190 = vld [vmem:[%s1 + $0x520] sm:$0xff]
    %v191 = vld [vmem:[%s1 + $0x528] sm:$0xff]
    %v192 = vld [vmem:[%s1 + $0x530] sm:$0xff]
    %v193 = vld [vmem:[%s1 + $0x538] sm:$0xff]
    %v194 = vld [vmem:[%s1 + $0x540] sm:$0xff]
    %v195 = vld [vmem:[%s1 + $0x548] sm:$0xff]
    %v196 = vld [vmem:[%s1 + $0x550] sm:$0xff]
    %v197 = vld [vmem:[%s1 + $0x558] sm:$0xff]
    %v198 = vld [vmem:[%s1 + $0x560] sm:$0xff]
    %v199 = vld [vmem:[%s1 + $0x568] sm:$0xff]
    %v200 = vld [vmem:[%s1 + $0x570] sm:$0xff]
    %v201 = vld [vmem:[%s1 + $0x578] sm:$0xff]
    %v202 = vld [vmem:[%s1 + $0x580] sm:$0xff]
    %v203 = vld [vmem:[%s1 + $0x588] sm:$0xff]
    %v204 = vld [vmem:[%s1 + $0x590] sm:$0xff]
    %v205 = vld [vmem:[%s1 + $0x598] sm:$0xff]
    %v206 = vld [vmem:[%s1 + $0x5a0] sm:$0xff]
    %v207 = vld [vmem:[%s1 + $0x5a8] sm:$0xff]
    %v208 = vld [vmem:[%s1 + $0x5b0] sm:$0xff]
    %v209 = vld [vmem:[%s1 + $0x5b8] sm:$0xff]
    %v210 = vld [vmem:[%s1 + $0x5c0] sm:$0xff]
    %v211 = vld [vmem:[%s1 + $0x5c8] sm:$0xff]
    %v212 = vld [vmem:[%s1 + $0x5d0] sm:$0xff]
    %v213 = vld [vmem:[%s1 + $0x5d8] sm:$0xff]
    %v214 = vld [vmem:[%s1 + $0x5e0] sm:$0xff]
    %v215 = vld [vmem:[%s1 + $0x5e8] sm:$0xff]
    %v216 = vld [vmem:[%s1 + $0x5f0] sm:$0xff]
    %v217 = vld [vmem:[%s1 + $0x5f8] sm:$0xff]
    %v218 = vld [vmem:[%s1 + $0x600] sm:$0xff]
    %v219 = vld [vmem:[%s1 + $0x608] sm:$0xff]
    %v220 = vld [vmem:[%s1 + $0x610] sm:$0xff]
    %v221 = vld [vmem:[%s1 + $0x618] sm:$0xff]
    %v222 = vld [vmem:[%s1 + $0x620] sm:$0xff]
    %v223 = vld [vmem:[%s1 + $0x628] sm:$0xff]
    %v224 = vld [vmem:[%s1 + $0x630] sm:$0xff]
    %v225 = vld [vmem:[%s1 + $0x638] sm:$0xff]
    %v226 = vld [vmem:[%s1 + $0x640] sm:$0xff]
    %v227 = vld [vmem:[%s1 + $0x648] sm:$0xff]
    %v228 = vld [vmem:[%s1 + $0x650] sm:$0xff]
    %v229 = vld [vmem:[%s1 + $0x658] sm:$0xff]
    %v230 = vld [vmem:[%s1 + $0x660] sm:$0xff]
    %v231 = vld [vmem:[%s1 + $0x668] sm:$0xff]
    %v232 = vld [vmem:[%s1 + $0x670] sm:$0xff]
    %v233 = vld [vmem:[%s1 + $0x678] sm:$0xff]
    %v234 = vld [vmem:[%s1 + $0x680] sm:$0xff]
    %v235 = vld [vmem:[%s1 + $0x688] sm:$0xff]
    %v236 = vld [vmem:[%s1 + $0x690] sm:$0xff]
    %v237 = vld [vmem:[%s1 + $0x698] sm:$0xff]
    %v238 = vld [vmem:[%s1 + $0x6a0] sm:$0xff]
    %v239 = vld [vmem:[%s1 + $0x6a8] sm:$0xff]
    %v240 = vld [vmem:[%s1 + $0x6b0] sm:$0xff]
    %v241 = vld [vmem:[%s1 + $0x6b8] sm:$0xff]
    %v242 = vld [vmem:[%s1 + $0x6c0] sm:$0xff]
    %v243 = vld [vmem:[%s1 + $0x6c8] sm:$0xff]
    %v244 = vld [vmem:[%s1 + $0x6d0] sm:$0xff]
    %v245 = vld [vmem:[%s1 + $0x6d8] sm:$0xff]
    %v246 = vld [vmem:[%s1 + $0x6e0] sm:$0xff]
    %v247 = vld [vmem:[%s1 + $0x6e8] sm:$0xff]
    %v248 = vld [vmem:[%s1 + $0x6f0] sm:$0xff]
    %v249 = vld [vmem:[%s1 + $0x6f8] sm:$0xff]
    %v250 = vld [vmem:[%s1 + $0x700] sm:$0xff]
    %v251 = vld [vmem:[%s1 + $0x708] sm:$0xff]
    %v252 = vld [vmem:[%s1 + $0x710] sm:$0xff]
    %v253 = vld [vmem:[%s1 + $0x718] sm:$0xff]
    %v254 = vld [vmem:[%s1 + $0x720] sm:$0xff]
    %v255 = vld [vmem:[%s1 + $0x728] sm:$0xff]
    %v256 = vld [vmem:[%s1 + $0x730] sm:$0xff]
    %v257 = vld [vmem:[%s1 + $0x738] sm:$0xff]
    %v258 = vld [vmem:[%s1 + $0x740] sm:$0xff]
    %v259 = vld [vmem:[%s1 + $0x748] sm:$0xff]
    %v260 = vld [vmem:[%s1 + $0x750] sm:$0xff]
    %v261 = vld [vmem:[%s1 + $0x758] sm:$0xff]
    %v262 = vld [vmem:[%s1 + $0x760] sm:$0xff]
    %v263 = vld [vmem:[%s1 + $0x768] sm:$0xff]
    %v264 = vld [vmem:[%s1 + $0x770] sm:$0xff]
    %v265 = vld [vmem:[%s1 + $0x778] sm:$0xff]
    %v266 = vld [vmem:[%s1 + $0x780] sm:$0xff]
    %v267 = vld [vmem:[%s1 + $0x788] sm:$0xff]
    %v268 = vld [vmem:[%s1 + $0x790] sm:$0xff]
    %v269 = vld [vmem:[%s1 + $0x798] sm:$0xff]
    %v270 = vld [vmem:[%s1 + $0x7a0] sm:$0xff]
    %v271 = vld [vmem:[%s1 + $0x7a8] sm:$0xff]
    %v272 = vld [vmem:[%s1 + $0x7b0] sm:$0xff]
    %v273 = vld [vmem:[%s1 + $0x7b8] sm:$0xff]
    %v274 = vld [vmem:[%s1 + $0x7c0] sm:$0xff]
    %v275 = vld [vmem:[%s1 + $0x7c8] sm:$0xff]
    %v276 = vld [vmem:[%s1 + $0x7d0] sm:$0xff]
    %v277 = vld [vmem:[%s1 + $0x7d8] sm:$0xff]
    %v278 = vld [vmem:[%s1 + $0x7e0] sm:$0xff]
    %v279 = vld [vmem:[%s1 + $0x7e8] sm:$0xff]
    %v280 = vld [vmem:[%s1 + $0x7f0] sm:$0xff]
    %v281 = vld [vmem:[%s1 + $0x7f8] sm:$0xff]
    %v282 = vld [vmem:[%s1 + $0x800] sm:$0xff]
    %v283 = vld [vmem:[%s1 + $0x808] sm:$0xff]
    %v284 = vld [vmem:[%s1 + $0x810] sm:$0xff]
    %v285 = vld [vmem:[%s1 + $0x818] sm:$0xff]
    %v286 = vld [vmem:[%s1 + $0x820] sm:$0xff]
    %v287 = vld [vmem:[%s1 + $0x828] sm:$0xff]
    %v288 = vld [vmem:[%s1 + $0x830] sm:$0xff]
    %v289 = vld [vmem:[%s1 + $0x838] sm:$0xff]
    %v290 = vld [vmem:[%s1 + $0x840] sm:$0xff]
    %v291 = vld [vmem:[%s1 + $0x848] sm:$0xff]
    %v292 = vld [vmem:[%s1 + $0x850] sm:$0xff]
    %v293 = vld [vmem:[%s1 + $0x858] sm:$0xff]
    %v294 = vld [vmem:[%s1 + $0x860] sm:$0xff]
    %v295 = vld [vmem:[%s1 + $0x868] sm:$0xff]
    %v296 = vld [vmem:[%s1 + $0x870] sm:$0xff]
    %v297 = vld [vmem:[%s1 + $0x878] sm:$0xff]
    %v298 = vld [vmem:[%s1 + $0x880] sm:$0xff]
    %v299 = vld [vmem:[%s1 + $0x888] sm:$0xff]
    %v300 = vld [vmem:[%s1 + $0x890] sm:$0xff]
    %v301 = vld [vmem:[%s1 + $0x898] sm:$0xff]
    %v302 = vld [vmem:[%s1 + $0x8a0] sm:$0xff]
    %v303 = vld [vmem:[%s1 + $0x8a8] sm:$0xff]
    %v304 = vld [vmem:[%s1 + $0x8b0] sm:$0xff]
    %v305 = vld [vmem:[%s1 + $0x8b8] sm:$0xff]
    %v306 = vld [vmem:[%s1 + $0x8c0] sm:$0xff]
    %v307 = vld [vmem:[%s1 + $0x8c8] sm:$0xff]
    %v308 = vld [vmem:[%s1 + $0x8d0] sm:$0xff]
    %v309 = vld [vmem:[%s1 + $0x8d8] sm:$0xff]
    %v310 = vld [vmem:[%s1 + $0x8e0] sm:$0xff]
    %v311 = vld [vmem:[%s1 + $0x8e8] sm:$0xff]
    %v312 = vld [vmem:[%s1 + $0x8f0] sm:$0xff]
    %v313 = vld [vmem:[%s1 + $0x8f8] sm:$0xff]
    %v314 = vld [vmem:[%s1 + $0x900] sm:$0xff]
    %v315 = vld [vmem:[%s1 + $0x908] sm:$0xff]
    %v316 = vld [vmem:[%s1 + $0x910] sm:$0xff]
    %v317 = vld [vmem:[%s1 + $0x918] sm:$0xff]
    %v318 = vld [vmem:[%s1 + $0x920] sm:$0xff]
    %v319 = vld [vmem:[%s1 + $0x928] sm:$0xff]
    %v320 = vld [vmem:[%s1 + $0x930] sm:$0xff]
    %v321 = vld [vmem:[%s1 + $0x938] sm:$0xff]
    %v322 = vld [vmem:[%s1 + $0x940] sm:$0xff]
    %v323 = vld [vmem:[%s1 + $0x948] sm:$0xff]
    %v324 = vld [vmem:[%s1 + $0x950] sm:$0xff]
    %v325 = vld [vmem:[%s1 + $0x958] sm:$0xff]
    %v326 = vld [vmem:[%s1 + $0x960] sm:$0xff]
    %v327 = vld [vmem:[%s1 + $0x968] sm:$0xff]
    %v328 = vld [vmem:[%s1 + $0x970] sm:$0xff]
    %v329 = vld [vmem:[%s1 + $0x978] sm:$0xff]
    %v330 = vld [vmem:[%s1 + $0x980] sm:$0xff]
    %v331 = vld [vmem:[%s1 + $0x988] sm:$0xff]
    %v332 = vld [vmem:[%s1 + $0x990] sm:$0xff]
    %v333 = vld [vmem:[%s1 + $0x998] sm:$0xff]
    %v334 = vld [vmem:[%s1 + $0x9a0] sm:$0xff]
    %v335 = vld [vmem:[%s1 + $0x9a8] sm:$0xff]
    %v336 = vld [vmem:[%s1 + $0x9b0] sm:$0xff]
    %v337 = vld [vmem:[%s1 + $0x9b8] sm:$0xff]
    %v338 = vld [vmem:[%s1 + $0x9c0] sm:$0xff]
    %v339 = vld [vmem:[%s1 + $0x9c8] sm:$0xff]
    %v340 = vld [vmem:[%s1 + $0x9d0] sm:$0xff]
    %v341 = vld [vmem:[%s1 + $0x9d8] sm:$0xff]
    %v342 = vld [vmem:[%s1 + $0x9e0] sm:$0xff]
    %v343 = vld [vmem:[%s1 + $0x9e8] sm:$0xff]
    %v344 = vld [vmem:[%s1 + $0x9f0] sm:$0xff]
    %v345 = vld [vmem:[%s1 + $0x9f8] sm:$0xff]
    %v346 = vld [vmem:[%s1 + $0xa00] sm:$0xff]
    %v347 = vld [vmem:[%s1 + $0xa08] sm:$0xff]
    %v348 = vld [vmem:[%s1 + $0xa10] sm:$0xff]
    %v349 = vld [vmem:[%s1 + $0xa18] sm:$0xff]
    %v350 = vld [vmem:[%s1 + $0xa20] sm:$0xff]
    %v351 = vld [vmem:[%s1 + $0xa28] sm:$0xff]
    %v352 = vld [vmem:[%s1 + $0xa30] sm:$0xff]
    %v353 = vld [vmem:[%s1 + $0xa38] sm:$0xff]
    %v354 = vld [vmem:[%s1 + $0xa40] sm:$0xff]
    %v355 = vld [vmem:[%s1 + $0xa48] sm:$0xff]
    %v356 = vld [vmem:[%s1 + $0xa50] sm:$0xff]
    %v357 = vld [vmem:[%s1 + $0xa58] sm:$0xff]
    %v358 = vld [vmem:[%s1 + $0xa60] sm:$0xff]
    %v359 = vld [vmem:[%s1 + $0xa68] sm:$0xff]
    %v360 = vld [vmem:[%s1 + $0xa70] sm:$0xff]
    %v361 = vld [vmem:[%s1 + $0xa78] sm:$0xff]
    %v362 = vld [vmem:[%s1 + $0xa80] sm:$0xff]
    %v363 = vld [vmem:[%s1 + $0xa88] sm:$0xff]
    %v364 = vld [vmem:[%s1 + $0xa90] sm:$0xff]
    %v365 = vld [vmem:[%s1 + $0xa98] sm:$0xff]
    %v366 = vld [vmem:[%s1 + $0xaa0] sm:$0xff]
    %v367 = vld [vmem:[%s1 + $0xaa8] sm:$0xff]
    %v368 = vld [vmem:[%s1 + $0xab0] sm:$0xff]
    %v369 = vld [vmem:[%s1 + $0xab8] sm:$0xff]
    %v370 = vld [vmem:[%s1 + $0xac0] sm:$0xff]
    %v371 = vld [vmem:[%s1 + $0xac8] sm:$0xff]
    %v372 = vld [vmem:[%s1 + $0xad0] sm:$0xff]
    %v373 = vld [vmem:[%s1 + $0xad8] sm:$0xff]
    %v374 = vld [vmem:[%s1 + $0xae0] sm:$0xff]
    %v375 = vld [vmem:[%s1 + $0xae8] sm:$0xff]
    %v376 = vld [vmem:[%s1 + $0xaf0] sm:$0xff]
    %v377 = vld [vmem:[%s1 + $0xaf8] sm:$0xff]
    %v378 = vld [vmem:[%s1 + $0xb00] sm:$0xff]
    %v379 = vld [vmem:[%s1 + $0xb08] sm:$0xff]
    %v380 = vld [vmem:[%s1 + $0xb10] sm:$0xff]
    %v381 = vld [vmem:[%s1 + $0xb18] sm:$0xff]
    %v382 = vld [vmem:[%s1 + $0xb20] sm:$0xff]
    %v383 = vld [vmem:[%s1 + $0xb28] sm:$0xff]
    %v384 = vld [vmem:[%s1 + $0xb30] sm:$0xff]
    %v385 = vld [vmem:[%s1 + $0xb38] sm:$0xff]
    %v386 = vld [vmem:[%s1 + $0xb40] sm:$0xff]
    %v387 = vld [vmem:[%s1 + $0xb48] sm:$0xff]
    %v388 = vld [vmem:[%s1 + $0xb50] sm:$0xff]
    %v389 = vld [vmem:[%s1 + $0xb58] sm:$0xff]
    %v390 = vld [vmem:[%s1 + $0xb60] sm:$0xff]
    %v391 = vld [vmem:[%s1 + $0xb68] sm:$0xff]
    %v392 = vld [vmem:[%s1 + $0xb70] sm:$0xff]
    %v393 = vld [vmem:[%s1 + $0xb78] sm:$0xff]
    %v394 = vld [vmem:[%s1 + $0xb80] sm:$0xff]
    %v395 = vld [vmem:[%s1 + $0xb88] sm:$0xff]
    %v396 = vld [vmem:[%s1 + $0xb90] sm:$0xff]
    %v397 = vld [vmem:[%s1 + $0xb98] sm:$0xff]
    %v398 = vld [vmem:[%s1 + $0xba0] sm:$0xff]
    %v399 = vld [vmem:[%s1 + $0xba8] sm:$0xff]
    %v400 = vld [vmem:[%s1 + $0xbb0] sm:$0xff]
    %v401 = vld [vmem:[%s1 + $0xbb8] sm:$0xff]
    %v402 = vld [vmem:[%s1 + $0xbc0] sm:$0xff]
    %v403 = vld [vmem:[%s1 + $0xbc8] sm:$0xff]
    %v404 = vld [vmem:[%s1 + $0xbd0] sm:$0xff]
    %v405 = vld [vmem:[%s1 + $0xbd8] sm:$0xff]
    %v406 = vld [vmem:[%s1 + $0xbe0] sm:$0xff]
    %v407 = vld [vmem:[%s1 + $0xbe8] sm:$0xff]
    %v408 = vld [vmem:[%s1 + $0xbf0] sm:$0xff]
    %v409 = vld [vmem:[%s1 + $0xbf8] sm:$0xff]
    %v410 = vld [vmem:[%s1 + $0xc00] sm:$0xff]
    %v411 = vld [vmem:[%s1 + $0xc08] sm:$0xff]
    %v412 = vld [vmem:[%s1 + $0xc10] sm:$0xff]
    %v413 = vld [vmem:[%s1 + $0xc18] sm:$0xff]
    %v414 = vld [vmem:[%s1 + $0xc20] sm:$0xff]
    %v415 = vld [vmem:[%s1 + $0xc28] sm:$0xff]
    %v416 = vld [vmem:[%s1 + $0xc30] sm:$0xff]
    %v417 = vld [vmem:[%s1 + $0xc38] sm:$0xff]
    %v418 = vld [vmem:[%s1 + $0xc40] sm:$0xff]
    %v419 = vld [vmem:[%s1 + $0xc48] sm:$0xff]
    %v420 = vld [vmem:[%s1 + $0xc50] sm:$0xff]
    %v421 = vld [vmem:[%s1 + $0xc58] sm:$0xff]
    %v422 = vld [vmem:[%s1 + $0xc60] sm:$0xff]
    %v423 = vld [vmem:[%s1 + $0xc68] sm:$0xff]
    %v424 = vld [vmem:[%s1 + $0xc70] sm:$0xff]
    %v425 = vld [vmem:[%s1 + $0xc78] sm:$0xff]
    %v426 = vld [vmem:[%s1 + $0xc80] sm:$0xff]
    %v427 = vld [vmem:[%s1 + $0xc88] sm:$0xff]
    %v428 = vld [vmem:[%s1 + $0xc90] sm:$0xff]
    %v429 = vld [vmem:[%s1 + $0xc98] sm:$0xff]
    %v430 = vld [vmem:[%s1 + $0xca0] sm:$0xff]
    %v431 = vld [vmem:[%s1 + $0xca8] sm:$0xff]
    %v432 = vld [vmem:[%s1 + $0xcb0] sm:$0xff]
    %v433 = vld [vmem:[%s1 + $0xcb8] sm:$0xff]
    %v434 = vld [vmem:[%s1 + $0xcc0] sm:$0xff]
    %v435 = vld [vmem:[%s1 + $0xcc8] sm:$0xff]
    %v436 = vld [vmem:[%s1 + $0xcd0] sm:$0xff]
    %v437 = vld [vmem:[%s1 + $0xcd8] sm:$0xff]
    %v438 = vld [vmem:[%s1 + $0xce0] sm:$0xff]
    %v439 = vld [vmem:[%s1 + $0xce8] sm:$0xff]
    %v440 = vld [vmem:[%s1 + $0xcf0] sm:$0xff]
    %v441 = vld [vmem:[%s1 + $0xcf8] sm:$0xff]
    %v442 = vld [vmem:[%s1 + $0xd00] sm:$0xff]
    %v443 = vld [vmem:[%s1 + $0xd08] sm:$0xff]
    %v444 = vld [vmem:[%s1 + $0xd10] sm:$0xff]
    %v445 = vld [vmem:[%s1 + $0xd18] sm:$0xff]
    %v446 = vld [vmem:[%s1 + $0xd20] sm:$0xff]
    %v447 = vld [vmem:[%s1 + $0xd28] sm:$0xff]
    %v448 = vld [vmem:[%s1 + $0xd30] sm:$0xff]
    %v449 = vld [vmem:[%s1 + $0xd38] sm:$0xff]
    %v450 = vld [vmem:[%s1 + $0xd40] sm:$0xff]
    %v451 = vld [vmem:[%s1 + $0xd48] sm:$0xff]
    %v452 = vld [vmem:[%s1 + $0xd50] sm:$0xff]
    %v453 = vld [vmem:[%s1 + $0xd58] sm:$0xff]
    %v454 = vld [vmem:[%s1 + $0xd60] sm:$0xff]
    %v455 = vld [vmem:[%s1 + $0xd68] sm:$0xff]
    %v456 = vld [vmem:[%s1 + $0xd70] sm:$0xff]
    %v457 = vld [vmem:[%s1 + $0xd78] sm:$0xff]
    %v458 = vld [vmem:[%s1 + $0xd80] sm:$0xff]
    %v459 = vld [vmem:[%s1 + $0xd88] sm:$0xff]
    %v460 = vld [vmem:[%s1 + $0xd90] sm:$0xff]
    %v461 = vld [vmem:[%s1 + $0xd98] sm:$0xff]
    %v462 = vld [vmem:[%s1 + $0xda0] sm:$0xff]
    %v463 = vld [vmem:[%s1 + $0xda8] sm:$0xff]
    %v464 = vld [vmem:[%s1 + $0xdb0] sm:$0xff]
    %v465 = vld [vmem:[%s1 + $0xdb8] sm:$0xff]
    %v466 = vld [vmem:[%s1 + $0xdc0] sm:$0xff]
    %v467 = vld [vmem:[%s1 + $0xdc8] sm:$0xff]
    %v468 = vld [vmem:[%s1 + $0xdd0] sm:$0xff]
    %v469 = vld [vmem:[%s1 + $0xdd8] sm:$0xff]
    %v470 = vld [vmem:[%s1 + $0xde0] sm:$0xff]
    %v471 = vld [vmem:[%s1 + $0xde8] sm:$0xff]
    %v472 = vld [vmem:[%s1 + $0xdf0] sm:$0xff]
    %v473 = vld [vmem:[%s1 + $0xdf8] sm:$0xff]
    %v474 = vld [vmem:[%s1 + $0xe00] sm:$0xff]
    %v475 = vld [vmem:[%s1 + $0xe08] sm:$0xff]
    %v476 = vld [vmem:[%s1 + $0xe10] sm:$0xff]
    %v477 = vld [vmem:[%s1 + $0xe18] sm:$0xff]
    %v478 = vld [vmem:[%s1 + $0xe20] sm:$0xff]
    %v479 = vld [vmem:[%s1 + $0xe28] sm:$0xff]
    %v480 = vld [vmem:[%s1 + $0xe30] sm:$0xff]
    %v481 = vld [vmem:[%s1 + $0xe38] sm:$0xff]
    %v482 = vld [vmem:[%s1 + $0xe40] sm:$0xff]
    %v483 = vld [vmem:[%s1 + $0xe48] sm:$0xff]
    %v484 = vld [vmem:[%s1 + $0xe50] sm:$0xff]
    %v485 = vld [vmem:[%s1 + $0xe58] sm:$0xff]
    %v486 = vld [vmem:[%s1 + $0xe60] sm:$0xff]
    %v487 = vld [vmem:[%s1 + $0xe68] sm:$0xff]
    %v488 = vld [vmem:[%s1 + $0xe70] sm:$0xff]
    %v489 = vld [vmem:[%s1 + $0xe78] sm:$0xff]
    %v490 = vld [vmem:[%s1 + $0xe80] sm:$0xff]
    %v491 = vld [vmem:[%s1 + $0xe88] sm:$0xff]
    %v492 = vld [vmem:[%s1 + $0xe90] sm:$0xff]
    %v493 = vld [vmem:[%s1 + $0xe98] sm:$0xff]
    %v494 = vld [vmem:[%s1 + $0xea0] sm:$0xff]
    %v495 = vld [vmem:[%s1 + $0xea8] sm:$0xff]
    %v496 = vld [vmem:[%s1 + $0xeb0] sm:$0xff]
    %v497 = vld [vmem:[%s1 + $0xeb8] sm:$0xff]
    %v498 = vld [vmem:[%s1 + $0xec0] sm:$0xff]
    %v499 = vld [vmem:[%s1 + $0xec8] sm:$0xff]
    %v500 = vld [vmem:[%s1 + $0xed0] sm:$0xff]
    %v501 = vld [vmem:[%s1 + $0xed8] sm:$0xff]
    %v502 = vld [vmem:[%s1 + $0xee0] sm:$0xff]
    %v503 = vld [vmem:[%s1 + $0xee8] sm:$0xff]
    %v504 = vld [vmem:[%s1 + $0xef0] sm:$0xff]
    %v505 = vld [vmem:[%s1 + $0xef8] sm:$0xff]
    %v506 = vld [vmem:[%s1 + $0xf00] sm:$0xff]
    %v507 = vld [vmem:[%s1 + $0xf08] sm:$0xff]
    %v508 = vld [vmem:[%s1 + $0xf10] sm:$0xff]
    %v509 = vld [vmem:[%s1 + $0xf18] sm:$0xff]
    %v510 = vld [vmem:[%s1 + $0xf20] sm:$0xff]
    %v511 = vld [vmem:[%s1 + $0xf28] sm:$0xff]
    %v512 = vld [vmem:[%s1 + $0xf30] sm:$0xff]
    %v513 = vld [vmem:[%s1 + $0xf38] sm:$0xff]
    %v514 = vld [vmem:[%s1 + $0xf40] sm:$0xff]
    %v515 = vld [vmem:[%s1 + $0xf48] sm:$0xff]
    %v516 = vld [vmem:[%s1 + $0xf50] sm:$0xff]
    %v517 = vld [vmem:[%s1 + $0xf58] sm:$0xff]
    %v518 = vld [vmem:[%s1 + $0xf60] sm:$0xff]
    %v519 = vld [vmem:[%s1 + $0xf68] sm:$0xff]
    %v520 = vld [vmem:[%s1 + $0xf70] sm:$0xff]
    %v521 = vld [vmem:[%s1 + $0xf78] sm:$0xff]
    %v522 = vld [vmem:[%s1 + $0xf80] sm:$0xff]
    %v523 = vld [vmem:[%s1 + $0xf88] sm:$0xff]
    %v524 = vld [vmem:[%s1 + $0xf90] sm:$0xff]
    %v525 = vld [vmem:[%s1 + $0xf98] sm:$0xff]
    %v526 = vld [vmem:[%s1 + $0xfa0] sm:$0xff]
    %v527 = vld [vmem:[%s1 + $0xfa8] sm:$0xff]
    %v528 = vld [vmem:[%s1 + $0xfb0] sm:$0xff]
    %v529 = vld [vmem:[%s1 + $0xfb8] sm:$0xff]
    %v530 = vld [vmem:[%s1 + $0xfc0] sm:$0xff]
    %v531 = vld [vmem:[%s1 + $0xfc8] sm:$0xff]
    %v532 = vld [vmem:[%s1 + $0xfd0] sm:$0xff]
    %v533 = vld [vmem:[%s1 + $0xfd8] sm:$0xff]
    %v534 = vld [vmem:[%s1 + $0xfe0] sm:$0xff]
    %v535 = vld [vmem:[%s1 + $0xfe8] sm:$0xff]
    %v536 = vld [vmem:[%s1 + $0xff0] sm:$0xff]
    %v537 = vld [vmem:[%s1 + $0xff8] sm:$0xff]
    %v538 = vld [vmem:[%s2] sm:$0x3]
    %v540 = vlaneseq
    %v541 = vshrl.u32 %v540, 7
    %v542 = vsub.s32 0, %v541
    %v543 = vrot.slane %v538, %v542
    %v544 = vlaneseq
    %v545 = vshrl.u32 %v544, 7
    %v546 = vsub.s32 1, %v545
    %v547 = vrot.slane %v538, %v546
    %v554 = vcombine.high %v22, %v22
    %v556 = vunpack.c.l.s4 1966171168
    %v557 = vunpack.c.0.s8 %v556
    %v558 = vlaneseq
    %v559 = vshrl.u32 %v558, 7
    %v560 = vsub.s32 %v557, %v559
    %v561 = vrot.slane %v22, %v560
    %v563 = vunpack.c.l.s4 1966171168
    %v564 = vunpack.c.0.s8 %v563
    %v565 = vlaneseq
    %v566 = vshrl.u32 %v565, 7
    %v567 = vsub.s32 %v564, %v566
    %v568 = vrot.slane %v554, %v567
    %v569 = vcombine.high %v561, %v561
    %v570 = vcombine.high %v568, %v568
    %v572 = vunpack.c.l.s4 1966171168
    %v573 = vunpack.c.0.s8 %v572
    %v574 = vlaneseq
    %v575 = vshrl.u32 %v574, 7
    %v576 = vsub.s32 %v573, %v575
    %v577 = vrot.slane %v561, %v576
    %v579 = vunpack.c.l.s4 1966171168
    %v580 = vunpack.c.0.s8 %v579
    %v581 = vlaneseq
    %v582 = vshrl.u32 %v581, 7
    %v583 = vsub.s32 %v580, %v582
    %v584 = vrot.slane %v568, %v583
    %v586 = vunpack.c.l.s4 1966171168
    %v587 = vunpack.c.0.s8 %v586
    %v588 = vlaneseq
    %v589 = vshrl.u32 %v588, 7
    %v590 = vsub.s32 %v587, %v589
    %v591 = vrot.slane %v569, %v590
    %v593 = vunpack.c.l.s4 1966171168
    %v594 = vunpack.c.0.s8 %v593
    %v595 = vlaneseq
    %v596 = vshrl.u32 %v595, 7
    %v597 = vsub.s32 %v594, %v596
    %v598 = vrot.slane %v570, %v597
    %v599 = vcombine.high %v577, %v577
    %v600 = vcombine.high %v584, %v584
    %v601 = vcombine.high %v591, %v591
    %v602 = vcombine.high %v598, %v598
    %v603 = vcombine.high %v23, %v23
    %v605 = vunpack.c.l.s4 1966171168
    %v606 = vunpack.c.0.s8 %v605
    %v607 = vlaneseq
    %v608 = vshrl.u32 %v607, 7
    %v609 = vsub.s32 %v606, %v608
    %v610 = vrot.slane %v23, %v609
    %v612 = vunpack.c.l.s4 1966171168
    %v613 = vunpack.c.0.s8 %v612
    %v614 = vlaneseq
    %v615 = vshrl.u32 %v614, 7
    %v616 = vsub.s32 %v613, %v615
    %v617 = vrot.slane %v603, %v616
    %v618 = vcombine.high %v610, %v610
    %v619 = vcombine.high %v617, %v617
    %v621 = vunpack.c.l.s4 1966171168
    %v622 = vunpack.c.0.s8 %v621
    %v623 = vlaneseq
    %v624 = vshrl.u32 %v623, 7
    %v625 = vsub.s32 %v622, %v624
    %v626 = vrot.slane %v610, %v625
    %v628 = vunpack.c.l.s4 1966171168
    %v629 = vunpack.c.0.s8 %v628
    %v630 = vlaneseq
    %v631 = vshrl.u32 %v630, 7
    %v632 = vsub.s32 %v629, %v631
    %v633 = vrot.slane %v617, %v632
    %v635 = vunpack.c.l.s4 1966171168
    %v636 = vunpack.c.0.s8 %v635
    %v637 = vlaneseq
    %v638 = vshrl.u32 %v637, 7
    %v639 = vsub.s32 %v636, %v638
    %v640 = vrot.slane %v618, %v639
    %v642 = vunpack.c.l.s4 1966171168
    %v643 = vunpack.c.0.s8 %v642
    %v644 = vlaneseq
    %v645 = vshrl.u32 %v644, 7
    %v646 = vsub.s32 %v643, %v645
    %v647 = vrot.slane %v619, %v646
    %v648 = vcombine.high %v626, %v626
    %v649 = vcombine.high %v633, %v633
    %v650 = vcombine.high %v640, %v640
    %v651 = vcombine.high %v647, %v647
    %v652 = vcombine.high %v24, %v24
    %v654 = vunpack.c.l.s4 1966171168
    %v655 = vunpack.c.0.s8 %v654
    %v656 = vlaneseq
    %v657 = vshrl.u32 %v656, 7
    %v658 = vsub.s32 %v655, %v657
    %v659 = vrot.slane %v24, %v658
    %v661 = vunpack.c.l.s4 1966171168
    %v662 = vunpack.c.0.s8 %v661
    %v663 = vlaneseq
    %v664 = vshrl.u32 %v663, 7
    %v665 = vsub.s32 %v662, %v664
    %v666 = vrot.slane %v652, %v665
    %v667 = vcombine.high %v659, %v659
    %v668 = vcombine.high %v666, %v666
    %v670 = vunpack.c.l.s4 1966171168
    %v671 = vunpack.c.0.s8 %v670
    %v672 = vlaneseq
    %v673 = vshrl.u32 %v672, 7
    %v674 = vsub.s32 %v671, %v673
    %v675 = vrot.slane %v659, %v674
    %v677 = vunpack.c.l.s4 1966171168
    %v678 = vunpack.c.0.s8 %v677
    %v679 = vlaneseq
    %v680 = vshrl.u32 %v679, 7
    %v681 = vsub.s32 %v678, %v680
    %v682 = vrot.slane %v666, %v681
    %v684 = vunpack.c.l.s4 1966171168
    %v685 = vunpack.c.0.s8 %v684
    %v686 = vlaneseq
    %v687 = vshrl.u32 %v686, 7
    %v688 = vsub.s32 %v685, %v687
    %v689 = vrot.slane %v667, %v688
    %v691 = vunpack.c.l.s4 1966171168
    %v692 = vunpack.c.0.s8 %v691
    %v693 = vlaneseq
    %v694 = vshrl.u32 %v693, 7
    %v695 = vsub.s32 %v692, %v694
    %v696 = vrot.slane %v668, %v695
    %v697 = vcombine.high %v675, %v675
    %v698 = vcombine.high %v682, %v682
    %v699 = vcombine.high %v689, %v689
    %v700 = vcombine.high %v696, %v696
    %v701 = vcombine.high %v25, %v25
    %v703 = vunpack.c.l.s4 1966171168
    %v704 = vunpack.c.0.s8 %v703
    %v705 = vlaneseq
    %v706 = vshrl.u32 %v705, 7
    %v707 = vsub.s32 %v704, %v706
    %v708 = vrot.slane %v25, %v707
    %v710 = vunpack.c.l.s4 1966171168
    %v711 = vunpack.c.0.s8 %v710
    %v712 = vlaneseq
    %v713 = vshrl.u32 %v712, 7
    %v714 = vsub.s32 %v711, %v713
    %v715 = vrot.slane %v701, %v714
    %v716 = vcombine.high %v708, %v708
    %v717 = vcombine.high %v715, %v715
    %v719 = vunpack.c.l.s4 1966171168
    %v720 = vunpack.c.0.s8 %v719
    %v721 = vlaneseq
    %v722 = vshrl.u32 %v721, 7
    %v723 = vsub.s32 %v720, %v722
    %v724 = vrot.slane %v708, %v723
    %v726 = vunpack.c.l.s4 1966171168
    %v727 = vunpack.c.0.s8 %v726
    %v728 = vlaneseq
    %v729 = vshrl.u32 %v728, 7
    %v730 = vsub.s32 %v727, %v729
    %v731 = vrot.slane %v715, %v730
    %v733 = vunpack.c.l.s4 1966171168
    %v734 = vunpack.c.0.s8 %v733
    %v735 = vlaneseq
    %v736 = vshrl.u32 %v735, 7
    %v737 = vsub.s32 %v734, %v736
    %v738 = vrot.slane %v716, %v737
    %v740 = vunpack.c.l.s4 1966171168
    %v741 = vunpack.c.0.s8 %v740
    %v742 = vlaneseq
    %v743 = vshrl.u32 %v742, 7
    %v744 = vsub.s32 %v741, %v743
    %v745 = vrot.slane %v717, %v744
    %v746 = vcombine.high %v724, %v724
    %v747 = vcombine.high %v731, %v731
    %v748 = vcombine.high %v738, %v738
    %v749 = vcombine.high %v745, %v745
    %v1294 = vunpack.c.l.b16 %v26
    %v1295 = vunpack.c.h.b16 %v26
    %v1296 = vunpack.c.l.b16 %v27
    %v1297 = vunpack.c.h.b16 %v27
    %v1298 = vunpack.c.l.b16 %v28
    %v1299 = vunpack.c.h.b16 %v28
    %v1300 = vunpack.c.l.b16 %v29
    %v1301 = vunpack.c.h.b16 %v29
    %v1302 = vunpack.c.l.b16 %v30
    %v1303 = vunpack.c.h.b16 %v30
    %v1304 = vunpack.c.l.b16 %v31
    %v1305 = vunpack.c.h.b16 %v31
    %v1306 = vunpack.c.l.b16 %v32
    %v1307 = vunpack.c.h.b16 %v32
    %v1308 = vunpack.c.l.b16 %v33
    %v1309 = vunpack.c.h.b16 %v33
    %v1310 = vunpack.c.l.b16 %v34
    %v1311 = vunpack.c.h.b16 %v34
    %v1312 = vunpack.c.l.b16 %v35
    %v1313 = vunpack.c.h.b16 %v35
    %v1314 = vunpack.c.l.b16 %v36
    %v1315 = vunpack.c.h.b16 %v36
    %v1316 = vunpack.c.l.b16 %v37
    %v1317 = vunpack.c.h.b16 %v37
    %v1318 = vunpack.c.l.b16 %v38
    %v1319 = vunpack.c.h.b16 %v38
    %v1320 = vunpack.c.l.b16 %v39
    %v1321 = vunpack.c.h.b16 %v39
    %v1322 = vunpack.c.l.b16 %v40
    %v1323 = vunpack.c.h.b16 %v40
    %v1324 = vunpack.c.l.b16 %v41
    %v1325 = vunpack.c.h.b16 %v41
    %v1326 = vunpack.c.l.b16 %v42
    %v1327 = vunpack.c.h.b16 %v42
    %v1328 = vunpack.c.l.b16 %v43
    %v1329 = vunpack.c.h.b16 %v43
    %v1330 = vunpack.c.l.b16 %v44
    %v1331 = vunpack.c.h.b16 %v44
    %v1332 = vunpack.c.l.b16 %v45
    %v1333 = vunpack.c.h.b16 %v45
    %v1334 = vunpack.c.l.b16 %v46
    %v1335 = vunpack.c.h.b16 %v46
    %v1336 = vunpack.c.l.b16 %v47
    %v1337 = vunpack.c.h.b16 %v47
    %v1338 = vunpack.c.l.b16 %v48
    %v1339 = vunpack.c.h.b16 %v48
    %v1340 = vunpack.c.l.b16 %v49
    %v1341 = vunpack.c.h.b16 %v49
    %v1342 = vunpack.c.l.b16 %v50
    %v1343 = vunpack.c.h.b16 %v50
    %v1344 = vunpack.c.l.b16 %v51
    %v1345 = vunpack.c.h.b16 %v51
    %v1346 = vunpack.c.l.b16 %v52
    %v1347 = vunpack.c.h.b16 %v52
    %v1348 = vunpack.c.l.b16 %v53
    %v1349 = vunpack.c.h.b16 %v53
    %v1350 = vunpack.c.l.b16 %v54
    %v1351 = vunpack.c.h.b16 %v54
    %v1352 = vunpack.c.l.b16 %v55
    %v1353 = vunpack.c.h.b16 %v55
    %v1354 = vunpack.c.l.b16 %v56
    %v1355 = vunpack.c.h.b16 %v56
    %v1356 = vunpack.c.l.b16 %v57
    %v1357 = vunpack.c.h.b16 %v57
    %v1358 = vunpack.c.l.b16 %v58
    %v1359 = vunpack.c.h.b16 %v58
    %v1360 = vunpack.c.l.b16 %v59
    %v1361 = vunpack.c.h.b16 %v59
    %v1362 = vunpack.c.l.b16 %v60
    %v1363 = vunpack.c.h.b16 %v60
    %v1364 = vunpack.c.l.b16 %v61
    %v1365 = vunpack.c.h.b16 %v61
    %v1366 = vunpack.c.l.b16 %v62
    %v1367 = vunpack.c.h.b16 %v62
    %v1368 = vunpack.c.l.b16 %v63
    %v1369 = vunpack.c.h.b16 %v63
    %v1370 = vunpack.c.l.b16 %v64
    %v1371 = vunpack.c.h.b16 %v64
    %v1372 = vunpack.c.l.b16 %v65
    %v1373 = vunpack.c.h.b16 %v65
    %v1374 = vunpack.c.l.b16 %v66
    %v1375 = vunpack.c.h.b16 %v66
    %v1376 = vunpack.c.l.b16 %v67
    %v1377 = vunpack.c.h.b16 %v67
    %v1378 = vunpack.c.l.b16 %v68
    %v1379 = vunpack.c.h.b16 %v68
    %v1380 = vunpack.c.l.b16 %v69
    %v1381 = vunpack.c.h.b16 %v69
    %v1382 = vunpack.c.l.b16 %v70
    %v1383 = vunpack.c.h.b16 %v70
    %v1384 = vunpack.c.l.b16 %v71
    %v1385 = vunpack.c.h.b16 %v71
    %v1386 = vunpack.c.l.b16 %v72
    %v1387 = vunpack.c.h.b16 %v72
    %v1388 = vunpack.c.l.b16 %v73
    %v1389 = vunpack.c.h.b16 %v73
    %v1390 = vunpack.c.l.b16 %v74
    %v1391 = vunpack.c.h.b16 %v74
    %v1392 = vunpack.c.l.b16 %v75
    %v1393 = vunpack.c.h.b16 %v75
    %v1394 = vunpack.c.l.b16 %v76
    %v1395 = vunpack.c.h.b16 %v76
    %v1396 = vunpack.c.l.b16 %v77
    %v1397 = vunpack.c.h.b16 %v77
    %v1398 = vunpack.c.l.b16 %v78
    %v1399 = vunpack.c.h.b16 %v78
    %v1400 = vunpack.c.l.b16 %v79
    %v1401 = vunpack.c.h.b16 %v79
    %v1402 = vunpack.c.l.b16 %v80
    %v1403 = vunpack.c.h.b16 %v80
    %v1404 = vunpack.c.l.b16 %v81
    %v1405 = vunpack.c.h.b16 %v81
    %v1406 = vunpack.c.l.b16 %v82
    %v1407 = vunpack.c.h.b16 %v82
    %v1408 = vunpack.c.l.b16 %v83
    %v1409 = vunpack.c.h.b16 %v83
    %v1410 = vunpack.c.l.b16 %v84
    %v1411 = vunpack.c.h.b16 %v84
    %v1412 = vunpack.c.l.b16 %v85
    %v1413 = vunpack.c.h.b16 %v85
    %v1414 = vunpack.c.l.b16 %v86
    %v1415 = vunpack.c.h.b16 %v86
    %v1416 = vunpack.c.l.b16 %v87
    %v1417 = vunpack.c.h.b16 %v87
    %v1418 = vunpack.c.l.b16 %v88
    %v1419 = vunpack.c.h.b16 %v88
    %v1420 = vunpack.c.l.b16 %v89
    %v1421 = vunpack.c.h.b16 %v89
    %v1422 = vunpack.c.l.b16 %v90
    %v1423 = vunpack.c.h.b16 %v90
    %v1424 = vunpack.c.l.b16 %v91
    %v1425 = vunpack.c.h.b16 %v91
    %v1426 = vunpack.c.l.b16 %v92
    %v1427 = vunpack.c.h.b16 %v92
    %v1428 = vunpack.c.l.b16 %v93
    %v1429 = vunpack.c.h.b16 %v93
    %v1430 = vunpack.c.l.b16 %v94
    %v1431 = vunpack.c.h.b16 %v94
    %v1432 = vunpack.c.l.b16 %v95
    %v1433 = vunpack.c.h.b16 %v95
    %v1434 = vunpack.c.l.b16 %v96
    %v1435 = vunpack.c.h.b16 %v96
    %v1436 = vunpack.c.l.b16 %v97
    %v1437 = vunpack.c.h.b16 %v97
    %v1438 = vunpack.c.l.b16 %v98
    %v1439 = vunpack.c.h.b16 %v98
    %v1440 = vunpack.c.l.b16 %v99
    %v1441 = vunpack.c.h.b16 %v99
    %v1442 = vunpack.c.l.b16 %v100
    %v1443 = vunpack.c.h.b16 %v100
    %v1444 = vunpack.c.l.b16 %v101
    %v1445 = vunpack.c.h.b16 %v101
    %v1446 = vunpack.c.l.b16 %v102
    %v1447 = vunpack.c.h.b16 %v102
    %v1448 = vunpack.c.l.b16 %v103
    %v1449 = vunpack.c.h.b16 %v103
    %v1450 = vunpack.c.l.b16 %v104
    %v1451 = vunpack.c.h.b16 %v104
    %v1452 = vunpack.c.l.b16 %v105
    %v1453 = vunpack.c.h.b16 %v105
    %v1454 = vunpack.c.l.b16 %v106
    %v1455 = vunpack.c.h.b16 %v106
    %v1456 = vunpack.c.l.b16 %v107
    %v1457 = vunpack.c.h.b16 %v107
    %v1458 = vunpack.c.l.b16 %v108
    %v1459 = vunpack.c.h.b16 %v108
    %v1460 = vunpack.c.l.b16 %v109
    %v1461 = vunpack.c.h.b16 %v109
    %v1462 = vunpack.c.l.b16 %v110
    %v1463 = vunpack.c.h.b16 %v110
    %v1464 = vunpack.c.l.b16 %v111
    %v1465 = vunpack.c.h.b16 %v111
    %v1466 = vunpack.c.l.b16 %v112
    %v1467 = vunpack.c.h.b16 %v112
    %v1468 = vunpack.c.l.b16 %v113
    %v1469 = vunpack.c.h.b16 %v113
    %v1470 = vunpack.c.l.b16 %v114
    %v1471 = vunpack.c.h.b16 %v114
    %v1472 = vunpack.c.l.b16 %v115
    %v1473 = vunpack.c.h.b16 %v115
    %v1474 = vunpack.c.l.b16 %v116
    %v1475 = vunpack.c.h.b16 %v116
    %v1476 = vunpack.c.l.b16 %v117
    %v1477 = vunpack.c.h.b16 %v117
    %v1478 = vunpack.c.l.b16 %v118
    %v1479 = vunpack.c.h.b16 %v118
    %v1480 = vunpack.c.l.b16 %v119
    %v1481 = vunpack.c.h.b16 %v119
    %v1482 = vunpack.c.l.b16 %v120
    %v1483 = vunpack.c.h.b16 %v120
    %v1484 = vunpack.c.l.b16 %v121
    %v1485 = vunpack.c.h.b16 %v121
    %v1486 = vunpack.c.l.b16 %v122
    %v1487 = vunpack.c.h.b16 %v122
    %v1488 = vunpack.c.l.b16 %v123
    %v1489 = vunpack.c.h.b16 %v123
    %v1490 = vunpack.c.l.b16 %v124
    %v1491 = vunpack.c.h.b16 %v124
    %v1492 = vunpack.c.l.b16 %v125
    %v1493 = vunpack.c.h.b16 %v125
    %v1494 = vunpack.c.l.b16 %v126
    %v1495 = vunpack.c.h.b16 %v126
    %v1496 = vunpack.c.l.b16 %v127
    %v1497 = vunpack.c.h.b16 %v127
    %v1498 = vunpack.c.l.b16 %v128
    %v1499 = vunpack.c.h.b16 %v128
    %v1500 = vunpack.c.l.b16 %v129
    %v1501 = vunpack.c.h.b16 %v129
    %v1502 = vunpack.c.l.b16 %v130
    %v1503 = vunpack.c.h.b16 %v130
    %v1504 = vunpack.c.l.b16 %v131
    %v1505 = vunpack.c.h.b16 %v131
    %v1506 = vunpack.c.l.b16 %v132
    %v1507 = vunpack.c.h.b16 %v132
    %v1508 = vunpack.c.l.b16 %v133
    %v1509 = vunpack.c.h.b16 %v133
    %v1510 = vunpack.c.l.b16 %v134
    %v1511 = vunpack.c.h.b16 %v134
    %v1512 = vunpack.c.l.b16 %v135
    %v1513 = vunpack.c.h.b16 %v135
    %v1514 = vunpack.c.l.b16 %v136
    %v1515 = vunpack.c.h.b16 %v136
    %v1516 = vunpack.c.l.b16 %v137
    %v1517 = vunpack.c.h.b16 %v137
    %v1518 = vunpack.c.l.b16 %v138
    %v1519 = vunpack.c.h.b16 %v138
    %v1520 = vunpack.c.l.b16 %v139
    %v1521 = vunpack.c.h.b16 %v139
    %v1522 = vunpack.c.l.b16 %v140
    %v1523 = vunpack.c.h.b16 %v140
    %v1524 = vunpack.c.l.b16 %v141
    %v1525 = vunpack.c.h.b16 %v141
    %v1526 = vunpack.c.l.b16 %v142
    %v1527 = vunpack.c.h.b16 %v142
    %v1528 = vunpack.c.l.b16 %v143
    %v1529 = vunpack.c.h.b16 %v143
    %v1530 = vunpack.c.l.b16 %v144
    %v1531 = vunpack.c.h.b16 %v144
    %v1532 = vunpack.c.l.b16 %v145
    %v1533 = vunpack.c.h.b16 %v145
    %v1534 = vunpack.c.l.b16 %v146
    %v1535 = vunpack.c.h.b16 %v146
    %v1536 = vunpack.c.l.b16 %v147
    %v1537 = vunpack.c.h.b16 %v147
    %v1538 = vunpack.c.l.b16 %v148
    %v1539 = vunpack.c.h.b16 %v148
    %v1540 = vunpack.c.l.b16 %v149
    %v1541 = vunpack.c.h.b16 %v149
    %v1542 = vunpack.c.l.b16 %v150
    %v1543 = vunpack.c.h.b16 %v150
    %v1544 = vunpack.c.l.b16 %v151
    %v1545 = vunpack.c.h.b16 %v151
    %v1546 = vunpack.c.l.b16 %v152
    %v1547 = vunpack.c.h.b16 %v152
    %v1548 = vunpack.c.l.b16 %v153
    %v1549 = vunpack.c.h.b16 %v153
    %v1550 = vunpack.c.l.b16 %v154
    %v1551 = vunpack.c.h.b16 %v154
    %v1552 = vunpack.c.l.b16 %v155
    %v1553 = vunpack.c.h.b16 %v155
    %v1554 = vunpack.c.l.b16 %v156
    %v1555 = vunpack.c.h.b16 %v156
    %v1556 = vunpack.c.l.b16 %v157
    %v1557 = vunpack.c.h.b16 %v157
    %v1558 = vunpack.c.l.b16 %v158
    %v1559 = vunpack.c.h.b16 %v158
    %v1560 = vunpack.c.l.b16 %v159
    %v1561 = vunpack.c.h.b16 %v159
    %v1562 = vunpack.c.l.b16 %v160
    %v1563 = vunpack.c.h.b16 %v160
    %v1564 = vunpack.c.l.b16 %v161
    %v1565 = vunpack.c.h.b16 %v161
    %v1566 = vunpack.c.l.b16 %v162
    %v1567 = vunpack.c.h.b16 %v162
    %v1568 = vunpack.c.l.b16 %v163
    %v1569 = vunpack.c.h.b16 %v163
    %v1570 = vunpack.c.l.b16 %v164
    %v1571 = vunpack.c.h.b16 %v164
    %v1572 = vunpack.c.l.b16 %v165
    %v1573 = vunpack.c.h.b16 %v165
    %v1574 = vunpack.c.l.b16 %v166
    %v1575 = vunpack.c.h.b16 %v166
    %v1576 = vunpack.c.l.b16 %v167
    %v1577 = vunpack.c.h.b16 %v167
    %v1578 = vunpack.c.l.b16 %v168
    %v1579 = vunpack.c.h.b16 %v168
    %v1580 = vunpack.c.l.b16 %v169
    %v1581 = vunpack.c.h.b16 %v169
    %v1582 = vunpack.c.l.b16 %v170
    %v1583 = vunpack.c.h.b16 %v170
    %v1584 = vunpack.c.l.b16 %v171
    %v1585 = vunpack.c.h.b16 %v171
    %v1586 = vunpack.c.l.b16 %v172
    %v1587 = vunpack.c.h.b16 %v172
    %v1588 = vunpack.c.l.b16 %v173
    %v1589 = vunpack.c.h.b16 %v173
    %v1590 = vunpack.c.l.b16 %v174
    %v1591 = vunpack.c.h.b16 %v174
    %v1592 = vunpack.c.l.b16 %v175
    %v1593 = vunpack.c.h.b16 %v175
    %v1594 = vunpack.c.l.b16 %v176
    %v1595 = vunpack.c.h.b16 %v176
    %v1596 = vunpack.c.l.b16 %v177
    %v1597 = vunpack.c.h.b16 %v177
    %v1598 = vunpack.c.l.b16 %v178
    %v1599 = vunpack.c.h.b16 %v178
    %v1600 = vunpack.c.l.b16 %v179
    %v1601 = vunpack.c.h.b16 %v179
    %v1602 = vunpack.c.l.b16 %v180
    %v1603 = vunpack.c.h.b16 %v180
    %v1604 = vunpack.c.l.b16 %v181
    %v1605 = vunpack.c.h.b16 %v181
    %v1606 = vunpack.c.l.b16 %v182
    %v1607 = vunpack.c.h.b16 %v182
    %v1608 = vunpack.c.l.b16 %v183
    %v1609 = vunpack.c.h.b16 %v183
    %v1610 = vunpack.c.l.b16 %v184
    %v1611 = vunpack.c.h.b16 %v184
    %v1612 = vunpack.c.l.b16 %v185
    %v1613 = vunpack.c.h.b16 %v185
    %v1614 = vunpack.c.l.b16 %v186
    %v1615 = vunpack.c.h.b16 %v186
    %v1616 = vunpack.c.l.b16 %v187
    %v1617 = vunpack.c.h.b16 %v187
    %v1618 = vunpack.c.l.b16 %v188
    %v1619 = vunpack.c.h.b16 %v188
    %v1620 = vunpack.c.l.b16 %v189
    %v1621 = vunpack.c.h.b16 %v189
    %v1622 = vunpack.c.l.b16 %v190
    %v1623 = vunpack.c.h.b16 %v190
    %v1624 = vunpack.c.l.b16 %v191
    %v1625 = vunpack.c.h.b16 %v191
    %v1626 = vunpack.c.l.b16 %v192
    %v1627 = vunpack.c.h.b16 %v192
    %v1628 = vunpack.c.l.b16 %v193
    %v1629 = vunpack.c.h.b16 %v193
    %v1630 = vunpack.c.l.b16 %v194
    %v1631 = vunpack.c.h.b16 %v194
    %v1632 = vunpack.c.l.b16 %v195
    %v1633 = vunpack.c.h.b16 %v195
    %v1634 = vunpack.c.l.b16 %v196
    %v1635 = vunpack.c.h.b16 %v196
    %v1636 = vunpack.c.l.b16 %v197
    %v1637 = vunpack.c.h.b16 %v197
    %v1638 = vunpack.c.l.b16 %v198
    %v1639 = vunpack.c.h.b16 %v198
    %v1640 = vunpack.c.l.b16 %v199
    %v1641 = vunpack.c.h.b16 %v199
    %v1642 = vunpack.c.l.b16 %v200
    %v1643 = vunpack.c.h.b16 %v200
    %v1644 = vunpack.c.l.b16 %v201
    %v1645 = vunpack.c.h.b16 %v201
    %v1646 = vunpack.c.l.b16 %v202
    %v1647 = vunpack.c.h.b16 %v202
    %v1648 = vunpack.c.l.b16 %v203
    %v1649 = vunpack.c.h.b16 %v203
    %v1650 = vunpack.c.l.b16 %v204
    %v1651 = vunpack.c.h.b16 %v204
    %v1652 = vunpack.c.l.b16 %v205
    %v1653 = vunpack.c.h.b16 %v205
    %v1654 = vunpack.c.l.b16 %v206
    %v1655 = vunpack.c.h.b16 %v206
    %v1656 = vunpack.c.l.b16 %v207
    %v1657 = vunpack.c.h.b16 %v207
    %v1658 = vunpack.c.l.b16 %v208
    %v1659 = vunpack.c.h.b16 %v208
    %v1660 = vunpack.c.l.b16 %v209
    %v1661 = vunpack.c.h.b16 %v209
    %v1662 = vunpack.c.l.b16 %v210
    %v1663 = vunpack.c.h.b16 %v210
    %v1664 = vunpack.c.l.b16 %v211
    %v1665 = vunpack.c.h.b16 %v211
    %v1666 = vunpack.c.l.b16 %v212
    %v1667 = vunpack.c.h.b16 %v212
    %v1668 = vunpack.c.l.b16 %v213
    %v1669 = vunpack.c.h.b16 %v213
    %v1670 = vunpack.c.l.b16 %v214
    %v1671 = vunpack.c.h.b16 %v214
    %v1672 = vunpack.c.l.b16 %v215
    %v1673 = vunpack.c.h.b16 %v215
    %v1674 = vunpack.c.l.b16 %v216
    %v1675 = vunpack.c.h.b16 %v216
    %v1676 = vunpack.c.l.b16 %v217
    %v1677 = vunpack.c.h.b16 %v217
    %v1678 = vunpack.c.l.b16 %v218
    %v1679 = vunpack.c.h.b16 %v218
    %v1680 = vunpack.c.l.b16 %v219
    %v1681 = vunpack.c.h.b16 %v219
    %v1682 = vunpack.c.l.b16 %v220
    %v1683 = vunpack.c.h.b16 %v220
    %v1684 = vunpack.c.l.b16 %v221
    %v1685 = vunpack.c.h.b16 %v221
    %v1686 = vunpack.c.l.b16 %v222
    %v1687 = vunpack.c.h.b16 %v222
    %v1688 = vunpack.c.l.b16 %v223
    %v1689 = vunpack.c.h.b16 %v223
    %v1690 = vunpack.c.l.b16 %v224
    %v1691 = vunpack.c.h.b16 %v224
    %v1692 = vunpack.c.l.b16 %v225
    %v1693 = vunpack.c.h.b16 %v225
    %v1694 = vunpack.c.l.b16 %v226
    %v1695 = vunpack.c.h.b16 %v226
    %v1696 = vunpack.c.l.b16 %v227
    %v1697 = vunpack.c.h.b16 %v227
    %v1698 = vunpack.c.l.b16 %v228
    %v1699 = vunpack.c.h.b16 %v228
    %v1700 = vunpack.c.l.b16 %v229
    %v1701 = vunpack.c.h.b16 %v229
    %v1702 = vunpack.c.l.b16 %v230
    %v1703 = vunpack.c.h.b16 %v230
    %v1704 = vunpack.c.l.b16 %v231
    %v1705 = vunpack.c.h.b16 %v231
    %v1706 = vunpack.c.l.b16 %v232
    %v1707 = vunpack.c.h.b16 %v232
    %v1708 = vunpack.c.l.b16 %v233
    %v1709 = vunpack.c.h.b16 %v233
    %v1710 = vunpack.c.l.b16 %v234
    %v1711 = vunpack.c.h.b16 %v234
    %v1712 = vunpack.c.l.b16 %v235
    %v1713 = vunpack.c.h.b16 %v235
    %v1714 = vunpack.c.l.b16 %v236
    %v1715 = vunpack.c.h.b16 %v236
    %v1716 = vunpack.c.l.b16 %v237
    %v1717 = vunpack.c.h.b16 %v237
    %v1718 = vunpack.c.l.b16 %v238
    %v1719 = vunpack.c.h.b16 %v238
    %v1720 = vunpack.c.l.b16 %v239
    %v1721 = vunpack.c.h.b16 %v239
    %v1722 = vunpack.c.l.b16 %v240
    %v1723 = vunpack.c.h.b16 %v240
    %v1724 = vunpack.c.l.b16 %v241
    %v1725 = vunpack.c.h.b16 %v241
    %v1726 = vunpack.c.l.b16 %v242
    %v1727 = vunpack.c.h.b16 %v242
    %v1728 = vunpack.c.l.b16 %v243
    %v1729 = vunpack.c.h.b16 %v243
    %v1730 = vunpack.c.l.b16 %v244
    %v1731 = vunpack.c.h.b16 %v244
    %v1732 = vunpack.c.l.b16 %v245
    %v1733 = vunpack.c.h.b16 %v245
    %v1734 = vunpack.c.l.b16 %v246
    %v1735 = vunpack.c.h.b16 %v246
    %v1736 = vunpack.c.l.b16 %v247
    %v1737 = vunpack.c.h.b16 %v247
    %v1738 = vunpack.c.l.b16 %v248
    %v1739 = vunpack.c.h.b16 %v248
    %v1740 = vunpack.c.l.b16 %v249
    %v1741 = vunpack.c.h.b16 %v249
    %v1742 = vunpack.c.l.b16 %v250
    %v1743 = vunpack.c.h.b16 %v250
    %v1744 = vunpack.c.l.b16 %v251
    %v1745 = vunpack.c.h.b16 %v251
    %v1746 = vunpack.c.l.b16 %v252
    %v1747 = vunpack.c.h.b16 %v252
    %v1748 = vunpack.c.l.b16 %v253
    %v1749 = vunpack.c.h.b16 %v253
    %v1750 = vunpack.c.l.b16 %v254
    %v1751 = vunpack.c.h.b16 %v254
    %v1752 = vunpack.c.l.b16 %v255
    %v1753 = vunpack.c.h.b16 %v255
    %v1754 = vunpack.c.l.b16 %v256
    %v1755 = vunpack.c.h.b16 %v256
    %v1756 = vunpack.c.l.b16 %v257
    %v1757 = vunpack.c.h.b16 %v257
    %v1758 = vunpack.c.l.b16 %v258
    %v1759 = vunpack.c.h.b16 %v258
    %v1760 = vunpack.c.l.b16 %v259
    %v1761 = vunpack.c.h.b16 %v259
    %v1762 = vunpack.c.l.b16 %v260
    %v1763 = vunpack.c.h.b16 %v260
    %v1764 = vunpack.c.l.b16 %v261
    %v1765 = vunpack.c.h.b16 %v261
    %v1766 = vunpack.c.l.b16 %v262
    %v1767 = vunpack.c.h.b16 %v262
    %v1768 = vunpack.c.l.b16 %v263
    %v1769 = vunpack.c.h.b16 %v263
    %v1770 = vunpack.c.l.b16 %v264
    %v1771 = vunpack.c.h.b16 %v264
    %v1772 = vunpack.c.l.b16 %v265
    %v1773 = vunpack.c.h.b16 %v265
    %v1774 = vunpack.c.l.b16 %v266
    %v1775 = vunpack.c.h.b16 %v266
    %v1776 = vunpack.c.l.b16 %v267
    %v1777 = vunpack.c.h.b16 %v267
    %v1778 = vunpack.c.l.b16 %v268
    %v1779 = vunpack.c.h.b16 %v268
    %v1780 = vunpack.c.l.b16 %v269
    %v1781 = vunpack.c.h.b16 %v269
    %v1782 = vunpack.c.l.b16 %v270
    %v1783 = vunpack.c.h.b16 %v270
    %v1784 = vunpack.c.l.b16 %v271
    %v1785 = vunpack.c.h.b16 %v271
    %v1786 = vunpack.c.l.b16 %v272
    %v1787 = vunpack.c.h.b16 %v272
    %v1788 = vunpack.c.l.b16 %v273
    %v1789 = vunpack.c.h.b16 %v273
    %v1790 = vunpack.c.l.b16 %v274
    %v1791 = vunpack.c.h.b16 %v274
    %v1792 = vunpack.c.l.b16 %v275
    %v1793 = vunpack.c.h.b16 %v275
    %v1794 = vunpack.c.l.b16 %v276
    %v1795 = vunpack.c.h.b16 %v276
    %v1796 = vunpack.c.l.b16 %v277
    %v1797 = vunpack.c.h.b16 %v277
    %v1798 = vunpack.c.l.b16 %v278
    %v1799 = vunpack.c.h.b16 %v278
    %v1800 = vunpack.c.l.b16 %v279
    %v1801 = vunpack.c.h.b16 %v279
    %v1802 = vunpack.c.l.b16 %v280
    %v1803 = vunpack.c.h.b16 %v280
    %v1804 = vunpack.c.l.b16 %v281
    %v1805 = vunpack.c.h.b16 %v281
    %v1806 = vunpack.c.l.b16 %v282
    %v1807 = vunpack.c.h.b16 %v282
    %v1808 = vunpack.c.l.b16 %v283
    %v1809 = vunpack.c.h.b16 %v283
    %v1810 = vunpack.c.l.b16 %v284
    %v1811 = vunpack.c.h.b16 %v284
    %v1812 = vunpack.c.l.b16 %v285
    %v1813 = vunpack.c.h.b16 %v285
    %v1814 = vunpack.c.l.b16 %v286
    %v1815 = vunpack.c.h.b16 %v286
    %v1816 = vunpack.c.l.b16 %v287
    %v1817 = vunpack.c.h.b16 %v287
    %v1818 = vunpack.c.l.b16 %v288
    %v1819 = vunpack.c.h.b16 %v288
    %v1820 = vunpack.c.l.b16 %v289
    %v1821 = vunpack.c.h.b16 %v289
    %v1822 = vunpack.c.l.b16 %v290
    %v1823 = vunpack.c.h.b16 %v290
    %v1824 = vunpack.c.l.b16 %v291
    %v1825 = vunpack.c.h.b16 %v291
    %v1826 = vunpack.c.l.b16 %v292
    %v1827 = vunpack.c.h.b16 %v292
    %v1828 = vunpack.c.l.b16 %v293
    %v1829 = vunpack.c.h.b16 %v293
    %v1830 = vunpack.c.l.b16 %v294
    %v1831 = vunpack.c.h.b16 %v294
    %v1832 = vunpack.c.l.b16 %v295
    %v1833 = vunpack.c.h.b16 %v295
    %v1834 = vunpack.c.l.b16 %v296
    %v1835 = vunpack.c.h.b16 %v296
    %v1836 = vunpack.c.l.b16 %v297
    %v1837 = vunpack.c.h.b16 %v297
    %v1838 = vunpack.c.l.b16 %v298
    %v1839 = vunpack.c.h.b16 %v298
    %v1840 = vunpack.c.l.b16 %v299
    %v1841 = vunpack.c.h.b16 %v299
    %v1842 = vunpack.c.l.b16 %v300
    %v1843 = vunpack.c.h.b16 %v300
    %v1844 = vunpack.c.l.b16 %v301
    %v1845 = vunpack.c.h.b16 %v301
    %v1846 = vunpack.c.l.b16 %v302
    %v1847 = vunpack.c.h.b16 %v302
    %v1848 = vunpack.c.l.b16 %v303
    %v1849 = vunpack.c.h.b16 %v303
    %v1850 = vunpack.c.l.b16 %v304
    %v1851 = vunpack.c.h.b16 %v304
    %v1852 = vunpack.c.l.b16 %v305
    %v1853 = vunpack.c.h.b16 %v305
    %v1854 = vunpack.c.l.b16 %v306
    %v1855 = vunpack.c.h.b16 %v306
    %v1856 = vunpack.c.l.b16 %v307
    %v1857 = vunpack.c.h.b16 %v307
    %v1858 = vunpack.c.l.b16 %v308
    %v1859 = vunpack.c.h.b16 %v308
    %v1860 = vunpack.c.l.b16 %v309
    %v1861 = vunpack.c.h.b16 %v309
    %v1862 = vunpack.c.l.b16 %v310
    %v1863 = vunpack.c.h.b16 %v310
    %v1864 = vunpack.c.l.b16 %v311
    %v1865 = vunpack.c.h.b16 %v311
    %v1866 = vunpack.c.l.b16 %v312
    %v1867 = vunpack.c.h.b16 %v312
    %v1868 = vunpack.c.l.b16 %v313
    %v1869 = vunpack.c.h.b16 %v313
    %v1870 = vunpack.c.l.b16 %v314
    %v1871 = vunpack.c.h.b16 %v314
    %v1872 = vunpack.c.l.b16 %v315
    %v1873 = vunpack.c.h.b16 %v315
    %v1874 = vunpack.c.l.b16 %v316
    %v1875 = vunpack.c.h.b16 %v316
    %v1876 = vunpack.c.l.b16 %v317
    %v1877 = vunpack.c.h.b16 %v317
    %v1878 = vunpack.c.l.b16 %v318
    %v1879 = vunpack.c.h.b16 %v318
    %v1880 = vunpack.c.l.b16 %v319
    %v1881 = vunpack.c.h.b16 %v319
    %v1882 = vunpack.c.l.b16 %v320
    %v1883 = vunpack.c.h.b16 %v320
    %v1884 = vunpack.c.l.b16 %v321
    %v1885 = vunpack.c.h.b16 %v321
    %v1886 = vunpack.c.l.b16 %v322
    %v1887 = vunpack.c.h.b16 %v322
    %v1888 = vunpack.c.l.b16 %v323
    %v1889 = vunpack.c.h.b16 %v323
    %v1890 = vunpack.c.l.b16 %v324
    %v1891 = vunpack.c.h.b16 %v324
    %v1892 = vunpack.c.l.b16 %v325
    %v1893 = vunpack.c.h.b16 %v325
    %v1894 = vunpack.c.l.b16 %v326
    %v1895 = vunpack.c.h.b16 %v326
    %v1896 = vunpack.c.l.b16 %v327
    %v1897 = vunpack.c.h.b16 %v327
    %v1898 = vunpack.c.l.b16 %v328
    %v1899 = vunpack.c.h.b16 %v328
    %v1900 = vunpack.c.l.b16 %v329
    %v1901 = vunpack.c.h.b16 %v329
    %v1902 = vunpack.c.l.b16 %v330
    %v1903 = vunpack.c.h.b16 %v330
    %v1904 = vunpack.c.l.b16 %v331
    %v1905 = vunpack.c.h.b16 %v331
    %v1906 = vunpack.c.l.b16 %v332
    %v1907 = vunpack.c.h.b16 %v332
    %v1908 = vunpack.c.l.b16 %v333
    %v1909 = vunpack.c.h.b16 %v333
    %v1910 = vunpack.c.l.b16 %v334
    %v1911 = vunpack.c.h.b16 %v334
    %v1912 = vunpack.c.l.b16 %v335
    %v1913 = vunpack.c.h.b16 %v335
    %v1914 = vunpack.c.l.b16 %v336
    %v1915 = vunpack.c.h.b16 %v336
    %v1916 = vunpack.c.l.b16 %v337
    %v1917 = vunpack.c.h.b16 %v337
    %v1918 = vunpack.c.l.b16 %v338
    %v1919 = vunpack.c.h.b16 %v338
    %v1920 = vunpack.c.l.b16 %v339
    %v1921 = vunpack.c.h.b16 %v339
    %v1922 = vunpack.c.l.b16 %v340
    %v1923 = vunpack.c.h.b16 %v340
    %v1924 = vunpack.c.l.b16 %v341
    %v1925 = vunpack.c.h.b16 %v341
    %v1926 = vunpack.c.l.b16 %v342
    %v1927 = vunpack.c.h.b16 %v342
    %v1928 = vunpack.c.l.b16 %v343
    %v1929 = vunpack.c.h.b16 %v343
    %v1930 = vunpack.c.l.b16 %v344
    %v1931 = vunpack.c.h.b16 %v344
    %v1932 = vunpack.c.l.b16 %v345
    %v1933 = vunpack.c.h.b16 %v345
    %v1934 = vunpack.c.l.b16 %v346
    %v1935 = vunpack.c.h.b16 %v346
    %v1936 = vunpack.c.l.b16 %v347
    %v1937 = vunpack.c.h.b16 %v347
    %v1938 = vunpack.c.l.b16 %v348
    %v1939 = vunpack.c.h.b16 %v348
    %v1940 = vunpack.c.l.b16 %v349
    %v1941 = vunpack.c.h.b16 %v349
    %v1942 = vunpack.c.l.b16 %v350
    %v1943 = vunpack.c.h.b16 %v350
    %v1944 = vunpack.c.l.b16 %v351
    %v1945 = vunpack.c.h.b16 %v351
    %v1946 = vunpack.c.l.b16 %v352
    %v1947 = vunpack.c.h.b16 %v352
    %v1948 = vunpack.c.l.b16 %v353
    %v1949 = vunpack.c.h.b16 %v353
    %v1950 = vunpack.c.l.b16 %v354
    %v1951 = vunpack.c.h.b16 %v354
    %v1952 = vunpack.c.l.b16 %v355
    %v1953 = vunpack.c.h.b16 %v355
    %v1954 = vunpack.c.l.b16 %v356
    %v1955 = vunpack.c.h.b16 %v356
    %v1956 = vunpack.c.l.b16 %v357
    %v1957 = vunpack.c.h.b16 %v357
    %v1958 = vunpack.c.l.b16 %v358
    %v1959 = vunpack.c.h.b16 %v358
    %v1960 = vunpack.c.l.b16 %v359
    %v1961 = vunpack.c.h.b16 %v359
    %v1962 = vunpack.c.l.b16 %v360
    %v1963 = vunpack.c.h.b16 %v360
    %v1964 = vunpack.c.l.b16 %v361
    %v1965 = vunpack.c.h.b16 %v361
    %v1966 = vunpack.c.l.b16 %v362
    %v1967 = vunpack.c.h.b16 %v362
    %v1968 = vunpack.c.l.b16 %v363
    %v1969 = vunpack.c.h.b16 %v363
    %v1970 = vunpack.c.l.b16 %v364
    %v1971 = vunpack.c.h.b16 %v364
    %v1972 = vunpack.c.l.b16 %v365
    %v1973 = vunpack.c.h.b16 %v365
    %v1974 = vunpack.c.l.b16 %v366
    %v1975 = vunpack.c.h.b16 %v366
    %v1976 = vunpack.c.l.b16 %v367
    %v1977 = vunpack.c.h.b16 %v367
    %v1978 = vunpack.c.l.b16 %v368
    %v1979 = vunpack.c.h.b16 %v368
    %v1980 = vunpack.c.l.b16 %v369
    %v1981 = vunpack.c.h.b16 %v369
    %v1982 = vunpack.c.l.b16 %v370
    %v1983 = vunpack.c.h.b16 %v370
    %v1984 = vunpack.c.l.b16 %v371
    %v1985 = vunpack.c.h.b16 %v371
    %v1986 = vunpack.c.l.b16 %v372
    %v1987 = vunpack.c.h.b16 %v372
    %v1988 = vunpack.c.l.b16 %v373
    %v1989 = vunpack.c.h.b16 %v373
    %v1990 = vunpack.c.l.b16 %v374
    %v1991 = vunpack.c.h.b16 %v374
    %v1992 = vunpack.c.l.b16 %v375
    %v1993 = vunpack.c.h.b16 %v375
    %v1994 = vunpack.c.l.b16 %v376
    %v1995 = vunpack.c.h.b16 %v376
    %v1996 = vunpack.c.l.b16 %v377
    %v1997 = vunpack.c.h.b16 %v377
    %v1998 = vunpack.c.l.b16 %v378
    %v1999 = vunpack.c.h.b16 %v378
    %v2000 = vunpack.c.l.b16 %v379
    %v2001 = vunpack.c.h.b16 %v379
    %v2002 = vunpack.c.l.b16 %v380
    %v2003 = vunpack.c.h.b16 %v380
    %v2004 = vunpack.c.l.b16 %v381
    %v2005 = vunpack.c.h.b16 %v381
    %v2006 = vunpack.c.l.b16 %v382
    %v2007 = vunpack.c.h.b16 %v382
    %v2008 = vunpack.c.l.b16 %v383
    %v2009 = vunpack.c.h.b16 %v383
    %v2010 = vunpack.c.l.b16 %v384
    %v2011 = vunpack.c.h.b16 %v384
    %v2012 = vunpack.c.l.b16 %v385
    %v2013 = vunpack.c.h.b16 %v385
    %v2014 = vunpack.c.l.b16 %v386
    %v2015 = vunpack.c.h.b16 %v386
    %v2016 = vunpack.c.l.b16 %v387
    %v2017 = vunpack.c.h.b16 %v387
    %v2018 = vunpack.c.l.b16 %v388
    %v2019 = vunpack.c.h.b16 %v388
    %v2020 = vunpack.c.l.b16 %v389
    %v2021 = vunpack.c.h.b16 %v389
    %v2022 = vunpack.c.l.b16 %v390
    %v2023 = vunpack.c.h.b16 %v390
    %v2024 = vunpack.c.l.b16 %v391
    %v2025 = vunpack.c.h.b16 %v391
    %v2026 = vunpack.c.l.b16 %v392
    %v2027 = vunpack.c.h.b16 %v392
    %v2028 = vunpack.c.l.b16 %v393
    %v2029 = vunpack.c.h.b16 %v393
    %v2030 = vunpack.c.l.b16 %v394
    %v2031 = vunpack.c.h.b16 %v394
    %v2032 = vunpack.c.l.b16 %v395
    %v2033 = vunpack.c.h.b16 %v395
    %v2034 = vunpack.c.l.b16 %v396
    %v2035 = vunpack.c.h.b16 %v396
    %v2036 = vunpack.c.l.b16 %v397
    %v2037 = vunpack.c.h.b16 %v397
    %v2038 = vunpack.c.l.b16 %v398
    %v2039 = vunpack.c.h.b16 %v398
    %v2040 = vunpack.c.l.b16 %v399
    %v2041 = vunpack.c.h.b16 %v399
    %v2042 = vunpack.c.l.b16 %v400
    %v2043 = vunpack.c.h.b16 %v400
    %v2044 = vunpack.c.l.b16 %v401
    %v2045 = vunpack.c.h.b16 %v401
    %v2046 = vunpack.c.l.b16 %v402
    %v2047 = vunpack.c.h.b16 %v402
    %v2048 = vunpack.c.l.b16 %v403
    %v2049 = vunpack.c.h.b16 %v403
    %v2050 = vunpack.c.l.b16 %v404
    %v2051 = vunpack.c.h.b16 %v404
    %v2052 = vunpack.c.l.b16 %v405
    %v2053 = vunpack.c.h.b16 %v405
    %v2054 = vunpack.c.l.b16 %v406
    %v2055 = vunpack.c.h.b16 %v406
    %v2056 = vunpack.c.l.b16 %v407
    %v2057 = vunpack.c.h.b16 %v407
    %v2058 = vunpack.c.l.b16 %v408
    %v2059 = vunpack.c.h.b16 %v408
    %v2060 = vunpack.c.l.b16 %v409
    %v2061 = vunpack.c.h.b16 %v409
    %v2062 = vunpack.c.l.b16 %v410
    %v2063 = vunpack.c.h.b16 %v410
    %v2064 = vunpack.c.l.b16 %v411
    %v2065 = vunpack.c.h.b16 %v411
    %v2066 = vunpack.c.l.b16 %v412
    %v2067 = vunpack.c.h.b16 %v412
    %v2068 = vunpack.c.l.b16 %v413
    %v2069 = vunpack.c.h.b16 %v413
    %v2070 = vunpack.c.l.b16 %v414
    %v2071 = vunpack.c.h.b16 %v414
    %v2072 = vunpack.c.l.b16 %v415
    %v2073 = vunpack.c.h.b16 %v415
    %v2074 = vunpack.c.l.b16 %v416
    %v2075 = vunpack.c.h.b16 %v416
    %v2076 = vunpack.c.l.b16 %v417
    %v2077 = vunpack.c.h.b16 %v417
    %v2078 = vunpack.c.l.b16 %v418
    %v2079 = vunpack.c.h.b16 %v418
    %v2080 = vunpack.c.l.b16 %v419
    %v2081 = vunpack.c.h.b16 %v419
    %v2082 = vunpack.c.l.b16 %v420
    %v2083 = vunpack.c.h.b16 %v420
    %v2084 = vunpack.c.l.b16 %v421
    %v2085 = vunpack.c.h.b16 %v421
    %v2086 = vunpack.c.l.b16 %v422
    %v2087 = vunpack.c.h.b16 %v422
    %v2088 = vunpack.c.l.b16 %v423
    %v2089 = vunpack.c.h.b16 %v423
    %v2090 = vunpack.c.l.b16 %v424
    %v2091 = vunpack.c.h.b16 %v424
    %v2092 = vunpack.c.l.b16 %v425
    %v2093 = vunpack.c.h.b16 %v425
    %v2094 = vunpack.c.l.b16 %v426
    %v2095 = vunpack.c.h.b16 %v426
    %v2096 = vunpack.c.l.b16 %v427
    %v2097 = vunpack.c.h.b16 %v427
    %v2098 = vunpack.c.l.b16 %v428
    %v2099 = vunpack.c.h.b16 %v428
    %v2100 = vunpack.c.l.b16 %v429
    %v2101 = vunpack.c.h.b16 %v429
    %v2102 = vunpack.c.l.b16 %v430
    %v2103 = vunpack.c.h.b16 %v430
    %v2104 = vunpack.c.l.b16 %v431
    %v2105 = vunpack.c.h.b16 %v431
    %v2106 = vunpack.c.l.b16 %v432
    %v2107 = vunpack.c.h.b16 %v432
    %v2108 = vunpack.c.l.b16 %v433
    %v2109 = vunpack.c.h.b16 %v433
    %v2110 = vunpack.c.l.b16 %v434
    %v2111 = vunpack.c.h.b16 %v434
    %v2112 = vunpack.c.l.b16 %v435
    %v2113 = vunpack.c.h.b16 %v435
    %v2114 = vunpack.c.l.b16 %v436
    %v2115 = vunpack.c.h.b16 %v436
    %v2116 = vunpack.c.l.b16 %v437
    %v2117 = vunpack.c.h.b16 %v437
    %v2118 = vunpack.c.l.b16 %v438
    %v2119 = vunpack.c.h.b16 %v438
    %v2120 = vunpack.c.l.b16 %v439
    %v2121 = vunpack.c.h.b16 %v439
    %v2122 = vunpack.c.l.b16 %v440
    %v2123 = vunpack.c.h.b16 %v440
    %v2124 = vunpack.c.l.b16 %v441
    %v2125 = vunpack.c.h.b16 %v441
    %v2126 = vunpack.c.l.b16 %v442
    %v2127 = vunpack.c.h.b16 %v442
    %v2128 = vunpack.c.l.b16 %v443
    %v2129 = vunpack.c.h.b16 %v443
    %v2130 = vunpack.c.l.b16 %v444
    %v2131 = vunpack.c.h.b16 %v444
    %v2132 = vunpack.c.l.b16 %v445
    %v2133 = vunpack.c.h.b16 %v445
    %v2134 = vunpack.c.l.b16 %v446
    %v2135 = vunpack.c.h.b16 %v446
    %v2136 = vunpack.c.l.b16 %v447
    %v2137 = vunpack.c.h.b16 %v447
    %v2138 = vunpack.c.l.b16 %v448
    %v2139 = vunpack.c.h.b16 %v448
    %v2140 = vunpack.c.l.b16 %v449
    %v2141 = vunpack.c.h.b16 %v449
    %v2142 = vunpack.c.l.b16 %v450
    %v2143 = vunpack.c.h.b16 %v450
    %v2144 = vunpack.c.l.b16 %v451
    %v2145 = vunpack.c.h.b16 %v451
    %v2146 = vunpack.c.l.b16 %v452
    %v2147 = vunpack.c.h.b16 %v452
    %v2148 = vunpack.c.l.b16 %v453
    %v2149 = vunpack.c.h.b16 %v453
    %v2150 = vunpack.c.l.b16 %v454
    %v2151 = vunpack.c.h.b16 %v454
    %v2152 = vunpack.c.l.b16 %v455
    %v2153 = vunpack.c.h.b16 %v455
    %v2154 = vunpack.c.l.b16 %v456
    %v2155 = vunpack.c.h.b16 %v456
    %v2156 = vunpack.c.l.b16 %v457
    %v2157 = vunpack.c.h.b16 %v457
    %v2158 = vunpack.c.l.b16 %v458
    %v2159 = vunpack.c.h.b16 %v458
    %v2160 = vunpack.c.l.b16 %v459
    %v2161 = vunpack.c.h.b16 %v459
    %v2162 = vunpack.c.l.b16 %v460
    %v2163 = vunpack.c.h.b16 %v460
    %v2164 = vunpack.c.l.b16 %v461
    %v2165 = vunpack.c.h.b16 %v461
    %v2166 = vunpack.c.l.b16 %v462
    %v2167 = vunpack.c.h.b16 %v462
    %v2168 = vunpack.c.l.b16 %v463
    %v2169 = vunpack.c.h.b16 %v463
    %v2170 = vunpack.c.l.b16 %v464
    %v2171 = vunpack.c.h.b16 %v464
    %v2172 = vunpack.c.l.b16 %v465
    %v2173 = vunpack.c.h.b16 %v465
    %v2174 = vunpack.c.l.b16 %v466
    %v2175 = vunpack.c.h.b16 %v466
    %v2176 = vunpack.c.l.b16 %v467
    %v2177 = vunpack.c.h.b16 %v467
    %v2178 = vunpack.c.l.b16 %v468
    %v2179 = vunpack.c.h.b16 %v468
    %v2180 = vunpack.c.l.b16 %v469
    %v2181 = vunpack.c.h.b16 %v469
    %v2182 = vunpack.c.l.b16 %v470
    %v2183 = vunpack.c.h.b16 %v470
    %v2184 = vunpack.c.l.b16 %v471
    %v2185 = vunpack.c.h.b16 %v471
    %v2186 = vunpack.c.l.b16 %v472
    %v2187 = vunpack.c.h.b16 %v472
    %v2188 = vunpack.c.l.b16 %v473
    %v2189 = vunpack.c.h.b16 %v473
    %v2190 = vunpack.c.l.b16 %v474
    %v2191 = vunpack.c.h.b16 %v474
    %v2192 = vunpack.c.l.b16 %v475
    %v2193 = vunpack.c.h.b16 %v475
    %v2194 = vunpack.c.l.b16 %v476
    %v2195 = vunpack.c.h.b16 %v476
    %v2196 = vunpack.c.l.b16 %v477
    %v2197 = vunpack.c.h.b16 %v477
    %v2198 = vunpack.c.l.b16 %v478
    %v2199 = vunpack.c.h.b16 %v478
    %v2200 = vunpack.c.l.b16 %v479
    %v2201 = vunpack.c.h.b16 %v479
    %v2202 = vunpack.c.l.b16 %v480
    %v2203 = vunpack.c.h.b16 %v480
    %v2204 = vunpack.c.l.b16 %v481
    %v2205 = vunpack.c.h.b16 %v481
    %v2206 = vunpack.c.l.b16 %v482
    %v2207 = vunpack.c.h.b16 %v482
    %v2208 = vunpack.c.l.b16 %v483
    %v2209 = vunpack.c.h.b16 %v483
    %v2210 = vunpack.c.l.b16 %v484
    %v2211 = vunpack.c.h.b16 %v484
    %v2212 = vunpack.c.l.b16 %v485
    %v2213 = vunpack.c.h.b16 %v485
    %v2214 = vunpack.c.l.b16 %v486
    %v2215 = vunpack.c.h.b16 %v486
    %v2216 = vunpack.c.l.b16 %v487
    %v2217 = vunpack.c.h.b16 %v487
    %v2218 = vunpack.c.l.b16 %v488
    %v2219 = vunpack.c.h.b16 %v488
    %v2220 = vunpack.c.l.b16 %v489
    %v2221 = vunpack.c.h.b16 %v489
    %v2222 = vunpack.c.l.b16 %v490
    %v2223 = vunpack.c.h.b16 %v490
    %v2224 = vunpack.c.l.b16 %v491
    %v2225 = vunpack.c.h.b16 %v491
    %v2226 = vunpack.c.l.b16 %v492
    %v2227 = vunpack.c.h.b16 %v492
    %v2228 = vunpack.c.l.b16 %v493
    %v2229 = vunpack.c.h.b16 %v493
    %v2230 = vunpack.c.l.b16 %v494
    %v2231 = vunpack.c.h.b16 %v494
    %v2232 = vunpack.c.l.b16 %v495
    %v2233 = vunpack.c.h.b16 %v495
    %v2234 = vunpack.c.l.b16 %v496
    %v2235 = vunpack.c.h.b16 %v496
    %v2236 = vunpack.c.l.b16 %v497
    %v2237 = vunpack.c.h.b16 %v497
    %v2238 = vunpack.c.l.b16 %v498
    %v2239 = vunpack.c.h.b16 %v498
    %v2240 = vunpack.c.l.b16 %v499
    %v2241 = vunpack.c.h.b16 %v499
    %v2242 = vunpack.c.l.b16 %v500
    %v2243 = vunpack.c.h.b16 %v500
    %v2244 = vunpack.c.l.b16 %v501
    %v2245 = vunpack.c.h.b16 %v501
    %v2246 = vunpack.c.l.b16 %v502
    %v2247 = vunpack.c.h.b16 %v502
    %v2248 = vunpack.c.l.b16 %v503
    %v2249 = vunpack.c.h.b16 %v503
    %v2250 = vunpack.c.l.b16 %v504
    %v2251 = vunpack.c.h.b16 %v504
    %v2252 = vunpack.c.l.b16 %v505
    %v2253 = vunpack.c.h.b16 %v505
    %v2254 = vunpack.c.l.b16 %v506
    %v2255 = vunpack.c.h.b16 %v506
    %v2256 = vunpack.c.l.b16 %v507
    %v2257 = vunpack.c.h.b16 %v507
    %v2258 = vunpack.c.l.b16 %v508
    %v2259 = vunpack.c.h.b16 %v508
    %v2260 = vunpack.c.l.b16 %v509
    %v2261 = vunpack.c.h.b16 %v509
    %v2262 = vunpack.c.l.b16 %v510
    %v2263 = vunpack.c.h.b16 %v510
    %v2264 = vunpack.c.l.b16 %v511
    %v2265 = vunpack.c.h.b16 %v511
    %v2266 = vunpack.c.l.b16 %v512
    %v2267 = vunpack.c.h.b16 %v512
    %v2268 = vunpack.c.l.b16 %v513
    %v2269 = vunpack.c.h.b16 %v513
    %v2270 = vunpack.c.l.b16 %v514
    %v2271 = vunpack.c.h.b16 %v514
    %v2272 = vunpack.c.l.b16 %v515
    %v2273 = vunpack.c.h.b16 %v515
    %v2274 = vunpack.c.l.b16 %v516
    %v2275 = vunpack.c.h.b16 %v516
    %v2276 = vunpack.c.l.b16 %v517
    %v2277 = vunpack.c.h.b16 %v517
    %v2278 = vunpack.c.l.b16 %v518
    %v2279 = vunpack.c.h.b16 %v518
    %v2280 = vunpack.c.l.b16 %v519
    %v2281 = vunpack.c.h.b16 %v519
    %v2282 = vunpack.c.l.b16 %v520
    %v2283 = vunpack.c.h.b16 %v520
    %v2284 = vunpack.c.l.b16 %v521
    %v2285 = vunpack.c.h.b16 %v521
    %v2286 = vunpack.c.l.b16 %v522
    %v2287 = vunpack.c.h.b16 %v522
    %v2288 = vunpack.c.l.b16 %v523
    %v2289 = vunpack.c.h.b16 %v523
    %v2290 = vunpack.c.l.b16 %v524
    %v2291 = vunpack.c.h.b16 %v524
    %v2292 = vunpack.c.l.b16 %v525
    %v2293 = vunpack.c.h.b16 %v525
    %v2294 = vunpack.c.l.b16 %v526
    %v2295 = vunpack.c.h.b16 %v526
    %v2296 = vunpack.c.l.b16 %v527
    %v2297 = vunpack.c.h.b16 %v527
    %v2298 = vunpack.c.l.b16 %v528
    %v2299 = vunpack.c.h.b16 %v528
    %v2300 = vunpack.c.l.b16 %v529
    %v2301 = vunpack.c.h.b16 %v529
    %v2302 = vunpack.c.l.b16 %v530
    %v2303 = vunpack.c.h.b16 %v530
    %v2304 = vunpack.c.l.b16 %v531
    %v2305 = vunpack.c.h.b16 %v531
    %v2306 = vunpack.c.l.b16 %v532
    %v2307 = vunpack.c.h.b16 %v532
    %v2308 = vunpack.c.l.b16 %v533
    %v2309 = vunpack.c.h.b16 %v533
    %v2310 = vunpack.c.l.b16 %v534
    %v2311 = vunpack.c.h.b16 %v534
    %v2312 = vunpack.c.l.b16 %v535
    %v2313 = vunpack.c.h.b16 %v535
    %v2314 = vunpack.c.l.b16 %v536
    %v2315 = vunpack.c.h.b16 %v536
    %v2316 = vunpack.c.l.b16 %v537
    %v2317 = vunpack.c.h.b16 %v537
    %v2318 = vpack.c.b16 %v1296, %v1294
    %v2319 = vpack.c.b16 %v1297, %v1295
    %v2320 = vpack.c.b16 %v1300, %v1298
    %v2321 = vpack.c.b16 %v1301, %v1299
    %v2322 = vpack.c.b16 %v1304, %v1302
    %v2323 = vpack.c.b16 %v1305, %v1303
    %v2324 = vpack.c.b16 %v1308, %v1306
    %v2325 = vpack.c.b16 %v1309, %v1307
    %v2326 = vpack.c.b16 %v1312, %v1310
    %v2327 = vpack.c.b16 %v1313, %v1311
    %v2328 = vpack.c.b16 %v1316, %v1314
    %v2329 = vpack.c.b16 %v1317, %v1315
    %v2330 = vpack.c.b16 %v1320, %v1318
    %v2331 = vpack.c.b16 %v1321, %v1319
    %v2332 = vpack.c.b16 %v1324, %v1322
    %v2333 = vpack.c.b16 %v1325, %v1323
    %v2334 = vpack.c.b16 %v1328, %v1326
    %v2335 = vpack.c.b16 %v1329, %v1327
    %v2336 = vpack.c.b16 %v1332, %v1330
    %v2337 = vpack.c.b16 %v1333, %v1331
    %v2338 = vpack.c.b16 %v1336, %v1334
    %v2339 = vpack.c.b16 %v1337, %v1335
    %v2340 = vpack.c.b16 %v1340, %v1338
    %v2341 = vpack.c.b16 %v1341, %v1339
    %v2342 = vpack.c.b16 %v1344, %v1342
    %v2343 = vpack.c.b16 %v1345, %v1343
    %v2344 = vpack.c.b16 %v1348, %v1346
    %v2345 = vpack.c.b16 %v1349, %v1347
    %v2346 = vpack.c.b16 %v1352, %v1350
    %v2347 = vpack.c.b16 %v1353, %v1351
    %v2348 = vpack.c.b16 %v1356, %v1354
    %v2349 = vpack.c.b16 %v1357, %v1355
    %v2350 = vpack.c.b16 %v1360, %v1358
    %v2351 = vpack.c.b16 %v1361, %v1359
    %v2352 = vpack.c.b16 %v1364, %v1362
    %v2353 = vpack.c.b16 %v1365, %v1363
    %v2354 = vpack.c.b16 %v1368, %v1366
    %v2355 = vpack.c.b16 %v1369, %v1367
    %v2356 = vpack.c.b16 %v1372, %v1370
    %v2357 = vpack.c.b16 %v1373, %v1371
    %v2358 = vpack.c.b16 %v1376, %v1374
    %v2359 = vpack.c.b16 %v1377, %v1375
    %v2360 = vpack.c.b16 %v1380, %v1378
    %v2361 = vpack.c.b16 %v1381, %v1379
    %v2362 = vpack.c.b16 %v1384, %v1382
    %v2363 = vpack.c.b16 %v1385, %v1383
    %v2364 = vpack.c.b16 %v1388, %v1386
    %v2365 = vpack.c.b16 %v1389, %v1387
    %v2366 = vpack.c.b16 %v1392, %v1390
    %v2367 = vpack.c.b16 %v1393, %v1391
    %v2368 = vpack.c.b16 %v1396, %v1394
    %v2369 = vpack.c.b16 %v1397, %v1395
    %v2370 = vpack.c.b16 %v1400, %v1398
    %v2371 = vpack.c.b16 %v1401, %v1399
    %v2372 = vpack.c.b16 %v1404, %v1402
    %v2373 = vpack.c.b16 %v1405, %v1403
    %v2374 = vpack.c.b16 %v1408, %v1406
    %v2375 = vpack.c.b16 %v1409, %v1407
    %v2376 = vpack.c.b16 %v1412, %v1410
    %v2377 = vpack.c.b16 %v1413, %v1411
    %v2378 = vpack.c.b16 %v1416, %v1414
    %v2379 = vpack.c.b16 %v1417, %v1415
    %v2380 = vpack.c.b16 %v1420, %v1418
    %v2381 = vpack.c.b16 %v1421, %v1419
    %v2382 = vpack.c.b16 %v1424, %v1422
    %v2383 = vpack.c.b16 %v1425, %v1423
    %v2384 = vpack.c.b16 %v1428, %v1426
    %v2385 = vpack.c.b16 %v1429, %v1427
    %v2386 = vpack.c.b16 %v1432, %v1430
    %v2387 = vpack.c.b16 %v1433, %v1431
    %v2388 = vpack.c.b16 %v1436, %v1434
    %v2389 = vpack.c.b16 %v1437, %v1435
    %v2390 = vpack.c.b16 %v1440, %v1438
    %v2391 = vpack.c.b16 %v1441, %v1439
    %v2392 = vpack.c.b16 %v1444, %v1442
    %v2393 = vpack.c.b16 %v1445, %v1443
    %v2394 = vpack.c.b16 %v1448, %v1446
    %v2395 = vpack.c.b16 %v1449, %v1447
    %v2396 = vpack.c.b16 %v1452, %v1450
    %v2397 = vpack.c.b16 %v1453, %v1451
    %v2398 = vpack.c.b16 %v1456, %v1454
    %v2399 = vpack.c.b16 %v1457, %v1455
    %v2400 = vpack.c.b16 %v1460, %v1458
    %v2401 = vpack.c.b16 %v1461, %v1459
    %v2402 = vpack.c.b16 %v1464, %v1462
    %v2403 = vpack.c.b16 %v1465, %v1463
    %v2404 = vpack.c.b16 %v1468, %v1466
    %v2405 = vpack.c.b16 %v1469, %v1467
    %v2406 = vpack.c.b16 %v1472, %v1470
    %v2407 = vpack.c.b16 %v1473, %v1471
    %v2408 = vpack.c.b16 %v1476, %v1474
    %v2409 = vpack.c.b16 %v1477, %v1475
    %v2410 = vpack.c.b16 %v1480, %v1478
    %v2411 = vpack.c.b16 %v1481, %v1479
    %v2412 = vpack.c.b16 %v1484, %v1482
    %v2413 = vpack.c.b16 %v1485, %v1483
    %v2414 = vpack.c.b16 %v1488, %v1486
    %v2415 = vpack.c.b16 %v1489, %v1487
    %v2416 = vpack.c.b16 %v1492, %v1490
    %v2417 = vpack.c.b16 %v1493, %v1491
    %v2418 = vpack.c.b16 %v1496, %v1494
    %v2419 = vpack.c.b16 %v1497, %v1495
    %v2420 = vpack.c.b16 %v1500, %v1498
    %v2421 = vpack.c.b16 %v1501, %v1499
    %v2422 = vpack.c.b16 %v1504, %v1502
    %v2423 = vpack.c.b16 %v1505, %v1503
    %v2424 = vpack.c.b16 %v1508, %v1506
    %v2425 = vpack.c.b16 %v1509, %v1507
    %v2426 = vpack.c.b16 %v1512, %v1510
    %v2427 = vpack.c.b16 %v1513, %v1511
    %v2428 = vpack.c.b16 %v1516, %v1514
    %v2429 = vpack.c.b16 %v1517, %v1515
    %v2430 = vpack.c.b16 %v1520, %v1518
    %v2431 = vpack.c.b16 %v1521, %v1519
    %v2432 = vpack.c.b16 %v1524, %v1522
    %v2433 = vpack.c.b16 %v1525, %v1523
    %v2434 = vpack.c.b16 %v1528, %v1526
    %v2435 = vpack.c.b16 %v1529, %v1527
    %v2436 = vpack.c.b16 %v1532, %v1530
    %v2437 = vpack.c.b16 %v1533, %v1531
    %v2438 = vpack.c.b16 %v1536, %v1534
    %v2439 = vpack.c.b16 %v1537, %v1535
    %v2440 = vpack.c.b16 %v1540, %v1538
    %v2441 = vpack.c.b16 %v1541, %v1539
    %v2442 = vpack.c.b16 %v1544, %v1542
    %v2443 = vpack.c.b16 %v1545, %v1543
    %v2444 = vpack.c.b16 %v1548, %v1546
    %v2445 = vpack.c.b16 %v1549, %v1547
    %v2446 = vpack.c.b16 %v1552, %v1550
    %v2447 = vpack.c.b16 %v1553, %v1551
    %v2448 = vpack.c.b16 %v1556, %v1554
    %v2449 = vpack.c.b16 %v1557, %v1555
    %v2450 = vpack.c.b16 %v1560, %v1558
    %v2451 = vpack.c.b16 %v1561, %v1559
    %v2452 = vpack.c.b16 %v1564, %v1562
    %v2453 = vpack.c.b16 %v1565, %v1563
    %v2454 = vpack.c.b16 %v1568, %v1566
    %v2455 = vpack.c.b16 %v1569, %v1567
    %v2456 = vpack.c.b16 %v1572, %v1570
    %v2457 = vpack.c.b16 %v1573, %v1571
    %v2458 = vpack.c.b16 %v1576, %v1574
    %v2459 = vpack.c.b16 %v1577, %v1575
    %v2460 = vpack.c.b16 %v1580, %v1578
    %v2461 = vpack.c.b16 %v1581, %v1579
    %v2462 = vpack.c.b16 %v1584, %v1582
    %v2463 = vpack.c.b16 %v1585, %v1583
    %v2464 = vpack.c.b16 %v1588, %v1586
    %v2465 = vpack.c.b16 %v1589, %v1587
    %v2466 = vpack.c.b16 %v1592, %v1590
    %v2467 = vpack.c.b16 %v1593, %v1591
    %v2468 = vpack.c.b16 %v1596, %v1594
    %v2469 = vpack.c.b16 %v1597, %v1595
    %v2470 = vpack.c.b16 %v1600, %v1598
    %v2471 = vpack.c.b16 %v1601, %v1599
    %v2472 = vpack.c.b16 %v1604, %v1602
    %v2473 = vpack.c.b16 %v1605, %v1603
    %v2474 = vpack.c.b16 %v1608, %v1606
    %v2475 = vpack.c.b16 %v1609, %v1607
    %v2476 = vpack.c.b16 %v1612, %v1610
    %v2477 = vpack.c.b16 %v1613, %v1611
    %v2478 = vpack.c.b16 %v1616, %v1614
    %v2479 = vpack.c.b16 %v1617, %v1615
    %v2480 = vpack.c.b16 %v1620, %v1618
    %v2481 = vpack.c.b16 %v1621, %v1619
    %v2482 = vpack.c.b16 %v1624, %v1622
    %v2483 = vpack.c.b16 %v1625, %v1623
    %v2484 = vpack.c.b16 %v1628, %v1626
    %v2485 = vpack.c.b16 %v1629, %v1627
    %v2486 = vpack.c.b16 %v1632, %v1630
    %v2487 = vpack.c.b16 %v1633, %v1631
    %v2488 = vpack.c.b16 %v1636, %v1634
    %v2489 = vpack.c.b16 %v1637, %v1635
    %v2490 = vpack.c.b16 %v1640, %v1638
    %v2491 = vpack.c.b16 %v1641, %v1639
    %v2492 = vpack.c.b16 %v1644, %v1642
    %v2493 = vpack.c.b16 %v1645, %v1643
    %v2494 = vpack.c.b16 %v1648, %v1646
    %v2495 = vpack.c.b16 %v1649, %v1647
    %v2496 = vpack.c.b16 %v1652, %v1650
    %v2497 = vpack.c.b16 %v1653, %v1651
    %v2498 = vpack.c.b16 %v1656, %v1654
    %v2499 = vpack.c.b16 %v1657, %v1655
    %v2500 = vpack.c.b16 %v1660, %v1658
    %v2501 = vpack.c.b16 %v1661, %v1659
    %v2502 = vpack.c.b16 %v1664, %v1662
    %v2503 = vpack.c.b16 %v1665, %v1663
    %v2504 = vpack.c.b16 %v1668, %v1666
    %v2505 = vpack.c.b16 %v1669, %v1667
    %v2506 = vpack.c.b16 %v1672, %v1670
    %v2507 = vpack.c.b16 %v1673, %v1671
    %v2508 = vpack.c.b16 %v1676, %v1674
    %v2509 = vpack.c.b16 %v1677, %v1675
    %v2510 = vpack.c.b16 %v1680, %v1678
    %v2511 = vpack.c.b16 %v1681, %v1679
    %v2512 = vpack.c.b16 %v1684, %v1682
    %v2513 = vpack.c.b16 %v1685, %v1683
    %v2514 = vpack.c.b16 %v1688, %v1686
    %v2515 = vpack.c.b16 %v1689, %v1687
    %v2516 = vpack.c.b16 %v1692, %v1690
    %v2517 = vpack.c.b16 %v1693, %v1691
    %v2518 = vpack.c.b16 %v1696, %v1694
    %v2519 = vpack.c.b16 %v1697, %v1695
    %v2520 = vpack.c.b16 %v1700, %v1698
    %v2521 = vpack.c.b16 %v1701, %v1699
    %v2522 = vpack.c.b16 %v1704, %v1702
    %v2523 = vpack.c.b16 %v1705, %v1703
    %v2524 = vpack.c.b16 %v1708, %v1706
    %v2525 = vpack.c.b16 %v1709, %v1707
    %v2526 = vpack.c.b16 %v1712, %v1710
    %v2527 = vpack.c.b16 %v1713, %v1711
    %v2528 = vpack.c.b16 %v1716, %v1714
    %v2529 = vpack.c.b16 %v1717, %v1715
    %v2530 = vpack.c.b16 %v1720, %v1718
    %v2531 = vpack.c.b16 %v1721, %v1719
    %v2532 = vpack.c.b16 %v1724, %v1722
    %v2533 = vpack.c.b16 %v1725, %v1723
    %v2534 = vpack.c.b16 %v1728, %v1726
    %v2535 = vpack.c.b16 %v1729, %v1727
    %v2536 = vpack.c.b16 %v1732, %v1730
    %v2537 = vpack.c.b16 %v1733, %v1731
    %v2538 = vpack.c.b16 %v1736, %v1734
    %v2539 = vpack.c.b16 %v1737, %v1735
    %v2540 = vpack.c.b16 %v1740, %v1738
    %v2541 = vpack.c.b16 %v1741, %v1739
    %v2542 = vpack.c.b16 %v1744, %v1742
    %v2543 = vpack.c.b16 %v1745, %v1743
    %v2544 = vpack.c.b16 %v1748, %v1746
    %v2545 = vpack.c.b16 %v1749, %v1747
    %v2546 = vpack.c.b16 %v1752, %v1750
    %v2547 = vpack.c.b16 %v1753, %v1751
    %v2548 = vpack.c.b16 %v1756, %v1754
    %v2549 = vpack.c.b16 %v1757, %v1755
    %v2550 = vpack.c.b16 %v1760, %v1758
    %v2551 = vpack.c.b16 %v1761, %v1759
    %v2552 = vpack.c.b16 %v1764, %v1762
    %v2553 = vpack.c.b16 %v1765, %v1763
    %v2554 = vpack.c.b16 %v1768, %v1766
    %v2555 = vpack.c.b16 %v1769, %v1767
    %v2556 = vpack.c.b16 %v1772, %v1770
    %v2557 = vpack.c.b16 %v1773, %v1771
    %v2558 = vpack.c.b16 %v1776, %v1774
    %v2559 = vpack.c.b16 %v1777, %v1775
    %v2560 = vpack.c.b16 %v1780, %v1778
    %v2561 = vpack.c.b16 %v1781, %v1779
    %v2562 = vpack.c.b16 %v1784, %v1782
    %v2563 = vpack.c.b16 %v1785, %v1783
    %v2564 = vpack.c.b16 %v1788, %v1786
    %v2565 = vpack.c.b16 %v1789, %v1787
    %v2566 = vpack.c.b16 %v1792, %v1790
    %v2567 = vpack.c.b16 %v1793, %v1791
    %v2568 = vpack.c.b16 %v1796, %v1794
    %v2569 = vpack.c.b16 %v1797, %v1795
    %v2570 = vpack.c.b16 %v1800, %v1798
    %v2571 = vpack.c.b16 %v1801, %v1799
    %v2572 = vpack.c.b16 %v1804, %v1802
    %v2573 = vpack.c.b16 %v1805, %v1803
    %v2574 = vpack.c.b16 %v1808, %v1806
    %v2575 = vpack.c.b16 %v1809, %v1807
    %v2576 = vpack.c.b16 %v1812, %v1810
    %v2577 = vpack.c.b16 %v1813, %v1811
    %v2578 = vpack.c.b16 %v1816, %v1814
    %v2579 = vpack.c.b16 %v1817, %v1815
    %v2580 = vpack.c.b16 %v1820, %v1818
    %v2581 = vpack.c.b16 %v1821, %v1819
    %v2582 = vpack.c.b16 %v1824, %v1822
    %v2583 = vpack.c.b16 %v1825, %v1823
    %v2584 = vpack.c.b16 %v1828, %v1826
    %v2585 = vpack.c.b16 %v1829, %v1827
    %v2586 = vpack.c.b16 %v1832, %v1830
    %v2587 = vpack.c.b16 %v1833, %v1831
    %v2588 = vpack.c.b16 %v1836, %v1834
    %v2589 = vpack.c.b16 %v1837, %v1835
    %v2590 = vpack.c.b16 %v1840, %v1838
    %v2591 = vpack.c.b16 %v1841, %v1839
    %v2592 = vpack.c.b16 %v1844, %v1842
    %v2593 = vpack.c.b16 %v1845, %v1843
    %v2594 = vpack.c.b16 %v1848, %v1846
    %v2595 = vpack.c.b16 %v1849, %v1847
    %v2596 = vpack.c.b16 %v1852, %v1850
    %v2597 = vpack.c.b16 %v1853, %v1851
    %v2598 = vpack.c.b16 %v1856, %v1854
    %v2599 = vpack.c.b16 %v1857, %v1855
    %v2600 = vpack.c.b16 %v1860, %v1858
    %v2601 = vpack.c.b16 %v1861, %v1859
    %v2602 = vpack.c.b16 %v1864, %v1862
    %v2603 = vpack.c.b16 %v1865, %v1863
    %v2604 = vpack.c.b16 %v1868, %v1866
    %v2605 = vpack.c.b16 %v1869, %v1867
    %v2606 = vpack.c.b16 %v1872, %v1870
    %v2607 = vpack.c.b16 %v1873, %v1871
    %v2608 = vpack.c.b16 %v1876, %v1874
    %v2609 = vpack.c.b16 %v1877, %v1875
    %v2610 = vpack.c.b16 %v1880, %v1878
    %v2611 = vpack.c.b16 %v1881, %v1879
    %v2612 = vpack.c.b16 %v1884, %v1882
    %v2613 = vpack.c.b16 %v1885, %v1883
    %v2614 = vpack.c.b16 %v1888, %v1886
    %v2615 = vpack.c.b16 %v1889, %v1887
    %v2616 = vpack.c.b16 %v1892, %v1890
    %v2617 = vpack.c.b16 %v1893, %v1891
    %v2618 = vpack.c.b16 %v1896, %v1894
    %v2619 = vpack.c.b16 %v1897, %v1895
    %v2620 = vpack.c.b16 %v1900, %v1898
    %v2621 = vpack.c.b16 %v1901, %v1899
    %v2622 = vpack.c.b16 %v1904, %v1902
    %v2623 = vpack.c.b16 %v1905, %v1903
    %v2624 = vpack.c.b16 %v1908, %v1906
    %v2625 = vpack.c.b16 %v1909, %v1907
    %v2626 = vpack.c.b16 %v1912, %v1910
    %v2627 = vpack.c.b16 %v1913, %v1911
    %v2628 = vpack.c.b16 %v1916, %v1914
    %v2629 = vpack.c.b16 %v1917, %v1915
    %v2630 = vpack.c.b16 %v1920, %v1918
    %v2631 = vpack.c.b16 %v1921, %v1919
    %v2632 = vpack.c.b16 %v1924, %v1922
    %v2633 = vpack.c.b16 %v1925, %v1923
    %v2634 = vpack.c.b16 %v1928, %v1926
    %v2635 = vpack.c.b16 %v1929, %v1927
    %v2636 = vpack.c.b16 %v1932, %v1930
    %v2637 = vpack.c.b16 %v1933, %v1931
    %v2638 = vpack.c.b16 %v1936, %v1934
    %v2639 = vpack.c.b16 %v1937, %v1935
    %v2640 = vpack.c.b16 %v1940, %v1938
    %v2641 = vpack.c.b16 %v1941, %v1939
    %v2642 = vpack.c.b16 %v1944, %v1942
    %v2643 = vpack.c.b16 %v1945, %v1943
    %v2644 = vpack.c.b16 %v1948, %v1946
    %v2645 = vpack.c.b16 %v1949, %v1947
    %v2646 = vpack.c.b16 %v1952, %v1950
    %v2647 = vpack.c.b16 %v1953, %v1951
    %v2648 = vpack.c.b16 %v1956, %v1954
    %v2649 = vpack.c.b16 %v1957, %v1955
    %v2650 = vpack.c.b16 %v1960, %v1958
    %v2651 = vpack.c.b16 %v1961, %v1959
    %v2652 = vpack.c.b16 %v1964, %v1962
    %v2653 = vpack.c.b16 %v1965, %v1963
    %v2654 = vpack.c.b16 %v1968, %v1966
    %v2655 = vpack.c.b16 %v1969, %v1967
    %v2656 = vpack.c.b16 %v1972, %v1970
    %v2657 = vpack.c.b16 %v1973, %v1971
    %v2658 = vpack.c.b16 %v1976, %v1974
    %v2659 = vpack.c.b16 %v1977, %v1975
    %v2660 = vpack.c.b16 %v1980, %v1978
    %v2661 = vpack.c.b16 %v1981, %v1979
    %v2662 = vpack.c.b16 %v1984, %v1982
    %v2663 = vpack.c.b16 %v1985, %v1983
    %v2664 = vpack.c.b16 %v1988, %v1986
    %v2665 = vpack.c.b16 %v1989, %v1987
    %v2666 = vpack.c.b16 %v1992, %v1990
    %v2667 = vpack.c.b16 %v1993, %v1991
    %v2668 = vpack.c.b16 %v1996, %v1994
    %v2669 = vpack.c.b16 %v1997, %v1995
    %v2670 = vpack.c.b16 %v2000, %v1998
    %v2671 = vpack.c.b16 %v2001, %v1999
    %v2672 = vpack.c.b16 %v2004, %v2002
    %v2673 = vpack.c.b16 %v2005, %v2003
    %v2674 = vpack.c.b16 %v2008, %v2006
    %v2675 = vpack.c.b16 %v2009, %v2007
    %v2676 = vpack.c.b16 %v2012, %v2010
    %v2677 = vpack.c.b16 %v2013, %v2011
    %v2678 = vpack.c.b16 %v2016, %v2014
    %v2679 = vpack.c.b16 %v2017, %v2015
    %v2680 = vpack.c.b16 %v2020, %v2018
    %v2681 = vpack.c.b16 %v2021, %v2019
    %v2682 = vpack.c.b16 %v2024, %v2022
    %v2683 = vpack.c.b16 %v2025, %v2023
    %v2684 = vpack.c.b16 %v2028, %v2026
    %v2685 = vpack.c.b16 %v2029, %v2027
    %v2686 = vpack.c.b16 %v2032, %v2030
    %v2687 = vpack.c.b16 %v2033, %v2031
    %v2688 = vpack.c.b16 %v2036, %v2034
    %v2689 = vpack.c.b16 %v2037, %v2035
    %v2690 = vpack.c.b16 %v2040, %v2038
    %v2691 = vpack.c.b16 %v2041, %v2039
    %v2692 = vpack.c.b16 %v2044, %v2042
    %v2693 = vpack.c.b16 %v2045, %v2043
    %v2694 = vpack.c.b16 %v2048, %v2046
    %v2695 = vpack.c.b16 %v2049, %v2047
    %v2696 = vpack.c.b16 %v2052, %v2050
    %v2697 = vpack.c.b16 %v2053, %v2051
    %v2698 = vpack.c.b16 %v2056, %v2054
    %v2699 = vpack.c.b16 %v2057, %v2055
    %v2700 = vpack.c.b16 %v2060, %v2058
    %v2701 = vpack.c.b16 %v2061, %v2059
    %v2702 = vpack.c.b16 %v2064, %v2062
    %v2703 = vpack.c.b16 %v2065, %v2063
    %v2704 = vpack.c.b16 %v2068, %v2066
    %v2705 = vpack.c.b16 %v2069, %v2067
    %v2706 = vpack.c.b16 %v2072, %v2070
    %v2707 = vpack.c.b16 %v2073, %v2071
    %v2708 = vpack.c.b16 %v2076, %v2074
    %v2709 = vpack.c.b16 %v2077, %v2075
    %v2710 = vpack.c.b16 %v2080, %v2078
    %v2711 = vpack.c.b16 %v2081, %v2079
    %v2712 = vpack.c.b16 %v2084, %v2082
    %v2713 = vpack.c.b16 %v2085, %v2083
    %v2714 = vpack.c.b16 %v2088, %v2086
    %v2715 = vpack.c.b16 %v2089, %v2087
    %v2716 = vpack.c.b16 %v2092, %v2090
    %v2717 = vpack.c.b16 %v2093, %v2091
    %v2718 = vpack.c.b16 %v2096, %v2094
    %v2719 = vpack.c.b16 %v2097, %v2095
    %v2720 = vpack.c.b16 %v2100, %v2098
    %v2721 = vpack.c.b16 %v2101, %v2099
    %v2722 = vpack.c.b16 %v2104, %v2102
    %v2723 = vpack.c.b16 %v2105, %v2103
    %v2724 = vpack.c.b16 %v2108, %v2106
    %v2725 = vpack.c.b16 %v2109, %v2107
    %v2726 = vpack.c.b16 %v2112, %v2110
    %v2727 = vpack.c.b16 %v2113, %v2111
    %v2728 = vpack.c.b16 %v2116, %v2114
    %v2729 = vpack.c.b16 %v2117, %v2115
    %v2730 = vpack.c.b16 %v2120, %v2118
    %v2731 = vpack.c.b16 %v2121, %v2119
    %v2732 = vpack.c.b16 %v2124, %v2122
    %v2733 = vpack.c.b16 %v2125, %v2123
    %v2734 = vpack.c.b16 %v2128, %v2126
    %v2735 = vpack.c.b16 %v2129, %v2127
    %v2736 = vpack.c.b16 %v2132, %v2130
    %v2737 = vpack.c.b16 %v2133, %v2131
    %v2738 = vpack.c.b16 %v2136, %v2134
    %v2739 = vpack.c.b16 %v2137, %v2135
    %v2740 = vpack.c.b16 %v2140, %v2138
    %v2741 = vpack.c.b16 %v2141, %v2139
    %v2742 = vpack.c.b16 %v2144, %v2142
    %v2743 = vpack.c.b16 %v2145, %v2143
    %v2744 = vpack.c.b16 %v2148, %v2146
    %v2745 = vpack.c.b16 %v2149, %v2147
    %v2746 = vpack.c.b16 %v2152, %v2150
    %v2747 = vpack.c.b16 %v2153, %v2151
    %v2748 = vpack.c.b16 %v2156, %v2154
    %v2749 = vpack.c.b16 %v2157, %v2155
    %v2750 = vpack.c.b16 %v2160, %v2158
    %v2751 = vpack.c.b16 %v2161, %v2159
    %v2752 = vpack.c.b16 %v2164, %v2162
    %v2753 = vpack.c.b16 %v2165, %v2163
    %v2754 = vpack.c.b16 %v2168, %v2166
    %v2755 = vpack.c.b16 %v2169, %v2167
    %v2756 = vpack.c.b16 %v2172, %v2170
    %v2757 = vpack.c.b16 %v2173, %v2171
    %v2758 = vpack.c.b16 %v2176, %v2174
    %v2759 = vpack.c.b16 %v2177, %v2175
    %v2760 = vpack.c.b16 %v2180, %v2178
    %v2761 = vpack.c.b16 %v2181, %v2179
    %v2762 = vpack.c.b16 %v2184, %v2182
    %v2763 = vpack.c.b16 %v2185, %v2183
    %v2764 = vpack.c.b16 %v2188, %v2186
    %v2765 = vpack.c.b16 %v2189, %v2187
    %v2766 = vpack.c.b16 %v2192, %v2190
    %v2767 = vpack.c.b16 %v2193, %v2191
    %v2768 = vpack.c.b16 %v2196, %v2194
    %v2769 = vpack.c.b16 %v2197, %v2195
    %v2770 = vpack.c.b16 %v2200, %v2198
    %v2771 = vpack.c.b16 %v2201, %v2199
    %v2772 = vpack.c.b16 %v2204, %v2202
    %v2773 = vpack.c.b16 %v2205, %v2203
    %v2774 = vpack.c.b16 %v2208, %v2206
    %v2775 = vpack.c.b16 %v2209, %v2207
    %v2776 = vpack.c.b16 %v2212, %v2210
    %v2777 = vpack.c.b16 %v2213, %v2211
    %v2778 = vpack.c.b16 %v2216, %v2214
    %v2779 = vpack.c.b16 %v2217, %v2215
    %v2780 = vpack.c.b16 %v2220, %v2218
    %v2781 = vpack.c.b16 %v2221, %v2219
    %v2782 = vpack.c.b16 %v2224, %v2222
    %v2783 = vpack.c.b16 %v2225, %v2223
    %v2784 = vpack.c.b16 %v2228, %v2226
    %v2785 = vpack.c.b16 %v2229, %v2227
    %v2786 = vpack.c.b16 %v2232, %v2230
    %v2787 = vpack.c.b16 %v2233, %v2231
    %v2788 = vpack.c.b16 %v2236, %v2234
    %v2789 = vpack.c.b16 %v2237, %v2235
    %v2790 = vpack.c.b16 %v2240, %v2238
    %v2791 = vpack.c.b16 %v2241, %v2239
    %v2792 = vpack.c.b16 %v2244, %v2242
    %v2793 = vpack.c.b16 %v2245, %v2243
    %v2794 = vpack.c.b16 %v2248, %v2246
    %v2795 = vpack.c.b16 %v2249, %v2247
    %v2796 = vpack.c.b16 %v2252, %v2250
    %v2797 = vpack.c.b16 %v2253, %v2251
    %v2798 = vpack.c.b16 %v2256, %v2254
    %v2799 = vpack.c.b16 %v2257, %v2255
    %v2800 = vpack.c.b16 %v2260, %v2258
    %v2801 = vpack.c.b16 %v2261, %v2259
    %v2802 = vpack.c.b16 %v2264, %v2262
    %v2803 = vpack.c.b16 %v2265, %v2263
    %v2804 = vpack.c.b16 %v2268, %v2266
    %v2805 = vpack.c.b16 %v2269, %v2267
    %v2806 = vpack.c.b16 %v2272, %v2270
    %v2807 = vpack.c.b16 %v2273, %v2271
    %v2808 = vpack.c.b16 %v2276, %v2274
    %v2809 = vpack.c.b16 %v2277, %v2275
    %v2810 = vpack.c.b16 %v2280, %v2278
    %v2811 = vpack.c.b16 %v2281, %v2279
    %v2812 = vpack.c.b16 %v2284, %v2282
    %v2813 = vpack.c.b16 %v2285, %v2283
    %v2814 = vpack.c.b16 %v2288, %v2286
    %v2815 = vpack.c.b16 %v2289, %v2287
    %v2816 = vpack.c.b16 %v2292, %v2290
    %v2817 = vpack.c.b16 %v2293, %v2291
    %v2818 = vpack.c.b16 %v2296, %v2294
    %v2819 = vpack.c.b16 %v2297, %v2295
    %v2820 = vpack.c.b16 %v2300, %v2298
    %v2821 = vpack.c.b16 %v2301, %v2299
    %v2822 = vpack.c.b16 %v2304, %v2302
    %v2823 = vpack.c.b16 %v2305, %v2303
    %v2824 = vpack.c.b16 %v2308, %v2306
    %v2825 = vpack.c.b16 %v2309, %v2307
    %v2826 = vpack.c.b16 %v2312, %v2310
    %v2827 = vpack.c.b16 %v2313, %v2311
    %v2828 = vpack.c.b16 %v2316, %v2314
    %v2829 = vpack.c.b16 %v2317, %v2315
    %3342 = vmatprep.subr.bf16.mxu0 %v2319
    %3343 = vmatpush1.bf16.msra.mxu0 %v2318
    %3344 = vmatprep.subr.bf16.mxu0 %v2321
    %3345 = vmatpush1.bf16.msra.mxu0 %v2320
    %3346 = vmatprep.subr.bf16.mxu0 %v2323
    %3347 = vmatpush1.bf16.msra.mxu0 %v2322
    %3348 = vmatprep.subr.bf16.mxu0 %v2325
    %3349 = vmatpush1.bf16.msra.mxu0 %v2324
    %3350 = vmatprep.subr.bf16.mxu0 %v2327
    %3351 = vmatpush1.bf16.msra.mxu0 %v2326
    %3352 = vmatprep.subr.bf16.mxu0 %v2329
    %3353 = vmatpush1.bf16.msra.mxu0 %v2328
    %3354 = vmatprep.subr.bf16.mxu0 %v2331
    %3355 = vmatpush1.bf16.msra.mxu0 %v2330
    %3356 = vmatprep.subr.bf16.mxu0 %v2333
    %3357 = vmatpush1.bf16.msra.mxu0 %v2332
    %3358 = vmatprep.subr.bf16.mxu0 %v2335
    %3359 = vmatpush1.bf16.msra.mxu0 %v2334
    %3360 = vmatprep.subr.bf16.mxu0 %v2337
    %3361 = vmatpush1.bf16.msra.mxu0 %v2336
    %3362 = vmatprep.subr.bf16.mxu0 %v2339
    %3363 = vmatpush1.bf16.msra.mxu0 %v2338
    %3364 = vmatprep.subr.bf16.mxu0 %v2341
    %3365 = vmatpush1.bf16.msra.mxu0 %v2340
    %3366 = vmatprep.subr.bf16.mxu0 %v2343
    %3367 = vmatpush1.bf16.msra.mxu0 %v2342
    %3368 = vmatprep.subr.bf16.mxu0 %v2345
    %3369 = vmatpush1.bf16.msra.mxu0 %v2344
    %3370 = vmatprep.subr.bf16.mxu0 %v2347
    %3371 = vmatpush1.bf16.msra.mxu0 %v2346
    %3372 = vmatprep.subr.bf16.mxu0 %v2349
    %3373 = vmatpush1.bf16.msra.mxu0 %v2348
    %3374 = vmatprep.mubr.bf16.mxu0 %v591
    %3375 = vmatmul.mubr.bf16.gmra.mrb[0].mxu0 %v577
    %v3376 = vpop.f32.mrb[0].mxu0
    %v3377 = vadd.f32 %v543, %v3376
    %v3378 = vpop.f32.mrb[0].mxu0
    %v3379 = vadd.f32 %v547, %v3378
    %v3380 = vpop.f32.mrb[0].mxu0
    %v3381 = vpop.f32.mrb[0].mxu0
    %3382 = vdwg.mxu0
    %3383 = vmatprep.subr.bf16.mxu0 %v2351
    %3384 = vmatpush1.bf16.msra.mxu0 %v2350
    %3385 = vmatprep.subr.bf16.mxu0 %v2353
    %3386 = vmatpush1.bf16.msra.mxu0 %v2352
    %3387 = vmatprep.subr.bf16.mxu0 %v2355
    %3388 = vmatpush1.bf16.msra.mxu0 %v2354
    %3389 = vmatprep.subr.bf16.mxu0 %v2357
    %3390 = vmatpush1.bf16.msra.mxu0 %v2356
    %3391 = vmatprep.subr.bf16.mxu0 %v2359
    %3392 = vmatpush1.bf16.msra.mxu0 %v2358
    %3393 = vmatprep.subr.bf16.mxu0 %v2361
    %3394 = vmatpush1.bf16.msra.mxu0 %v2360
    %3395 = vmatprep.subr.bf16.mxu0 %v2363
    %3396 = vmatpush1.bf16.msra.mxu0 %v2362
    %3397 = vmatprep.subr.bf16.mxu0 %v2365
    %3398 = vmatpush1.bf16.msra.mxu0 %v2364
    %3399 = vmatprep.subr.bf16.mxu0 %v2367
    %3400 = vmatpush1.bf16.msra.mxu0 %v2366
    %3401 = vmatprep.subr.bf16.mxu0 %v2369
    %3402 = vmatpush1.bf16.msra.mxu0 %v2368
    %3403 = vmatprep.subr.bf16.mxu0 %v2371
    %3404 = vmatpush1.bf16.msra.mxu0 %v2370
    %3405 = vmatprep.subr.bf16.mxu0 %v2373
    %3406 = vmatpush1.bf16.msra.mxu0 %v2372
    %3407 = vmatprep.subr.bf16.mxu0 %v2375
    %3408 = vmatpush1.bf16.msra.mxu0 %v2374
    %3409 = vmatprep.subr.bf16.mxu0 %v2377
    %3410 = vmatpush1.bf16.msra.mxu0 %v2376
    %3411 = vmatprep.subr.bf16.mxu0 %v2379
    %3412 = vmatpush1.bf16.msra.mxu0 %v2378
    %3413 = vmatprep.subr.bf16.mxu0 %v2381
    %3414 = vmatpush1.bf16.msra.mxu0 %v2380
    %3415 = vmatprep.mubr.bf16.mxu0 %v601
    %3416 = vmatmul.mubr.bf16.gmra.mrb[0].mxu0 %v599
    %v3417 = vpop.f32.mrb[0].mxu0
    %v3418 = vadd.f32 %v3377, %v3417
    %v3419 = vpop.f32.mrb[0].mxu0
    %v3420 = vadd.f32 %v3379, %v3419
    %v3421 = vpop.f32.mrb[0].mxu0
    %v3422 = vpop.f32.mrb[0].mxu0
    %3423 = vdwg.mxu0
    %3424 = vmatprep.subr.bf16.mxu0 %v2383
    %3425 = vmatpush1.bf16.msra.mxu0 %v2382
    %3426 = vmatprep.subr.bf16.mxu0 %v2385
    %3427 = vmatpush1.bf16.msra.mxu0 %v2384
    %3428 = vmatprep.subr.bf16.mxu0 %v2387
    %3429 = vmatpush1.bf16.msra.mxu0 %v2386
    %3430 = vmatprep.subr.bf16.mxu0 %v2389
    %3431 = vmatpush1.bf16.msra.mxu0 %v2388
    %3432 = vmatprep.subr.bf16.mxu0 %v2391
    %3433 = vmatpush1.bf16.msra.mxu0 %v2390
    %3434 = vmatprep.subr.bf16.mxu0 %v2393
    %3435 = vmatpush1.bf16.msra.mxu0 %v2392
    %3436 = vmatprep.subr.bf16.mxu0 %v2395
    %3437 = vmatpush1.bf16.msra.mxu0 %v2394
    %3438 = vmatprep.subr.bf16.mxu0 %v2397
    %3439 = vmatpush1.bf16.msra.mxu0 %v2396
    %3440 = vmatprep.subr.bf16.mxu0 %v2399
    %3441 = vmatpush1.bf16.msra.mxu0 %v2398
    %3442 = vmatprep.subr.bf16.mxu0 %v2401
    %3443 = vmatpush1.bf16.msra.mxu0 %v2400
    %3444 = vmatprep.subr.bf16.mxu0 %v2403
    %3445 = vmatpush1.bf16.msra.mxu0 %v2402
    %3446 = vmatprep.subr.bf16.mxu0 %v2405
    %3447 = vmatpush1.bf16.msra.mxu0 %v2404
    %3448 = vmatprep.subr.bf16.mxu0 %v2407
    %3449 = vmatpush1.bf16.msra.mxu0 %v2406
    %3450 = vmatprep.subr.bf16.mxu0 %v2409
    %3451 = vmatpush1.bf16.msra.mxu0 %v2408
    %3452 = vmatprep.subr.bf16.mxu0 %v2411
    %3453 = vmatpush1.bf16.msra.mxu0 %v2410
    %3454 = vmatprep.subr.bf16.mxu0 %v2413
    %3455 = vmatpush1.bf16.msra.mxu0 %v2412
    %3456 = vmatprep.mubr.bf16.mxu0 %v598
    %3457 = vmatmul.mubr.bf16.gmra.mrb[0].mxu0 %v584
    %v3458 = vpop.f32.mrb[0].mxu0
    %v3459 = vadd.f32 %v3418, %v3458
    %v3460 = vpop.f32.mrb[0].mxu0
    %v3461 = vadd.f32 %v3420, %v3460
    %v3462 = vpop.f32.mrb[0].mxu0
    %v3463 = vpop.f32.mrb[0].mxu0
    %3464 = vdwg.mxu0
    %3465 = vmatprep.subr.bf16.mxu0 %v2415
    %3466 = vmatpush1.bf16.msra.mxu0 %v2414
    %3467 = vmatprep.subr.bf16.mxu0 %v2417
    %3468 = vmatpush1.bf16.msra.mxu0 %v2416
    %3469 = vmatprep.subr.bf16.mxu0 %v2419
    %3470 = vmatpush1.bf16.msra.mxu0 %v2418
    %3471 = vmatprep.subr.bf16.mxu0 %v2421
    %3472 = vmatpush1.bf16.msra.mxu0 %v2420
    %3473 = vmatprep.subr.bf16.mxu0 %v2423
    %3474 = vmatpush1.bf16.msra.mxu0 %v2422
    %3475 = vmatprep.subr.bf16.mxu0 %v2425
    %3476 = vmatpush1.bf16.msra.mxu0 %v2424
    %3477 = vmatprep.subr.bf16.mxu0 %v2427
    %3478 = vmatpush1.bf16.msra.mxu0 %v2426
    %3479 = vmatprep.subr.bf16.mxu0 %v2429
    %3480 = vmatpush1.bf16.msra.mxu0 %v2428
    %3481 = vmatprep.subr.bf16.mxu0 %v2431
    %3482 = vmatpush1.bf16.msra.mxu0 %v2430
    %3483 = vmatprep.subr.bf16.mxu0 %v2433
    %3484 = vmatpush1.bf16.msra.mxu0 %v2432
    %3485 = vmatprep.subr.bf16.mxu0 %v2435
    %3486 = vmatpush1.bf16.msra.mxu0 %v2434
    %3487 = vmatprep.subr.bf16.mxu0 %v2437
    %3488 = vmatpush1.bf16.msra.mxu0 %v2436
    %3489 = vmatprep.subr.bf16.mxu0 %v2439
    %3490 = vmatpush1.bf16.msra.mxu0 %v2438
    %3491 = vmatprep.subr.bf16.mxu0 %v2441
    %3492 = vmatpush1.bf16.msra.mxu0 %v2440
    %3493 = vmatprep.subr.bf16.mxu0 %v2443
    %3494 = vmatpush1.bf16.msra.mxu0 %v2442
    %3495 = vmatprep.subr.bf16.mxu0 %v2445
    %3496 = vmatpush1.bf16.msra.mxu0 %v2444
    %3497 = vmatprep.mubr.bf16.mxu0 %v602
    %3498 = vmatmul.mubr.bf16.gmra.mrb[0].mxu0 %v600
    %v3499 = vpop.f32.mrb[0].mxu0
    %v3500 = vadd.f32 %v3459, %v3499
    %v3501 = vpop.f32.mrb[0].mxu0
    %v3502 = vadd.f32 %v3461, %v3501
    %v3503 = vpop.f32.mrb[0].mxu0
    %v3504 = vpop.f32.mrb[0].mxu0
    %3505 = vdwg.mxu0
    %3506 = vmatprep.subr.bf16.mxu0 %v2447
    %3507 = vmatpush1.bf16.msra.mxu0 %v2446
    %3508 = vmatprep.subr.bf16.mxu0 %v2449
    %3509 = vmatpush1.bf16.msra.mxu0 %v2448
    %3510 = vmatprep.subr.bf16.mxu0 %v2451
    %3511 = vmatpush1.bf16.msra.mxu0 %v2450
    %3512 = vmatprep.subr.bf16.mxu0 %v2453
    %3513 = vmatpush1.bf16.msra.mxu0 %v2452
    %3514 = vmatprep.subr.bf16.mxu0 %v2455
    %3515 = vmatpush1.bf16.msra.mxu0 %v2454
    %3516 = vmatprep.subr.bf16.mxu0 %v2457
    %3517 = vmatpush1.bf16.msra.mxu0 %v2456
    %3518 = vmatprep.subr.bf16.mxu0 %v2459
    %3519 = vmatpush1.bf16.msra.mxu0 %v2458
    %3520 = vmatprep.subr.bf16.mxu0 %v2461
    %3521 = vmatpush1.bf16.msra.mxu0 %v2460
    %3522 = vmatprep.subr.bf16.mxu0 %v2463
    %3523 = vmatpush1.bf16.msra.mxu0 %v2462
    %3524 = vmatprep.subr.bf16.mxu0 %v2465
    %3525 = vmatpush1.bf16.msra.mxu0 %v2464
    %3526 = vmatprep.subr.bf16.mxu0 %v2467
    %3527 = vmatpush1.bf16.msra.mxu0 %v2466
    %3528 = vmatprep.subr.bf16.mxu0 %v2469
    %3529 = vmatpush1.bf16.msra.mxu0 %v2468
    %3530 = vmatprep.subr.bf16.mxu0 %v2471
    %3531 = vmatpush1.bf16.msra.mxu0 %v2470
    %3532 = vmatprep.subr.bf16.mxu0 %v2473
    %3533 = vmatpush1.bf16.msra.mxu0 %v2472
    %3534 = vmatprep.subr.bf16.mxu0 %v2475
    %3535 = vmatpush1.bf16.msra.mxu0 %v2474
    %3536 = vmatprep.subr.bf16.mxu0 %v2477
    %3537 = vmatpush1.bf16.msra.mxu0 %v2476
    %3538 = vmatprep.mubr.bf16.mxu0 %v640
    %3539 = vmatmul.mubr.bf16.gmra.mrb[0].mxu0 %v626
    %v3540 = vpop.f32.mrb[0].mxu0
    %v3541 = vadd.f32 %v3500, %v3540
    %v3542 = vpop.f32.mrb[0].mxu0
    %v3543 = vadd.f32 %v3502, %v3542
    %v3544 = vpop.f32.mrb[0].mxu0
    %v3545 = vpop.f32.mrb[0].mxu0
    %3546 = vdwg.mxu0
    %3547 = vmatprep.subr.bf16.mxu0 %v2479
    %3548 = vmatpush1.bf16.msra.mxu0 %v2478
    %3549 = vmatprep.subr.bf16.mxu0 %v2481
    %3550 = vmatpush1.bf16.msra.mxu0 %v2480
    %3551 = vmatprep.subr.bf16.mxu0 %v2483
    %3552 = vmatpush1.bf16.msra.mxu0 %v2482
    %3553 = vmatprep.subr.bf16.mxu0 %v2485
    %3554 = vmatpush1.bf16.msra.mxu0 %v2484
    %3555 = vmatprep.subr.bf16.mxu0 %v2487
    %3556 = vmatpush1.bf16.msra.mxu0 %v2486
    %3557 = vmatprep.subr.bf16.mxu0 %v2489
    %3558 = vmatpush1.bf16.msra.mxu0 %v2488
    %3559 = vmatprep.subr.bf16.mxu0 %v2491
    %3560 = vmatpush1.bf16.msra.mxu0 %v2490
    %3561 = vmatprep.subr.bf16.mxu0 %v2493
    %3562 = vmatpush1.bf16.msra.mxu0 %v2492
    %3563 = vmatprep.subr.bf16.mxu0 %v2495
    %3564 = vmatpush1.bf16.msra.mxu0 %v2494
    %3565 = vmatprep.subr.bf16.mxu0 %v2497
    %3566 = vmatpush1.bf16.msra.mxu0 %v2496
    %3567 = vmatprep.subr.bf16.mxu0 %v2499
    %3568 = vmatpush1.bf16.msra.mxu0 %v2498
    %3569 = vmatprep.subr.bf16.mxu0 %v2501
    %3570 = vmatpush1.bf16.msra.mxu0 %v2500
    %3571 = vmatprep.subr.bf16.mxu0 %v2503
    %3572 = vmatpush1.bf16.msra.mxu0 %v2502
    %3573 = vmatprep.subr.bf16.mxu0 %v2505
    %3574 = vmatpush1.bf16.msra.mxu0 %v2504
    %3575 = vmatprep.subr.bf16.mxu0 %v2507
    %3576 = vmatpush1.bf16.msra.mxu0 %v2506
    %3577 = vmatprep.subr.bf16.mxu0 %v2509
    %3578 = vmatpush1.bf16.msra.mxu0 %v2508
    %3579 = vmatprep.mubr.bf16.mxu0 %v650
    %3580 = vmatmul.mubr.bf16.gmra.mrb[0].mxu0 %v648
    %v3581 = vpop.f32.mrb[0].mxu0
    %v3582 = vadd.f32 %v3541, %v3581
    %v3583 = vpop.f32.mrb[0].mxu0
    %v3584 = vadd.f32 %v3543, %v3583
    %v3585 = vpop.f32.mrb[0].mxu0
    %v3586 = vpop.f32.mrb[0].mxu0
    %3587 = vdwg.mxu0
    %3588 = vmatprep.subr.bf16.mxu0 %v2511
    %3589 = vmatpush1.bf16.msra.mxu0 %v2510
    %3590 = vmatprep.subr.bf16.mxu0 %v2513
    %3591 = vmatpush1.bf16.msra.mxu0 %v2512
    %3592 = vmatprep.subr.bf16.mxu0 %v2515
    %3593 = vmatpush1.bf16.msra.mxu0 %v2514
    %3594 = vmatprep.subr.bf16.mxu0 %v2517
    %3595 = vmatpush1.bf16.msra.mxu0 %v2516
    %3596 = vmatprep.subr.bf16.mxu0 %v2519
    %3597 = vmatpush1.bf16.msra.mxu0 %v2518
    %3598 = vmatprep.subr.bf16.mxu0 %v2521
    %3599 = vmatpush1.bf16.msra.mxu0 %v2520
    %3600 = vmatprep.subr.bf16.mxu0 %v2523
    %3601 = vmatpush1.bf16.msra.mxu0 %v2522
    %3602 = vmatprep.subr.bf16.mxu0 %v2525
    %3603 = vmatpush1.bf16.msra.mxu0 %v2524
    %3604 = vmatprep.subr.bf16.mxu0 %v2527
    %3605 = vmatpush1.bf16.msra.mxu0 %v2526
    %3606 = vmatprep.subr.bf16.mxu0 %v2529
    %3607 = vmatpush1.bf16.msra.mxu0 %v2528
    %3608 = vmatprep.subr.bf16.mxu0 %v2531
    %3609 = vmatpush1.bf16.msra.mxu0 %v2530
    %3610 = vmatprep.subr.bf16.mxu0 %v2533
    %3611 = vmatpush1.bf16.msra.mxu0 %v2532
    %3612 = vmatprep.subr.bf16.mxu0 %v2535
    %3613 = vmatpush1.bf16.msra.mxu0 %v2534
    %3614 = vmatprep.subr.bf16.mxu0 %v2537
    %3615 = vmatpush1.bf16.msra.mxu0 %v2536
    %3616 = vmatprep.subr.bf16.mxu0 %v2539
    %3617 = vmatpush1.bf16.msra.mxu0 %v2538
    %3618 = vmatprep.subr.bf16.mxu0 %v2541
    %3619 = vmatpush1.bf16.msra.mxu0 %v2540
    %3620 = vmatprep.mubr.bf16.mxu0 %v647
    %3621 = vmatmul.mubr.bf16.gmra.mrb[0].mxu0 %v633
    %v3622 = vpop.f32.mrb[0].mxu0
    %v3623 = vadd.f32 %v3582, %v3622
    %v3624 = vpop.f32.mrb[0].mxu0
    %v3625 = vadd.f32 %v3584, %v3624
    %v3626 = vpop.f32.mrb[0].mxu0
    %v3627 = vpop.f32.mrb[0].mxu0
    %3628 = vdwg.mxu0
    %3629 = vmatprep.subr.bf16.mxu0 %v2543
    %3630 = vmatpush1.bf16.msra.mxu0 %v2542
    %3631 = vmatprep.subr.bf16.mxu0 %v2545
    %3632 = vmatpush1.bf16.msra.mxu0 %v2544
    %3633 = vmatprep.subr.bf16.mxu0 %v2547
    %3634 = vmatpush1.bf16.msra.mxu0 %v2546
    %3635 = vmatprep.subr.bf16.mxu0 %v2549
    %3636 = vmatpush1.bf16.msra.mxu0 %v2548
    %3637 = vmatprep.subr.bf16.mxu0 %v2551
    %3638 = vmatpush1.bf16.msra.mxu0 %v2550
    %3639 = vmatprep.subr.bf16.mxu0 %v2553
    %3640 = vmatpush1.bf16.msra.mxu0 %v2552
    %3641 = vmatprep.subr.bf16.mxu0 %v2555
    %3642 = vmatpush1.bf16.msra.mxu0 %v2554
    %3643 = vmatprep.subr.bf16.mxu0 %v2557
    %3644 = vmatpush1.bf16.msra.mxu0 %v2556
    %3645 = vmatprep.subr.bf16.mxu0 %v2559
    %3646 = vmatpush1.bf16.msra.mxu0 %v2558
    %3647 = vmatprep.subr.bf16.mxu0 %v2561
    %3648 = vmatpush1.bf16.msra.mxu0 %v2560
    %3649 = vmatprep.subr.bf16.mxu0 %v2563
    %3650 = vmatpush1.bf16.msra.mxu0 %v2562
    %3651 = vmatprep.subr.bf16.mxu0 %v2565
    %3652 = vmatpush1.bf16.msra.mxu0 %v2564
    %3653 = vmatprep.subr.bf16.mxu0 %v2567
    %3654 = vmatpush1.bf16.msra.mxu0 %v2566
    %3655 = vmatprep.subr.bf16.mxu0 %v2569
    %3656 = vmatpush1.bf16.msra.mxu0 %v2568
    %3657 = vmatprep.subr.bf16.mxu0 %v2571
    %3658 = vmatpush1.bf16.msra.mxu0 %v2570
    %3659 = vmatprep.subr.bf16.mxu0 %v2573
    %3660 = vmatpush1.bf16.msra.mxu0 %v2572
    %3661 = vmatprep.mubr.bf16.mxu0 %v651
    %3662 = vmatmul.mubr.bf16.gmra.mrb[0].mxu0 %v649
    %v3663 = vpop.f32.mrb[0].mxu0
    %v3664 = vadd.f32 %v3623, %v3663
    %v3665 = vpop.f32.mrb[0].mxu0
    %v3666 = vadd.f32 %v3625, %v3665
    %v3667 = vpop.f32.mrb[0].mxu0
    %v3668 = vpop.f32.mrb[0].mxu0
    %3669 = vdwg.mxu0
    %3670 = vmatprep.subr.bf16.mxu0 %v2575
    %3671 = vmatpush1.bf16.msra.mxu0 %v2574
    %3672 = vmatprep.subr.bf16.mxu0 %v2577
    %3673 = vmatpush1.bf16.msra.mxu0 %v2576
    %3674 = vmatprep.subr.bf16.mxu0 %v2579
    %3675 = vmatpush1.bf16.msra.mxu0 %v2578
    %3676 = vmatprep.subr.bf16.mxu0 %v2581
    %3677 = vmatpush1.bf16.msra.mxu0 %v2580
    %3678 = vmatprep.subr.bf16.mxu0 %v2583
    %3679 = vmatpush1.bf16.msra.mxu0 %v2582
    %3680 = vmatprep.subr.bf16.mxu0 %v2585
    %3681 = vmatpush1.bf16.msra.mxu0 %v2584
    %3682 = vmatprep.subr.bf16.mxu0 %v2587
    %3683 = vmatpush1.bf16.msra.mxu0 %v2586
    %3684 = vmatprep.subr.bf16.mxu0 %v2589
    %3685 = vmatpush1.bf16.msra.mxu0 %v2588
    %3686 = vmatprep.subr.bf16.mxu0 %v2591
    %3687 = vmatpush1.bf16.msra.mxu0 %v2590
    %3688 = vmatprep.subr.bf16.mxu0 %v2593
    %3689 = vmatpush1.bf16.msra.mxu0 %v2592
    %3690 = vmatprep.subr.bf16.mxu0 %v2595
    %3691 = vmatpush1.bf16.msra.mxu0 %v2594
    %3692 = vmatprep.subr.bf16.mxu0 %v2597
    %3693 = vmatpush1.bf16.msra.mxu0 %v2596
    %3694 = vmatprep.subr.bf16.mxu0 %v2599
    %3695 = vmatpush1.bf16.msra.mxu0 %v2598
    %3696 = vmatprep.subr.bf16.mxu0 %v2601
    %3697 = vmatpush1.bf16.msra.mxu0 %v2600
    %3698 = vmatprep.subr.bf16.mxu0 %v2603
    %3699 = vmatpush1.bf16.msra.mxu0 %v2602
    %3700 = vmatprep.subr.bf16.mxu0 %v2605
    %3701 = vmatpush1.bf16.msra.mxu0 %v2604
    %3702 = vmatprep.mubr.bf16.mxu0 %v689
    %3703 = vmatmul.mubr.bf16.gmra.mrb[0].mxu0 %v675
    %v3704 = vpop.f32.mrb[0].mxu0
    %v3705 = vadd.f32 %v3664, %v3704
    %v3706 = vpop.f32.mrb[0].mxu0
    %v3707 = vadd.f32 %v3666, %v3706
    %v3708 = vpop.f32.mrb[0].mxu0
    %v3709 = vpop.f32.mrb[0].mxu0
    %3710 = vdwg.mxu0
    %3711 = vmatprep.subr.bf16.mxu0 %v2607
    %3712 = vmatpush1.bf16.msra.mxu0 %v2606
    %3713 = vmatprep.subr.bf16.mxu0 %v2609
    %3714 = vmatpush1.bf16.msra.mxu0 %v2608
    %3715 = vmatprep.subr.bf16.mxu0 %v2611
    %3716 = vmatpush1.bf16.msra.mxu0 %v2610
    %3717 = vmatprep.subr.bf16.mxu0 %v2613
    %3718 = vmatpush1.bf16.msra.mxu0 %v2612
    %3719 = vmatprep.subr.bf16.mxu0 %v2615
    %3720 = vmatpush1.bf16.msra.mxu0 %v2614
    %3721 = vmatprep.subr.bf16.mxu0 %v2617
    %3722 = vmatpush1.bf16.msra.mxu0 %v2616
    %3723 = vmatprep.subr.bf16.mxu0 %v2619
    %3724 = vmatpush1.bf16.msra.mxu0 %v2618
    %3725 = vmatprep.subr.bf16.mxu0 %v2621
    %3726 = vmatpush1.bf16.msra.mxu0 %v2620
    %3727 = vmatprep.subr.bf16.mxu0 %v2623
    %3728 = vmatpush1.bf16.msra.mxu0 %v2622
    %3729 = vmatprep.subr.bf16.mxu0 %v2625
    %3730 = vmatpush1.bf16.msra.mxu0 %v2624
    %3731 = vmatprep.subr.bf16.mxu0 %v2627
    %3732 = vmatpush1.bf16.msra.mxu0 %v2626
    %3733 = vmatprep.subr.bf16.mxu0 %v2629
    %3734 = vmatpush1.bf16.msra.mxu0 %v2628
    %3735 = vmatprep.subr.bf16.mxu0 %v2631
    %3736 = vmatpush1.bf16.msra.mxu0 %v2630
    %3737 = vmatprep.subr.bf16.mxu0 %v2633
    %3738 = vmatpush1.bf16.msra.mxu0 %v2632
    %3739 = vmatprep.subr.bf16.mxu0 %v2635
    %3740 = vmatpush1.bf16.msra.mxu0 %v2634
    %3741 = vmatprep.subr.bf16.mxu0 %v2637
    %3742 = vmatpush1.bf16.msra.mxu0 %v2636
    %3743 = vmatprep.mubr.bf16.mxu0 %v699
    %3744 = vmatmul.mubr.bf16.gmra.mrb[0].mxu0 %v697
    %v3745 = vpop.f32.mrb[0].mxu0
    %v3746 = vadd.f32 %v3705, %v3745
    %v3747 = vpop.f32.mrb[0].mxu0
    %v3748 = vadd.f32 %v3707, %v3747
    %v3749 = vpop.f32.mrb[0].mxu0
    %v3750 = vpop.f32.mrb[0].mxu0
    %3751 = vdwg.mxu0
    %3752 = vmatprep.subr.bf16.mxu0 %v2639
    %3753 = vmatpush1.bf16.msra.mxu0 %v2638
    %3754 = vmatprep.subr.bf16.mxu0 %v2641
    %3755 = vmatpush1.bf16.msra.mxu0 %v2640
    %3756 = vmatprep.subr.bf16.mxu0 %v2643
    %3757 = vmatpush1.bf16.msra.mxu0 %v2642
    %3758 = vmatprep.subr.bf16.mxu0 %v2645
    %3759 = vmatpush1.bf16.msra.mxu0 %v2644
    %3760 = vmatprep.subr.bf16.mxu0 %v2647
    %3761 = vmatpush1.bf16.msra.mxu0 %v2646
    %3762 = vmatprep.subr.bf16.mxu0 %v2649
    %3763 = vmatpush1.bf16.msra.mxu0 %v2648
    %3764 = vmatprep.subr.bf16.mxu0 %v2651
    %3765 = vmatpush1.bf16.msra.mxu0 %v2650
    %3766 = vmatprep.subr.bf16.mxu0 %v2653
    %3767 = vmatpush1.bf16.msra.mxu0 %v2652
    %3768 = vmatprep.subr.bf16.mxu0 %v2655
    %3769 = vmatpush1.bf16.msra.mxu0 %v2654
    %3770 = vmatprep.subr.bf16.mxu0 %v2657
    %3771 = vmatpush1.bf16.msra.mxu0 %v2656
    %3772 = vmatprep.subr.bf16.mxu0 %v2659
    %3773 = vmatpush1.bf16.msra.mxu0 %v2658
    %3774 = vmatprep.subr.bf16.mxu0 %v2661
    %3775 = vmatpush1.bf16.msra.mxu0 %v2660
    %3776 = vmatprep.subr.bf16.mxu0 %v2663
    %3777 = vmatpush1.bf16.msra.mxu0 %v2662
    %3778 = vmatprep.subr.bf16.mxu0 %v2665
    %3779 = vmatpush1.bf16.msra.mxu0 %v2664
    %3780 = vmatprep.subr.bf16.mxu0 %v2667
    %3781 = vmatpush1.bf16.msra.mxu0 %v2666
    %3782 = vmatprep.subr.bf16.mxu0 %v2669
    %3783 = vmatpush1.bf16.msra.mxu0 %v2668
    %3784 = vmatprep.mubr.bf16.mxu0 %v696
    %3785 = vmatmul.mubr.bf16.gmra.mrb[0].mxu0 %v682
    %v3786 = vpop.f32.mrb[0].mxu0
    %v3787 = vadd.f32 %v3746, %v3786
    %v3788 = vpop.f32.mrb[0].mxu0
    %v3789 = vadd.f32 %v3748, %v3788
    %v3790 = vpop.f32.mrb[0].mxu0
    %v3791 = vpop.f32.mrb[0].mxu0
    %3792 = vdwg.mxu0
    %3793 = vmatprep.subr.bf16.mxu0 %v2671
    %3794 = vmatpush1.bf16.msra.mxu0 %v2670
    %3795 = vmatprep.subr.bf16.mxu0 %v2673
    %3796 = vmatpush1.bf16.msra.mxu0 %v2672
    %3797 = vmatprep.subr.bf16.mxu0 %v2675
    %3798 = vmatpush1.bf16.msra.mxu0 %v2674
    %3799 = vmatprep.subr.bf16.mxu0 %v2677
    %3800 = vmatpush1.bf16.msra.mxu0 %v2676
    %3801 = vmatprep.subr.bf16.mxu0 %v2679
    %3802 = vmatpush1.bf16.msra.mxu0 %v2678
    %3803 = vmatprep.subr.bf16.mxu0 %v2681
    %3804 = vmatpush1.bf16.msra.mxu0 %v2680
    %3805 = vmatprep.subr.bf16.mxu0 %v2683
    %3806 = vmatpush1.bf16.msra.mxu0 %v2682
    %3807 = vmatprep.subr.bf16.mxu0 %v2685
    %3808 = vmatpush1.bf16.msra.mxu0 %v2684
    %3809 = vmatprep.subr.bf16.mxu0 %v2687
    %3810 = vmatpush1.bf16.msra.mxu0 %v2686
    %3811 = vmatprep.subr.bf16.mxu0 %v2689
    %3812 = vmatpush1.bf16.msra.mxu0 %v2688
    %3813 = vmatprep.subr.bf16.mxu0 %v2691
    %3814 = vmatpush1.bf16.msra.mxu0 %v2690
    %3815 = vmatprep.subr.bf16.mxu0 %v2693
    %3816 = vmatpush1.bf16.msra.mxu0 %v2692
    %3817 = vmatprep.subr.bf16.mxu0 %v2695
    %3818 = vmatpush1.bf16.msra.mxu0 %v2694
    %3819 = vmatprep.subr.bf16.mxu0 %v2697
    %3820 = vmatpush1.bf16.msra.mxu0 %v2696
    %3821 = vmatprep.subr.bf16.mxu0 %v2699
    %3822 = vmatpush1.bf16.msra.mxu0 %v2698
    %3823 = vmatprep.subr.bf16.mxu0 %v2701
    %3824 = vmatpush1.bf16.msra.mxu0 %v2700
    %3825 = vmatprep.mubr.bf16.mxu0 %v700
    %3826 = vmatmul.mubr.bf16.gmra.mrb[0].mxu0 %v698
    %v3827 = vpop.f32.mrb[0].mxu0
    %v3828 = vadd.f32 %v3787, %v3827
    %v3829 = vpop.f32.mrb[0].mxu0
    %v3830 = vadd.f32 %v3789, %v3829
    %v3831 = vpop.f32.mrb[0].mxu0
    %v3832 = vpop.f32.mrb[0].mxu0
    %3833 = vdwg.mxu0
    %3834 = vmatprep.subr.bf16.mxu0 %v2703
    %3835 = vmatpush1.bf16.msra.mxu0 %v2702
    %3836 = vmatprep.subr.bf16.mxu0 %v2705
    %3837 = vmatpush1.bf16.msra.mxu0 %v2704
    %3838 = vmatprep.subr.bf16.mxu0 %v2707
    %3839 = vmatpush1.bf16.msra.mxu0 %v2706
    %3840 = vmatprep.subr.bf16.mxu0 %v2709
    %3841 = vmatpush1.bf16.msra.mxu0 %v2708
    %3842 = vmatprep.subr.bf16.mxu0 %v2711
    %3843 = vmatpush1.bf16.msra.mxu0 %v2710
    %3844 = vmatprep.subr.bf16.mxu0 %v2713
    %3845 = vmatpush1.bf16.msra.mxu0 %v2712
    %3846 = vmatprep.subr.bf16.mxu0 %v2715
    %3847 = vmatpush1.bf16.msra.mxu0 %v2714
    %3848 = vmatprep.subr.bf16.mxu0 %v2717
    %3849 = vmatpush1.bf16.msra.mxu0 %v2716
    %3850 = vmatprep.subr.bf16.mxu0 %v2719
    %3851 = vmatpush1.bf16.msra.mxu0 %v2718
    %3852 = vmatprep.subr.bf16.mxu0 %v2721
    %3853 = vmatpush1.bf16.msra.mxu0 %v2720
    %3854 = vmatprep.subr.bf16.mxu0 %v2723
    %3855 = vmatpush1.bf16.msra.mxu0 %v2722
    %3856 = vmatprep.subr.bf16.mxu0 %v2725
    %3857 = vmatpush1.bf16.msra.mxu0 %v2724
    %3858 = vmatprep.subr.bf16.mxu0 %v2727
    %3859 = vmatpush1.bf16.msra.mxu0 %v2726
    %3860 = vmatprep.subr.bf16.mxu0 %v2729
    %3861 = vmatpush1.bf16.msra.mxu0 %v2728
    %3862 = vmatprep.subr.bf16.mxu0 %v2731
    %3863 = vmatpush1.bf16.msra.mxu0 %v2730
    %3864 = vmatprep.subr.bf16.mxu0 %v2733
    %3865 = vmatpush1.bf16.msra.mxu0 %v2732
    %3866 = vmatprep.mubr.bf16.mxu0 %v738
    %3867 = vmatmul.mubr.bf16.gmra.mrb[0].mxu0 %v724
    %v3868 = vpop.f32.mrb[0].mxu0
    %v3869 = vadd.f32 %v3828, %v3868
    %v3870 = vpop.f32.mrb[0].mxu0
    %v3871 = vadd.f32 %v3830, %v3870
    %v3872 = vpop.f32.mrb[0].mxu0
    %v3873 = vpop.f32.mrb[0].mxu0
    %3874 = vdwg.mxu0
    %3875 = vmatprep.subr.bf16.mxu0 %v2735
    %3876 = vmatpush1.bf16.msra.mxu0 %v2734
    %3877 = vmatprep.subr.bf16.mxu0 %v2737
    %3878 = vmatpush1.bf16.msra.mxu0 %v2736
    %3879 = vmatprep.subr.bf16.mxu0 %v2739
    %3880 = vmatpush1.bf16.msra.mxu0 %v2738
    %3881 = vmatprep.subr.bf16.mxu0 %v2741
    %3882 = vmatpush1.bf16.msra.mxu0 %v2740
    %3883 = vmatprep.subr.bf16.mxu0 %v2743
    %3884 = vmatpush1.bf16.msra.mxu0 %v2742
    %3885 = vmatprep.subr.bf16.mxu0 %v2745
    %3886 = vmatpush1.bf16.msra.mxu0 %v2744
    %3887 = vmatprep.subr.bf16.mxu0 %v2747
    %3888 = vmatpush1.bf16.msra.mxu0 %v2746
    %3889 = vmatprep.subr.bf16.mxu0 %v2749
    %3890 = vmatpush1.bf16.msra.mxu0 %v2748
    %3891 = vmatprep.subr.bf16.mxu0 %v2751
    %3892 = vmatpush1.bf16.msra.mxu0 %v2750
    %3893 = vmatprep.subr.bf16.mxu0 %v2753
    %3894 = vmatpush1.bf16.msra.mxu0 %v2752
    %3895 = vmatprep.subr.bf16.mxu0 %v2755
    %3896 = vmatpush1.bf16.msra.mxu0 %v2754
    %3897 = vmatprep.subr.bf16.mxu0 %v2757
    %3898 = vmatpush1.bf16.msra.mxu0 %v2756
    %3899 = vmatprep.subr.bf16.mxu0 %v2759
    %3900 = vmatpush1.bf16.msra.mxu0 %v2758
    %3901 = vmatprep.subr.bf16.mxu0 %v2761
    %3902 = vmatpush1.bf16.msra.mxu0 %v2760
    %3903 = vmatprep.subr.bf16.mxu0 %v2763
    %3904 = vmatpush1.bf16.msra.mxu0 %v2762
    %3905 = vmatprep.subr.bf16.mxu0 %v2765
    %3906 = vmatpush1.bf16.msra.mxu0 %v2764
    %3907 = vmatprep.mubr.bf16.mxu0 %v748
    %3908 = vmatmul.mubr.bf16.gmra.mrb[0].mxu0 %v746
    %v3909 = vpop.f32.mrb[0].mxu0
    %v3910 = vadd.f32 %v3869, %v3909
    %v3911 = vpop.f32.mrb[0].mxu0
    %v3912 = vadd.f32 %v3871, %v3911
    %v3913 = vpop.f32.mrb[0].mxu0
    %v3914 = vpop.f32.mrb[0].mxu0
    %3915 = vdwg.mxu0
    %3916 = vmatprep.subr.bf16.mxu0 %v2767
    %3917 = vmatpush1.bf16.msra.mxu0 %v2766
    %3918 = vmatprep.subr.bf16.mxu0 %v2769
    %3919 = vmatpush1.bf16.msra.mxu0 %v2768
    %3920 = vmatprep.subr.bf16.mxu0 %v2771
    %3921 = vmatpush1.bf16.msra.mxu0 %v2770
    %3922 = vmatprep.subr.bf16.mxu0 %v2773
    %3923 = vmatpush1.bf16.msra.mxu0 %v2772
    %3924 = vmatprep.subr.bf16.mxu0 %v2775
    %3925 = vmatpush1.bf16.msra.mxu0 %v2774
    %3926 = vmatprep.subr.bf16.mxu0 %v2777
    %3927 = vmatpush1.bf16.msra.mxu0 %v2776
    %3928 = vmatprep.subr.bf16.mxu0 %v2779
    %3929 = vmatpush1.bf16.msra.mxu0 %v2778
    %3930 = vmatprep.subr.bf16.mxu0 %v2781
    %3931 = vmatpush1.bf16.msra.mxu0 %v2780
    %3932 = vmatprep.subr.bf16.mxu0 %v2783
    %3933 = vmatpush1.bf16.msra.mxu0 %v2782
    %3934 = vmatprep.subr.bf16.mxu0 %v2785
    %3935 = vmatpush1.bf16.msra.mxu0 %v2784
    %3936 = vmatprep.subr.bf16.mxu0 %v2787
    %3937 = vmatpush1.bf16.msra.mxu0 %v2786
    %3938 = vmatprep.subr.bf16.mxu0 %v2789
    %3939 = vmatpush1.bf16.msra.mxu0 %v2788
    %3940 = vmatprep.subr.bf16.mxu0 %v2791
    %3941 = vmatpush1.bf16.msra.mxu0 %v2790
    %3942 = vmatprep.subr.bf16.mxu0 %v2793
    %3943 = vmatpush1.bf16.msra.mxu0 %v2792
    %3944 = vmatprep.subr.bf16.mxu0 %v2795
    %3945 = vmatpush1.bf16.msra.mxu0 %v2794
    %3946 = vmatprep.subr.bf16.mxu0 %v2797
    %3947 = vmatpush1.bf16.msra.mxu0 %v2796
    %3948 = vmatprep.mubr.bf16.mxu0 %v745
    %3949 = vmatmul.mubr.bf16.gmra.mrb[0].mxu0 %v731
    %v3950 = vpop.f32.mrb[0].mxu0
    %v3951 = vadd.f32 %v3910, %v3950
    %v3952 = vpop.f32.mrb[0].mxu0
    %v3953 = vadd.f32 %v3912, %v3952
    %v3954 = vpop.f32.mrb[0].mxu0
    %v3955 = vpop.f32.mrb[0].mxu0
    %3956 = vdwg.mxu0
    %3957 = vmatprep.subr.bf16.mxu0 %v2799
    %3958 = vmatpush1.bf16.msra.mxu0 %v2798
    %3959 = vmatprep.subr.bf16.mxu0 %v2801
    %3960 = vmatpush1.bf16.msra.mxu0 %v2800
    %3961 = vmatprep.subr.bf16.mxu0 %v2803
    %3962 = vmatpush1.bf16.msra.mxu0 %v2802
    %3963 = vmatprep.subr.bf16.mxu0 %v2805
    %3964 = vmatpush1.bf16.msra.mxu0 %v2804
    %3965 = vmatprep.subr.bf16.mxu0 %v2807
    %3966 = vmatpush1.bf16.msra.mxu0 %v2806
    %3967 = vmatprep.subr.bf16.mxu0 %v2809
    %3968 = vmatpush1.bf16.msra.mxu0 %v2808
    %3969 = vmatprep.subr.bf16.mxu0 %v2811
    %3970 = vmatpush1.bf16.msra.mxu0 %v2810
    %3971 = vmatprep.subr.bf16.mxu0 %v2813
    %3972 = vmatpush1.bf16.msra.mxu0 %v2812
    %3973 = vmatprep.subr.bf16.mxu0 %v2815
    %3974 = vmatpush1.bf16.msra.mxu0 %v2814
    %3975 = vmatprep.subr.bf16.mxu0 %v2817
    %3976 = vmatpush1.bf16.msra.mxu0 %v2816
    %3977 = vmatprep.subr.bf16.mxu0 %v2819
    %3978 = vmatpush1.bf16.msra.mxu0 %v2818
    %3979 = vmatprep.subr.bf16.mxu0 %v2821
    %3980 = vmatpush1.bf16.msra.mxu0 %v2820
    %3981 = vmatprep.subr.bf16.mxu0 %v2823
    %3982 = vmatpush1.bf16.msra.mxu0 %v2822
    %3983 = vmatprep.subr.bf16.mxu0 %v2825
    %3984 = vmatpush1.bf16.msra.mxu0 %v2824
    %3985 = vmatprep.subr.bf16.mxu0 %v2827
    %3986 = vmatpush1.bf16.msra.mxu0 %v2826
    %3987 = vmatprep.subr.bf16.mxu0 %v2829
    %3988 = vmatpush1.bf16.msra.mxu0 %v2828
    %3989 = vmatprep.mubr.bf16.mxu0 %v749
    %3990 = vmatmul.mubr.bf16.gmra.mrb[0].mxu0 %v747
    %v3991 = vpop.f32.mrb[0].mxu0
    %v3992 = vadd.f32 %v3951, %v3991
    %v3993 = vpop.f32.mrb[0].mxu0
    %v3994 = vadd.f32 %v3953, %v3993
    %v3995 = vpop.f32.mrb[0].mxu0
    %v3996 = vpop.f32.mrb[0].mxu0
    %3997 = vdwg.mxu0
    %v3998 = vmax.f32 %v3992, 0.0
    %v3999 = vmax.f32 %v3994, 0.0
    %v4000 = vpack.c.bf16 %v3998, %v3998
    %v4001 = vpack.c.bf16 %v3999, %v3999
    %v4002 = vld [vmem:[%s3] sm:$0xf]
    %v4003 = vld [vmem:[%s3 + $0x4] sm:$0xf]
    %v4004 = vld [vmem:[%s3 + $0x8] sm:$0xf]
    %v4005 = vld [vmem:[%s3 + $0xc] sm:$0xf]
    %v4006 = vld [vmem:[%s3 + $0x10] sm:$0xf]
    %v4007 = vld [vmem:[%s3 + $0x14] sm:$0xf]
    %v4008 = vld [vmem:[%s3 + $0x18] sm:$0xf]
    %v4009 = vld [vmem:[%s3 + $0x1c] sm:$0xf]
    %v4010 = vld [vmem:[%s3 + $0x20] sm:$0xf]
    %v4011 = vld [vmem:[%s3 + $0x24] sm:$0xf]
    %v4012 = vld [vmem:[%s3 + $0x28] sm:$0xf]
    %v4013 = vld [vmem:[%s3 + $0x2c] sm:$0xf]
    %v4014 = vld [vmem:[%s3 + $0x30] sm:$0xf]
    %v4015 = vld [vmem:[%s3 + $0x34] sm:$0xf]
    %v4016 = vld [vmem:[%s3 + $0x38] sm:$0xf]
    %v4017 = vld [vmem:[%s3 + $0x3c] sm:$0xf]
    %v4018 = vld [vmem:[%s3 + $0x40] sm:$0xf]
    %v4019 = vld [vmem:[%s3 + $0x44] sm:$0xf]
    %v4020 = vld [vmem:[%s3 + $0x48] sm:$0xf]
    %v4021 = vld [vmem:[%s3 + $0x4c] sm:$0xf]
    %v4022 = vld [vmem:[%s3 + $0x50] sm:$0xf]
    %v4023 = vld [vmem:[%s3 + $0x54] sm:$0xf]
    %v4024 = vld [vmem:[%s3 + $0x58] sm:$0xf]
    %v4025 = vld [vmem:[%s3 + $0x5c] sm:$0xf]
    %v4026 = vld [vmem:[%s3 + $0x60] sm:$0xf]
    %v4027 = vld [vmem:[%s3 + $0x64] sm:$0xf]
    %v4028 = vld [vmem:[%s3 + $0x68] sm:$0xf]
    %v4029 = vld [vmem:[%s3 + $0x6c] sm:$0xf]
    %v4030 = vld [vmem:[%s3 + $0x70] sm:$0xf]
    %v4031 = vld [vmem:[%s3 + $0x74] sm:$0xf]
    %v4032 = vld [vmem:[%s3 + $0x78] sm:$0xf]
    %v4033 = vld [vmem:[%s3 + $0x7c] sm:$0xf]
    %v4034 = vld [vmem:[%s4] sm:$0x1]
    %v4036 = vlaneseq
    %v4037 = vshrl.u32 %v4036, 7
    %v4038 = vsub.s32 0, %v4037
    %v4039 = vrot.slane %v4034, %v4038
    %v4073 = vunpack.c.l.b16 %v4002
    %v4074 = vunpack.c.l.b16 %v4003
    %v4075 = vunpack.c.l.b16 %v4004
    %v4076 = vunpack.c.l.b16 %v4005
    %v4077 = vunpack.c.l.b16 %v4006
    %v4078 = vunpack.c.l.b16 %v4007
    %v4079 = vunpack.c.l.b16 %v4008
    %v4080 = vunpack.c.l.b16 %v4009
    %v4081 = vunpack.c.l.b16 %v4010
    %v4082 = vunpack.c.l.b16 %v4011
    %v4083 = vunpack.c.l.b16 %v4012
    %v4084 = vunpack.c.l.b16 %v4013
    %v4085 = vunpack.c.l.b16 %v4014
    %v4086 = vunpack.c.l.b16 %v4015
    %v4087 = vunpack.c.l.b16 %v4016
    %v4088 = vunpack.c.l.b16 %v4017
    %v4089 = vunpack.c.l.b16 %v4018
    %v4090 = vunpack.c.l.b16 %v4019
    %v4091 = vunpack.c.l.b16 %v4020
    %v4092 = vunpack.c.l.b16 %v4021
    %v4093 = vunpack.c.l.b16 %v4022
    %v4094 = vunpack.c.l.b16 %v4023
    %v4095 = vunpack.c.l.b16 %v4024
    %v4096 = vunpack.c.l.b16 %v4025
    %v4097 = vunpack.c.l.b16 %v4026
    %v4098 = vunpack.c.l.b16 %v4027
    %v4099 = vunpack.c.l.b16 %v4028
    %v4100 = vunpack.c.l.b16 %v4029
    %v4101 = vunpack.c.l.b16 %v4030
    %v4102 = vunpack.c.l.b16 %v4031
    %v4103 = vunpack.c.l.b16 %v4032
    %v4104 = vunpack.c.l.b16 %v4033
    %v4105 = vpack.c.b16 %v4074, %v4073
    %v4106 = vpack.c.b16 %v4076, %v4075
    %v4107 = vpack.c.b16 %v4078, %v4077
    %v4108 = vpack.c.b16 %v4080, %v4079
    %v4109 = vpack.c.b16 %v4082, %v4081
    %v4110 = vpack.c.b16 %v4084, %v4083
    %v4111 = vpack.c.b16 %v4086, %v4085
    %v4112 = vpack.c.b16 %v4088, %v4087
    %v4113 = vpack.c.b16 %v4090, %v4089
    %v4114 = vpack.c.b16 %v4092, %v4091
    %v4115 = vpack.c.b16 %v4094, %v4093
    %v4116 = vpack.c.b16 %v4096, %v4095
    %v4117 = vpack.c.b16 %v4098, %v4097
    %v4118 = vpack.c.b16 %v4100, %v4099
    %v4119 = vpack.c.b16 %v4102, %v4101
    %v4120 = vpack.c.b16 %v4104, %v4103
    %4137 = vmatprep.subr.bf16.mxu0 0
    %4138 = vmatpush1.bf16.msra.mxu0 %v4105
    %4139 = vmatprep.subr.bf16.mxu0 0
    %4140 = vmatpush1.bf16.msra.mxu0 %v4106
    %4141 = vmatprep.subr.bf16.mxu0 0
    %4142 = vmatpush1.bf16.msra.mxu0 %v4107
    %4143 = vmatprep.subr.bf16.mxu0 0
    %4144 = vmatpush1.bf16.msra.mxu0 %v4108
    %4145 = vmatprep.subr.bf16.mxu0 0
    %4146 = vmatpush1.bf16.msra.mxu0 %v4109
    %4147 = vmatprep.subr.bf16.mxu0 0
    %4148 = vmatpush1.bf16.msra.mxu0 %v4110
    %4149 = vmatprep.subr.bf16.mxu0 0
    %4150 = vmatpush1.bf16.msra.mxu0 %v4111
    %4151 = vmatprep.subr.bf16.mxu0 0
    %4152 = vmatpush1.bf16.msra.mxu0 %v4112
    %4153 = vmatprep.subr.bf16.mxu0 0
    %4154 = vmatpush1.bf16.msra.mxu0 %v4113
    %4155 = vmatprep.subr.bf16.mxu0 0
    %4156 = vmatpush1.bf16.msra.mxu0 %v4114
    %4157 = vmatprep.subr.bf16.mxu0 0
    %4158 = vmatpush1.bf16.msra.mxu0 %v4115
    %4159 = vmatprep.subr.bf16.mxu0 0
    %4160 = vmatpush1.bf16.msra.mxu0 %v4116
    %4161 = vmatprep.subr.bf16.mxu0 0
    %4162 = vmatpush1.bf16.msra.mxu0 %v4117
    %4163 = vmatprep.subr.bf16.mxu0 0
    %4164 = vmatpush1.bf16.msra.mxu0 %v4118
    %4165 = vmatprep.subr.bf16.mxu0 0
    %4166 = vmatpush1.bf16.msra.mxu0 %v4119
    %4167 = vmatprep.subr.bf16.mxu0 0
    %4168 = vmatpush1.bf16.msra.mxu0 %v4120
    %4169 = vmatprep.mubr.bf16.mxu0 %v4001
    %4170 = vmatmul.mubr.bf16.gmra.mrb[0].mxu0 %v4000
    %v4171 = vpop.f32.mrb[0].mxu0
    %v4172 = vadd.f32 %v4039, %v4171
    %v4173 = vpop.f32.mrb[0].mxu0
    %v4174 = vpop.f32.mrb[0].mxu0
    %v4175 = vpop.f32.mrb[0].mxu0
    %4176 = vdwg.mxu0
    %4177 = vst [vmem:[#allocation2] sm:$0x3] %v4172
    // Predicated region
    $region22: #{cnn_custom_forward.7} parent=1 // pred_check
      _
    $region23: #{cnn_custom_forward.7} parent=1 // pred_check_branch
      %4179 = sbr.rel (0) target = $region25
    $region24: #{cnn_custom_forward.7} parent=1 // pred_region
      %s4181 = ssub.s32 32, 32
      %4182 = vsyncadd [#allocation3], %s4181
      %s4184 = sshll.u32 [#allocation2], 4
      %s4185 = int_to_ptr.vmem [resolvable:$true] %s4184
      %4187 = dma.vmem_to_hbm [thread:$0]  %s4185, 32, %s5, [#allocation3]
    $region25: #{cnn_custom_forward.7} parent=1 // pred_fallthru
      _
    // Predicated region
    $region26: #{cnn_custom_forward.7} parent=1 // pred_check
      _
    $region27: #{cnn_custom_forward.7} parent=1 // pred_check_branch
      %4189 = sbr.rel (0) target = $region29
    $region28: #{cnn_custom_forward.7} parent=1 // pred_region
      %4190 = dma.done [#allocation3], 32
    $region29: #{cnn_custom_forward.7} parent=1 // pred_fallthru
      _
    %4191 = vsyncpa [#allocation3], 1

</llo_original>
